<compile_context>
chip_gen: v7x
topology: tpu7x:2x2x1
jax: 0.10.0
libtpu: 0.0.40
codegen_flags: <defaults>
</compile_context>

<pallas_src>
import functools

import jax
import jax.numpy as jnp
from jax.experimental import pallas as pl
from jax.experimental.pallas import tpu as pltpu


# ----------------------------- small helpers -------------------------------


def _round_up(x, m):
    return ((x + m - 1) // m) * m


def _choose_tm(m):
    """Row tile: large enough to amortize per-step overhead, small enough to
    bound VMEM on v7x and leave >= 2 grid steps for 2-TC sharding when possible."""
    if m >= 1024:
        return 512
    if m >= 256:
        return 256
    return max(8, _round_up(m, 8))


def _pad_axis(x, axis, target):
    pad = target - x.shape[axis]
    if pad == 0:
        return x
    widths = [(0, 0)] * x.ndim
    widths[axis] = (0, pad)
    return jnp.pad(x, widths)


# ------------------------- Pallas kernel: matmul ----------------------------


def _mm_bias_kernel(x_ref, w_ref, b_ref, o_ref):
    # bf16 MXU inputs, f32 accumulation, fused bias epilogue.
    y = jnp.dot(x_ref[...].astype(jnp.bfloat16),
                w_ref[...].astype(jnp.bfloat16),
                preferred_element_type=jnp.float32)
    o_ref[...] = y + b_ref[...]


def matmul_bias(x, w, b):
    """x:(M,K) @ w:(K,N) + b:(N,).  Tiled over M (double-buffered pipeline),
    N zero-padded to a lane-dense multiple of 128, K kept whole (kh*kw*C is small)."""
    M, K = x.shape
    N = w.shape[1]
    n_pad = _round_up(N, 128)
    tm = _choose_tm(M)
    m_pad = _round_up(M, tm)
    xp = _pad_axis(x, 0, m_pad)
    wp = _pad_axis(w, 1, n_pad)
    bp = _pad_axis(b, 0, n_pad).reshape(1, n_pad)
    out = pl.pallas_call(
        _mm_bias_kernel,
        out_shape=jax.ShapeDtypeStruct((m_pad, n_pad), jnp.float32),
        grid=(m_pad // tm,),
        in_specs=[
            pl.BlockSpec((tm, K), lambda i: (i, 0)),
            pl.BlockSpec((K, n_pad), lambda i: (0, 0)),
            pl.BlockSpec((1, n_pad), lambda i: (0, 0)),
        ],
        out_specs=pl.BlockSpec((tm, n_pad), lambda i: (i, 0)),
        compiler_params=pltpu.CompilerParams(
            dimension_semantics=("parallel",)),
    )(xp, wp, bp)
    return out[:M, :N]


# -------------------- Pallas kernel: depthwise / grouped --------------------


def _dw_conv_kernel(p_ref, w_ref, b_ref, o_ref, *, kk, jm, c):
    # p_ref: (KK, TM, C) per-tap lane-dense slabs, w_ref: (KK, J, C),
    # b_ref: (J, C), o_ref: (TM, J*C) in j-major channel blocks.
    wv = w_ref[...]
    bv = b_ref[...]
    for j in range(jm):
        acc = p_ref[0] * wv[0, j:j + 1, :] + bv[j:j + 1, :]
        for k in range(1, kk):
            acc = acc + p_ref[k] * wv[k, j:j + 1, :]
        if jm == 1:
            o_ref[...] = acc
        else:
            o_ref[:, j * c:(j + 1) * c] = acc


def depthwise_conv_mm(taps, w, b):
    """Grouped conv with one input channel per group (channel multiplier J).
    taps: (KK, M, C) -- one lane-dense (M, C) slab per filter tap."""
    KK, M, C = taps.shape
    J = w.shape[1]
    tm = _choose_tm(M)
    m_pad = _round_up(M, tm)
    taps = _pad_axis(taps, 1, m_pad)
    out = pl.pallas_call(
        functools.partial(_dw_conv_kernel, kk=KK, jm=J, c=C),
        out_shape=jax.ShapeDtypeStruct((m_pad, J * C), jnp.float32),
        grid=(m_pad // tm,),
        in_specs=[
            pl.BlockSpec((KK, tm, C), lambda i: (0, i, 0)),
            pl.BlockSpec((KK, J, C), lambda i: (0, 0, 0)),
            pl.BlockSpec((J, C), lambda i: (0, 0)),
        ],
        out_specs=pl.BlockSpec((tm, J * C), lambda i: (i, 0)),
        compiler_params=pltpu.CompilerParams(
            dimension_semantics=("parallel",)),
    )(taps, w, b)
    return out[:M]


# -------------------- Pallas kernel: BN affine (+ ReLU) ---------------------


def _affine_kernel(x_ref, s_ref, t_ref, o_ref, *, relu):
    y = x_ref[...] * s_ref[...] + t_ref[...]
    if relu:
        y = jnp.maximum(y, 0.0)
    o_ref[...] = y


def affine_act(x2d, scale, shift, relu):
    M, C = x2d.shape
    tm = _choose_tm(M)
    m_pad = _round_up(M, tm)
    xp = _pad_axis(x2d, 0, m_pad)
    out = pl.pallas_call(
        functools.partial(_affine_kernel, relu=relu),
        out_shape=jax.ShapeDtypeStruct((m_pad, C), jnp.float32),
        grid=(m_pad // tm,),
        in_specs=[
            pl.BlockSpec((tm, C), lambda i: (i, 0)),
            pl.BlockSpec((1, C), lambda i: (0, 0)),
            pl.BlockSpec((1, C), lambda i: (0, 0)),
        ],
        out_specs=pl.BlockSpec((tm, C), lambda i: (i, 0)),
        compiler_params=pltpu.CompilerParams(
            dimension_semantics=("parallel",)),
    )(xp, scale.reshape(1, C), shift.reshape(1, C))
    return out[:M]


# ----------------- Pallas kernels: squeeze-excite (2 calls) -----------------


def _pool_kernel(x_ref, o_ref, *, inv_hw):
    t = pl.program_id(1)

    @pl.when(t == 0)
    def _():
        o_ref[...] = jnp.zeros_like(o_ref)

    o_ref[...] += jnp.sum(x_ref[...], axis=1, keepdims=True)

    @pl.when(t == pl.num_programs(1) - 1)
    def _():
        o_ref[...] *= inv_hw


def global_avg_pool(x):
    """x: (N, H, W, C) -> (N, C) spatial mean (tiled Pallas reduction;
    reduction axis last / 'arbitrary', batch axis 'parallel')."""
    N, H, W, C = x.shape
    HW = H * W
    thw = _choose_tm(HW)
    hw_pad = _round_up(HW, thw)
    x3 = _pad_axis(x.reshape(N, HW, C), 1, hw_pad)
    out = pl.pallas_call(
        functools.partial(_pool_kernel, inv_hw=1.0 / float(HW)),
        out_shape=jax.ShapeDtypeStruct((N, 1, C), jnp.float32),
        grid=(N, hw_pad // thw),
        in_specs=[pl.BlockSpec((1, thw, C), lambda n, t: (n, t, 0))],
        out_specs=pl.BlockSpec((1, 1, C), lambda n, t: (n, 0, 0)),
        compiler_params=pltpu.CompilerParams(
            dimension_semantics=("parallel", "arbitrary")),
    )(x3)
    return out.reshape(N, C)


def _se_apply_kernel(x_ref, p_ref, w1_ref, b1_ref, w2_ref, b2_ref, o_ref):
    # Fused fc1 -> relu -> fc2 -> sigmoid -> channel scale.  FC weights stay
    # resident in VMEM; no intermediate HBM round trips for h / s.
    pooled = p_ref[0]                                              # (1, C)
    h = jnp.dot(pooled, w1_ref[...], preferred_element_type=jnp.float32)
    h = jnp.maximum(h + b1_ref[...], 0.0)
    s = jnp.dot(h, w2_ref[...], preferred_element_type=jnp.float32)
    s = jax.nn.sigmoid(s + b2_ref[...])                            # (1, C)
    o_ref[...] = x_ref[...] * s.reshape(1, 1, -1)


# TODO(synk): SEModule is referenced but not defined in the source; implemented as the standard squeeze-excite block.
def se_forward(x, p):
    N, H, W, C = x.shape
    HW = H * W
    thw = _choose_tm(HW)
    hw_pad = _round_up(HW, thw)
    cb = p["fc1"]["w"].shape[1]
    pooled = global_avg_pool(x).reshape(N, 1, C)
    x3 = _pad_axis(x.reshape(N, HW, C), 1, hw_pad)
    out = pl.pallas_call(
        _se_apply_kernel,
        out_shape=jax.ShapeDtypeStruct((N, hw_pad, C), jnp.float32),
        grid=(N, hw_pad // thw),
        in_specs=[
            pl.BlockSpec((1, thw, C), lambda n, t: (n, t, 0)),
            pl.BlockSpec((1, 1, C), lambda n, t: (n, 0, 0)),
            pl.BlockSpec((C, cb), lambda n, t: (0, 0)),
            pl.BlockSpec((1, cb), lambda n, t: (0, 0)),
            pl.BlockSpec((cb, C), lambda n, t: (0, 0)),
            pl.BlockSpec((1, C), lambda n, t: (0, 0)),
        ],
        out_specs=pl.BlockSpec((1, thw, C), lambda n, t: (n, t, 0)),
        compiler_params=pltpu.CompilerParams(
            dimension_semantics=("parallel", "parallel")),
    )(x3, pooled, p["fc1"]["w"], p["fc1"]["b"].reshape(1, cb),
      p["fc2"]["w"], p["fc2"]["b"].reshape(1, C))
    return out[:, :HW].reshape(N, H, W, C)


# ------------------------------- glue (JAX) ---------------------------------


def _im2col_patches(x, kh, kw, stride, pad):
    # TODO(synk): im2col is still materialized in XLA glue; removing it needs halo'd/overlapping BlockSpec index maps.
    if pad > 0:
        x = jnp.pad(x, ((0, 0), (pad, pad), (pad, pad), (0, 0)))
    N, H, W, C = x.shape
    oh = (H - kh) // stride + 1
    ow = (W - kw) // stride + 1
    cols = []
    for i in range(kh):
        for j in range(kw):
            cols.append(x[:, i:i + stride * oh:stride, j:j + stride * ow:stride, :])
    patches = jnp.stack(cols, axis=3)                  # (N, oh, ow, kh*kw, C)
    return patches.reshape(N * oh * ow, kh * kw * C), oh, ow


def _im2col_taps(x, k, stride, pad):
    if pad > 0:
        x = jnp.pad(x, ((0, 0), (pad, pad), (pad, pad), (0, 0)))
    N, H, W, C = x.shape
    oh = (H - k) // stride + 1
    ow = (W - k) // stride + 1
    taps = [
        x[:, i:i + stride * oh:stride, j:j + stride * ow:stride, :]
        .reshape(N * oh * ow, C)
        for i in range(k) for j in range(k)
    ]
    return jnp.stack(taps, axis=0), oh, ow             # (k*k, M, C)


def conv2d(x, w, b, stride=1, pad=0):
    """Dense conv.  x: NHWC, w: (kh, kw, cin, cout), b: (cout,)."""
    N, _, _, C = x.shape
    kh, kw, _, cout = w.shape
    patches, oh, ow = _im2col_patches(x, kh, kw, stride, pad)
    y = matmul_bias(patches, w.reshape(kh * kw * C, cout), b)
    return y.reshape(N, oh, ow, cout)


def grouped_conv2d(x, w, b, stride=1, pad=0):
    """Grouped conv with groups == in_channels.  w: (k*k, J, C), b: (J, C)."""
    N, _, _, C = x.shape
    KK, J, _ = w.shape
    k = int(round(KK ** 0.5))
    taps, oh, ow = _im2col_taps(x, k, stride, pad)
    M = N * oh * ow
    y = depthwise_conv_mm(taps, w, b)                  # (M, J*C), j-major blocks
    if J > 1:
        # TODO(synk): PyTorch grouped-conv order is out = c*J + j; reorder kept in glue (J == 1 for GhostNet with s=2).
        y = y.reshape(M, J, C).transpose(0, 2, 1).reshape(M, J * C)
    return y.reshape(N, oh, ow, J * C)


def _bn_scale_shift(x2d, bn):
    # Training-mode nn.BatchNorm2d forward (batch statistics, biased variance).
    mean = jnp.mean(x2d, axis=0)
    var = jnp.mean(jnp.square(x2d - mean[None, :]), axis=0)
    scale = bn["g"] * jax.lax.rsqrt(var + 1e-5)
    shift = bn["b"] - mean * scale
    return scale, shift


def batchnorm_act(x, bn, relu):
    N, H, W, C = x.shape
    x2 = x.reshape(N * H * W, C)
    scale, shift = _bn_scale_shift(x2, bn)
    return affine_act(x2, scale, shift, relu).reshape(N, H, W, C)


# ------------------------------ parameters ----------------------------------


def _keygen(seed):
    key = jax.random.PRNGKey(seed)

    def nxt():
        nonlocal key
        key, k = jax.random.split(key)
        return k

    return nxt


def nrm(key, shape, scale=0.1):
    return scale * jax.random.normal(key, shape, dtype=jnp.float32)


def init_bn(kg, c):
    return {"g": 1.0 + nrm(kg(), (c,)), "b": nrm(kg(), (c,))}


def init_conv(kg, kh, kw, cin, cout):
    return {"w": nrm(kg(), (kh, kw, cin, cout)), "b": nrm(kg(), (cout,), 0.01)}


def init_dwconv(kg, k, c, j):
    return {"w": nrm(kg(), (k * k, j, c)), "b": nrm(kg(), (j, c), 0.01)}


def init_ghost(kg, cin, cout, s, d):
    m = cout // s
    return {"d": d,
            "primary": init_conv(kg, 3, 3, cin, m),
            "pbn": init_bn(kg, m),
            "ghost": init_dwconv(kg, d, m, (cout - m) // m),
            "gbn": init_bn(kg, cout - m)}


def init_se(kg, c, r):
    cb = c // r
    return {"fc1": {"w": nrm(kg(), (c, cb)), "b": nrm(kg(), (cb,), 0.01)},
            "fc2": {"w": nrm(kg(), (cb, c)), "b": nrm(kg(), (c,), 0.01)}}


def init_bottleneck(seed, cin, cexp, cout, stride, s, d, se, r):
    kg = _keygen(seed)
    p = {"stride": stride}
    if cin == cout:
        p["shortcut"] = None                           # nn.Identity()
    else:
        p["shortcut"] = {"dw": init_dwconv(kg, 3, cin, 1), "dwbn": init_bn(kg, cin),
                         "pw": init_conv(kg, 1, 1, cin, cout), "pwbn": init_bn(kg, cout)}
    p["ghost1"] = init_ghost(kg, cin, cexp, s, d)
    if stride != 1:
        p["dw"] = init_dwconv(kg, 3, cexp, 1)
        p["dwbn"] = init_bn(kg, cexp)
    else:
        p["dw"] = None
    p["se"] = init_se(kg, cexp, r) if se else None
    p["ghost2"] = init_ghost(kg, cexp, cout, s, d)
    return p


# -------------------------------- forward -----------------------------------


def ghost_forward(x, p, relu):
    y_raw = conv2d(x, p["primary"]["w"], p["primary"]["b"], stride=1, pad=1)
    y = batchnorm_act(y_raw, p["pbn"], relu)
    d = p["d"]
    g_raw = grouped_conv2d(y, p["ghost"]["w"], p["ghost"]["b"],
                           stride=1, pad=(d - 1) // 2)
    g = batchnorm_act(g_raw, p["gbn"], relu)
    # TODO(synk): the channel concat (+ residual add) is left to one fused XLA pass; an in-kernel aliased concat-write would remove it.
    return jnp.concatenate([y, g], axis=-1)


def bottleneck_forward(x, p):
    stride = p["stride"]
    if p["shortcut"] is None:
        xs = x                                         # nn.Identity()
    else:
        sc = p["shortcut"]
        xs = grouped_conv2d(x, sc["dw"]["w"], sc["dw"]["b"], stride=stride, pad=1)
        xs = batchnorm_act(xs, sc["dwbn"], relu=False)
        xs = conv2d(xs, sc["pw"]["w"], sc["pw"]["b"], stride=1, pad=0)
        xs = batchnorm_act(xs, sc["pwbn"], relu=False)
    y = ghost_forward(x, p["ghost1"], relu=True)
    if p["dw"] is not None:
        y = grouped_conv2d(y, p["dw"]["w"], p["dw"]["b"], stride=stride, pad=1)
        y = batchnorm_act(y, p["dwbn"], relu=False)
    if p["se"] is not None:
        y = se_forward(y, p["se"])
    y = ghost_forward(y, p["ghost2"], relu=False)
    return y + xs


# ---------------------------------- main -------------------------------------


if __name__ == "__main__":
    key = jax.random.PRNGKey(0)
    x_nchw = jax.random.normal(key, (2, 16, 16, 16), dtype=jnp.float32)  # NCHW
    x = jnp.transpose(x_nchw, (0, 2, 3, 1))                              # NHWC

    # GhostBottleneck(in=16, exp=48, out=24, stride=2, s=2, d=3, SE, ratio=4):
    # conv shortcut + downsampling depthwise + squeeze-excite path.
    p1 = init_bottleneck(seed=0, cin=16, cexp=48, cout=24, stride=2,
                         s=2, d=3, se=True, r=4)
    y1 = jax.jit(lambda v: bottleneck_forward(v, p1))(x)
    y1 = jax.block_until_ready(y1)
    assert y1.shape == (2, 8, 8, 24), y1.shape

    # GhostBottleneck(in=16, exp=32, out=16, stride=1, s=2, d=3, no SE):
    # identity-shortcut path.
    p2 = init_bottleneck(seed=1, cin=16, cexp=32, cout=16, stride=1,
                         s=2, d=3, se=False, r=4)
    y2 = jax.jit(lambda v: bottleneck_forward(v, p2))(x)
    y2 = jax.block_until_ready(y2)
    assert y2.shape == (2, 16, 16, 16), y2.shape

    print("KERNEL_OK")
</pallas_src>

<mosaic_0001>
module attributes {stable_mosaic.version = 11 : i64} {
  func.func @_mm_bias_kernel(%arg0: i32, %arg1: memref<256x144xf32, #tpu.memory_space<vmem>>, %arg2: memref<144x128xf32, #tpu.memory_space<vmem>>, %arg3: memref<1x128xf32, #tpu.memory_space<vmem>>, %arg4: memref<256x128xf32, #tpu.memory_space<vmem>>) attributes {dimension_semantics = [#tpu.dimension_semantics<parallel>], iteration_bounds = array<i64: 2>, scalar_prefetch = 0 : i64, scratch_operands = 0 : i64, tpu.core_type = #tpu.core_type<tc>, window_params = [{transform_indices = @transform_0, window_bounds = array<i64: 256, 144>}, {pipeline_mode = #tpu.pipeline_mode<synchronous>, transform_indices = @transform_1, window_bounds = array<i64: 144, 128>}, {pipeline_mode = #tpu.pipeline_mode<synchronous>, transform_indices = @transform_2, window_bounds = array<i64: 1, 128>}, {transform_indices = @transform_3, window_bounds = array<i64: 256, 128>}]} {
    %c0 = arith.constant 0 : index
    %c0_0 = arith.constant 0 : index
    %0 = vector.load %arg1[%c0, %c0_0] : memref<256x144xf32, #tpu.memory_space<vmem>>, vector<256x144xf32>
    %1 = arith.truncf %0 : vector<256x144xf32> to vector<256x144xbf16>
    %c0_1 = arith.constant 0 : index
    %c0_2 = arith.constant 0 : index
    %2 = vector.load %arg2[%c0_1, %c0_2] : memref<144x128xf32, #tpu.memory_space<vmem>>, vector<144x128xf32>
    %3 = arith.truncf %2 : vector<144x128xf32> to vector<144x128xbf16>
    %cst = arith.constant dense<0.000000e+00> : vector<256x128xf32>
    %4 = tpu.matmul %1, %3, %cst {dimension_numbers = #tpu.dot_dimension_numbers<[1], [0], [0], [1], [0, 0, 1, 1], [], []>} : vector<256x144xbf16>, vector<144x128xbf16>, vector<256x128xf32> -> vector<256x128xf32>
    %c0_3 = arith.constant 0 : index
    %c0_4 = arith.constant 0 : index
    %5 = vector.load %arg3[%c0_3, %c0_4] : memref<1x128xf32, #tpu.memory_space<vmem>>, vector<1x128xf32>
    %6 = vector.broadcast %5 : vector<1x128xf32> to vector<256x128xf32>
    %7 = arith.addf %4, %6 : vector<256x128xf32>
    %c0_5 = arith.constant 0 : index
    %c0_6 = arith.constant 0 : index
    %8 = vector.load %arg4[%c0_5, %c0_6] : memref<256x128xf32, #tpu.memory_space<vmem>>, vector<256x128xf32>
    tpu.vector_store %arg4[%c0_5, %c0_6], %7 {strides = array<i32>} : memref<256x128xf32, #tpu.memory_space<vmem>>, vector<256x128xf32>,
    return
  }
  func.func @transform_0(%arg0: i32) -> (i32, i32) {
    %c0_i32 = arith.constant 0 : i32
    %c0_i32_0 = arith.constant 0 : i32
    return %arg0, %c0_i32 : i32, i32
  }
  func.func @transform_1(%arg0: i32) -> (i32, i32) {
    %c0_i32 = arith.constant 0 : i32
    %c0_i32_0 = arith.constant 0 : i32
    %c0_i32_1 = arith.constant 0 : i32
    return %c0_i32, %c0_i32_0 : i32, i32
  }
  func.func @transform_2(%arg0: i32) -> (i32, i32) {
    %c0_i32 = arith.constant 0 : i32
    %c0_i32_0 = arith.constant 0 : i32
    %c0_i32_1 = arith.constant 0 : i32
    return %c0_i32, %c0_i32_0 : i32, i32
  }
  func.func @transform_3(%arg0: i32) -> (i32, i32) {
    %c0_i32 = arith.constant 0 : i32
    %c0_i32_0 = arith.constant 0 : i32
    return %arg0, %c0_i32 : i32, i32
  }
}

module attributes {stable_mosaic.version = 11 : i64} {
  func.func @_affine_kernel(%arg0: i32, %arg1: memref<256x24xf32, #tpu.memory_space<vmem>>, %arg2: memref<1x24xf32, #tpu.memory_space<vmem>>, %arg3: memref<1x24xf32, #tpu.memory_space<vmem>>, %arg4: memref<256x24xf32, #tpu.memory_space<vmem>>) attributes {dimension_semantics = [#tpu.dimension_semantics<parallel>], iteration_bounds = array<i64: 2>, scalar_prefetch = 0 : i64, scratch_operands = 0 : i64, tpu.core_type = #tpu.core_type<tc>, window_params = [{transform_indices = @transform_0, window_bounds = array<i64: 256, 24>}, {pipeline_mode = #tpu.pipeline_mode<synchronous>, transform_indices = @transform_1, window_bounds = array<i64: 1, 24>}, {pipeline_mode = #tpu.pipeline_mode<synchronous>, transform_indices = @transform_2, window_bounds = array<i64: 1, 24>}, {transform_indices = @transform_3, window_bounds = array<i64: 256, 24>}]} {
    %c0 = arith.constant 0 : index
    %c0_0 = arith.constant 0 : index
    %0 = vector.load %arg1[%c0, %c0_0] : memref<256x24xf32, #tpu.memory_space<vmem>>, vector<256x24xf32>
    %c0_1 = arith.constant 0 : index
    %c0_2 = arith.constant 0 : index
    %1 = vector.load %arg2[%c0_1, %c0_2] : memref<1x24xf32, #tpu.memory_space<vmem>>, vector<1x24xf32>
    %2 = vector.broadcast %1 : vector<1x24xf32> to vector<256x24xf32>
    %3 = arith.mulf %0, %2 : vector<256x24xf32>
    %c0_3 = arith.constant 0 : index
    %c0_4 = arith.constant 0 : index
    %4 = vector.load %arg3[%c0_3, %c0_4] : memref<1x24xf32, #tpu.memory_space<vmem>>, vector<1x24xf32>
    %5 = vector.broadcast %4 : vector<1x24xf32> to vector<256x24xf32>
    %6 = arith.addf %3, %5 : vector<256x24xf32>
    %cst = arith.constant 0.000000e+00 : f32
    %7 = vector.broadcast %cst : f32 to vector<256x24xf32>
    %8 = arith.maximumf %6, %7 : vector<256x24xf32>
    %c0_5 = arith.constant 0 : index
    %c0_6 = arith.constant 0 : index
    %9 = vector.load %arg4[%c0_5, %c0_6] : memref<256x24xf32, #tpu.memory_space<vmem>>, vector<256x24xf32>
    tpu.vector_store %arg4[%c0_5, %c0_6], %8 {strides = array<i32>} : memref<256x24xf32, #tpu.memory_space<vmem>>, vector<256x24xf32>,
    return
  }
  func.func @transform_0(%arg0: i32) -> (i32, i32) {
    %c0_i32 = arith.constant 0 : i32
    %c0_i32_0 = arith.constant 0 : i32
    return %arg0, %c0_i32 : i32, i32
  }
  func.func @transform_1(%arg0: i32) -> (i32, i32) {
    %c0_i32 = arith.constant 0 : i32
    %c0_i32_0 = arith.constant 0 : i32
    %c0_i32_1 = arith.constant 0 : i32
    return %c0_i32, %c0_i32_0 : i32, i32
  }
  func.func @transform_2(%arg0: i32) -> (i32, i32) {
    %c0_i32 = arith.constant 0 : i32
    %c0_i32_0 = arith.constant 0 : i32
    %c0_i32_1 = arith.constant 0 : i32
    return %c0_i32, %c0_i32_0 : i32, i32
  }
  func.func @transform_3(%arg0: i32) -> (i32, i32) {
    %c0_i32 = arith.constant 0 : i32
    %c0_i32_0 = arith.constant 0 : i32
    return %arg0, %c0_i32 : i32, i32
  }
}

module attributes {stable_mosaic.version = 11 : i64} {
  func.func @_dw_conv_kernel(%arg0: i32, %arg1: memref<9x256x24xf32, #tpu.memory_space<vmem>>, %arg2: memref<9x1x24xf32, #tpu.memory_space<vmem>>, %arg3: memref<1x24xf32, #tpu.memory_space<vmem>>, %arg4: memref<256x24xf32, #tpu.memory_space<vmem>>) attributes {dimension_semantics = [#tpu.dimension_semantics<parallel>], iteration_bounds = array<i64: 2>, scalar_prefetch = 0 : i64, scratch_operands = 0 : i64, tpu.core_type = #tpu.core_type<tc>, window_params = [{transform_indices = @transform_0, window_bounds = array<i64: 9, 256, 24>}, {pipeline_mode = #tpu.pipeline_mode<synchronous>, transform_indices = @transform_1, window_bounds = array<i64: 9, 1, 24>}, {pipeline_mode = #tpu.pipeline_mode<synchronous>, transform_indices = @transform_2, window_bounds = array<i64: 1, 24>}, {transform_indices = @transform_3, window_bounds = array<i64: 256, 24>}]} {
    %c0 = arith.constant 0 : index
    %c0_0 = arith.constant 0 : index
    %c0_1 = arith.constant 0 : index
    %0 = vector.load %arg2[%c0, %c0_0, %c0_1] : memref<9x1x24xf32, #tpu.memory_space<vmem>>, vector<9x1x24xf32>
    %c0_2 = arith.constant 0 : index
    %c0_3 = arith.constant 0 : index
    %1 = vector.load %arg3[%c0_2, %c0_3] : memref<1x24xf32, #tpu.memory_space<vmem>>, vector<1x24xf32>
    %c0_4 = arith.constant 0 : index
    %c0_5 = arith.constant 0 : index
    %c0_6 = arith.constant 0 : index
    %2 = vector.load %arg1[%c0_4, %c0_5, %c0_6] : memref<9x256x24xf32, #tpu.memory_space<vmem>>, vector<1x256x24xf32>
    %3 = vector.shape_cast %2 : vector<1x256x24xf32> to vector<256x24xf32>
    %4 = vector.extract_strided_slice %0 {offsets = [0, 0, 0], sizes = [1, 1, 24], strides = [1, 1, 1]} : vector<9x1x24xf32> to vector<1x1x24xf32>
    %5 = vector.shape_cast %4 : vector<1x1x24xf32> to vector<1x24xf32>
    %6 = vector.broadcast %5 : vector<1x24xf32> to vector<256x24xf32>
    %7 = arith.mulf %3, %6 : vector<256x24xf32>
    %8 = vector.broadcast %1 : vector<1x24xf32> to vector<256x24xf32>
    %9 = arith.addf %7, %8 : vector<256x24xf32>
    %c1 = arith.constant 1 : index
    %c0_7 = arith.constant 0 : index
    %c0_8 = arith.constant 0 : index
    %10 = vector.load %arg1[%c1, %c0_7, %c0_8] : memref<9x256x24xf32, #tpu.memory_space<vmem>>, vector<1x256x24xf32>
    %11 = vector.shape_cast %10 : vector<1x256x24xf32> to vector<256x24xf32>
    %12 = vector.extract_strided_slice %0 {offsets = [1, 0, 0], sizes = [1, 1, 24], strides = [1, 1, 1]} : vector<9x1x24xf32> to vector<1x1x24xf32>
    %13 = vector.shape_cast %12 : vector<1x1x24xf32> to vector<1x24xf32>
    %14 = vector.broadcast %13 : vector<1x24xf32> to vector<256x24xf32>
    %15 = arith.mulf %11, %14 : vector<256x24xf32>
    %16 = arith.addf %9, %15 : vector<256x24xf32>
    %c2 = arith.constant 2 : index
    %c0_9 = arith.constant 0 : index
    %c0_10 = arith.constant 0 : index
    %17 = vector.load %arg1[%c2, %c0_9, %c0_10] : memref<9x256x24xf32, #tpu.memory_space<vmem>>, vector<1x256x24xf32>
    %18 = vector.shape_cast %17 : vector<1x256x24xf32> to vector<256x24xf32>
    %19 = vector.extract_strided_slice %0 {offsets = [2, 0, 0], sizes = [1, 1, 24], strides = [1, 1, 1]} : vector<9x1x24xf32> to vector<1x1x24xf32>
    %20 = vector.shape_cast %19 : vector<1x1x24xf32> to vector<1x24xf32>
    %21 = vector.broadcast %20 : vector<1x24xf32> to vector<256x24xf32>
    %22 = arith.mulf %18, %21 : vector<256x24xf32>
    %23 = arith.addf %16, %22 : vector<256x24xf32>
    %c3 = arith.constant 3 : index
    %c0_11 = arith.constant 0 : index
    %c0_12 = arith.constant 0 : index
    %24 = vector.load %arg1[%c3, %c0_11, %c0_12] : memref<9x256x24xf32, #tpu.memory_space<vmem>>, vector<1x256x24xf32>
    %25 = vector.shape_cast %24 : vector<1x256x24xf32> to vector<256x24xf32>
    %26 = vector.extract_strided_slice %0 {offsets = [3, 0, 0], sizes = [1, 1, 24], strides = [1, 1, 1]} : vector<9x1x24xf32> to vector<1x1x24xf32>
    %27 = vector.shape_cast %26 : vector<1x1x24xf32> to vector<1x24xf32>
    %28 = vector.broadcast %27 : vector<1x24xf32> to vector<256x24xf32>
    %29 = arith.mulf %25, %28 : vector<256x24xf32>
    %30 = arith.addf %23, %29 : vector<256x24xf32>
    %c4 = arith.constant 4 : index
    %c0_13 = arith.constant 0 : index
    %c0_14 = arith.constant 0 : index
    %31 = vector.load %arg1[%c4, %c0_13, %c0_14] : memref<9x256x24xf32, #tpu.memory_space<vmem>>, vector<1x256x24xf32>
    %32 = vector.shape_cast %31 : vector<1x256x24xf32> to vector<256x24xf32>
    %33 = vector.extract_strided_slice %0 {offsets = [4, 0, 0], sizes = [1, 1, 24], strides = [1, 1, 1]} : vector<9x1x24xf32> to vector<1x1x24xf32>
    %34 = vector.shape_cast %33 : vector<1x1x24xf32> to vector<1x24xf32>
    %35 = vector.broadcast %34 : vector<1x24xf32> to vector<256x24xf32>
    %36 = arith.mulf %32, %35 : vector<256x24xf32>
    %37 = arith.addf %30, %36 : vector<256x24xf32>
    %c5 = arith.constant 5 : index
    %c0_15 = arith.constant 0 : index
    %c0_16 = arith.constant 0 : index
    %38 = vector.load %arg1[%c5, %c0_15, %c0_16] : memref<9x256x24xf32, #tpu.memory_space<vmem>>, vector<1x256x24xf32>
    %39 = vector.shape_cast %38 : vector<1x256x24xf32> to vector<256x24xf32>
    %40 = vector.extract_strided_slice %0 {offsets = [5, 0, 0], sizes = [1, 1, 24], strides = [1, 1, 1]} : vector<9x1x24xf32> to vector<1x1x24xf32>
    %41 = vector.shape_cast %40 : vector<1x1x24xf32> to vector<1x24xf32>
    %42 = vector.broadcast %41 : vector<1x24xf32> to vector<256x24xf32>
    %43 = arith.mulf %39, %42 : vector<256x24xf32>
    %44 = arith.addf %37, %43 : vector<256x24xf32>
    %c6 = arith.constant 6 : index
    %c0_17 = arith.constant 0 : index
    %c0_18 = arith.constant 0 : index
    %45 = vector.load %arg1[%c6, %c0_17, %c0_18] : memref<9x256x24xf32, #tpu.memory_space<vmem>>, vector<1x256x24xf32>
    %46 = vector.shape_cast %45 : vector<1x256x24xf32> to vector<256x24xf32>
    %47 = vector.extract_strided_slice %0 {offsets = [6, 0, 0], sizes = [1, 1, 24], strides = [1, 1, 1]} : vector<9x1x24xf32> to vector<1x1x24xf32>
    %48 = vector.shape_cast %47 : vector<1x1x24xf32> to vector<1x24xf32>
    %49 = vector.broadcast %48 : vector<1x24xf32> to vector<256x24xf32>
    %50 = arith.mulf %46, %49 : vector<256x24xf32>
    %51 = arith.addf %44, %50 : vector<256x24xf32>
    %c7 = arith.constant 7 : index
    %c0_19 = arith.constant 0 : index
    %c0_20 = arith.constant 0 : index
    %52 = vector.load %arg1[%c7, %c0_19, %c0_20] : memref<9x256x24xf32, #tpu.memory_space<vmem>>, vector<1x256x24xf32>
    %53 = vector.shape_cast %52 : vector<1x256x24xf32> to vector<256x24xf32>
    %54 = vector.extract_strided_slice %0 {offsets = [7, 0, 0], sizes = [1, 1, 24], strides = [1, 1, 1]} : vector<9x1x24xf32> to vector<1x1x24xf32>
    %55 = vector.shape_cast %54 : vector<1x1x24xf32> to vector<1x24xf32>
    %56 = vector.broadcast %55 : vector<1x24xf32> to vector<256x24xf32>
    %57 = arith.mulf %53, %56 : vector<256x24xf32>
    %58 = arith.addf %51, %57 : vector<256x24xf32>
    %c8 = arith.constant 8 : index
    %c0_21 = arith.constant 0 : index
    %c0_22 = arith.constant 0 : index
    %59 = vector.load %arg1[%c8, %c0_21, %c0_22] : memref<9x256x24xf32, #tpu.memory_space<vmem>>, vector<1x256x24xf32>
    %60 = vector.shape_cast %59 : vector<1x256x24xf32> to vector<256x24xf32>
    %61 = vector.extract_strided_slice %0 {offsets = [8, 0, 0], sizes = [1, 1, 24], strides = [1, 1, 1]} : vector<9x1x24xf32> to vector<1x1x24xf32>
    %62 = vector.shape_cast %61 : vector<1x1x24xf32> to vector<1x24xf32>
    %63 = vector.broadcast %62 : vector<1x24xf32> to vector<256x24xf32>
    %64 = arith.mulf %60, %63 : vector<256x24xf32>
    %65 = arith.addf %58, %64 : vector<256x24xf32>
    %c0_23 = arith.constant 0 : index
    %c0_24 = arith.constant 0 : index
    %66 = vector.load %arg4[%c0_23, %c0_24] : memref<256x24xf32, #tpu.memory_space<vmem>>, vector<256x24xf32>
    tpu.vector_store %arg4[%c0_23, %c0_24], %65 {strides = array<i32>} : memref<256x24xf32, #tpu.memory_space<vmem>>, vector<256x24xf32>,
    return
  }
  func.func @transform_0(%arg0: i32) -> (i32, i32, i32) {
    %c0_i32 = arith.constant 0 : i32
    %c0_i32_0 = arith.constant 0 : i32
    %c0_i32_1 = arith.constant 0 : i32
    return %c0_i32, %arg0, %c0_i32_0 : i32, i32, i32
  }
  func.func @transform_1(%arg0: i32) -> (i32, i32, i32) {
    %c0_i32 = arith.constant 0 : i32
    %c0_i32_0 = arith.constant 0 : i32
    %c0_i32_1 = arith.constant 0 : i32
    %c0_i32_2 = arith.constant 0 : i32
    return %c0_i32, %c0_i32_0, %c0_i32_1 : i32, i32, i32
  }
  func.func @transform_2(%arg0: i32) -> (i32, i32) {
    %c0_i32 = arith.constant 0 : i32
    %c0_i32_0 = arith.constant 0 : i32
    %c0_i32_1 = arith.constant 0 : i32
    return %c0_i32, %c0_i32_0 : i32, i32
  }
  func.func @transform_3(%arg0: i32) -> (i32, i32) {
    %c0_i32 = arith.constant 0 : i32
    %c0_i32_0 = arith.constant 0 : i32
    return %arg0, %c0_i32 : i32, i32
  }
}

module attributes {stable_mosaic.version = 11 : i64} {
  func.func @_dw_conv_kernel(%arg0: i32, %arg1: memref<9x128x48xf32, #tpu.memory_space<vmem>>, %arg2: memref<9x1x48xf32, #tpu.memory_space<vmem>>, %arg3: memref<1x48xf32, #tpu.memory_space<vmem>>, %arg4: memref<128x48xf32, #tpu.memory_space<vmem>>) attributes {dimension_semantics = [#tpu.dimension_semantics<parallel>], iteration_bounds = array<i64: 1>, scalar_prefetch = 0 : i64, scratch_operands = 0 : i64, tpu.core_type = #tpu.core_type<tc>, window_params = [{transform_indices = @transform_0, window_bounds = array<i64: 9, 128, 48>}, {pipeline_mode = #tpu.pipeline_mode<synchronous>, transform_indices = @transform_1, window_bounds = array<i64: 9, 1, 48>}, {pipeline_mode = #tpu.pipeline_mode<synchronous>, transform_indices = @transform_2, window_bounds = array<i64: 1, 48>}, {transform_indices = @transform_3, window_bounds = array<i64: 128, 48>}]} {
    %c0 = arith.constant 0 : index
    %c0_0 = arith.constant 0 : index
    %c0_1 = arith.constant 0 : index
    %0 = vector.load %arg2[%c0, %c0_0, %c0_1] : memref<9x1x48xf32, #tpu.memory_space<vmem>>, vector<9x1x48xf32>
    %c0_2 = arith.constant 0 : index
    %c0_3 = arith.constant 0 : index
    %1 = vector.load %arg3[%c0_2, %c0_3] : memref<1x48xf32, #tpu.memory_space<vmem>>, vector<1x48xf32>
    %c0_4 = arith.constant 0 : index
    %c0_5 = arith.constant 0 : index
    %c0_6 = arith.constant 0 : index
    %2 = vector.load %arg1[%c0_4, %c0_5, %c0_6] : memref<9x128x48xf32, #tpu.memory_space<vmem>>, vector<1x128x48xf32>
    %3 = vector.shape_cast %2 : vector<1x128x48xf32> to vector<128x48xf32>
    %4 = vector.extract_strided_slice %0 {offsets = [0, 0, 0], sizes = [1, 1, 48], strides = [1, 1, 1]} : vector<9x1x48xf32> to vector<1x1x48xf32>
    %5 = vector.shape_cast %4 : vector<1x1x48xf32> to vector<1x48xf32>
    %6 = vector.broadcast %5 : vector<1x48xf32> to vector<128x48xf32>
    %7 = arith.mulf %3, %6 : vector<128x48xf32>
    %8 = vector.broadcast %1 : vector<1x48xf32> to vector<128x48xf32>
    %9 = arith.addf %7, %8 : vector<128x48xf32>
    %c1 = arith.constant 1 : index
    %c0_7 = arith.constant 0 : index
    %c0_8 = arith.constant 0 : index
    %10 = vector.load %arg1[%c1, %c0_7, %c0_8] : memref<9x128x48xf32, #tpu.memory_space<vmem>>, vector<1x128x48xf32>
    %11 = vector.shape_cast %10 : vector<1x128x48xf32> to vector<128x48xf32>
    %12 = vector.extract_strided_slice %0 {offsets = [1, 0, 0], sizes = [1, 1, 48], strides = [1, 1, 1]} : vector<9x1x48xf32> to vector<1x1x48xf32>
    %13 = vector.shape_cast %12 : vector<1x1x48xf32> to vector<1x48xf32>
    %14 = vector.broadcast %13 : vector<1x48xf32> to vector<128x48xf32>
    %15 = arith.mulf %11, %14 : vector<128x48xf32>
    %16 = arith.addf %9, %15 : vector<128x48xf32>
    %c2 = arith.constant 2 : index
    %c0_9 = arith.constant 0 : index
    %c0_10 = arith.constant 0 : index
    %17 = vector.load %arg1[%c2, %c0_9, %c0_10] : memref<9x128x48xf32, #tpu.memory_space<vmem>>, vector<1x128x48xf32>
    %18 = vector.shape_cast %17 : vector<1x128x48xf32> to vector<128x48xf32>
    %19 = vector.extract_strided_slice %0 {offsets = [2, 0, 0], sizes = [1, 1, 48], strides = [1, 1, 1]} : vector<9x1x48xf32> to vector<1x1x48xf32>
    %20 = vector.shape_cast %19 : vector<1x1x48xf32> to vector<1x48xf32>
    %21 = vector.broadcast %20 : vector<1x48xf32> to vector<128x48xf32>
    %22 = arith.mulf %18, %21 : vector<128x48xf32>
    %23 = arith.addf %16, %22 : vector<128x48xf32>
    %c3 = arith.constant 3 : index
    %c0_11 = arith.constant 0 : index
    %c0_12 = arith.constant 0 : index
    %24 = vector.load %arg1[%c3, %c0_11, %c0_12] : memref<9x128x48xf32, #tpu.memory_space<vmem>>, vector<1x128x48xf32>
    %25 = vector.shape_cast %24 : vector<1x128x48xf32> to vector<128x48xf32>
    %26 = vector.extract_strided_slice %0 {offsets = [3, 0, 0], sizes = [1, 1, 48], strides = [1, 1, 1]} : vector<9x1x48xf32> to vector<1x1x48xf32>
    %27 = vector.shape_cast %26 : vector<1x1x48xf32> to vector<1x48xf32>
    %28 = vector.broadcast %27 : vector<1x48xf32> to vector<128x48xf32>
    %29 = arith.mulf %25, %28 : vector<128x48xf32>
    %30 = arith.addf %23, %29 : vector<128x48xf32>
    %c4 = arith.constant 4 : index
    %c0_13 = arith.constant 0 : index
    %c0_14 = arith.constant 0 : index
    %31 = vector.load %arg1[%c4, %c0_13, %c0_14] : memref<9x128x48xf32, #tpu.memory_space<vmem>>, vector<1x128x48xf32>
    %32 = vector.shape_cast %31 : vector<1x128x48xf32> to vector<128x48xf32>
    %33 = vector.extract_strided_slice %0 {offsets = [4, 0, 0], sizes = [1, 1, 48], strides = [1, 1, 1]} : vector<9x1x48xf32> to vector<1x1x48xf32>
    %34 = vector.shape_cast %33 : vector<1x1x48xf32> to vector<1x48xf32>
    %35 = vector.broadcast %34 : vector<1x48xf32> to vector<128x48xf32>
    %36 = arith.mulf %32, %35 : vector<128x48xf32>
    %37 = arith.addf %30, %36 : vector<128x48xf32>
    %c5 = arith.constant 5 : index
    %c0_15 = arith.constant 0 : index
    %c0_16 = arith.constant 0 : index
    %38 = vector.load %arg1[%c5, %c0_15, %c0_16] : memref<9x128x48xf32, #tpu.memory_space<vmem>>, vector<1x128x48xf32>
    %39 = vector.shape_cast %38 : vector<1x128x48xf32> to vector<128x48xf32>
    %40 = vector.extract_strided_slice %0 {offsets = [5, 0, 0], sizes = [1, 1, 48], strides = [1, 1, 1]} : vector<9x1x48xf32> to vector<1x1x48xf32>
    %41 = vector.shape_cast %40 : vector<1x1x48xf32> to vector<1x48xf32>
    %42 = vector.broadcast %41 : vector<1x48xf32> to vector<128x48xf32>
    %43 = arith.mulf %39, %42 : vector<128x48xf32>
    %44 = arith.addf %37, %43 : vector<128x48xf32>
    %c6 = arith.constant 6 : index
    %c0_17 = arith.constant 0 : index
    %c0_18 = arith.constant 0 : index
    %45 = vector.load %arg1[%c6, %c0_17, %c0_18] : memref<9x128x48xf32, #tpu.memory_space<vmem>>, vector<1x128x48xf32>
    %46 = vector.shape_cast %45 : vector<1x128x48xf32> to vector<128x48xf32>
    %47 = vector.extract_strided_slice %0 {offsets = [6, 0, 0], sizes = [1, 1, 48], strides = [1, 1, 1]} : vector<9x1x48xf32> to vector<1x1x48xf32>
    %48 = vector.shape_cast %47 : vector<1x1x48xf32> to vector<1x48xf32>
    %49 = vector.broadcast %48 : vector<1x48xf32> to vector<128x48xf32>
    %50 = arith.mulf %46, %49 : vector<128x48xf32>
    %51 = arith.addf %44, %50 : vector<128x48xf32>
    %c7 = arith.constant 7 : index
    %c0_19 = arith.constant 0 : index
    %c0_20 = arith.constant 0 : index
    %52 = vector.load %arg1[%c7, %c0_19, %c0_20] : memref<9x128x48xf32, #tpu.memory_space<vmem>>, vector<1x128x48xf32>
    %53 = vector.shape_cast %52 : vector<1x128x48xf32> to vector<128x48xf32>
    %54 = vector.extract_strided_slice %0 {offsets = [7, 0, 0], sizes = [1, 1, 48], strides = [1, 1, 1]} : vector<9x1x48xf32> to vector<1x1x48xf32>
    %55 = vector.shape_cast %54 : vector<1x1x48xf32> to vector<1x48xf32>
    %56 = vector.broadcast %55 : vector<1x48xf32> to vector<128x48xf32>
    %57 = arith.mulf %53, %56 : vector<128x48xf32>
    %58 = arith.addf %51, %57 : vector<128x48xf32>
    %c8 = arith.constant 8 : index
    %c0_21 = arith.constant 0 : index
    %c0_22 = arith.constant 0 : index
    %59 = vector.load %arg1[%c8, %c0_21, %c0_22] : memref<9x128x48xf32, #tpu.memory_space<vmem>>, vector<1x128x48xf32>
    %60 = vector.shape_cast %59 : vector<1x128x48xf32> to vector<128x48xf32>
    %61 = vector.extract_strided_slice %0 {offsets = [8, 0, 0], sizes = [1, 1, 48], strides = [1, 1, 1]} : vector<9x1x48xf32> to vector<1x1x48xf32>
    %62 = vector.shape_cast %61 : vector<1x1x48xf32> to vector<1x48xf32>
    %63 = vector.broadcast %62 : vector<1x48xf32> to vector<128x48xf32>
    %64 = arith.mulf %60, %63 : vector<128x48xf32>
    %65 = arith.addf %58, %64 : vector<128x48xf32>
    %c0_23 = arith.constant 0 : index
    %c0_24 = arith.constant 0 : index
    %66 = vector.load %arg4[%c0_23, %c0_24] : memref<128x48xf32, #tpu.memory_space<vmem>>, vector<128x48xf32>
    tpu.vector_store %arg4[%c0_23, %c0_24], %65 {strides = array<i32>} : memref<128x48xf32, #tpu.memory_space<vmem>>, vector<128x48xf32>,
    return
  }
  func.func @transform_0(%arg0: i32) -> (i32, i32, i32) {
    %c0_i32 = arith.constant 0 : i32
    %c0_i32_0 = arith.constant 0 : i32
    %c0_i32_1 = arith.constant 0 : i32
    return %c0_i32, %arg0, %c0_i32_0 : i32, i32, i32
  }
  func.func @transform_1(%arg0: i32) -> (i32, i32, i32) {
    %c0_i32 = arith.constant 0 : i32
    %c0_i32_0 = arith.constant 0 : i32
    %c0_i32_1 = arith.constant 0 : i32
    %c0_i32_2 = arith.constant 0 : i32
    return %c0_i32, %c0_i32_0, %c0_i32_1 : i32, i32, i32
  }
  func.func @transform_2(%arg0: i32) -> (i32, i32) {
    %c0_i32 = arith.constant 0 : i32
    %c0_i32_0 = arith.constant 0 : i32
    %c0_i32_1 = arith.constant 0 : i32
    return %c0_i32, %c0_i32_0 : i32, i32
  }
  func.func @transform_3(%arg0: i32) -> (i32, i32) {
    %c0_i32 = arith.constant 0 : i32
    %c0_i32_0 = arith.constant 0 : i32
    return %arg0, %c0_i32 : i32, i32
  }
}

module attributes {stable_mosaic.version = 11 : i64} {
  func.func @_affine_kernel(%arg0: i32, %arg1: memref<128x48xf32, #tpu.memory_space<vmem>>, %arg2: memref<1x48xf32, #tpu.memory_space<vmem>>, %arg3: memref<1x48xf32, #tpu.memory_space<vmem>>, %arg4: memref<128x48xf32, #tpu.memory_space<vmem>>) attributes {dimension_semantics = [#tpu.dimension_semantics<parallel>], iteration_bounds = array<i64: 1>, scalar_prefetch = 0 : i64, scratch_operands = 0 : i64, tpu.core_type = #tpu.core_type<tc>, window_params = [{transform_indices = @transform_0, window_bounds = array<i64: 128, 48>}, {pipeline_mode = #tpu.pipeline_mode<synchronous>, transform_indices = @transform_1, window_bounds = array<i64: 1, 48>}, {pipeline_mode = #tpu.pipeline_mode<synchronous>, transform_indices = @transform_2, window_bounds = array<i64: 1, 48>}, {transform_indices = @transform_3, window_bounds = array<i64: 128, 48>}]} {
    %c0 = arith.constant 0 : index
    %c0_0 = arith.constant 0 : index
    %0 = vector.load %arg1[%c0, %c0_0] : memref<128x48xf32, #tpu.memory_space<vmem>>, vector<128x48xf32>
    %c0_1 = arith.constant 0 : index
    %c0_2 = arith.constant 0 : index
    %1 = vector.load %arg2[%c0_1, %c0_2] : memref<1x48xf32, #tpu.memory_space<vmem>>, vector<1x48xf32>
    %2 = vector.broadcast %1 : vector<1x48xf32> to vector<128x48xf32>
    %3 = arith.mulf %0, %2 : vector<128x48xf32>
    %c0_3 = arith.constant 0 : index
    %c0_4 = arith.constant 0 : index
    %4 = vector.load %arg3[%c0_3, %c0_4] : memref<1x48xf32, #tpu.memory_space<vmem>>, vector<1x48xf32>
    %5 = vector.broadcast %4 : vector<1x48xf32> to vector<128x48xf32>
    %6 = arith.addf %3, %5 : vector<128x48xf32>
    %c0_5 = arith.constant 0 : index
    %c0_6 = arith.constant 0 : index
    %7 = vector.load %arg4[%c0_5, %c0_6] : memref<128x48xf32, #tpu.memory_space<vmem>>, vector<128x48xf32>
    tpu.vector_store %arg4[%c0_5, %c0_6], %6 {strides = array<i32>} : memref<128x48xf32, #tpu.memory_space<vmem>>, vector<128x48xf32>,
    return
  }
  func.func @transform_0(%arg0: i32) -> (i32, i32) {
    %c0_i32 = arith.constant 0 : i32
    %c0_i32_0 = arith.constant 0 : i32
    return %arg0, %c0_i32 : i32, i32
  }
  func.func @transform_1(%arg0: i32) -> (i32, i32) {
    %c0_i32 = arith.constant 0 : i32
    %c0_i32_0 = arith.constant 0 : i32
    %c0_i32_1 = arith.constant 0 : i32
    return %c0_i32, %c0_i32_0 : i32, i32
  }
  func.func @transform_2(%arg0: i32) -> (i32, i32) {
    %c0_i32 = arith.constant 0 : i32
    %c0_i32_0 = arith.constant 0 : i32
    %c0_i32_1 = arith.constant 0 : i32
    return %c0_i32, %c0_i32_0 : i32, i32
  }
  func.func @transform_3(%arg0: i32) -> (i32, i32) {
    %c0_i32 = arith.constant 0 : i32
    %c0_i32_0 = arith.constant 0 : i32
    return %arg0, %c0_i32 : i32, i32
  }
}

module attributes {stable_mosaic.version = 11 : i64} {
  func.func @_pool_kernel(%arg0: i32, %arg1: i32, %arg2: memref<1x64x48xf32, #tpu.memory_space<vmem>>, %arg3: memref<1x1x48xf32, #tpu.memory_space<vmem>>) attributes {dimension_semantics = [#tpu.dimension_semantics<parallel>, #tpu.dimension_semantics<arbitrary>], iteration_bounds = array<i64: 2, 1>, scalar_prefetch = 0 : i64, scratch_operands = 0 : i64, tpu.core_type = #tpu.core_type<tc>, window_params = [{transform_indices = @transform_0, window_bounds = array<i64: 1, 64, 48>}, {transform_indices = @transform_1, window_bounds = array<i64: 1, 1, 48>}]} {
    %c0_i32 = arith.constant 0 : i32
    %0 = arith.cmpi eq, %arg1, %c0_i32 : i32
    %1 = arith.extui %0 : i1 to i32
    %c0_i32_0 = arith.constant 0 : i32
    %2 = arith.cmpi ne, %1, %c0_i32_0 : i32
    scf.if %2 {
      %cst_11 = arith.constant 0.000000e+00 : f32
      %12 = vector.broadcast %cst_11 : f32 to vector<1x1x48xf32>
      %c0_12 = arith.constant 0 : index
      %c0_13 = arith.constant 0 : index
      %c0_14 = arith.constant 0 : index
      %13 = vector.load %arg3[%c0_12, %c0_13, %c0_14] : memref<1x1x48xf32, #tpu.memory_space<vmem>>, vector<1x1x48xf32>
      tpu.vector_store %arg3[%c0_12, %c0_13, %c0_14], %12 {strides = array<i32>} : memref<1x1x48xf32, #tpu.memory_space<vmem>>, vector<1x1x48xf32>,
    } else {
    }
    %c0 = arith.constant 0 : index
    %c0_1 = arith.constant 0 : index
    %c0_2 = arith.constant 0 : index
    %3 = vector.load %arg3[%c0, %c0_1, %c0_2] : memref<1x1x48xf32, #tpu.memory_space<vmem>>, vector<1x1x48xf32>
    %c0_3 = arith.constant 0 : index
    %c0_4 = arith.constant 0 : index
    %c0_5 = arith.constant 0 : index
    %4 = vector.load %arg2[%c0_3, %c0_4, %c0_5] : memref<1x64x48xf32, #tpu.memory_space<vmem>>, vector<1x64x48xf32>
    %cst = arith.constant dense<0.000000e+00> : vector<1x48xf32>
    %5 = vector.multi_reduction <add>, %4, %cst [1] : vector<1x64x48xf32> to vector<1x48xf32>
    %6 = vector.shape_cast %5 : vector<1x48xf32> to vector<1x1x48xf32>
    %7 = arith.addf %3, %6 : vector<1x1x48xf32>
    %c0_6 = arith.constant 0 : index
    %c0_7 = arith.constant 0 : index
    %c0_8 = arith.constant 0 : index
    %8 = vector.load %arg3[%c0_6, %c0_7, %c0_8] : memref<1x1x48xf32, #tpu.memory_space<vmem>>, vector<1x1x48xf32>
    tpu.vector_store %arg3[%c0_6, %c0_7, %c0_8], %7 {strides = array<i32>} : memref<1x1x48xf32, #tpu.memory_space<vmem>>, vector<1x1x48xf32>,
    %c0_i32_9 = arith.constant 0 : i32
    %9 = arith.cmpi eq, %arg1, %c0_i32_9 : i32
    %10 = arith.extui %9 : i1 to i32
    %c0_i32_10 = arith.constant 0 : i32
    %11 = arith.cmpi ne, %10, %c0_i32_10 : i32
    scf.if %11 {
      %c0_11 = arith.constant 0 : index
      %c0_12 = arith.constant 0 : index
      %c0_13 = arith.constant 0 : index
      %12 = vector.load %arg3[%c0_11, %c0_12, %c0_13] : memref<1x1x48xf32, #tpu.memory_space<vmem>>, vector<1x1x48xf32>
      %cst_14 = arith.constant 1.562500e-02 : f32
      %13 = vector.broadcast %cst_14 : f32 to vector<1x1x48xf32>
      %14 = arith.mulf %12, %13 : vector<1x1x48xf32>
      %c0_15 = arith.constant 0 : index
      %c0_16 = arith.constant 0 : index
      %c0_17 = arith.constant 0 : index
      %15 = vector.load %arg3[%c0_15, %c0_16, %c0_17] : memref<1x1x48xf32, #tpu.memory_space<vmem>>, vector<1x1x48xf32>
      tpu.vector_store %arg3[%c0_15, %c0_16, %c0_17], %14 {strides = array<i32>} : memref<1x1x48xf32, #tpu.memory_space<vmem>>, vector<1x1x48xf32>,
    } else {
    }
    return
  }
  func.func @transform_0(%arg0: i32, %arg1: i32) -> (i32, i32, i32) {
    %c0_i32 = arith.constant 0 : i32
    %c0_i32_0 = arith.constant 0 : i32
    return %arg0, %arg1, %c0_i32 : i32, i32, i32
  }
  func.func @transform_1(%arg0: i32, %arg1: i32) -> (i32, i32, i32) {
    %c0_i32 = arith.constant 0 : i32
    %c0_i32_0 = arith.constant 0 : i32
    %c0_i32_1 = arith.constant 0 : i32
    return %arg0, %c0_i32, %c0_i32_0 : i32, i32, i32
  }
}

module attributes {stable_mosaic.version = 11 : i64} {
  func.func @_se_apply_kernel(%arg0: i32, %arg1: i32, %arg2: memref<1x64x48xf32, #tpu.memory_space<vmem>>, %arg3: memref<1x1x48xf32, #tpu.memory_space<vmem>>, %arg4: memref<48x12xf32, #tpu.memory_space<vmem>>, %arg5: memref<1x12xf32, #tpu.memory_space<vmem>>, %arg6: memref<12x48xf32, #tpu.memory_space<vmem>>, %arg7: memref<1x48xf32, #tpu.memory_space<vmem>>, %arg8: memref<1x64x48xf32, #tpu.memory_space<vmem>>) attributes {dimension_semantics = [#tpu.dimension_semantics<parallel>, #tpu.dimension_semantics<parallel>], iteration_bounds = array<i64: 2, 1>, scalar_prefetch = 0 : i64, scratch_operands = 0 : i64, tpu.core_type = #tpu.core_type<tc>, window_params = [{transform_indices = @transform_0, window_bounds = array<i64: 1, 64, 48>}, {transform_indices = @transform_1, window_bounds = array<i64: 1, 1, 48>}, {pipeline_mode = #tpu.pipeline_mode<synchronous>, transform_indices = @transform_2, window_bounds = array<i64: 48, 12>}, {pipeline_mode = #tpu.pipeline_mode<synchronous>, transform_indices = @transform_3, window_bounds = array<i64: 1, 12>}, {pipeline_mode = #tpu.pipeline_mode<synchronous>, transform_indices = @transform_4, window_bounds = array<i64: 12, 48>}, {pipeline_mode = #tpu.pipeline_mode<synchronous>, transform_indices = @transform_5, window_bounds = array<i64: 1, 48>}, {transform_indices = @transform_6, window_bounds = array<i64: 1, 64, 48>}]} {
    %c0 = arith.constant 0 : index
    %c0_0 = arith.constant 0 : index
    %c0_1 = arith.constant 0 : index
    %0 = vector.load %arg3[%c0, %c0_0, %c0_1] : memref<1x1x48xf32, #tpu.memory_space<vmem>>, vector<1x1x48xf32>
    %1 = vector.shape_cast %0 : vector<1x1x48xf32> to vector<1x48xf32>
    %c0_2 = arith.constant 0 : index
    %c0_3 = arith.constant 0 : index
    %2 = vector.load %arg4[%c0_2, %c0_3] : memref<48x12xf32, #tpu.memory_space<vmem>>, vector<48x12xf32>
    %cst = arith.constant dense<0.000000e+00> : vector<1x12xf32>
    %3 = tpu.matmul %1, %2, %cst {dimension_numbers = #tpu.dot_dimension_numbers<[1], [0], [0], [1], [0, 0, 1, 1], [], []>} : vector<1x48xf32>, vector<48x12xf32>, vector<1x12xf32> -> vector<1x12xf32>
    %c0_4 = arith.constant 0 : index
    %c0_5 = arith.constant 0 : index
    %4 = vector.load %arg5[%c0_4, %c0_5] : memref<1x12xf32, #tpu.memory_space<vmem>>, vector<1x12xf32>
    %5 = arith.addf %3, %4 : vector<1x12xf32>
    %cst_6 = arith.constant 0.000000e+00 : f32
    %6 = vector.broadcast %cst_6 : f32 to vector<1x12xf32>
    %7 = arith.maximumf %5, %6 : vector<1x12xf32>
    %c0_7 = arith.constant 0 : index
    %c0_8 = arith.constant 0 : index
    %8 = vector.load %arg6[%c0_7, %c0_8] : memref<12x48xf32, #tpu.memory_space<vmem>>, vector<12x48xf32>
    %cst_9 = arith.constant dense<0.000000e+00> : vector<1x48xf32>
    %9 = tpu.matmul %7, %8, %cst_9 {dimension_numbers = #tpu.dot_dimension_numbers<[1], [0], [0], [1], [0, 0, 1, 1], [], []>} : vector<1x12xf32>, vector<12x48xf32>, vector<1x48xf32> -> vector<1x48xf32>
    %c0_10 = arith.constant 0 : index
    %c0_11 = arith.constant 0 : index
    %10 = vector.load %arg7[%c0_10, %c0_11] : memref<1x48xf32, #tpu.memory_space<vmem>>, vector<1x48xf32>
    %11 = arith.addf %9, %10 : vector<1x48xf32>
    %12 = arith.negf %11 : vector<1x48xf32>
    %13 = math.exp %12 : vector<1x48xf32>
    %cst_12 = arith.constant 1.000000e+00 : f32
    %14 = vector.broadcast %cst_12 : f32 to vector<1x48xf32>
    %15 = arith.addf %14, %13 : vector<1x48xf32>
    %16 = arith.divf %14, %15 : vector<1x48xf32>
    %c0_13 = arith.constant 0 : index
    %c0_14 = arith.constant 0 : index
    %c0_15 = arith.constant 0 : index
    %17 = vector.load %arg2[%c0_13, %c0_14, %c0_15] : memref<1x64x48xf32, #tpu.memory_space<vmem>>, vector<1x64x48xf32>
    %18 = vector.shape_cast %16 : vector<1x48xf32> to vector<1x1x48xf32>
    %19 = vector.broadcast %18 : vector<1x1x48xf32> to vector<1x64x48xf32>
    %20 = arith.mulf %17, %19 : vector<1x64x48xf32>
    %c0_16 = arith.constant 0 : index
    %c0_17 = arith.constant 0 : index
    %c0_18 = arith.constant 0 : index
    %21 = vector.load %arg8[%c0_16, %c0_17, %c0_18] : memref<1x64x48xf32, #tpu.memory_space<vmem>>, vector<1x64x48xf32>
    tpu.vector_store %arg8[%c0_16, %c0_17, %c0_18], %20 {strides = array<i32>} : memref<1x64x48xf32, #tpu.memory_space<vmem>>, vector<1x64x48xf32>,
    return
  }
  func.func @transform_0(%arg0: i32, %arg1: i32) -> (i32, i32, i32) {
    %c0_i32 = arith.constant 0 : i32
    %c0_i32_0 = arith.constant 0 : i32
    return %arg0, %arg1, %c0_i32 : i32, i32, i32
  }
  func.func @transform_1(%arg0: i32, %arg1: i32) -> (i32, i32, i32) {
    %c0_i32 = arith.constant 0 : i32
    %c0_i32_0 = arith.constant 0 : i32
    %c0_i32_1 = arith.constant 0 : i32
    return %arg0, %c0_i32, %c0_i32_0 : i32, i32, i32
  }
  func.func @transform_2(%arg0: i32, %arg1: i32) -> (i32, i32) {
    %c0_i32 = arith.constant 0 : i32
    %c0_i32_0 = arith.constant 0 : i32
    %c0_i32_1 = arith.constant 0 : i32
    return %c0_i32, %c0_i32_0 : i32, i32
  }
  func.func @transform_3(%arg0: i32, %arg1: i32) -> (i32, i32) {
    %c0_i32 = arith.constant 0 : i32
    %c0_i32_0 = arith.constant 0 : i32
    %c0_i32_1 = arith.constant 0 : i32
    return %c0_i32, %c0_i32_0 : i32, i32
  }
  func.func @transform_4(%arg0: i32, %arg1: i32) -> (i32, i32) {
    %c0_i32 = arith.constant 0 : i32
    %c0_i32_0 = arith.constant 0 : i32
    %c0_i32_1 = arith.constant 0 : i32
    return %c0_i32, %c0_i32_0 : i32, i32
  }
  func.func @transform_5(%arg0: i32, %arg1: i32) -> (i32, i32) {
    %c0_i32 = arith.constant 0 : i32
    %c0_i32_0 = arith.constant 0 : i32
    %c0_i32_1 = arith.constant 0 : i32
    return %c0_i32, %c0_i32_0 : i32, i32
  }
  func.func @transform_6(%arg0: i32, %arg1: i32) -> (i32, i32, i32) {
    %c0_i32 = arith.constant 0 : i32
    %c0_i32_0 = arith.constant 0 : i32
    return %arg0, %arg1, %c0_i32 : i32, i32, i32
  }
}

module attributes {stable_mosaic.version = 11 : i64} {
  func.func @_mm_bias_kernel(%arg0: i32, %arg1: memref<128x432xf32, #tpu.memory_space<vmem>>, %arg2: memref<432x128xf32, #tpu.memory_space<vmem>>, %arg3: memref<1x128xf32, #tpu.memory_space<vmem>>, %arg4: memref<128x128xf32, #tpu.memory_space<vmem>>) attributes {dimension_semantics = [#tpu.dimension_semantics<parallel>], iteration_bounds = array<i64: 1>, scalar_prefetch = 0 : i64, scratch_operands = 0 : i64, tpu.core_type = #tpu.core_type<tc>, window_params = [{transform_indices = @transform_0, window_bounds = array<i64: 128, 432>}, {pipeline_mode = #tpu.pipeline_mode<synchronous>, transform_indices = @transform_1, window_bounds = array<i64: 432, 128>}, {pipeline_mode = #tpu.pipeline_mode<synchronous>, transform_indices = @transform_2, window_bounds = array<i64: 1, 128>}, {transform_indices = @transform_3, window_bounds = array<i64: 128, 128>}]} {
    %c0 = arith.constant 0 : index
    %c0_0 = arith.constant 0 : index
    %0 = vector.load %arg1[%c0, %c0_0] : memref<128x432xf32, #tpu.memory_space<vmem>>, vector<128x432xf32>
    %1 = arith.truncf %0 : vector<128x432xf32> to vector<128x432xbf16>
    %c0_1 = arith.constant 0 : index
    %c0_2 = arith.constant 0 : index
    %2 = vector.load %arg2[%c0_1, %c0_2] : memref<432x128xf32, #tpu.memory_space<vmem>>, vector<432x128xf32>
    %3 = arith.truncf %2 : vector<432x128xf32> to vector<432x128xbf16>
    %cst = arith.constant dense<0.000000e+00> : vector<128x128xf32>
    %4 = tpu.matmul %1, %3, %cst {dimension_numbers = #tpu.dot_dimension_numbers<[1], [0], [0], [1], [0, 0, 1, 1], [], []>} : vector<128x432xbf16>, vector<432x128xbf16>, vector<128x128xf32> -> vector<128x128xf32>
    %c0_3 = arith.constant 0 : index
    %c0_4 = arith.constant 0 : index
    %5 = vector.load %arg3[%c0_3, %c0_4] : memref<1x128xf32, #tpu.memory_space<vmem>>, vector<1x128xf32>
    %6 = vector.broadcast %5 : vector<1x128xf32> to vector<128x128xf32>
    %7 = arith.addf %4, %6 : vector<128x128xf32>
    %c0_5 = arith.constant 0 : index
    %c0_6 = arith.constant 0 : index
    %8 = vector.load %arg4[%c0_5, %c0_6] : memref<128x128xf32, #tpu.memory_space<vmem>>, vector<128x128xf32>
    tpu.vector_store %arg4[%c0_5, %c0_6], %7 {strides = array<i32>} : memref<128x128xf32, #tpu.memory_space<vmem>>, vector<128x128xf32>,
    return
  }
  func.func @transform_0(%arg0: i32) -> (i32, i32) {
    %c0_i32 = arith.constant 0 : i32
    %c0_i32_0 = arith.constant 0 : i32
    return %arg0, %c0_i32 : i32, i32
  }
  func.func @transform_1(%arg0: i32) -> (i32, i32) {
    %c0_i32 = arith.constant 0 : i32
    %c0_i32_0 = arith.constant 0 : i32
    %c0_i32_1 = arith.constant 0 : i32
    return %c0_i32, %c0_i32_0 : i32, i32
  }
  func.func @transform_2(%arg0: i32) -> (i32, i32) {
    %c0_i32 = arith.constant 0 : i32
    %c0_i32_0 = arith.constant 0 : i32
    %c0_i32_1 = arith.constant 0 : i32
    return %c0_i32, %c0_i32_0 : i32, i32
  }
  func.func @transform_3(%arg0: i32) -> (i32, i32) {
    %c0_i32 = arith.constant 0 : i32
    %c0_i32_0 = arith.constant 0 : i32
    return %arg0, %c0_i32 : i32, i32
  }
}

module attributes {stable_mosaic.version = 11 : i64} {
  func.func @_affine_kernel(%arg0: i32, %arg1: memref<128x12xf32, #tpu.memory_space<vmem>>, %arg2: memref<1x12xf32, #tpu.memory_space<vmem>>, %arg3: memref<1x12xf32, #tpu.memory_space<vmem>>, %arg4: memref<128x12xf32, #tpu.memory_space<vmem>>) attributes {dimension_semantics = [#tpu.dimension_semantics<parallel>], iteration_bounds = array<i64: 1>, scalar_prefetch = 0 : i64, scratch_operands = 0 : i64, tpu.core_type = #tpu.core_type<tc>, window_params = [{transform_indices = @transform_0, window_bounds = array<i64: 128, 12>}, {pipeline_mode = #tpu.pipeline_mode<synchronous>, transform_indices = @transform_1, window_bounds = array<i64: 1, 12>}, {pipeline_mode = #tpu.pipeline_mode<synchronous>, transform_indices = @transform_2, window_bounds = array<i64: 1, 12>}, {transform_indices = @transform_3, window_bounds = array<i64: 128, 12>}]} {
    %c0 = arith.constant 0 : index
    %c0_0 = arith.constant 0 : index
    %0 = vector.load %arg1[%c0, %c0_0] : memref<128x12xf32, #tpu.memory_space<vmem>>, vector<128x12xf32>
    %c0_1 = arith.constant 0 : index
    %c0_2 = arith.constant 0 : index
    %1 = vector.load %arg2[%c0_1, %c0_2] : memref<1x12xf32, #tpu.memory_space<vmem>>, vector<1x12xf32>
    %2 = vector.broadcast %1 : vector<1x12xf32> to vector<128x12xf32>
    %3 = arith.mulf %0, %2 : vector<128x12xf32>
    %c0_3 = arith.constant 0 : index
    %c0_4 = arith.constant 0 : index
    %4 = vector.load %arg3[%c0_3, %c0_4] : memref<1x12xf32, #tpu.memory_space<vmem>>, vector<1x12xf32>
    %5 = vector.broadcast %4 : vector<1x12xf32> to vector<128x12xf32>
    %6 = arith.addf %3, %5 : vector<128x12xf32>
    %c0_5 = arith.constant 0 : index
    %c0_6 = arith.constant 0 : index
    %7 = vector.load %arg4[%c0_5, %c0_6] : memref<128x12xf32, #tpu.memory_space<vmem>>, vector<128x12xf32>
    tpu.vector_store %arg4[%c0_5, %c0_6], %6 {strides = array<i32>} : memref<128x12xf32, #tpu.memory_space<vmem>>, vector<128x12xf32>,
    return
  }
  func.func @transform_0(%arg0: i32) -> (i32, i32) {
    %c0_i32 = arith.constant 0 : i32
    %c0_i32_0 = arith.constant 0 : i32
    return %arg0, %c0_i32 : i32, i32
  }
  func.func @transform_1(%arg0: i32) -> (i32, i32) {
    %c0_i32 = arith.constant 0 : i32
    %c0_i32_0 = arith.constant 0 : i32
    %c0_i32_1 = arith.constant 0 : i32
    return %c0_i32, %c0_i32_0 : i32, i32
  }
  func.func @transform_2(%arg0: i32) -> (i32, i32) {
    %c0_i32 = arith.constant 0 : i32
    %c0_i32_0 = arith.constant 0 : i32
    %c0_i32_1 = arith.constant 0 : i32
    return %c0_i32, %c0_i32_0 : i32, i32
  }
  func.func @transform_3(%arg0: i32) -> (i32, i32) {
    %c0_i32 = arith.constant 0 : i32
    %c0_i32_0 = arith.constant 0 : i32
    return %arg0, %c0_i32 : i32, i32
  }
}

module attributes {stable_mosaic.version = 11 : i64} {
  func.func @_dw_conv_kernel(%arg0: i32, %arg1: memref<9x128x12xf32, #tpu.memory_space<vmem>>, %arg2: memref<9x1x12xf32, #tpu.memory_space<vmem>>, %arg3: memref<1x12xf32, #tpu.memory_space<vmem>>, %arg4: memref<128x12xf32, #tpu.memory_space<vmem>>) attributes {dimension_semantics = [#tpu.dimension_semantics<parallel>], iteration_bounds = array<i64: 1>, scalar_prefetch = 0 : i64, scratch_operands = 0 : i64, tpu.core_type = #tpu.core_type<tc>, window_params = [{transform_indices = @transform_0, window_bounds = array<i64: 9, 128, 12>}, {pipeline_mode = #tpu.pipeline_mode<synchronous>, transform_indices = @transform_1, window_bounds = array<i64: 9, 1, 12>}, {pipeline_mode = #tpu.pipeline_mode<synchronous>, transform_indices = @transform_2, window_bounds = array<i64: 1, 12>}, {transform_indices = @transform_3, window_bounds = array<i64: 128, 12>}]} {
    %c0 = arith.constant 0 : index
    %c0_0 = arith.constant 0 : index
    %c0_1 = arith.constant 0 : index
    %0 = vector.load %arg2[%c0, %c0_0, %c0_1] : memref<9x1x12xf32, #tpu.memory_space<vmem>>, vector<9x1x12xf32>
    %c0_2 = arith.constant 0 : index
    %c0_3 = arith.constant 0 : index
    %1 = vector.load %arg3[%c0_2, %c0_3] : memref<1x12xf32, #tpu.memory_space<vmem>>, vector<1x12xf32>
    %c0_4 = arith.constant 0 : index
    %c0_5 = arith.constant 0 : index
    %c0_6 = arith.constant 0 : index
    %2 = vector.load %arg1[%c0_4, %c0_5, %c0_6] : memref<9x128x12xf32, #tpu.memory_space<vmem>>, vector<1x128x12xf32>
    %3 = vector.shape_cast %2 : vector<1x128x12xf32> to vector<128x12xf32>
    %4 = vector.extract_strided_slice %0 {offsets = [0, 0, 0], sizes = [1, 1, 12], strides = [1, 1, 1]} : vector<9x1x12xf32> to vector<1x1x12xf32>
    %5 = vector.shape_cast %4 : vector<1x1x12xf32> to vector<1x12xf32>
    %6 = vector.broadcast %5 : vector<1x12xf32> to vector<128x12xf32>
    %7 = arith.mulf %3, %6 : vector<128x12xf32>
    %8 = vector.broadcast %1 : vector<1x12xf32> to vector<128x12xf32>
    %9 = arith.addf %7, %8 : vector<128x12xf32>
    %c1 = arith.constant 1 : index
    %c0_7 = arith.constant 0 : index
    %c0_8 = arith.constant 0 : index
    %10 = vector.load %arg1[%c1, %c0_7, %c0_8] : memref<9x128x12xf32, #tpu.memory_space<vmem>>, vector<1x128x12xf32>
    %11 = vector.shape_cast %10 : vector<1x128x12xf32> to vector<128x12xf32>
    %12 = vector.extract_strided_slice %0 {offsets = [1, 0, 0], sizes = [1, 1, 12], strides = [1, 1, 1]} : vector<9x1x12xf32> to vector<1x1x12xf32>
    %13 = vector.shape_cast %12 : vector<1x1x12xf32> to vector<1x12xf32>
    %14 = vector.broadcast %13 : vector<1x12xf32> to vector<128x12xf32>
    %15 = arith.mulf %11, %14 : vector<128x12xf32>
    %16 = arith.addf %9, %15 : vector<128x12xf32>
    %c2 = arith.constant 2 : index
    %c0_9 = arith.constant 0 : index
    %c0_10 = arith.constant 0 : index
    %17 = vector.load %arg1[%c2, %c0_9, %c0_10] : memref<9x128x12xf32, #tpu.memory_space<vmem>>, vector<1x128x12xf32>
    %18 = vector.shape_cast %17 : vector<1x128x12xf32> to vector<128x12xf32>
    %19 = vector.extract_strided_slice %0 {offsets = [2, 0, 0], sizes = [1, 1, 12], strides = [1, 1, 1]} : vector<9x1x12xf32> to vector<1x1x12xf32>
    %20 = vector.shape_cast %19 : vector<1x1x12xf32> to vector<1x12xf32>
    %21 = vector.broadcast %20 : vector<1x12xf32> to vector<128x12xf32>
    %22 = arith.mulf %18, %21 : vector<128x12xf32>
    %23 = arith.addf %16, %22 : vector<128x12xf32>
    %c3 = arith.constant 3 : index
    %c0_11 = arith.constant 0 : index
    %c0_12 = arith.constant 0 : index
    %24 = vector.load %arg1[%c3, %c0_11, %c0_12] : memref<9x128x12xf32, #tpu.memory_space<vmem>>, vector<1x128x12xf32>
    %25 = vector.shape_cast %24 : vector<1x128x12xf32> to vector<128x12xf32>
    %26 = vector.extract_strided_slice %0 {offsets = [3, 0, 0], sizes = [1, 1, 12], strides = [1, 1, 1]} : vector<9x1x12xf32> to vector<1x1x12xf32>
    %27 = vector.shape_cast %26 : vector<1x1x12xf32> to vector<1x12xf32>
    %28 = vector.broadcast %27 : vector<1x12xf32> to vector<128x12xf32>
    %29 = arith.mulf %25, %28 : vector<128x12xf32>
    %30 = arith.addf %23, %29 : vector<128x12xf32>
    %c4 = arith.constant 4 : index
    %c0_13 = arith.constant 0 : index
    %c0_14 = arith.constant 0 : index
    %31 = vector.load %arg1[%c4, %c0_13, %c0_14] : memref<9x128x12xf32, #tpu.memory_space<vmem>>, vector<1x128x12xf32>
    %32 = vector.shape_cast %31 : vector<1x128x12xf32> to vector<128x12xf32>
    %33 = vector.extract_strided_slice %0 {offsets = [4, 0, 0], sizes = [1, 1, 12], strides = [1, 1, 1]} : vector<9x1x12xf32> to vector<1x1x12xf32>
    %34 = vector.shape_cast %33 : vector<1x1x12xf32> to vector<1x12xf32>
    %35 = vector.broadcast %34 : vector<1x12xf32> to vector<128x12xf32>
    %36 = arith.mulf %32, %35 : vector<128x12xf32>
    %37 = arith.addf %30, %36 : vector<128x12xf32>
    %c5 = arith.constant 5 : index
    %c0_15 = arith.constant 0 : index
    %c0_16 = arith.constant 0 : index
    %38 = vector.load %arg1[%c5, %c0_15, %c0_16] : memref<9x128x12xf32, #tpu.memory_space<vmem>>, vector<1x128x12xf32>
    %39 = vector.shape_cast %38 : vector<1x128x12xf32> to vector<128x12xf32>
    %40 = vector.extract_strided_slice %0 {offsets = [5, 0, 0], sizes = [1, 1, 12], strides = [1, 1, 1]} : vector<9x1x12xf32> to vector<1x1x12xf32>
    %41 = vector.shape_cast %40 : vector<1x1x12xf32> to vector<1x12xf32>
    %42 = vector.broadcast %41 : vector<1x12xf32> to vector<128x12xf32>
    %43 = arith.mulf %39, %42 : vector<128x12xf32>
    %44 = arith.addf %37, %43 : vector<128x12xf32>
    %c6 = arith.constant 6 : index
    %c0_17 = arith.constant 0 : index
    %c0_18 = arith.constant 0 : index
    %45 = vector.load %arg1[%c6, %c0_17, %c0_18] : memref<9x128x12xf32, #tpu.memory_space<vmem>>, vector<1x128x12xf32>
    %46 = vector.shape_cast %45 : vector<1x128x12xf32> to vector<128x12xf32>
    %47 = vector.extract_strided_slice %0 {offsets = [6, 0, 0], sizes = [1, 1, 12], strides = [1, 1, 1]} : vector<9x1x12xf32> to vector<1x1x12xf32>
    %48 = vector.shape_cast %47 : vector<1x1x12xf32> to vector<1x12xf32>
    %49 = vector.broadcast %48 : vector<1x12xf32> to vector<128x12xf32>
    %50 = arith.mulf %46, %49 : vector<128x12xf32>
    %51 = arith.addf %44, %50 : vector<128x12xf32>
    %c7 = arith.constant 7 : index
    %c0_19 = arith.constant 0 : index
    %c0_20 = arith.constant 0 : index
    %52 = vector.load %arg1[%c7, %c0_19, %c0_20] : memref<9x128x12xf32, #tpu.memory_space<vmem>>, vector<1x128x12xf32>
    %53 = vector.shape_cast %52 : vector<1x128x12xf32> to vector<128x12xf32>
    %54 = vector.extract_strided_slice %0 {offsets = [7, 0, 0], sizes = [1, 1, 12], strides = [1, 1, 1]} : vector<9x1x12xf32> to vector<1x1x12xf32>
    %55 = vector.shape_cast %54 : vector<1x1x12xf32> to vector<1x12xf32>
    %56 = vector.broadcast %55 : vector<1x12xf32> to vector<128x12xf32>
    %57 = arith.mulf %53, %56 : vector<128x12xf32>
    %58 = arith.addf %51, %57 : vector<128x12xf32>
    %c8 = arith.constant 8 : index
    %c0_21 = arith.constant 0 : index
    %c0_22 = arith.constant 0 : index
    %59 = vector.load %arg1[%c8, %c0_21, %c0_22] : memref<9x128x12xf32, #tpu.memory_space<vmem>>, vector<1x128x12xf32>
    %60 = vector.shape_cast %59 : vector<1x128x12xf32> to vector<128x12xf32>
    %61 = vector.extract_strided_slice %0 {offsets = [8, 0, 0], sizes = [1, 1, 12], strides = [1, 1, 1]} : vector<9x1x12xf32> to vector<1x1x12xf32>
    %62 = vector.shape_cast %61 : vector<1x1x12xf32> to vector<1x12xf32>
    %63 = vector.broadcast %62 : vector<1x12xf32> to vector<128x12xf32>
    %64 = arith.mulf %60, %63 : vector<128x12xf32>
    %65 = arith.addf %58, %64 : vector<128x12xf32>
    %c0_23 = arith.constant 0 : index
    %c0_24 = arith.constant 0 : index
    %66 = vector.load %arg4[%c0_23, %c0_24] : memref<128x12xf32, #tpu.memory_space<vmem>>, vector<128x12xf32>
    tpu.vector_store %arg4[%c0_23, %c0_24], %65 {strides = array<i32>} : memref<128x12xf32, #tpu.memory_space<vmem>>, vector<128x12xf32>,
    return
  }
  func.func @transform_0(%arg0: i32) -> (i32, i32, i32) {
    %c0_i32 = arith.constant 0 : i32
    %c0_i32_0 = arith.constant 0 : i32
    %c0_i32_1 = arith.constant 0 : i32
    return %c0_i32, %arg0, %c0_i32_0 : i32, i32, i32
  }
  func.func @transform_1(%arg0: i32) -> (i32, i32, i32) {
    %c0_i32 = arith.constant 0 : i32
    %c0_i32_0 = arith.constant 0 : i32
    %c0_i32_1 = arith.constant 0 : i32
    %c0_i32_2 = arith.constant 0 : i32
    return %c0_i32, %c0_i32_0, %c0_i32_1 : i32, i32, i32
  }
  func.func @transform_2(%arg0: i32) -> (i32, i32) {
    %c0_i32 = arith.constant 0 : i32
    %c0_i32_0 = arith.constant 0 : i32
    %c0_i32_1 = arith.constant 0 : i32
    return %c0_i32, %c0_i32_0 : i32, i32
  }
  func.func @transform_3(%arg0: i32) -> (i32, i32) {
    %c0_i32 = arith.constant 0 : i32
    %c0_i32_0 = arith.constant 0 : i32
    return %arg0, %c0_i32 : i32, i32
  }
}

module attributes {stable_mosaic.version = 11 : i64} {
  func.func @_dw_conv_kernel(%arg0: i32, %arg1: memref<9x128x16xf32, #tpu.memory_space<vmem>>, %arg2: memref<9x1x16xf32, #tpu.memory_space<vmem>>, %arg3: memref<1x16xf32, #tpu.memory_space<vmem>>, %arg4: memref<128x16xf32, #tpu.memory_space<vmem>>) attributes {dimension_semantics = [#tpu.dimension_semantics<parallel>], iteration_bounds = array<i64: 1>, scalar_prefetch = 0 : i64, scratch_operands = 0 : i64, tpu.core_type = #tpu.core_type<tc>, window_params = [{transform_indices = @transform_0, window_bounds = array<i64: 9, 128, 16>}, {pipeline_mode = #tpu.pipeline_mode<synchronous>, transform_indices = @transform_1, window_bounds = array<i64: 9, 1, 16>}, {pipeline_mode = #tpu.pipeline_mode<synchronous>, transform_indices = @transform_2, window_bounds = array<i64: 1, 16>}, {transform_indices = @transform_3, window_bounds = array<i64: 128, 16>}]} {
    %c0 = arith.constant 0 : index
    %c0_0 = arith.constant 0 : index
    %c0_1 = arith.constant 0 : index
    %0 = vector.load %arg2[%c0, %c0_0, %c0_1] : memref<9x1x16xf32, #tpu.memory_space<vmem>>, vector<9x1x16xf32>
    %c0_2 = arith.constant 0 : index
    %c0_3 = arith.constant 0 : index
    %1 = vector.load %arg3[%c0_2, %c0_3] : memref<1x16xf32, #tpu.memory_space<vmem>>, vector<1x16xf32>
    %c0_4 = arith.constant 0 : index
    %c0_5 = arith.constant 0 : index
    %c0_6 = arith.constant 0 : index
    %2 = vector.load %arg1[%c0_4, %c0_5, %c0_6] : memref<9x128x16xf32, #tpu.memory_space<vmem>>, vector<1x128x16xf32>
    %3 = vector.shape_cast %2 : vector<1x128x16xf32> to vector<128x16xf32>
    %4 = vector.extract_strided_slice %0 {offsets = [0, 0, 0], sizes = [1, 1, 16], strides = [1, 1, 1]} : vector<9x1x16xf32> to vector<1x1x16xf32>
    %5 = vector.shape_cast %4 : vector<1x1x16xf32> to vector<1x16xf32>
    %6 = vector.broadcast %5 : vector<1x16xf32> to vector<128x16xf32>
    %7 = arith.mulf %3, %6 : vector<128x16xf32>
    %8 = vector.broadcast %1 : vector<1x16xf32> to vector<128x16xf32>
    %9 = arith.addf %7, %8 : vector<128x16xf32>
    %c1 = arith.constant 1 : index
    %c0_7 = arith.constant 0 : index
    %c0_8 = arith.constant 0 : index
    %10 = vector.load %arg1[%c1, %c0_7, %c0_8] : memref<9x128x16xf32, #tpu.memory_space<vmem>>, vector<1x128x16xf32>
    %11 = vector.shape_cast %10 : vector<1x128x16xf32> to vector<128x16xf32>
    %12 = vector.extract_strided_slice %0 {offsets = [1, 0, 0], sizes = [1, 1, 16], strides = [1, 1, 1]} : vector<9x1x16xf32> to vector<1x1x16xf32>
    %13 = vector.shape_cast %12 : vector<1x1x16xf32> to vector<1x16xf32>
    %14 = vector.broadcast %13 : vector<1x16xf32> to vector<128x16xf32>
    %15 = arith.mulf %11, %14 : vector<128x16xf32>
    %16 = arith.addf %9, %15 : vector<128x16xf32>
    %c2 = arith.constant 2 : index
    %c0_9 = arith.constant 0 : index
    %c0_10 = arith.constant 0 : index
    %17 = vector.load %arg1[%c2, %c0_9, %c0_10] : memref<9x128x16xf32, #tpu.memory_space<vmem>>, vector<1x128x16xf32>
    %18 = vector.shape_cast %17 : vector<1x128x16xf32> to vector<128x16xf32>
    %19 = vector.extract_strided_slice %0 {offsets = [2, 0, 0], sizes = [1, 1, 16], strides = [1, 1, 1]} : vector<9x1x16xf32> to vector<1x1x16xf32>
    %20 = vector.shape_cast %19 : vector<1x1x16xf32> to vector<1x16xf32>
    %21 = vector.broadcast %20 : vector<1x16xf32> to vector<128x16xf32>
    %22 = arith.mulf %18, %21 : vector<128x16xf32>
    %23 = arith.addf %16, %22 : vector<128x16xf32>
    %c3 = arith.constant 3 : index
    %c0_11 = arith.constant 0 : index
    %c0_12 = arith.constant 0 : index
    %24 = vector.load %arg1[%c3, %c0_11, %c0_12] : memref<9x128x16xf32, #tpu.memory_space<vmem>>, vector<1x128x16xf32>
    %25 = vector.shape_cast %24 : vector<1x128x16xf32> to vector<128x16xf32>
    %26 = vector.extract_strided_slice %0 {offsets = [3, 0, 0], sizes = [1, 1, 16], strides = [1, 1, 1]} : vector<9x1x16xf32> to vector<1x1x16xf32>
    %27 = vector.shape_cast %26 : vector<1x1x16xf32> to vector<1x16xf32>
    %28 = vector.broadcast %27 : vector<1x16xf32> to vector<128x16xf32>
    %29 = arith.mulf %25, %28 : vector<128x16xf32>
    %30 = arith.addf %23, %29 : vector<128x16xf32>
    %c4 = arith.constant 4 : index
    %c0_13 = arith.constant 0 : index
    %c0_14 = arith.constant 0 : index
    %31 = vector.load %arg1[%c4, %c0_13, %c0_14] : memref<9x128x16xf32, #tpu.memory_space<vmem>>, vector<1x128x16xf32>
    %32 = vector.shape_cast %31 : vector<1x128x16xf32> to vector<128x16xf32>
    %33 = vector.extract_strided_slice %0 {offsets = [4, 0, 0], sizes = [1, 1, 16], strides = [1, 1, 1]} : vector<9x1x16xf32> to vector<1x1x16xf32>
    %34 = vector.shape_cast %33 : vector<1x1x16xf32> to vector<1x16xf32>
    %35 = vector.broadcast %34 : vector<1x16xf32> to vector<128x16xf32>
    %36 = arith.mulf %32, %35 : vector<128x16xf32>
    %37 = arith.addf %30, %36 : vector<128x16xf32>
    %c5 = arith.constant 5 : index
    %c0_15 = arith.constant 0 : index
    %c0_16 = arith.constant 0 : index
    %38 = vector.load %arg1[%c5, %c0_15, %c0_16] : memref<9x128x16xf32, #tpu.memory_space<vmem>>, vector<1x128x16xf32>
    %39 = vector.shape_cast %38 : vector<1x128x16xf32> to vector<128x16xf32>
    %40 = vector.extract_strided_slice %0 {offsets = [5, 0, 0], sizes = [1, 1, 16], strides = [1, 1, 1]} : vector<9x1x16xf32> to vector<1x1x16xf32>
    %41 = vector.shape_cast %40 : vector<1x1x16xf32> to vector<1x16xf32>
    %42 = vector.broadcast %41 : vector<1x16xf32> to vector<128x16xf32>
    %43 = arith.mulf %39, %42 : vector<128x16xf32>
    %44 = arith.addf %37, %43 : vector<128x16xf32>
    %c6 = arith.constant 6 : index
    %c0_17 = arith.constant 0 : index
    %c0_18 = arith.constant 0 : index
    %45 = vector.load %arg1[%c6, %c0_17, %c0_18] : memref<9x128x16xf32, #tpu.memory_space<vmem>>, vector<1x128x16xf32>
    %46 = vector.shape_cast %45 : vector<1x128x16xf32> to vector<128x16xf32>
    %47 = vector.extract_strided_slice %0 {offsets = [6, 0, 0], sizes = [1, 1, 16], strides = [1, 1, 1]} : vector<9x1x16xf32> to vector<1x1x16xf32>
    %48 = vector.shape_cast %47 : vector<1x1x16xf32> to vector<1x16xf32>
    %49 = vector.broadcast %48 : vector<1x16xf32> to vector<128x16xf32>
    %50 = arith.mulf %46, %49 : vector<128x16xf32>
    %51 = arith.addf %44, %50 : vector<128x16xf32>
    %c7 = arith.constant 7 : index
    %c0_19 = arith.constant 0 : index
    %c0_20 = arith.constant 0 : index
    %52 = vector.load %arg1[%c7, %c0_19, %c0_20] : memref<9x128x16xf32, #tpu.memory_space<vmem>>, vector<1x128x16xf32>
    %53 = vector.shape_cast %52 : vector<1x128x16xf32> to vector<128x16xf32>
    %54 = vector.extract_strided_slice %0 {offsets = [7, 0, 0], sizes = [1, 1, 16], strides = [1, 1, 1]} : vector<9x1x16xf32> to vector<1x1x16xf32>
    %55 = vector.shape_cast %54 : vector<1x1x16xf32> to vector<1x16xf32>
    %56 = vector.broadcast %55 : vector<1x16xf32> to vector<128x16xf32>
    %57 = arith.mulf %53, %56 : vector<128x16xf32>
    %58 = arith.addf %51, %57 : vector<128x16xf32>
    %c8 = arith.constant 8 : index
    %c0_21 = arith.constant 0 : index
    %c0_22 = arith.constant 0 : index
    %59 = vector.load %arg1[%c8, %c0_21, %c0_22] : memref<9x128x16xf32, #tpu.memory_space<vmem>>, vector<1x128x16xf32>
    %60 = vector.shape_cast %59 : vector<1x128x16xf32> to vector<128x16xf32>
    %61 = vector.extract_strided_slice %0 {offsets = [8, 0, 0], sizes = [1, 1, 16], strides = [1, 1, 1]} : vector<9x1x16xf32> to vector<1x1x16xf32>
    %62 = vector.shape_cast %61 : vector<1x1x16xf32> to vector<1x16xf32>
    %63 = vector.broadcast %62 : vector<1x16xf32> to vector<128x16xf32>
    %64 = arith.mulf %60, %63 : vector<128x16xf32>
    %65 = arith.addf %58, %64 : vector<128x16xf32>
    %c0_23 = arith.constant 0 : index
    %c0_24 = arith.constant 0 : index
    %66 = vector.load %arg4[%c0_23, %c0_24] : memref<128x16xf32, #tpu.memory_space<vmem>>, vector<128x16xf32>
    tpu.vector_store %arg4[%c0_23, %c0_24], %65 {strides = array<i32>} : memref<128x16xf32, #tpu.memory_space<vmem>>, vector<128x16xf32>,
    return
  }
  func.func @transform_0(%arg0: i32) -> (i32, i32, i32) {
    %c0_i32 = arith.constant 0 : i32
    %c0_i32_0 = arith.constant 0 : i32
    %c0_i32_1 = arith.constant 0 : i32
    return %c0_i32, %arg0, %c0_i32_0 : i32, i32, i32
  }
  func.func @transform_1(%arg0: i32) -> (i32, i32, i32) {
    %c0_i32 = arith.constant 0 : i32
    %c0_i32_0 = arith.constant 0 : i32
    %c0_i32_1 = arith.constant 0 : i32
    %c0_i32_2 = arith.constant 0 : i32
    return %c0_i32, %c0_i32_0, %c0_i32_1 : i32, i32, i32
  }
  func.func @transform_2(%arg0: i32) -> (i32, i32) {
    %c0_i32 = arith.constant 0 : i32
    %c0_i32_0 = arith.constant 0 : i32
    %c0_i32_1 = arith.constant 0 : i32
    return %c0_i32, %c0_i32_0 : i32, i32
  }
  func.func @transform_3(%arg0: i32) -> (i32, i32) {
    %c0_i32 = arith.constant 0 : i32
    %c0_i32_0 = arith.constant 0 : i32
    return %arg0, %c0_i32 : i32, i32
  }
}

module attributes {stable_mosaic.version = 11 : i64} {
  func.func @_mm_bias_kernel(%arg0: i32, %arg1: memref<128x16xf32, #tpu.memory_space<vmem>>, %arg2: memref<16x128xf32, #tpu.memory_space<vmem>>, %arg3: memref<1x128xf32, #tpu.memory_space<vmem>>, %arg4: memref<128x128xf32, #tpu.memory_space<vmem>>) attributes {dimension_semantics = [#tpu.dimension_semantics<parallel>], iteration_bounds = array<i64: 1>, scalar_prefetch = 0 : i64, scratch_operands = 0 : i64, tpu.core_type = #tpu.core_type<tc>, window_params = [{transform_indices = @transform_0, window_bounds = array<i64: 128, 16>}, {pipeline_mode = #tpu.pipeline_mode<synchronous>, transform_indices = @transform_1, window_bounds = array<i64: 16, 128>}, {pipeline_mode = #tpu.pipeline_mode<synchronous>, transform_indices = @transform_2, window_bounds = array<i64: 1, 128>}, {transform_indices = @transform_3, window_bounds = array<i64: 128, 128>}]} {
    %c0 = arith.constant 0 : index
    %c0_0 = arith.constant 0 : index
    %0 = vector.load %arg1[%c0, %c0_0] : memref<128x16xf32, #tpu.memory_space<vmem>>, vector<128x16xf32>
    %1 = arith.truncf %0 : vector<128x16xf32> to vector<128x16xbf16>
    %c0_1 = arith.constant 0 : index
    %c0_2 = arith.constant 0 : index
    %2 = vector.load %arg2[%c0_1, %c0_2] : memref<16x128xf32, #tpu.memory_space<vmem>>, vector<16x128xf32>
    %3 = arith.truncf %2 : vector<16x128xf32> to vector<16x128xbf16>
    %cst = arith.constant dense<0.000000e+00> : vector<128x128xf32>
    %4 = tpu.matmul %1, %3, %cst {dimension_numbers = #tpu.dot_dimension_numbers<[1], [0], [0], [1], [0, 0, 1, 1], [], []>} : vector<128x16xbf16>, vector<16x128xbf16>, vector<128x128xf32> -> vector<128x128xf32>
    %c0_3 = arith.constant 0 : index
    %c0_4 = arith.constant 0 : index
    %5 = vector.load %arg3[%c0_3, %c0_4] : memref<1x128xf32, #tpu.memory_space<vmem>>, vector<1x128xf32>
    %6 = vector.broadcast %5 : vector<1x128xf32> to vector<128x128xf32>
    %7 = arith.addf %4, %6 : vector<128x128xf32>
    %c0_5 = arith.constant 0 : index
    %c0_6 = arith.constant 0 : index
    %8 = vector.load %arg4[%c0_5, %c0_6] : memref<128x128xf32, #tpu.memory_space<vmem>>, vector<128x128xf32>
    tpu.vector_store %arg4[%c0_5, %c0_6], %7 {strides = array<i32>} : memref<128x128xf32, #tpu.memory_space<vmem>>, vector<128x128xf32>,
    return
  }
  func.func @transform_0(%arg0: i32) -> (i32, i32) {
    %c0_i32 = arith.constant 0 : i32
    %c0_i32_0 = arith.constant 0 : i32
    return %arg0, %c0_i32 : i32, i32
  }
  func.func @transform_1(%arg0: i32) -> (i32, i32) {
    %c0_i32 = arith.constant 0 : i32
    %c0_i32_0 = arith.constant 0 : i32
    %c0_i32_1 = arith.constant 0 : i32
    return %c0_i32, %c0_i32_0 : i32, i32
  }
  func.func @transform_2(%arg0: i32) -> (i32, i32) {
    %c0_i32 = arith.constant 0 : i32
    %c0_i32_0 = arith.constant 0 : i32
    %c0_i32_1 = arith.constant 0 : i32
    return %c0_i32, %c0_i32_0 : i32, i32
  }
  func.func @transform_3(%arg0: i32) -> (i32, i32) {
    %c0_i32 = arith.constant 0 : i32
    %c0_i32_0 = arith.constant 0 : i32
    return %arg0, %c0_i32 : i32, i32
  }
}

module attributes {stable_mosaic.version = 11 : i64} {
  func.func @_affine_kernel(%arg0: i32, %arg1: memref<128x16xf32, #tpu.memory_space<vmem>>, %arg2: memref<1x16xf32, #tpu.memory_space<vmem>>, %arg3: memref<1x16xf32, #tpu.memory_space<vmem>>, %arg4: memref<128x16xf32, #tpu.memory_space<vmem>>) attributes {dimension_semantics = [#tpu.dimension_semantics<parallel>], iteration_bounds = array<i64: 1>, scalar_prefetch = 0 : i64, scratch_operands = 0 : i64, tpu.core_type = #tpu.core_type<tc>, window_params = [{transform_indices = @transform_0, window_bounds = array<i64: 128, 16>}, {pipeline_mode = #tpu.pipeline_mode<synchronous>, transform_indices = @transform_1, window_bounds = array<i64: 1, 16>}, {pipeline_mode = #tpu.pipeline_mode<synchronous>, transform_indices = @transform_2, window_bounds = array<i64: 1, 16>}, {transform_indices = @transform_3, window_bounds = array<i64: 128, 16>}]} {
    %c0 = arith.constant 0 : index
    %c0_0 = arith.constant 0 : index
    %0 = vector.load %arg1[%c0, %c0_0] : memref<128x16xf32, #tpu.memory_space<vmem>>, vector<128x16xf32>
    %c0_1 = arith.constant 0 : index
    %c0_2 = arith.constant 0 : index
    %1 = vector.load %arg2[%c0_1, %c0_2] : memref<1x16xf32, #tpu.memory_space<vmem>>, vector<1x16xf32>
    %2 = vector.broadcast %1 : vector<1x16xf32> to vector<128x16xf32>
    %3 = arith.mulf %0, %2 : vector<128x16xf32>
    %c0_3 = arith.constant 0 : index
    %c0_4 = arith.constant 0 : index
    %4 = vector.load %arg3[%c0_3, %c0_4] : memref<1x16xf32, #tpu.memory_space<vmem>>, vector<1x16xf32>
    %5 = vector.broadcast %4 : vector<1x16xf32> to vector<128x16xf32>
    %6 = arith.addf %3, %5 : vector<128x16xf32>
    %c0_5 = arith.constant 0 : index
    %c0_6 = arith.constant 0 : index
    %7 = vector.load %arg4[%c0_5, %c0_6] : memref<128x16xf32, #tpu.memory_space<vmem>>, vector<128x16xf32>
    tpu.vector_store %arg4[%c0_5, %c0_6], %6 {strides = array<i32>} : memref<128x16xf32, #tpu.memory_space<vmem>>, vector<128x16xf32>,
    return
  }
  func.func @transform_0(%arg0: i32) -> (i32, i32) {
    %c0_i32 = arith.constant 0 : i32
    %c0_i32_0 = arith.constant 0 : i32
    return %arg0, %c0_i32 : i32, i32
  }
  func.func @transform_1(%arg0: i32) -> (i32, i32) {
    %c0_i32 = arith.constant 0 : i32
    %c0_i32_0 = arith.constant 0 : i32
    %c0_i32_1 = arith.constant 0 : i32
    return %c0_i32, %c0_i32_0 : i32, i32
  }
  func.func @transform_2(%arg0: i32) -> (i32, i32) {
    %c0_i32 = arith.constant 0 : i32
    %c0_i32_0 = arith.constant 0 : i32
    %c0_i32_1 = arith.constant 0 : i32
    return %c0_i32, %c0_i32_0 : i32, i32
  }
  func.func @transform_3(%arg0: i32) -> (i32, i32) {
    %c0_i32 = arith.constant 0 : i32
    %c0_i32_0 = arith.constant 0 : i32
    return %arg0, %c0_i32 : i32, i32
  }
}

module attributes {stable_mosaic.version = 11 : i64} {
  func.func @_affine_kernel(%arg0: i32, %arg1: memref<128x24xf32, #tpu.memory_space<vmem>>, %arg2: memref<1x24xf32, #tpu.memory_space<vmem>>, %arg3: memref<1x24xf32, #tpu.memory_space<vmem>>, %arg4: memref<128x24xf32, #tpu.memory_space<vmem>>) attributes {dimension_semantics = [#tpu.dimension_semantics<parallel>], iteration_bounds = array<i64: 1>, scalar_prefetch = 0 : i64, scratch_operands = 0 : i64, tpu.core_type = #tpu.core_type<tc>, window_params = [{transform_indices = @transform_0, window_bounds = array<i64: 128, 24>}, {pipeline_mode = #tpu.pipeline_mode<synchronous>, transform_indices = @transform_1, window_bounds = array<i64: 1, 24>}, {pipeline_mode = #tpu.pipeline_mode<synchronous>, transform_indices = @transform_2, window_bounds = array<i64: 1, 24>}, {transform_indices = @transform_3, window_bounds = array<i64: 128, 24>}]} {
    %c0 = arith.constant 0 : index
    %c0_0 = arith.constant 0 : index
    %0 = vector.load %arg1[%c0, %c0_0] : memref<128x24xf32, #tpu.memory_space<vmem>>, vector<128x24xf32>
    %c0_1 = arith.constant 0 : index
    %c0_2 = arith.constant 0 : index
    %1 = vector.load %arg2[%c0_1, %c0_2] : memref<1x24xf32, #tpu.memory_space<vmem>>, vector<1x24xf32>
    %2 = vector.broadcast %1 : vector<1x24xf32> to vector<128x24xf32>
    %3 = arith.mulf %0, %2 : vector<128x24xf32>
    %c0_3 = arith.constant 0 : index
    %c0_4 = arith.constant 0 : index
    %4 = vector.load %arg3[%c0_3, %c0_4] : memref<1x24xf32, #tpu.memory_space<vmem>>, vector<1x24xf32>
    %5 = vector.broadcast %4 : vector<1x24xf32> to vector<128x24xf32>
    %6 = arith.addf %3, %5 : vector<128x24xf32>
    %c0_5 = arith.constant 0 : index
    %c0_6 = arith.constant 0 : index
    %7 = vector.load %arg4[%c0_5, %c0_6] : memref<128x24xf32, #tpu.memory_space<vmem>>, vector<128x24xf32>
    tpu.vector_store %arg4[%c0_5, %c0_6], %6 {strides = array<i32>} : memref<128x24xf32, #tpu.memory_space<vmem>>, vector<128x24xf32>,
    return
  }
  func.func @transform_0(%arg0: i32) -> (i32, i32) {
    %c0_i32 = arith.constant 0 : i32
    %c0_i32_0 = arith.constant 0 : i32
    return %arg0, %c0_i32 : i32, i32
  }
  func.func @transform_1(%arg0: i32) -> (i32, i32) {
    %c0_i32 = arith.constant 0 : i32
    %c0_i32_0 = arith.constant 0 : i32
    %c0_i32_1 = arith.constant 0 : i32
    return %c0_i32, %c0_i32_0 : i32, i32
  }
  func.func @transform_2(%arg0: i32) -> (i32, i32) {
    %c0_i32 = arith.constant 0 : i32
    %c0_i32_0 = arith.constant 0 : i32
    %c0_i32_1 = arith.constant 0 : i32
    return %c0_i32, %c0_i32_0 : i32, i32
  }
  func.func @transform_3(%arg0: i32) -> (i32, i32) {
    %c0_i32 = arith.constant 0 : i32
    %c0_i32_0 = arith.constant 0 : i32
    return %arg0, %c0_i32 : i32, i32
  }
}

</mosaic_0001>

<llo_original>
// kernel: _lambda_.20
$region0: #{_lambda_.20}
  #allocation0 [shape = 'u32[]', space=smem, size = 0x4, offset = 0x4, fixed_abs, tag = 'smem constant byte address 0x4 - core index']
  #allocation1 [shape = 'u32[144,128]{1,0:T(1,128)}', space=vmem, size = 0x12000, scoped, tag = 'internal scratch']
  %s0 = inlined_call_operand.vmem [shape: f32[512,144], index: 0, kind: input, shape index: {}]
  %s1 = inlined_call_operand.vmem [shape: f32[144,128], index: 1, kind: input, shape index: {}]
  %s2 = inlined_call_operand.vmem [shape: f32[1,128], index: 2, kind: input, shape index: {}]
  %s3 = inlined_call_operand.vmem [shape: f32[512,128], index: 3, kind: output, shape index: {}]
  %s4 = sld [smem:[#allocation0]]
  $region45: #{_lambda_.20} parent=0
    _
  %s6 = ssub.s32 1, %s4
  %s7 = scalar_select 0, %s6, %s4
  loop: start=0, step=1, limit=4
  $region2: #{_lambda_.20} parent=0 // loop_pre_header
    _
  $region3: #{_lambda_.20} parent=0 // loop_header
    %s9 = sphi 0, %s13
    %p10 = scmp.ge.s32.totalorder %s9, 4
    %s19 = sphi 0, %s21
    %s22 = sphi 0, %s19
    %s23 = sphi 0, %s22
    %s39 = sphi 0, %s23
    %s43 = sphi 0, %s43
    %s45 = sphi 0, %s43
    %s46 = sphi 0, %s45
    %s60 = sphi 0, %s46
    %s64 = sphi 0, %s64
    %s66 = sphi 0, %s64
    %s67 = sphi 0, %s66
    %s81 = sphi 0, %s67
    %s87 = sphi 0, %s89
    %s90 = sphi 0, %s87
    %s91 = sphi 0, %s90
    %s107 = sphi 0, %s91
  $region4: #{_lambda_.20} parent=0 // loop_header_branch
    %12 = sbr.rel (%p10) target = $region8
  $region5: #{_lambda_.20} parent=0 // loop_body
    %s14 = ssub.s32 %s9, 1
    %s15 = ssub.s32 %s9, 2
    %s16 = sadd.s32 %s9, 1
    %s17 = ssub.s32 %s9, %s16
    %p18 = scmp.eq.s32.totalorder %s17, 0
    %s20 = sadd.s32 %s19, 1
    %s21 = scalar_select %p18, %s19, %s20
    %p24 = pneg %p18
    %p25 = scmp.eq.s32.totalorder %s9, 1
    %p26 = por %p24, %p25
    %p27 = scmp.ne.s32.totalorder %s19, %s22
    %p28 = scmp.eq.s32.totalorder %s9, 0
    %p29 = por %p27, %p28
    %p30 = scmp.ne.s32.totalorder %s19, %s22
    %p31 = scmp.eq.s32.totalorder %s14, 1
    %p32 = por %p30, %p31
    %p33 = scmp.ne.s32.totalorder %s22, %s23
    %p34 = scmp.eq.s32.totalorder %s14, 0
    %p35 = por %p33, %p34
    %p36 = scmp.ne.s32.totalorder %s22, %s23
    %p37 = scmp.eq.s32.totalorder %s15, 1
    %p38 = por %p36, %p37
    %p40 = scmp.ne.s32.totalorder %s23, %s39
    %p41 = scmp.eq.s32.totalorder %s15, 0
    %p42 = por %p40, %p41
    %s44 = sadd.s32 %s43, 1
    %p47 = scmp.eq.s32.totalorder %s9, 1
    %p48 = scmp.ne.s32.totalorder %s43, %s45
    %p49 = scmp.eq.s32.totalorder %s9, 0
    %p50 = por %p48, %p49
    %p51 = scmp.ne.s32.totalorder %s43, %s45
    %p52 = scmp.eq.s32.totalorder %s14, 1
    %p53 = por %p51, %p52
    %p54 = scmp.ne.s32.totalorder %s45, %s46
    %p55 = scmp.eq.s32.totalorder %s14, 0
    %p56 = por %p54, %p55
    %p57 = scmp.ne.s32.totalorder %s45, %s46
    %p58 = scmp.eq.s32.totalorder %s15, 1
    %p59 = por %p57, %p58
    %p61 = scmp.ne.s32.totalorder %s46, %s60
    %p62 = scmp.eq.s32.totalorder %s15, 0
    %p63 = por %p61, %p62
    %s65 = sadd.s32 %s64, 1
    %p68 = scmp.eq.s32.totalorder %s9, 1
    %p69 = scmp.ne.s32.totalorder %s64, %s66
    %p70 = scmp.eq.s32.totalorder %s9, 0
    %p71 = por %p69, %p70
    %p72 = scmp.ne.s32.totalorder %s64, %s66
    %p73 = scmp.eq.s32.totalorder %s14, 1
    %p74 = por %p72, %p73
    %p75 = scmp.ne.s32.totalorder %s66, %s67
    %p76 = scmp.eq.s32.totalorder %s14, 0
    %p77 = por %p75, %p76
    %p78 = scmp.ne.s32.totalorder %s66, %s67
    %p79 = scmp.eq.s32.totalorder %s15, 1
    %p80 = por %p78, %p79
    %p82 = scmp.ne.s32.totalorder %s67, %s81
    %p83 = scmp.eq.s32.totalorder %s15, 0
    %p84 = por %p82, %p83
    %s85 = ssub.s32 %s9, %s16
    %p86 = scmp.eq.s32.totalorder %s85, 0
    %s88 = sadd.s32 %s87, 1
    %s89 = scalar_select %p86, %s87, %s88
    %p92 = pneg %p86
    %p93 = scmp.eq.s32.totalorder %s9, 1
    %p94 = por %p92, %p93
    %p95 = scmp.ne.s32.totalorder %s87, %s90
    %p96 = scmp.eq.s32.totalorder %s9, 0
    %p97 = por %p95, %p96
    %p98 = scmp.ne.s32.totalorder %s87, %s90
    %p99 = scmp.eq.s32.totalorder %s14, 1
    %p100 = por %p98, %p99
    %p101 = scmp.ne.s32.totalorder %s90, %s91
    %p102 = scmp.eq.s32.totalorder %s14, 0
    %p103 = por %p101, %p102
    %p104 = scmp.ne.s32.totalorder %s90, %s91
    %p105 = scmp.eq.s32.totalorder %s15, 1
    %p106 = por %p104, %p105
    %p108 = scmp.ne.s32.totalorder %s91, %s107
    %p109 = scmp.eq.s32.totalorder %s15, 0
    %p110 = por %p108, %p109
    %p111 = scmp.le.s32.totalorder 1, %s9
    %p112 = scmp.lt.s32.totalorder %s9, 3
    %p113 = pnand %p111, %p112
    %p114 = pneg %p113
    // Predicated region
    $region9: #{_lambda_.20} parent=5 // pred_check
      _
    $region10: #{_lambda_.20} parent=5 // pred_check_branch
      %116 = sbr.rel (%p113) target = $region12
    $region11: #{_lambda_.20} parent=5 // pred_region
      %s117 = ssub.s32 %s9, 1
      // Predicated region
      $region13: #{_lambda_.20} parent=11 // pred_check
        %p118 = pneg %p56
      $region14: #{_lambda_.20} parent=11 // pred_check_branch
        %120 = sbr.rel (%p118) target = $region16
      $region15: #{_lambda_.20} parent=11 // pred_region
        _
      $region16: #{_lambda_.20} parent=11 // pred_fallthru
        _
      // Predicated region
      $region17: #{_lambda_.20} parent=11 // pred_check
        %p121 = pneg %p77
      $region18: #{_lambda_.20} parent=11 // pred_check_branch
        %123 = sbr.rel (%p121) target = $region20
      $region19: #{_lambda_.20} parent=11 // pred_region
        _
      $region20: #{_lambda_.20} parent=11 // pred_fallthru
        _
    $region12: #{_lambda_.20} parent=5 // pred_fallthru
      _
    %p124 = scmp.lt.s32.totalorder %s9, 2
    // Predicated region
    $region21: #{_lambda_.20} parent=5 // pred_check
      %p125 = pneg %p124
    $region22: #{_lambda_.20} parent=5 // pred_check_branch
      %127 = sbr.rel (%p125) target = $region24
    $region23: #{_lambda_.20} parent=5 // pred_region
      // Predicated region
      $region25: #{_lambda_.20} parent=23 // pred_check
        %p128 = pneg %p29
      $region26: #{_lambda_.20} parent=23 // pred_check_branch
        %130 = sbr.rel (%p128) target = $region28
      $region27: #{_lambda_.20} parent=23 // pred_region
        %s131 = smul.u32 32, %s9
        %p132 = scmp.lt.s32.totalorder %s131, 63
        %s133 = scalar_select %p132, %s131, 63
        %s134 = smul.addr %s133, 2
        %s135 = smul.addr %s134, 8
        %s136 = scalar_lea.vmem %s0, %s135
        %s137 = smul.u32 32, %s9
      $region28: #{_lambda_.20} parent=23 // pred_fallthru
        _
    $region24: #{_lambda_.20} parent=5 // pred_fallthru
      _
    %p138 = scmp.le.s32.totalorder 1, %s9
    %p139 = scmp.lt.s32.totalorder %s9, 3
    %p140 = pnand %p138, %p139
    %p141 = pneg %p140
    // Predicated region
    $region29: #{_lambda_.20} parent=5 // pred_check
      _
    $region30: #{_lambda_.20} parent=5 // pred_check_branch
      %143 = sbr.rel (%p140) target = $region32
    $region31: #{_lambda_.20} parent=5 // pred_region
      %s144 = ssub.s32 %s9, 1
      %s145 = smul.u32 32, %s14
      %p146 = scmp.lt.s32.totalorder %s145, 63
      %s147 = scalar_select %p146, %s145, 63
      %s148 = smul.addr %s147, 2
      %s149 = smul.addr %s148, 8
      %s150 = scalar_lea.vmem %s0, %s149
      %p151 = pneg %p35
      %p152 = pneg %p32
      %p153 = pneg %p56
      %p154 = pneg %p53
      %p155 = pneg %p77
      %p156 = pneg %p74
      %p157 = pneg %p103
      %p158 = pneg %p100
      %s159 = smul.u32 32, %s14
      %p160 = scmp.lt.s32.totalorder %s159, 63
      %s161 = scalar_select %p160, %s159, 63
      %s162 = smul.addr %s161, 8
      %s163 = scalar_lea.vmem %s3, %s162
      %s164 = smul.u32 32, %s14
      %p165 = scmp.lt.s32.totalorder %s164, 63
      %s166 = scalar_select %p165, %s164, 63
      %s167 = smul.addr %s166, 2
      %s168 = smul.addr %s167, 8
      %s169 = scalar_lea.vmem %s0, %s168
      %s170 = smul.u32 32, %s14
      %s171 = smul.u32 32, %s14
      %p172 = scmp.lt.s32.totalorder %s171, 63
      %s173 = scalar_select %p172, %s171, 63
      %s174 = smul.addr %s173, 8
      %s175 = scalar_lea.vmem %s3, %s174
      %s176 = smul.u32 32, %s14
      %v178 = vld [vmem:[%s169] sm:$0xff]
      %v179 = vld [vmem:[%s169 + $0x8] sm:$0xff]
      %v180 = vld [vmem:[%s169 + $0x10] sm:$0xff]
      %v181 = vld [vmem:[%s169 + $0x18] sm:$0xff]
      %v182 = vld [vmem:[%s169 + $0x20] sm:$0xff]
      %v183 = vld [vmem:[%s169 + $0x28] sm:$0xff]
      %v184 = vld [vmem:[%s169 + $0x30] sm:$0xff]
      %v185 = vld [vmem:[%s169 + $0x38] sm:$0xff]
      %v186 = vld [vmem:[%s169 + $0x40] sm:$0xff]
      %v187 = vld [vmem:[%s169 + $0x48] sm:$0xff]
      %v188 = vld [vmem:[%s169 + $0x50] sm:$0xff]
      %v189 = vld [vmem:[%s169 + $0x58] sm:$0xff]
      %v190 = vld [vmem:[%s169 + $0x60] sm:$0xff]
      %v191 = vld [vmem:[%s169 + $0x68] sm:$0xff]
      %v192 = vld [vmem:[%s169 + $0x70] sm:$0xff]
      %v193 = vld [vmem:[%s169 + $0x78] sm:$0xff]
      %v194 = vld [vmem:[%s169 + $0x80] sm:$0xff]
      %v195 = vld [vmem:[%s169 + $0x88] sm:$0xff]
      %v196 = vld [vmem:[%s169 + $0x90] sm:$0xff]
      %v197 = vld [vmem:[%s169 + $0x98] sm:$0xff]
      %v198 = vld [vmem:[%s169 + $0xa0] sm:$0xff]
      %v199 = vld [vmem:[%s169 + $0xa8] sm:$0xff]
      %v200 = vld [vmem:[%s169 + $0xb0] sm:$0xff]
      %v201 = vld [vmem:[%s169 + $0xb8] sm:$0xff]
      %v202 = vld [vmem:[%s169 + $0xc0] sm:$0xff]
      %v203 = vld [vmem:[%s169 + $0xc8] sm:$0xff]
      %v204 = vld [vmem:[%s169 + $0xd0] sm:$0xff]
      %v205 = vld [vmem:[%s169 + $0xd8] sm:$0xff]
      %v206 = vld [vmem:[%s169 + $0xe0] sm:$0xff]
      %v207 = vld [vmem:[%s169 + $0xe8] sm:$0xff]
      %v208 = vld [vmem:[%s169 + $0xf0] sm:$0xff]
      %v209 = vld [vmem:[%s169 + $0xf8] sm:$0xff]
      %v210 = vld [vmem:[%s169 + $0x100] sm:$0xff]
      %v211 = vld [vmem:[%s169 + $0x108] sm:$0xff]
      %v212 = vld [vmem:[%s169 + $0x110] sm:$0xff]
      %v213 = vld [vmem:[%s169 + $0x118] sm:$0xff]
      %v214 = vld [vmem:[%s169 + $0x120] sm:$0xff]
      %v215 = vld [vmem:[%s169 + $0x128] sm:$0xff]
      %v216 = vld [vmem:[%s169 + $0x130] sm:$0xff]
      %v217 = vld [vmem:[%s169 + $0x138] sm:$0xff]
      %v218 = vld [vmem:[%s169 + $0x140] sm:$0xff]
      %v219 = vld [vmem:[%s169 + $0x148] sm:$0xff]
      %v220 = vld [vmem:[%s169 + $0x150] sm:$0xff]
      %v221 = vld [vmem:[%s169 + $0x158] sm:$0xff]
      %v222 = vld [vmem:[%s169 + $0x160] sm:$0xff]
      %v223 = vld [vmem:[%s169 + $0x168] sm:$0xff]
      %v224 = vld [vmem:[%s169 + $0x170] sm:$0xff]
      %v225 = vld [vmem:[%s169 + $0x178] sm:$0xff]
      %v226 = vld [vmem:[%s169 + $0x180] sm:$0xff]
      %v227 = vld [vmem:[%s169 + $0x188] sm:$0xff]
      %v228 = vld [vmem:[%s169 + $0x190] sm:$0xff]
      %v229 = vld [vmem:[%s169 + $0x198] sm:$0xff]
      %v230 = vld [vmem:[%s169 + $0x1a0] sm:$0xff]
      %v231 = vld [vmem:[%s169 + $0x1a8] sm:$0xff]
      %v232 = vld [vmem:[%s169 + $0x1b0] sm:$0xff]
      %v233 = vld [vmem:[%s169 + $0x1b8] sm:$0xff]
      %v234 = vld [vmem:[%s169 + $0x1c0] sm:$0xff]
      %v235 = vld [vmem:[%s169 + $0x1c8] sm:$0xff]
      %v236 = vld [vmem:[%s169 + $0x1d0] sm:$0xff]
      %v237 = vld [vmem:[%s169 + $0x1d8] sm:$0xff]
      %v238 = vld [vmem:[%s169 + $0x1e0] sm:$0xff]
      %v239 = vld [vmem:[%s169 + $0x1e8] sm:$0xff]
      %v240 = vld [vmem:[%s169 + $0x1f0] sm:$0xff]
      %v241 = vld [vmem:[%s169 + $0x1f8] sm:$0xff]
      %v242 = vpack.c.bf16 %v180, %v178
      %v243 = vpack.c.bf16 %v181, %v179
      %v244 = vpack.c.bf16 %v184, %v182
      %v245 = vpack.c.bf16 %v185, %v183
      %v246 = vpack.c.bf16 %v188, %v186
      %v247 = vpack.c.bf16 %v189, %v187
      %v248 = vpack.c.bf16 %v192, %v190
      %v249 = vpack.c.bf16 %v193, %v191
      %v250 = vpack.c.bf16 %v196, %v194
      %v251 = vpack.c.bf16 %v197, %v195
      %v252 = vpack.c.bf16 %v200, %v198
      %v253 = vpack.c.bf16 %v201, %v199
      %v254 = vpack.c.bf16 %v204, %v202
      %v255 = vpack.c.bf16 %v205, %v203
      %v256 = vpack.c.bf16 %v208, %v206
      %v257 = vpack.c.bf16 %v209, %v207
      %v258 = vpack.c.bf16 %v212, %v210
      %v259 = vpack.c.bf16 %v213, %v211
      %v260 = vpack.c.bf16 %v216, %v214
      %v261 = vpack.c.bf16 %v217, %v215
      %v262 = vpack.c.bf16 %v220, %v218
      %v263 = vpack.c.bf16 %v221, %v219
      %v264 = vpack.c.bf16 %v224, %v222
      %v265 = vpack.c.bf16 %v225, %v223
      %v266 = vpack.c.bf16 %v228, %v226
      %v267 = vpack.c.bf16 %v229, %v227
      %v268 = vpack.c.bf16 %v232, %v230
      %v269 = vpack.c.bf16 %v233, %v231
      %v270 = vpack.c.bf16 %v236, %v234
      %v271 = vpack.c.bf16 %v237, %v235
      %v272 = vpack.c.bf16 %v240, %v238
      %v273 = vpack.c.bf16 %v241, %v239
      %v274 = vld [vmem:[%s1] sm:$0xff]
      %v275 = vld [vmem:[%s1 + $0x8] sm:$0xff]
      %v276 = vld [vmem:[%s1 + $0x10] sm:$0xff]
      %v277 = vld [vmem:[%s1 + $0x18] sm:$0xff]
      %v278 = vld [vmem:[%s1 + $0x20] sm:$0xff]
      %v279 = vld [vmem:[%s1 + $0x28] sm:$0xff]
      %v280 = vld [vmem:[%s1 + $0x30] sm:$0xff]
      %v281 = vld [vmem:[%s1 + $0x38] sm:$0xff]
      %v282 = vld [vmem:[%s1 + $0x40] sm:$0xff]
      %v283 = vld [vmem:[%s1 + $0x48] sm:$0xff]
      %v284 = vld [vmem:[%s1 + $0x50] sm:$0xff]
      %v285 = vld [vmem:[%s1 + $0x58] sm:$0xff]
      %v286 = vld [vmem:[%s1 + $0x60] sm:$0xff]
      %v287 = vld [vmem:[%s1 + $0x68] sm:$0xff]
      %v288 = vld [vmem:[%s1 + $0x70] sm:$0xff]
      %v289 = vld [vmem:[%s1 + $0x78] sm:$0xff]
      %v290 = vld [vmem:[%s1 + $0x80] sm:$0xff]
      %v291 = vld [vmem:[%s1 + $0x88] sm:$0xff]
      %v292 = vpack.c.bf16 %v275, %v274
      %v293 = vpack.c.bf16 %v277, %v276
      %v294 = vpack.c.bf16 %v279, %v278
      %v295 = vpack.c.bf16 %v281, %v280
      %v296 = vpack.c.bf16 %v283, %v282
      %v297 = vpack.c.bf16 %v285, %v284
      %v298 = vpack.c.bf16 %v287, %v286
      %v299 = vpack.c.bf16 %v289, %v288
      %v300 = vpack.c.bf16 %v291, %v290
      %v301 = vld [vmem:[%s2] sm:$0x1]
      %v303 = vlaneseq
      %v304 = vshrl.u32 %v303, 7
      %v305 = vsub.s32 0, %v304
      %v306 = vrot.slane %v301, %v305
      %vm308 = vcmask 130048
      %v310 = vsel %vm308, %v243, 0
      %v313 = vsel %vm308, %v245, 0
      %v316 = vsel %vm308, %v247, 0
      %v319 = vsel %vm308, %v249, 0
      %v322 = vsel %vm308, %v251, 0
      %v325 = vsel %vm308, %v253, 0
      %v328 = vsel %vm308, %v255, 0
      %v331 = vsel %vm308, %v257, 0
      %v334 = vsel %vm308, %v259, 0
      %v337 = vsel %vm308, %v261, 0
      %v340 = vsel %vm308, %v263, 0
      %v343 = vsel %vm308, %v265, 0
      %v346 = vsel %vm308, %v267, 0
      %v349 = vsel %vm308, %v269, 0
      %v352 = vsel %vm308, %v271, 0
      %v355 = vsel %vm308, %v273, 0
      %357 = vmatprep.subr.bf16.mxu0 0
      %358 = vmatpush1.bf16.msra.mxu0 %v292
      %359 = vmatprep.subr.bf16.mxu0 0
      %360 = vmatpush1.bf16.msra.mxu0 %v293
      %361 = vmatprep.subr.bf16.mxu0 0
      %362 = vmatpush1.bf16.msra.mxu0 %v294
      %363 = vmatprep.subr.bf16.mxu0 0
      %364 = vmatpush1.bf16.msra.mxu0 %v295
      %365 = vmatprep.subr.bf16.mxu0 0
      %366 = vmatpush1.bf16.msra.mxu0 %v296
      %367 = vmatprep.subr.bf16.mxu0 0
      %368 = vmatpush1.bf16.msra.mxu0 %v297
      %369 = vmatprep.subr.bf16.mxu0 0
      %370 = vmatpush1.bf16.msra.mxu0 %v298
      %371 = vmatprep.subr.bf16.mxu0 0
      %372 = vmatpush1.bf16.msra.mxu0 %v299
      %373 = vmatprep.subr.bf16.mxu0 0
      %374 = vmatpush1.bf16.msra.mxu0 %v300
      %375 = vmatprep.subr.bf16.mxu0 0
      %376 = vmatpush1.bf16.msra.mxu0 0
      %377 = vmatprep.subr.bf16.mxu0 0
      %378 = vmatpush1.bf16.msra.mxu0 0
      %379 = vmatprep.subr.bf16.mxu0 0
      %380 = vmatpush1.bf16.msra.mxu0 0
      %381 = vmatprep.subr.bf16.mxu0 0
      %382 = vmatpush1.bf16.msra.mxu0 0
      %383 = vmatprep.subr.bf16.mxu0 0
      %384 = vmatpush1.bf16.msra.mxu0 0
      %385 = vmatprep.subr.bf16.mxu0 0
      %386 = vmatpush1.bf16.msra.mxu0 0
      %387 = vmatprep.subr.bf16.mxu0 0
      %388 = vmatpush1.bf16.msra.mxu0 0
      %389 = vmatprep.mubr.bf16.mxu0 %v310
      %390 = vmatmul.mubr.bf16.gmra.mrb[0].mxu0 %v242
      %v391 = vpop.f32.mrb[0].mxu0
      %v392 = vadd.f32 %v306, %v391
      %v393 = vpop.f32.mrb[0].mxu0
      %v394 = vpop.f32.mrb[0].mxu0
      %v395 = vadd.f32 %v306, %v394
      %v396 = vpop.f32.mrb[0].mxu0
      %397 = vmatprep.mubr.bf16.mxu0 %v313
      %398 = vmatmul.mubr.bf16.gmra.mrb[0].mxu0 %v244
      %v399 = vpop.f32.mrb[0].mxu0
      %v400 = vadd.f32 %v306, %v399
      %v401 = vpop.f32.mrb[0].mxu0
      %v402 = vpop.f32.mrb[0].mxu0
      %v403 = vadd.f32 %v306, %v402
      %v404 = vpop.f32.mrb[0].mxu0
      %405 = vmatprep.mubr.bf16.mxu0 %v316
      %406 = vmatmul.mubr.bf16.gmra.mrb[0].mxu0 %v246
      %v407 = vpop.f32.mrb[0].mxu0
      %v408 = vadd.f32 %v306, %v407
      %v409 = vpop.f32.mrb[0].mxu0
      %v410 = vpop.f32.mrb[0].mxu0
      %v411 = vadd.f32 %v306, %v410
      %v412 = vpop.f32.mrb[0].mxu0
      %413 = vmatprep.mubr.bf16.mxu0 %v319
      %414 = vmatmul.mubr.bf16.gmra.mrb[0].mxu0 %v248
      %v415 = vpop.f32.mrb[0].mxu0
      %v416 = vadd.f32 %v306, %v415
      %v417 = vpop.f32.mrb[0].mxu0
      %v418 = vpop.f32.mrb[0].mxu0
      %v419 = vadd.f32 %v306, %v418
      %v420 = vpop.f32.mrb[0].mxu0
      %421 = vmatprep.mubr.bf16.mxu0 %v322
      %422 = vmatmul.mubr.bf16.gmra.mrb[0].mxu0 %v250
      %v423 = vpop.f32.mrb[0].mxu0
      %v424 = vadd.f32 %v306, %v423
      %v425 = vpop.f32.mrb[0].mxu0
      %v426 = vpop.f32.mrb[0].mxu0
      %v427 = vadd.f32 %v306, %v426
      %v428 = vpop.f32.mrb[0].mxu0
      %429 = vmatprep.mubr.bf16.mxu0 %v325
      %430 = vmatmul.mubr.bf16.gmra.mrb[0].mxu0 %v252
      %v431 = vpop.f32.mrb[0].mxu0
      %v432 = vadd.f32 %v306, %v431
      %v433 = vpop.f32.mrb[0].mxu0
      %v434 = vpop.f32.mrb[0].mxu0
      %v435 = vadd.f32 %v306, %v434
      %v436 = vpop.f32.mrb[0].mxu0
      %437 = vmatprep.mubr.bf16.mxu0 %v328
      %438 = vmatmul.mubr.bf16.gmra.mrb[0].mxu0 %v254
      %v439 = vpop.f32.mrb[0].mxu0
      %v440 = vadd.f32 %v306, %v439
      %v441 = vpop.f32.mrb[0].mxu0
      %v442 = vpop.f32.mrb[0].mxu0
      %v443 = vadd.f32 %v306, %v442
      %v444 = vpop.f32.mrb[0].mxu0
      %445 = vmatprep.mubr.bf16.mxu0 %v331
      %446 = vmatmul.mubr.bf16.gmra.mrb[0].mxu0 %v256
      %v447 = vpop.f32.mrb[0].mxu0
      %v448 = vadd.f32 %v306, %v447
      %v449 = vpop.f32.mrb[0].mxu0
      %v450 = vpop.f32.mrb[0].mxu0
      %v451 = vadd.f32 %v306, %v450
      %v452 = vpop.f32.mrb[0].mxu0
      %453 = vmatprep.mubr.bf16.mxu0 %v334
      %454 = vmatmul.mubr.bf16.gmra.mrb[0].mxu0 %v258
      %v455 = vpop.f32.mrb[0].mxu0
      %v456 = vadd.f32 %v306, %v455
      %v457 = vpop.f32.mrb[0].mxu0
      %v458 = vpop.f32.mrb[0].mxu0
      %v459 = vadd.f32 %v306, %v458
      %v460 = vpop.f32.mrb[0].mxu0
      %461 = vmatprep.mubr.bf16.mxu0 %v337
      %462 = vmatmul.mubr.bf16.gmra.mrb[0].mxu0 %v260
      %v463 = vpop.f32.mrb[0].mxu0
      %v464 = vadd.f32 %v306, %v463
      %v465 = vpop.f32.mrb[0].mxu0
      %v466 = vpop.f32.mrb[0].mxu0
      %v467 = vadd.f32 %v306, %v466
      %v468 = vpop.f32.mrb[0].mxu0
      %469 = vmatprep.mubr.bf16.mxu0 %v340
      %470 = vmatmul.mubr.bf16.gmra.mrb[0].mxu0 %v262
      %v471 = vpop.f32.mrb[0].mxu0
      %v472 = vadd.f32 %v306, %v471
      %v473 = vpop.f32.mrb[0].mxu0
      %v474 = vpop.f32.mrb[0].mxu0
      %v475 = vadd.f32 %v306, %v474
      %v476 = vpop.f32.mrb[0].mxu0
      %477 = vmatprep.mubr.bf16.mxu0 %v343
      %478 = vmatmul.mubr.bf16.gmra.mrb[0].mxu0 %v264
      %v479 = vpop.f32.mrb[0].mxu0
      %v480 = vadd.f32 %v306, %v479
      %v481 = vpop.f32.mrb[0].mxu0
      %v482 = vpop.f32.mrb[0].mxu0
      %v483 = vadd.f32 %v306, %v482
      %v484 = vpop.f32.mrb[0].mxu0
      %485 = vmatprep.mubr.bf16.mxu0 %v346
      %486 = vmatmul.mubr.bf16.gmra.mrb[0].mxu0 %v266
      %v487 = vpop.f32.mrb[0].mxu0
      %v488 = vadd.f32 %v306, %v487
      %v489 = vpop.f32.mrb[0].mxu0
      %v490 = vpop.f32.mrb[0].mxu0
      %v491 = vadd.f32 %v306, %v490
      %v492 = vpop.f32.mrb[0].mxu0
      %493 = vmatprep.mubr.bf16.mxu0 %v349
      %494 = vmatmul.mubr.bf16.gmra.mrb[0].mxu0 %v268
      %v495 = vpop.f32.mrb[0].mxu0
      %v496 = vadd.f32 %v306, %v495
      %v497 = vpop.f32.mrb[0].mxu0
      %v498 = vpop.f32.mrb[0].mxu0
      %v499 = vadd.f32 %v306, %v498
      %v500 = vpop.f32.mrb[0].mxu0
      %501 = vmatprep.mubr.bf16.mxu0 %v352
      %502 = vmatmul.mubr.bf16.gmra.mrb[0].mxu0 %v270
      %v503 = vpop.f32.mrb[0].mxu0
      %v504 = vadd.f32 %v306, %v503
      %v505 = vpop.f32.mrb[0].mxu0
      %v506 = vpop.f32.mrb[0].mxu0
      %v507 = vadd.f32 %v306, %v506
      %v508 = vpop.f32.mrb[0].mxu0
      %509 = vmatprep.mubr.bf16.mxu0 %v355
      %510 = vmatmul.mubr.bf16.gmra.mrb[0].mxu0 %v272
      %v511 = vpop.f32.mrb[0].mxu0
      %v512 = vadd.f32 %v306, %v511
      %v513 = vpop.f32.mrb[0].mxu0
      %v514 = vpop.f32.mrb[0].mxu0
      %v515 = vadd.f32 %v306, %v514
      %v516 = vpop.f32.mrb[0].mxu0
      %517 = vdwg.mxu0
      %518 = vst [vmem:[%s175] sm:$0xff] %v392
      %519 = vst [vmem:[%s175 + $0x8] sm:$0xff] %v395
      %520 = vst [vmem:[%s175 + $0x10] sm:$0xff] %v400
      %521 = vst [vmem:[%s175 + $0x18] sm:$0xff] %v403
      %522 = vst [vmem:[%s175 + $0x20] sm:$0xff] %v408
      %523 = vst [vmem:[%s175 + $0x28] sm:$0xff] %v411
      %524 = vst [vmem:[%s175 + $0x30] sm:$0xff] %v416
      %525 = vst [vmem:[%s175 + $0x38] sm:$0xff] %v419
      %526 = vst [vmem:[%s175 + $0x40] sm:$0xff] %v424
      %527 = vst [vmem:[%s175 + $0x48] sm:$0xff] %v427
      %528 = vst [vmem:[%s175 + $0x50] sm:$0xff] %v432
      %529 = vst [vmem:[%s175 + $0x58] sm:$0xff] %v435
      %530 = vst [vmem:[%s175 + $0x60] sm:$0xff] %v440
      %531 = vst [vmem:[%s175 + $0x68] sm:$0xff] %v443
      %532 = vst [vmem:[%s175 + $0x70] sm:$0xff] %v448
      %533 = vst [vmem:[%s175 + $0x78] sm:$0xff] %v451
      %534 = vst [vmem:[%s175 + $0x80] sm:$0xff] %v456
      %535 = vst [vmem:[%s175 + $0x88] sm:$0xff] %v459
      %536 = vst [vmem:[%s175 + $0x90] sm:$0xff] %v464
      %537 = vst [vmem:[%s175 + $0x98] sm:$0xff] %v467
      %538 = vst [vmem:[%s175 + $0xa0] sm:$0xff] %v472
      %539 = vst [vmem:[%s175 + $0xa8] sm:$0xff] %v475
      %540 = vst [vmem:[%s175 + $0xb0] sm:$0xff] %v480
      %541 = vst [vmem:[%s175 + $0xb8] sm:$0xff] %v483
      %542 = vst [vmem:[%s175 + $0xc0] sm:$0xff] %v488
      %543 = vst [vmem:[%s175 + $0xc8] sm:$0xff] %v491
      %544 = vst [vmem:[%s175 + $0xd0] sm:$0xff] %v496
      %545 = vst [vmem:[%s175 + $0xd8] sm:$0xff] %v499
      %546 = vst [vmem:[%s175 + $0xe0] sm:$0xff] %v504
      %547 = vst [vmem:[%s175 + $0xe8] sm:$0xff] %v507
      %548 = vst [vmem:[%s175 + $0xf0] sm:$0xff] %v512
      %549 = vst [vmem:[%s175 + $0xf8] sm:$0xff] %v515
      %s550 = smul.u32 32, %s14
      %p551 = scmp.lt.s32.totalorder %s550, 63
      %s552 = scalar_select %p551, %s550, 63
      %s553 = smul.addr %s552, 8
      %s554 = scalar_lea.vmem %s3, %s553
      // Predicated region
      $region33: #{_lambda_.20} parent=31 // pred_check
        %p555 = pneg %p100
      $region34: #{_lambda_.20} parent=31 // pred_check_branch
        %557 = sbr.rel (%p555) target = $region36
      $region35: #{_lambda_.20} parent=31 // pred_region
        %s558 = smul.u32 32, %s14
      $region36: #{_lambda_.20} parent=31 // pred_fallthru
        _
    $region32: #{_lambda_.20} parent=5 // pred_fallthru
      _
    %p559 = scmp.le.s32.totalorder 2, %s9
    // Predicated region
    $region37: #{_lambda_.20} parent=5 // pred_check
      %p560 = pneg %p559
    $region38: #{_lambda_.20} parent=5 // pred_check_branch
      %562 = sbr.rel (%p560) target = $region40
    $region39: #{_lambda_.20} parent=5 // pred_region
      %s563 = ssub.s32 %s9, 2
      // Predicated region
      $region41: #{_lambda_.20} parent=39 // pred_check
        %p564 = pneg %p106
      $region42: #{_lambda_.20} parent=39 // pred_check_branch
        %566 = sbr.rel (%p564) target = $region44
      $region43: #{_lambda_.20} parent=39 // pred_region
        %s567 = smul.u32 32, %s15
        %p568 = scmp.lt.s32.totalorder %s567, 63
        %s569 = scalar_select %p568, %s567, 63
        %s570 = smul.addr %s569, 8
        %s571 = scalar_lea.vmem %s3, %s570
      $region44: #{_lambda_.20} parent=39 // pred_fallthru
        _
    $region40: #{_lambda_.20} parent=5 // pred_fallthru
      _
  $region6: #{_lambda_.20} parent=0 // loop_footer
    %s13 = sadd.s32 1, %s9
  $region7: #{_lambda_.20} parent=0 // loop_footer_branch
    %8 = sbr.rel target = $region3
  $region8: #{_lambda_.20} parent=0 // loop_exit
    _

// kernel: _lambda_.21
$region0: #{_lambda_.21}
  #allocation0 [shape = 'u32[]', space=smem, size = 0x4, offset = 0x4, fixed_abs, tag = 'smem constant byte address 0x4 - core index']
  #allocation1 [shape = 'u32[144,128]{1,0:T(1,128)}', space=vmem, size = 0x12000, scoped, tag = 'internal scratch']
  %s0 = inlined_call_operand.vmem [shape: f32[512,24], index: 0, kind: input, shape index: {}]
  %s1 = inlined_call_operand.vmem [shape: f32[1,24], index: 1, kind: input, shape index: {}]
  %s2 = inlined_call_operand.vmem [shape: f32[1,24], index: 2, kind: input, shape index: {}]
  %s3 = inlined_call_operand.vmem [shape: f32[512,24], index: 3, kind: output, shape index: {}]
  %s4 = sld [smem:[#allocation0]]
  $region45: #{_lambda_.21} parent=0
    _
  %s6 = ssub.s32 1, %s4
  %s7 = scalar_select 0, %s6, %s4
  loop: start=0, step=1, limit=4
  $region2: #{_lambda_.21} parent=0 // loop_pre_header
    _
  $region3: #{_lambda_.21} parent=0 // loop_header
    %s9 = sphi 0, %s13
    %p10 = scmp.ge.s32.totalorder %s9, 4
    %s19 = sphi 0, %s21
    %s22 = sphi 0, %s19
    %s23 = sphi 0, %s22
    %s39 = sphi 0, %s23
    %s43 = sphi 0, %s43
    %s45 = sphi 0, %s43
    %s46 = sphi 0, %s45
    %s60 = sphi 0, %s46
    %s64 = sphi 0, %s64
    %s66 = sphi 0, %s64
    %s67 = sphi 0, %s66
    %s81 = sphi 0, %s67
    %s87 = sphi 0, %s89
    %s90 = sphi 0, %s87
    %s91 = sphi 0, %s90
    %s107 = sphi 0, %s91
  $region4: #{_lambda_.21} parent=0 // loop_header_branch
    %12 = sbr.rel (%p10) target = $region8
  $region5: #{_lambda_.21} parent=0 // loop_body
    %s14 = ssub.s32 %s9, 1
    %s15 = ssub.s32 %s9, 2
    %s16 = sadd.s32 %s9, 1
    %s17 = ssub.s32 %s9, %s16
    %p18 = scmp.eq.s32.totalorder %s17, 0
    %s20 = sadd.s32 %s19, 1
    %s21 = scalar_select %p18, %s19, %s20
    %p24 = pneg %p18
    %p25 = scmp.eq.s32.totalorder %s9, 1
    %p26 = por %p24, %p25
    %p27 = scmp.ne.s32.totalorder %s19, %s22
    %p28 = scmp.eq.s32.totalorder %s9, 0
    %p29 = por %p27, %p28
    %p30 = scmp.ne.s32.totalorder %s19, %s22
    %p31 = scmp.eq.s32.totalorder %s14, 1
    %p32 = por %p30, %p31
    %p33 = scmp.ne.s32.totalorder %s22, %s23
    %p34 = scmp.eq.s32.totalorder %s14, 0
    %p35 = por %p33, %p34
    %p36 = scmp.ne.s32.totalorder %s22, %s23
    %p37 = scmp.eq.s32.totalorder %s15, 1
    %p38 = por %p36, %p37
    %p40 = scmp.ne.s32.totalorder %s23, %s39
    %p41 = scmp.eq.s32.totalorder %s15, 0
    %p42 = por %p40, %p41
    %s44 = sadd.s32 %s43, 1
    %p47 = scmp.eq.s32.totalorder %s9, 1
    %p48 = scmp.ne.s32.totalorder %s43, %s45
    %p49 = scmp.eq.s32.totalorder %s9, 0
    %p50 = por %p48, %p49
    %p51 = scmp.ne.s32.totalorder %s43, %s45
    %p52 = scmp.eq.s32.totalorder %s14, 1
    %p53 = por %p51, %p52
    %p54 = scmp.ne.s32.totalorder %s45, %s46
    %p55 = scmp.eq.s32.totalorder %s14, 0
    %p56 = por %p54, %p55
    %p57 = scmp.ne.s32.totalorder %s45, %s46
    %p58 = scmp.eq.s32.totalorder %s15, 1
    %p59 = por %p57, %p58
    %p61 = scmp.ne.s32.totalorder %s46, %s60
    %p62 = scmp.eq.s32.totalorder %s15, 0
    %p63 = por %p61, %p62
    %s65 = sadd.s32 %s64, 1
    %p68 = scmp.eq.s32.totalorder %s9, 1
    %p69 = scmp.ne.s32.totalorder %s64, %s66
    %p70 = scmp.eq.s32.totalorder %s9, 0
    %p71 = por %p69, %p70
    %p72 = scmp.ne.s32.totalorder %s64, %s66
    %p73 = scmp.eq.s32.totalorder %s14, 1
    %p74 = por %p72, %p73
    %p75 = scmp.ne.s32.totalorder %s66, %s67
    %p76 = scmp.eq.s32.totalorder %s14, 0
    %p77 = por %p75, %p76
    %p78 = scmp.ne.s32.totalorder %s66, %s67
    %p79 = scmp.eq.s32.totalorder %s15, 1
    %p80 = por %p78, %p79
    %p82 = scmp.ne.s32.totalorder %s67, %s81
    %p83 = scmp.eq.s32.totalorder %s15, 0
    %p84 = por %p82, %p83
    %s85 = ssub.s32 %s9, %s16
    %p86 = scmp.eq.s32.totalorder %s85, 0
    %s88 = sadd.s32 %s87, 1
    %s89 = scalar_select %p86, %s87, %s88
    %p92 = pneg %p86
    %p93 = scmp.eq.s32.totalorder %s9, 1
    %p94 = por %p92, %p93
    %p95 = scmp.ne.s32.totalorder %s87, %s90
    %p96 = scmp.eq.s32.totalorder %s9, 0
    %p97 = por %p95, %p96
    %p98 = scmp.ne.s32.totalorder %s87, %s90
    %p99 = scmp.eq.s32.totalorder %s14, 1
    %p100 = por %p98, %p99
    %p101 = scmp.ne.s32.totalorder %s90, %s91
    %p102 = scmp.eq.s32.totalorder %s14, 0
    %p103 = por %p101, %p102
    %p104 = scmp.ne.s32.totalorder %s90, %s91
    %p105 = scmp.eq.s32.totalorder %s15, 1
    %p106 = por %p104, %p105
    %p108 = scmp.ne.s32.totalorder %s91, %s107
    %p109 = scmp.eq.s32.totalorder %s15, 0
    %p110 = por %p108, %p109
    %p111 = scmp.le.s32.totalorder 1, %s9
    %p112 = scmp.lt.s32.totalorder %s9, 3
    %p113 = pnand %p111, %p112
    %p114 = pneg %p113
    // Predicated region
    $region9: #{_lambda_.21} parent=5 // pred_check
      _
    $region10: #{_lambda_.21} parent=5 // pred_check_branch
      %116 = sbr.rel (%p113) target = $region12
    $region11: #{_lambda_.21} parent=5 // pred_region
      %s117 = ssub.s32 %s9, 1
      // Predicated region
      $region13: #{_lambda_.21} parent=11 // pred_check
        %p118 = pneg %p56
      $region14: #{_lambda_.21} parent=11 // pred_check_branch
        %120 = sbr.rel (%p118) target = $region16
      $region15: #{_lambda_.21} parent=11 // pred_region
        _
      $region16: #{_lambda_.21} parent=11 // pred_fallthru
        _
      // Predicated region
      $region17: #{_lambda_.21} parent=11 // pred_check
        %p121 = pneg %p77
      $region18: #{_lambda_.21} parent=11 // pred_check_branch
        %123 = sbr.rel (%p121) target = $region20
      $region19: #{_lambda_.21} parent=11 // pred_region
        _
      $region20: #{_lambda_.21} parent=11 // pred_fallthru
        _
    $region12: #{_lambda_.21} parent=5 // pred_fallthru
      _
    %p124 = scmp.lt.s32.totalorder %s9, 2
    // Predicated region
    $region21: #{_lambda_.21} parent=5 // pred_check
      %p125 = pneg %p124
    $region22: #{_lambda_.21} parent=5 // pred_check_branch
      %127 = sbr.rel (%p125) target = $region24
    $region23: #{_lambda_.21} parent=5 // pred_region
      // Predicated region
      $region25: #{_lambda_.21} parent=23 // pred_check
        %p128 = pneg %p29
      $region26: #{_lambda_.21} parent=23 // pred_check_branch
        %130 = sbr.rel (%p128) target = $region28
      $region27: #{_lambda_.21} parent=23 // pred_region
        %s131 = smul.u32 32, %s9
        %p132 = scmp.lt.s32.totalorder %s131, 63
        %s133 = scalar_select %p132, %s131, 63
        %s134 = smul.addr %s133, 8
        %s135 = scalar_lea.vmem %s0, %s134
        %s136 = smul.u32 32, %s9
      $region28: #{_lambda_.21} parent=23 // pred_fallthru
        _
    $region24: #{_lambda_.21} parent=5 // pred_fallthru
      _
    %p137 = scmp.le.s32.totalorder 1, %s9
    %p138 = scmp.lt.s32.totalorder %s9, 3
    %p139 = pnand %p137, %p138
    %p140 = pneg %p139
    // Predicated region
    $region29: #{_lambda_.21} parent=5 // pred_check
      _
    $region30: #{_lambda_.21} parent=5 // pred_check_branch
      %142 = sbr.rel (%p139) target = $region32
    $region31: #{_lambda_.21} parent=5 // pred_region
      %s143 = ssub.s32 %s9, 1
      %s144 = smul.u32 32, %s14
      %p145 = scmp.lt.s32.totalorder %s144, 63
      %s146 = scalar_select %p145, %s144, 63
      %s147 = smul.addr %s146, 8
      %s148 = scalar_lea.vmem %s0, %s147
      %p149 = pneg %p35
      %p150 = pneg %p32
      %p151 = pneg %p56
      %p152 = pneg %p53
      %p153 = pneg %p77
      %p154 = pneg %p74
      %p155 = pneg %p103
      %p156 = pneg %p100
      %s157 = smul.u32 32, %s14
      %p158 = scmp.lt.s32.totalorder %s157, 63
      %s159 = scalar_select %p158, %s157, 63
      %s160 = smul.addr %s159, 8
      %s161 = scalar_lea.vmem %s3, %s160
      %s162 = smul.u32 32, %s14
      %p163 = scmp.lt.s32.totalorder %s162, 63
      %s164 = scalar_select %p163, %s162, 63
      %s165 = smul.addr %s164, 8
      %s166 = scalar_lea.vmem %s0, %s165
      %s167 = smul.u32 32, %s14
      %s168 = smul.u32 32, %s14
      %p169 = scmp.lt.s32.totalorder %s168, 63
      %s170 = scalar_select %p169, %s168, 63
      %s171 = smul.addr %s170, 8
      %s172 = scalar_lea.vmem %s3, %s171
      %s173 = smul.u32 32, %s14
      %v174 = vld [vmem:[%s166] sm:$0xff]
      %v175 = vld [vmem:[%s166 + $0x8] sm:$0xff]
      %v176 = vld [vmem:[%s166 + $0x10] sm:$0xff]
      %v177 = vld [vmem:[%s166 + $0x18] sm:$0xff]
      %v178 = vld [vmem:[%s166 + $0x20] sm:$0xff]
      %v179 = vld [vmem:[%s166 + $0x28] sm:$0xff]
      %v180 = vld [vmem:[%s166 + $0x30] sm:$0xff]
      %v181 = vld [vmem:[%s166 + $0x38] sm:$0xff]
      %v182 = vld [vmem:[%s166 + $0x40] sm:$0xff]
      %v183 = vld [vmem:[%s166 + $0x48] sm:$0xff]
      %v184 = vld [vmem:[%s166 + $0x50] sm:$0xff]
      %v185 = vld [vmem:[%s166 + $0x58] sm:$0xff]
      %v186 = vld [vmem:[%s166 + $0x60] sm:$0xff]
      %v187 = vld [vmem:[%s166 + $0x68] sm:$0xff]
      %v188 = vld [vmem:[%s166 + $0x70] sm:$0xff]
      %v189 = vld [vmem:[%s166 + $0x78] sm:$0xff]
      %v190 = vld [vmem:[%s166 + $0x80] sm:$0xff]
      %v191 = vld [vmem:[%s166 + $0x88] sm:$0xff]
      %v192 = vld [vmem:[%s166 + $0x90] sm:$0xff]
      %v193 = vld [vmem:[%s166 + $0x98] sm:$0xff]
      %v194 = vld [vmem:[%s166 + $0xa0] sm:$0xff]
      %v195 = vld [vmem:[%s166 + $0xa8] sm:$0xff]
      %v196 = vld [vmem:[%s166 + $0xb0] sm:$0xff]
      %v197 = vld [vmem:[%s166 + $0xb8] sm:$0xff]
      %v198 = vld [vmem:[%s166 + $0xc0] sm:$0xff]
      %v199 = vld [vmem:[%s166 + $0xc8] sm:$0xff]
      %v200 = vld [vmem:[%s166 + $0xd0] sm:$0xff]
      %v201 = vld [vmem:[%s166 + $0xd8] sm:$0xff]
      %v202 = vld [vmem:[%s166 + $0xe0] sm:$0xff]
      %v203 = vld [vmem:[%s166 + $0xe8] sm:$0xff]
      %v204 = vld [vmem:[%s166 + $0xf0] sm:$0xff]
      %v205 = vld [vmem:[%s166 + $0xf8] sm:$0xff]
      %v206 = vld [vmem:[%s1] sm:$0x1]
      %v208 = vlaneseq
      %v209 = vshrl.u32 %v208, 7
      %v210 = vsub.s32 0, %v209
      %v211 = vrot.slane %v206, %v210
      %v213 = vmul.f32 %v174, %v211
      %v214 = vmul.f32 %v175, %v211
      %v215 = vmul.f32 %v176, %v211
      %v216 = vmul.f32 %v177, %v211
      %v217 = vmul.f32 %v178, %v211
      %v218 = vmul.f32 %v179, %v211
      %v219 = vmul.f32 %v180, %v211
      %v220 = vmul.f32 %v181, %v211
      %v221 = vmul.f32 %v182, %v211
      %v222 = vmul.f32 %v183, %v211
      %v223 = vmul.f32 %v184, %v211
      %v224 = vmul.f32 %v185, %v211
      %v225 = vmul.f32 %v186, %v211
      %v226 = vmul.f32 %v187, %v211
      %v227 = vmul.f32 %v188, %v211
      %v228 = vmul.f32 %v189, %v211
      %v229 = vmul.f32 %v190, %v211
      %v230 = vmul.f32 %v191, %v211
      %v231 = vmul.f32 %v192, %v211
      %v232 = vmul.f32 %v193, %v211
      %v233 = vmul.f32 %v194, %v211
      %v234 = vmul.f32 %v195, %v211
      %v235 = vmul.f32 %v196, %v211
      %v236 = vmul.f32 %v197, %v211
      %v237 = vmul.f32 %v198, %v211
      %v238 = vmul.f32 %v199, %v211
      %v239 = vmul.f32 %v200, %v211
      %v240 = vmul.f32 %v201, %v211
      %v241 = vmul.f32 %v202, %v211
      %v242 = vmul.f32 %v203, %v211
      %v243 = vmul.f32 %v204, %v211
      %v244 = vmul.f32 %v205, %v211
      %v245 = vld [vmem:[%s2] sm:$0x1]
      %v247 = vlaneseq
      %v248 = vshrl.u32 %v247, 7
      %v249 = vsub.s32 0, %v248
      %v250 = vrot.slane %v245, %v249
      %v252 = vadd.f32 %v213, %v250
      %v253 = vadd.f32 %v214, %v250
      %v254 = vadd.f32 %v215, %v250
      %v255 = vadd.f32 %v216, %v250
      %v256 = vadd.f32 %v217, %v250
      %v257 = vadd.f32 %v218, %v250
      %v258 = vadd.f32 %v219, %v250
      %v259 = vadd.f32 %v220, %v250
      %v260 = vadd.f32 %v221, %v250
      %v261 = vadd.f32 %v222, %v250
      %v262 = vadd.f32 %v223, %v250
      %v263 = vadd.f32 %v224, %v250
      %v264 = vadd.f32 %v225, %v250
      %v265 = vadd.f32 %v226, %v250
      %v266 = vadd.f32 %v227, %v250
      %v267 = vadd.f32 %v228, %v250
      %v268 = vadd.f32 %v229, %v250
      %v269 = vadd.f32 %v230, %v250
      %v270 = vadd.f32 %v231, %v250
      %v271 = vadd.f32 %v232, %v250
      %v272 = vadd.f32 %v233, %v250
      %v273 = vadd.f32 %v234, %v250
      %v274 = vadd.f32 %v235, %v250
      %v275 = vadd.f32 %v236, %v250
      %v276 = vadd.f32 %v237, %v250
      %v277 = vadd.f32 %v238, %v250
      %v278 = vadd.f32 %v239, %v250
      %v279 = vadd.f32 %v240, %v250
      %v280 = vadd.f32 %v241, %v250
      %v281 = vadd.f32 %v242, %v250
      %v282 = vadd.f32 %v243, %v250
      %v283 = vadd.f32 %v244, %v250
      %v284 = vmax.f32 %v252, 0.0
      %v285 = vmax.f32 %v253, 0.0
      %v286 = vmax.f32 %v254, 0.0
      %v287 = vmax.f32 %v255, 0.0
      %v288 = vmax.f32 %v256, 0.0
      %v289 = vmax.f32 %v257, 0.0
      %v290 = vmax.f32 %v258, 0.0
      %v291 = vmax.f32 %v259, 0.0
      %v292 = vmax.f32 %v260, 0.0
      %v293 = vmax.f32 %v261, 0.0
      %v294 = vmax.f32 %v262, 0.0
      %v295 = vmax.f32 %v263, 0.0
      %v296 = vmax.f32 %v264, 0.0
      %v297 = vmax.f32 %v265, 0.0
      %v298 = vmax.f32 %v266, 0.0
      %v299 = vmax.f32 %v267, 0.0
      %v300 = vmax.f32 %v268, 0.0
      %v301 = vmax.f32 %v269, 0.0
      %v302 = vmax.f32 %v270, 0.0
      %v303 = vmax.f32 %v271, 0.0
      %v304 = vmax.f32 %v272, 0.0
      %v305 = vmax.f32 %v273, 0.0
      %v306 = vmax.f32 %v274, 0.0
      %v307 = vmax.f32 %v275, 0.0
      %v308 = vmax.f32 %v276, 0.0
      %v309 = vmax.f32 %v277, 0.0
      %v310 = vmax.f32 %v278, 0.0
      %v311 = vmax.f32 %v279, 0.0
      %v312 = vmax.f32 %v280, 0.0
      %v313 = vmax.f32 %v281, 0.0
      %v314 = vmax.f32 %v282, 0.0
      %v315 = vmax.f32 %v283, 0.0
      %vm316 = vcmask 195584
      %317 = vst.msk [vmem:[%s172] sm:$0xff] %vm316, %v284
      %318 = vst.msk [vmem:[%s172 + $0x8] sm:$0xff] %vm316, %v285
      %319 = vst.msk [vmem:[%s172 + $0x10] sm:$0xff] %vm316, %v286
      %320 = vst.msk [vmem:[%s172 + $0x18] sm:$0xff] %vm316, %v287
      %321 = vst.msk [vmem:[%s172 + $0x20] sm:$0xff] %vm316, %v288
      %322 = vst.msk [vmem:[%s172 + $0x28] sm:$0xff] %vm316, %v289
      %323 = vst.msk [vmem:[%s172 + $0x30] sm:$0xff] %vm316, %v290
      %324 = vst.msk [vmem:[%s172 + $0x38] sm:$0xff] %vm316, %v291
      %325 = vst.msk [vmem:[%s172 + $0x40] sm:$0xff] %vm316, %v292
      %326 = vst.msk [vmem:[%s172 + $0x48] sm:$0xff] %vm316, %v293
      %327 = vst.msk [vmem:[%s172 + $0x50] sm:$0xff] %vm316, %v294
      %328 = vst.msk [vmem:[%s172 + $0x58] sm:$0xff] %vm316, %v295
      %329 = vst.msk [vmem:[%s172 + $0x60] sm:$0xff] %vm316, %v296
      %330 = vst.msk [vmem:[%s172 + $0x68] sm:$0xff] %vm316, %v297
      %331 = vst.msk [vmem:[%s172 + $0x70] sm:$0xff] %vm316, %v298
      %332 = vst.msk [vmem:[%s172 + $0x78] sm:$0xff] %vm316, %v299
      %333 = vst.msk [vmem:[%s172 + $0x80] sm:$0xff] %vm316, %v300
      %334 = vst.msk [vmem:[%s172 + $0x88] sm:$0xff] %vm316, %v301
      %335 = vst.msk [vmem:[%s172 + $0x90] sm:$0xff] %vm316, %v302
      %336 = vst.msk [vmem:[%s172 + $0x98] sm:$0xff] %vm316, %v303
      %337 = vst.msk [vmem:[%s172 + $0xa0] sm:$0xff] %vm316, %v304
      %338 = vst.msk [vmem:[%s172 + $0xa8] sm:$0xff] %vm316, %v305
      %339 = vst.msk [vmem:[%s172 + $0xb0] sm:$0xff] %vm316, %v306
      %340 = vst.msk [vmem:[%s172 + $0xb8] sm:$0xff] %vm316, %v307
      %341 = vst.msk [vmem:[%s172 + $0xc0] sm:$0xff] %vm316, %v308
      %342 = vst.msk [vmem:[%s172 + $0xc8] sm:$0xff] %vm316, %v309
      %343 = vst.msk [vmem:[%s172 + $0xd0] sm:$0xff] %vm316, %v310
      %344 = vst.msk [vmem:[%s172 + $0xd8] sm:$0xff] %vm316, %v311
      %345 = vst.msk [vmem:[%s172 + $0xe0] sm:$0xff] %vm316, %v312
      %346 = vst.msk [vmem:[%s172 + $0xe8] sm:$0xff] %vm316, %v313
      %347 = vst.msk [vmem:[%s172 + $0xf0] sm:$0xff] %vm316, %v314
      %348 = vst.msk [vmem:[%s172 + $0xf8] sm:$0xff] %vm316, %v315
      %s349 = smul.u32 32, %s14
      %p350 = scmp.lt.s32.totalorder %s349, 63
      %s351 = scalar_select %p350, %s349, 63
      %s352 = smul.addr %s351, 8
      %s353 = scalar_lea.vmem %s3, %s352
      // Predicated region
      $region33: #{_lambda_.21} parent=31 // pred_check
        %p354 = pneg %p100
      $region34: #{_lambda_.21} parent=31 // pred_check_branch
        %356 = sbr.rel (%p354) target = $region36
      $region35: #{_lambda_.21} parent=31 // pred_region
        %s357 = smul.u32 32, %s14
      $region36: #{_lambda_.21} parent=31 // pred_fallthru
        _
    $region32: #{_lambda_.21} parent=5 // pred_fallthru
      _
    %p358 = scmp.le.s32.totalorder 2, %s9
    // Predicated region
    $region37: #{_lambda_.21} parent=5 // pred_check
      %p359 = pneg %p358
    $region38: #{_lambda_.21} parent=5 // pred_check_branch
      %361 = sbr.rel (%p359) target = $region40
    $region39: #{_lambda_.21} parent=5 // pred_region
      %s362 = ssub.s32 %s9, 2
      // Predicated region
      $region41: #{_lambda_.21} parent=39 // pred_check
        %p363 = pneg %p106
      $region42: #{_lambda_.21} parent=39 // pred_check_branch
        %365 = sbr.rel (%p363) target = $region44
      $region43: #{_lambda_.21} parent=39 // pred_region
        %s366 = smul.u32 32, %s15
        %p367 = scmp.lt.s32.totalorder %s366, 63
        %s368 = scalar_select %p367, %s366, 63
        %s369 = smul.addr %s368, 8
        %s370 = scalar_lea.vmem %s3, %s369
      $region44: #{_lambda_.21} parent=39 // pred_fallthru
        _
    $region40: #{_lambda_.21} parent=5 // pred_fallthru
      _
  $region6: #{_lambda_.21} parent=0 // loop_footer
    %s13 = sadd.s32 1, %s9
  $region7: #{_lambda_.21} parent=0 // loop_footer_branch
    %8 = sbr.rel target = $region3
  $region8: #{_lambda_.21} parent=0 // loop_exit
    _

// kernel: _lambda_.22
$region0: #{_lambda_.22}
  #allocation0 [shape = 'u32[]', space=smem, size = 0x4, offset = 0x4, fixed_abs, tag = 'smem constant byte address 0x4 - core index']
  #allocation1 [shape = 'u32[144,128]{1,0:T(1,128)}', space=vmem, size = 0x12000, scoped, tag = 'internal scratch']
  %s0 = inlined_call_operand.vmem [shape: f32[9,512,24], index: 0, kind: input, shape index: {}]
  %s1 = inlined_call_operand.vmem [shape: f32[9,1,24], index: 1, kind: input, shape index: {}]
  %s2 = inlined_call_operand.vmem [shape: f32[1,24], index: 2, kind: input, shape index: {}]
  %s3 = inlined_call_operand.vmem [shape: f32[512,24], index: 3, kind: output, shape index: {}]
  %s4 = sld [smem:[#allocation0]]
  $region83: #{_lambda_.22} parent=0
    _
  %s6 = ssub.s32 1, %s4
  %s7 = scalar_select 0, %s6, %s4
  $region1: #{_lambda_.22} parent=0
    #allocation2 [shape = 'u8[2359296]{0}', space=vmem, size = 0x240000, scoped, tag = 'input window, operand 0']
    loop: start=0, step=1, limit=4
    $region2: #{_lambda_.22} parent=1 // loop_pre_header
      _
    $region3: #{_lambda_.22} parent=1 // loop_header
      %s9 = sphi 0, %s13
      %p10 = scmp.ge.s32.totalorder %s9, 4
      %s19 = sphi 0, %s21
      %s22 = sphi 0, %s19
      %s23 = sphi 0, %s22
      %s39 = sphi 0, %s23
      %s43 = sphi 0, %s43
      %s45 = sphi 0, %s43
      %s46 = sphi 0, %s45
      %s60 = sphi 0, %s46
      %s64 = sphi 0, %s64
      %s66 = sphi 0, %s64
      %s67 = sphi 0, %s66
      %s81 = sphi 0, %s67
      %s87 = sphi 0, %s89
      %s90 = sphi 0, %s87
      %s91 = sphi 0, %s90
      %s107 = sphi 0, %s91
    $region4: #{_lambda_.22} parent=1 // loop_header_branch
      %12 = sbr.rel (%p10) target = $region8
    $region5: #{_lambda_.22} parent=1 // loop_body
      %s14 = ssub.s32 %s9, 1
      %s15 = ssub.s32 %s9, 2
      %s16 = sadd.s32 %s9, 1
      %s17 = ssub.s32 %s9, %s16
      %p18 = scmp.eq.s32.totalorder %s17, 0
      %s20 = sadd.s32 %s19, 1
      %s21 = scalar_select %p18, %s19, %s20
      %p24 = pneg %p18
      %p25 = scmp.eq.s32.totalorder %s9, 1
      %p26 = por %p24, %p25
      %p27 = scmp.ne.s32.totalorder %s19, %s22
      %p28 = scmp.eq.s32.totalorder %s9, 0
      %p29 = por %p27, %p28
      %p30 = scmp.ne.s32.totalorder %s19, %s22
      %p31 = scmp.eq.s32.totalorder %s14, 1
      %p32 = por %p30, %p31
      %p33 = scmp.ne.s32.totalorder %s22, %s23
      %p34 = scmp.eq.s32.totalorder %s14, 0
      %p35 = por %p33, %p34
      %p36 = scmp.ne.s32.totalorder %s22, %s23
      %p37 = scmp.eq.s32.totalorder %s15, 1
      %p38 = por %p36, %p37
      %p40 = scmp.ne.s32.totalorder %s23, %s39
      %p41 = scmp.eq.s32.totalorder %s15, 0
      %p42 = por %p40, %p41
      %s44 = sadd.s32 %s43, 1
      %p47 = scmp.eq.s32.totalorder %s9, 1
      %p48 = scmp.ne.s32.totalorder %s43, %s45
      %p49 = scmp.eq.s32.totalorder %s9, 0
      %p50 = por %p48, %p49
      %p51 = scmp.ne.s32.totalorder %s43, %s45
      %p52 = scmp.eq.s32.totalorder %s14, 1
      %p53 = por %p51, %p52
      %p54 = scmp.ne.s32.totalorder %s45, %s46
      %p55 = scmp.eq.s32.totalorder %s14, 0
      %p56 = por %p54, %p55
      %p57 = scmp.ne.s32.totalorder %s45, %s46
      %p58 = scmp.eq.s32.totalorder %s15, 1
      %p59 = por %p57, %p58
      %p61 = scmp.ne.s32.totalorder %s46, %s60
      %p62 = scmp.eq.s32.totalorder %s15, 0
      %p63 = por %p61, %p62
      %s65 = sadd.s32 %s64, 1
      %p68 = scmp.eq.s32.totalorder %s9, 1
      %p69 = scmp.ne.s32.totalorder %s64, %s66
      %p70 = scmp.eq.s32.totalorder %s9, 0
      %p71 = por %p69, %p70
      %p72 = scmp.ne.s32.totalorder %s64, %s66
      %p73 = scmp.eq.s32.totalorder %s14, 1
      %p74 = por %p72, %p73
      %p75 = scmp.ne.s32.totalorder %s66, %s67
      %p76 = scmp.eq.s32.totalorder %s14, 0
      %p77 = por %p75, %p76
      %p78 = scmp.ne.s32.totalorder %s66, %s67
      %p79 = scmp.eq.s32.totalorder %s15, 1
      %p80 = por %p78, %p79
      %p82 = scmp.ne.s32.totalorder %s67, %s81
      %p83 = scmp.eq.s32.totalorder %s15, 0
      %p84 = por %p82, %p83
      %s85 = ssub.s32 %s9, %s16
      %p86 = scmp.eq.s32.totalorder %s85, 0
      %s88 = sadd.s32 %s87, 1
      %s89 = scalar_select %p86, %s87, %s88
      %p92 = pneg %p86
      %p93 = scmp.eq.s32.totalorder %s9, 1
      %p94 = por %p92, %p93
      %p95 = scmp.ne.s32.totalorder %s87, %s90
      %p96 = scmp.eq.s32.totalorder %s9, 0
      %p97 = por %p95, %p96
      %p98 = scmp.ne.s32.totalorder %s87, %s90
      %p99 = scmp.eq.s32.totalorder %s14, 1
      %p100 = por %p98, %p99
      %p101 = scmp.ne.s32.totalorder %s90, %s91
      %p102 = scmp.eq.s32.totalorder %s14, 0
      %p103 = por %p101, %p102
      %p104 = scmp.ne.s32.totalorder %s90, %s91
      %p105 = scmp.eq.s32.totalorder %s15, 1
      %p106 = por %p104, %p105
      %p108 = scmp.ne.s32.totalorder %s91, %s107
      %p109 = scmp.eq.s32.totalorder %s15, 0
      %p110 = por %p108, %p109
      %p111 = scmp.le.s32.totalorder 1, %s9
      %p112 = scmp.lt.s32.totalorder %s9, 3
      %p113 = pnand %p111, %p112
      %p114 = pneg %p113
      // Predicated region
      $region9: #{_lambda_.22} parent=5 // pred_check
        _
      $region10: #{_lambda_.22} parent=5 // pred_check_branch
        %116 = sbr.rel (%p113) target = $region12
      $region11: #{_lambda_.22} parent=5 // pred_region
        %s117 = ssub.s32 %s9, 1
        // Predicated region
        $region13: #{_lambda_.22} parent=11 // pred_check
          %p118 = pneg %p56
        $region14: #{_lambda_.22} parent=11 // pred_check_branch
          %120 = sbr.rel (%p118) target = $region16
        $region15: #{_lambda_.22} parent=11 // pred_region
          _
        $region16: #{_lambda_.22} parent=11 // pred_fallthru
          _
        // Predicated region
        $region17: #{_lambda_.22} parent=11 // pred_check
          %p121 = pneg %p77
        $region18: #{_lambda_.22} parent=11 // pred_check_branch
          %123 = sbr.rel (%p121) target = $region20
        $region19: #{_lambda_.22} parent=11 // pred_region
          _
        $region20: #{_lambda_.22} parent=11 // pred_fallthru
          _
      $region12: #{_lambda_.22} parent=5 // pred_fallthru
        _
      %p124 = scmp.lt.s32.totalorder %s9, 2
      // Predicated region
      $region21: #{_lambda_.22} parent=5 // pred_check
        %p125 = pneg %p124
      $region22: #{_lambda_.22} parent=5 // pred_check_branch
        %127 = sbr.rel (%p125) target = $region24
      $region23: #{_lambda_.22} parent=5 // pred_region
        // Predicated region
        $region25: #{_lambda_.22} parent=23 // pred_check
          %p128 = pneg %p29
        $region26: #{_lambda_.22} parent=23 // pred_check_branch
          %130 = sbr.rel (%p128) target = $region28
        $region27: #{_lambda_.22} parent=23 // pred_region
          %s131 = sand.u32 %s19, 1
          %s132 = sand.u32 %s19, 1
          %s133 = smul.addr %s132, 2304
          %s134 = scalar_lea.vmem [#allocation2], %s133
          %s135 = smul.u32 32, %s9
          %s136 = smul.addr %s135, 8
          %s137 = scalar_lea.vmem %s0, %s136
          // Predicated region
          $region29: #{_lambda_.22} parent=27 // pred_check
            _
          $region30: #{_lambda_.22} parent=27 // pred_check_branch
            %139 = sbr.rel (0) target = $region32
          $region31: #{_lambda_.22} parent=27 // pred_region
            // Predicated region
            $region33: #{_lambda_.22} parent=31 // pred_check
              _
            $region34: #{_lambda_.22} parent=31 // pred_check_branch
              %141 = sbr.rel (0) target = $region36
            $region35: #{_lambda_.22} parent=31 // pred_region
              // Predicated region
              $region48: #{_lambda_.22} parent=35 // pred_check
                _
              $region49: #{_lambda_.22} parent=35 // pred_check_branch
                %730 = sbr.rel (0) target = $region51
              $region50: #{_lambda_.22} parent=35 // pred_region
                loop: start=0, step=1, limit=1
                $region52: #{_lambda_.22} parent=50 // loop_pre_header
                  _
                $region53: #{_lambda_.22} parent=50 // loop_header
                  %s732 = sphi 0, %s736
                  %p733 = scmp.ge.s32.totalorder %s732, 1
                  %s737 = sphi %s137, %s137
                  %s738 = sphi %s134, %s134
                $region54: #{_lambda_.22} parent=50 // loop_header_branch
                  %735 = sbr.rel (%p733) target = $region58
                $region55: #{_lambda_.22} parent=50 // loop_body
                  %v739 = vld [vmem:[%s737] sm:$0xff]
                  %740 = vst [vmem:[%s738] sm:$0xff] %v739
                  %v741 = vld [vmem:[%s737 + $0x8] sm:$0xff]
                  %742 = vst [vmem:[%s738 + $0x8] sm:$0xff] %v741
                  %v743 = vld [vmem:[%s737 + $0x10] sm:$0xff]
                  %744 = vst [vmem:[%s738 + $0x10] sm:$0xff] %v743
                  %v745 = vld [vmem:[%s737 + $0x18] sm:$0xff]
                  %746 = vst [vmem:[%s738 + $0x18] sm:$0xff] %v745
                  %v747 = vld [vmem:[%s737 + $0x20] sm:$0xff]
                  %748 = vst [vmem:[%s738 + $0x20] sm:$0xff] %v747
                  %v749 = vld [vmem:[%s737 + $0x28] sm:$0xff]
                  %750 = vst [vmem:[%s738 + $0x28] sm:$0xff] %v749
                  %v751 = vld [vmem:[%s737 + $0x30] sm:$0xff]
                  %752 = vst [vmem:[%s738 + $0x30] sm:$0xff] %v751
                  %v753 = vld [vmem:[%s737 + $0x38] sm:$0xff]
                  %754 = vst [vmem:[%s738 + $0x38] sm:$0xff] %v753
                  %v755 = vld [vmem:[%s737 + $0x40] sm:$0xff]
                  %756 = vst [vmem:[%s738 + $0x40] sm:$0xff] %v755
                  %v757 = vld [vmem:[%s737 + $0x48] sm:$0xff]
                  %758 = vst [vmem:[%s738 + $0x48] sm:$0xff] %v757
                  %v759 = vld [vmem:[%s737 + $0x50] sm:$0xff]
                  %760 = vst [vmem:[%s738 + $0x50] sm:$0xff] %v759
                  %v761 = vld [vmem:[%s737 + $0x58] sm:$0xff]
                  %762 = vst [vmem:[%s738 + $0x58] sm:$0xff] %v761
                  %v763 = vld [vmem:[%s737 + $0x60] sm:$0xff]
                  %764 = vst [vmem:[%s738 + $0x60] sm:$0xff] %v763
                  %v765 = vld [vmem:[%s737 + $0x68] sm:$0xff]
                  %766 = vst [vmem:[%s738 + $0x68] sm:$0xff] %v765
                  %v767 = vld [vmem:[%s737 + $0x70] sm:$0xff]
                  %768 = vst [vmem:[%s738 + $0x70] sm:$0xff] %v767
                  %v769 = vld [vmem:[%s737 + $0x78] sm:$0xff]
                  %770 = vst [vmem:[%s738 + $0x78] sm:$0xff] %v769
                  %v771 = vld [vmem:[%s737 + $0x80] sm:$0xff]
                  %772 = vst [vmem:[%s738 + $0x80] sm:$0xff] %v771
                  %v773 = vld [vmem:[%s737 + $0x88] sm:$0xff]
                  %774 = vst [vmem:[%s738 + $0x88] sm:$0xff] %v773
                  %v775 = vld [vmem:[%s737 + $0x90] sm:$0xff]
                  %776 = vst [vmem:[%s738 + $0x90] sm:$0xff] %v775
                  %v777 = vld [vmem:[%s737 + $0x98] sm:$0xff]
                  %778 = vst [vmem:[%s738 + $0x98] sm:$0xff] %v777
                  %v779 = vld [vmem:[%s737 + $0xa0] sm:$0xff]
                  %780 = vst [vmem:[%s738 + $0xa0] sm:$0xff] %v779
                  %v781 = vld [vmem:[%s737 + $0xa8] sm:$0xff]
                  %782 = vst [vmem:[%s738 + $0xa8] sm:$0xff] %v781
                  %v783 = vld [vmem:[%s737 + $0xb0] sm:$0xff]
                  %784 = vst [vmem:[%s738 + $0xb0] sm:$0xff] %v783
                  %v785 = vld [vmem:[%s737 + $0xb8] sm:$0xff]
                  %786 = vst [vmem:[%s738 + $0xb8] sm:$0xff] %v785
                  %v787 = vld [vmem:[%s737 + $0xc0] sm:$0xff]
                  %788 = vst [vmem:[%s738 + $0xc0] sm:$0xff] %v787
                  %v789 = vld [vmem:[%s737 + $0xc8] sm:$0xff]
                  %790 = vst [vmem:[%s738 + $0xc8] sm:$0xff] %v789
                  %v791 = vld [vmem:[%s737 + $0xd0] sm:$0xff]
                  %792 = vst [vmem:[%s738 + $0xd0] sm:$0xff] %v791
                  %v793 = vld [vmem:[%s737 + $0xd8] sm:$0xff]
                  %794 = vst [vmem:[%s738 + $0xd8] sm:$0xff] %v793
                  %v795 = vld [vmem:[%s737 + $0xe0] sm:$0xff]
                  %796 = vst [vmem:[%s738 + $0xe0] sm:$0xff] %v795
                  %v797 = vld [vmem:[%s737 + $0xe8] sm:$0xff]
                  %798 = vst [vmem:[%s738 + $0xe8] sm:$0xff] %v797
                  %v799 = vld [vmem:[%s737 + $0xf0] sm:$0xff]
                  %800 = vst [vmem:[%s738 + $0xf0] sm:$0xff] %v799
                  %v801 = vld [vmem:[%s737 + $0xf8] sm:$0xff]
                  %802 = vst [vmem:[%s738 + $0xf8] sm:$0xff] %v801
                  %v803 = vld [vmem:[%s737 + $0x200] sm:$0xff]
                  %804 = vst [vmem:[%s738 + $0x100] sm:$0xff] %v803
                  %v805 = vld [vmem:[%s737 + $0x208] sm:$0xff]
                  %806 = vst [vmem:[%s738 + $0x108] sm:$0xff] %v805
                  %v807 = vld [vmem:[%s737 + $0x210] sm:$0xff]
                  %808 = vst [vmem:[%s738 + $0x110] sm:$0xff] %v807
                  %v809 = vld [vmem:[%s737 + $0x218] sm:$0xff]
                  %810 = vst [vmem:[%s738 + $0x118] sm:$0xff] %v809
                  %v811 = vld [vmem:[%s737 + $0x220] sm:$0xff]
                  %812 = vst [vmem:[%s738 + $0x120] sm:$0xff] %v811
                  %v813 = vld [vmem:[%s737 + $0x228] sm:$0xff]
                  %814 = vst [vmem:[%s738 + $0x128] sm:$0xff] %v813
                  %v815 = vld [vmem:[%s737 + $0x230] sm:$0xff]
                  %816 = vst [vmem:[%s738 + $0x130] sm:$0xff] %v815
                  %v817 = vld [vmem:[%s737 + $0x238] sm:$0xff]
                  %818 = vst [vmem:[%s738 + $0x138] sm:$0xff] %v817
                  %v819 = vld [vmem:[%s737 + $0x240] sm:$0xff]
                  %820 = vst [vmem:[%s738 + $0x140] sm:$0xff] %v819
                  %v821 = vld [vmem:[%s737 + $0x248] sm:$0xff]
                  %822 = vst [vmem:[%s738 + $0x148] sm:$0xff] %v821
                  %v823 = vld [vmem:[%s737 + $0x250] sm:$0xff]
                  %824 = vst [vmem:[%s738 + $0x150] sm:$0xff] %v823
                  %v825 = vld [vmem:[%s737 + $0x258] sm:$0xff]
                  %826 = vst [vmem:[%s738 + $0x158] sm:$0xff] %v825
                  %v827 = vld [vmem:[%s737 + $0x260] sm:$0xff]
                  %828 = vst [vmem:[%s738 + $0x160] sm:$0xff] %v827
                  %v829 = vld [vmem:[%s737 + $0x268] sm:$0xff]
                  %830 = vst [vmem:[%s738 + $0x168] sm:$0xff] %v829
                  %v831 = vld [vmem:[%s737 + $0x270] sm:$0xff]
                  %832 = vst [vmem:[%s738 + $0x170] sm:$0xff] %v831
                  %v833 = vld [vmem:[%s737 + $0x278] sm:$0xff]
                  %834 = vst [vmem:[%s738 + $0x178] sm:$0xff] %v833
                  %v835 = vld [vmem:[%s737 + $0x280] sm:$0xff]
                  %836 = vst [vmem:[%s738 + $0x180] sm:$0xff] %v835
                  %v837 = vld [vmem:[%s737 + $0x288] sm:$0xff]
                  %838 = vst [vmem:[%s738 + $0x188] sm:$0xff] %v837
                  %v839 = vld [vmem:[%s737 + $0x290] sm:$0xff]
                  %840 = vst [vmem:[%s738 + $0x190] sm:$0xff] %v839
                  %v841 = vld [vmem:[%s737 + $0x298] sm:$0xff]
                  %842 = vst [vmem:[%s738 + $0x198] sm:$0xff] %v841
                  %v843 = vld [vmem:[%s737 + $0x2a0] sm:$0xff]
                  %844 = vst [vmem:[%s738 + $0x1a0] sm:$0xff] %v843
                  %v845 = vld [vmem:[%s737 + $0x2a8] sm:$0xff]
                  %846 = vst [vmem:[%s738 + $0x1a8] sm:$0xff] %v845
                  %v847 = vld [vmem:[%s737 + $0x2b0] sm:$0xff]
                  %848 = vst [vmem:[%s738 + $0x1b0] sm:$0xff] %v847
                  %v849 = vld [vmem:[%s737 + $0x2b8] sm:$0xff]
                  %850 = vst [vmem:[%s738 + $0x1b8] sm:$0xff] %v849
                  %v851 = vld [vmem:[%s737 + $0x2c0] sm:$0xff]
                  %852 = vst [vmem:[%s738 + $0x1c0] sm:$0xff] %v851
                  %v853 = vld [vmem:[%s737 + $0x2c8] sm:$0xff]
                  %854 = vst [vmem:[%s738 + $0x1c8] sm:$0xff] %v853
                  %v855 = vld [vmem:[%s737 + $0x2d0] sm:$0xff]
                  %856 = vst [vmem:[%s738 + $0x1d0] sm:$0xff] %v855
                  %v857 = vld [vmem:[%s737 + $0x2d8] sm:$0xff]
                  %858 = vst [vmem:[%s738 + $0x1d8] sm:$0xff] %v857
                  %v859 = vld [vmem:[%s737 + $0x2e0] sm:$0xff]
                  %860 = vst [vmem:[%s738 + $0x1e0] sm:$0xff] %v859
                  %v861 = vld [vmem:[%s737 + $0x2e8] sm:$0xff]
                  %862 = vst [vmem:[%s738 + $0x1e8] sm:$0xff] %v861
                  %v863 = vld [vmem:[%s737 + $0x2f0] sm:$0xff]
                  %864 = vst [vmem:[%s738 + $0x1f0] sm:$0xff] %v863
                  %v865 = vld [vmem:[%s737 + $0x2f8] sm:$0xff]
                  %866 = vst [vmem:[%s738 + $0x1f8] sm:$0xff] %v865
                  %v867 = vld [vmem:[%s737 + $0x400] sm:$0xff]
                  %868 = vst [vmem:[%s738 + $0x200] sm:$0xff] %v867
                  %v869 = vld [vmem:[%s737 + $0x408] sm:$0xff]
                  %870 = vst [vmem:[%s738 + $0x208] sm:$0xff] %v869
                  %v871 = vld [vmem:[%s737 + $0x410] sm:$0xff]
                  %872 = vst [vmem:[%s738 + $0x210] sm:$0xff] %v871
                  %v873 = vld [vmem:[%s737 + $0x418] sm:$0xff]
                  %874 = vst [vmem:[%s738 + $0x218] sm:$0xff] %v873
                  %v875 = vld [vmem:[%s737 + $0x420] sm:$0xff]
                  %876 = vst [vmem:[%s738 + $0x220] sm:$0xff] %v875
                  %v877 = vld [vmem:[%s737 + $0x428] sm:$0xff]
                  %878 = vst [vmem:[%s738 + $0x228] sm:$0xff] %v877
                  %v879 = vld [vmem:[%s737 + $0x430] sm:$0xff]
                  %880 = vst [vmem:[%s738 + $0x230] sm:$0xff] %v879
                  %v881 = vld [vmem:[%s737 + $0x438] sm:$0xff]
                  %882 = vst [vmem:[%s738 + $0x238] sm:$0xff] %v881
                  %v883 = vld [vmem:[%s737 + $0x440] sm:$0xff]
                  %884 = vst [vmem:[%s738 + $0x240] sm:$0xff] %v883
                  %v885 = vld [vmem:[%s737 + $0x448] sm:$0xff]
                  %886 = vst [vmem:[%s738 + $0x248] sm:$0xff] %v885
                  %v887 = vld [vmem:[%s737 + $0x450] sm:$0xff]
                  %888 = vst [vmem:[%s738 + $0x250] sm:$0xff] %v887
                  %v889 = vld [vmem:[%s737 + $0x458] sm:$0xff]
                  %890 = vst [vmem:[%s738 + $0x258] sm:$0xff] %v889
                  %v891 = vld [vmem:[%s737 + $0x460] sm:$0xff]
                  %892 = vst [vmem:[%s738 + $0x260] sm:$0xff] %v891
                  %v893 = vld [vmem:[%s737 + $0x468] sm:$0xff]
                  %894 = vst [vmem:[%s738 + $0x268] sm:$0xff] %v893
                  %v895 = vld [vmem:[%s737 + $0x470] sm:$0xff]
                  %896 = vst [vmem:[%s738 + $0x270] sm:$0xff] %v895
                  %v897 = vld [vmem:[%s737 + $0x478] sm:$0xff]
                  %898 = vst [vmem:[%s738 + $0x278] sm:$0xff] %v897
                  %v899 = vld [vmem:[%s737 + $0x480] sm:$0xff]
                  %900 = vst [vmem:[%s738 + $0x280] sm:$0xff] %v899
                  %v901 = vld [vmem:[%s737 + $0x488] sm:$0xff]
                  %902 = vst [vmem:[%s738 + $0x288] sm:$0xff] %v901
                  %v903 = vld [vmem:[%s737 + $0x490] sm:$0xff]
                  %904 = vst [vmem:[%s738 + $0x290] sm:$0xff] %v903
                  %v905 = vld [vmem:[%s737 + $0x498] sm:$0xff]
                  %906 = vst [vmem:[%s738 + $0x298] sm:$0xff] %v905
                  %v907 = vld [vmem:[%s737 + $0x4a0] sm:$0xff]
                  %908 = vst [vmem:[%s738 + $0x2a0] sm:$0xff] %v907
                  %v909 = vld [vmem:[%s737 + $0x4a8] sm:$0xff]
                  %910 = vst [vmem:[%s738 + $0x2a8] sm:$0xff] %v909
                  %v911 = vld [vmem:[%s737 + $0x4b0] sm:$0xff]
                  %912 = vst [vmem:[%s738 + $0x2b0] sm:$0xff] %v911
                  %v913 = vld [vmem:[%s737 + $0x4b8] sm:$0xff]
                  %914 = vst [vmem:[%s738 + $0x2b8] sm:$0xff] %v913
                  %v915 = vld [vmem:[%s737 + $0x4c0] sm:$0xff]
                  %916 = vst [vmem:[%s738 + $0x2c0] sm:$0xff] %v915
                  %v917 = vld [vmem:[%s737 + $0x4c8] sm:$0xff]
                  %918 = vst [vmem:[%s738 + $0x2c8] sm:$0xff] %v917
                  %v919 = vld [vmem:[%s737 + $0x4d0] sm:$0xff]
                  %920 = vst [vmem:[%s738 + $0x2d0] sm:$0xff] %v919
                  %v921 = vld [vmem:[%s737 + $0x4d8] sm:$0xff]
                  %922 = vst [vmem:[%s738 + $0x2d8] sm:$0xff] %v921
                  %v923 = vld [vmem:[%s737 + $0x4e0] sm:$0xff]
                  %924 = vst [vmem:[%s738 + $0x2e0] sm:$0xff] %v923
                  %v925 = vld [vmem:[%s737 + $0x4e8] sm:$0xff]
                  %926 = vst [vmem:[%s738 + $0x2e8] sm:$0xff] %v925
                  %v927 = vld [vmem:[%s737 + $0x4f0] sm:$0xff]
                  %928 = vst [vmem:[%s738 + $0x2f0] sm:$0xff] %v927
                  %v929 = vld [vmem:[%s737 + $0x4f8] sm:$0xff]
                  %930 = vst [vmem:[%s738 + $0x2f8] sm:$0xff] %v929
                  %v931 = vld [vmem:[%s737 + $0x600] sm:$0xff]
                  %932 = vst [vmem:[%s738 + $0x300] sm:$0xff] %v931
                  %v933 = vld [vmem:[%s737 + $0x608] sm:$0xff]
                  %934 = vst [vmem:[%s738 + $0x308] sm:$0xff] %v933
                  %v935 = vld [vmem:[%s737 + $0x610] sm:$0xff]
                  %936 = vst [vmem:[%s738 + $0x310] sm:$0xff] %v935
                  %v937 = vld [vmem:[%s737 + $0x618] sm:$0xff]
                  %938 = vst [vmem:[%s738 + $0x318] sm:$0xff] %v937
                  %v939 = vld [vmem:[%s737 + $0x620] sm:$0xff]
                  %940 = vst [vmem:[%s738 + $0x320] sm:$0xff] %v939
                  %v941 = vld [vmem:[%s737 + $0x628] sm:$0xff]
                  %942 = vst [vmem:[%s738 + $0x328] sm:$0xff] %v941
                  %v943 = vld [vmem:[%s737 + $0x630] sm:$0xff]
                  %944 = vst [vmem:[%s738 + $0x330] sm:$0xff] %v943
                  %v945 = vld [vmem:[%s737 + $0x638] sm:$0xff]
                  %946 = vst [vmem:[%s738 + $0x338] sm:$0xff] %v945
                  %v947 = vld [vmem:[%s737 + $0x640] sm:$0xff]
                  %948 = vst [vmem:[%s738 + $0x340] sm:$0xff] %v947
                  %v949 = vld [vmem:[%s737 + $0x648] sm:$0xff]
                  %950 = vst [vmem:[%s738 + $0x348] sm:$0xff] %v949
                  %v951 = vld [vmem:[%s737 + $0x650] sm:$0xff]
                  %952 = vst [vmem:[%s738 + $0x350] sm:$0xff] %v951
                  %v953 = vld [vmem:[%s737 + $0x658] sm:$0xff]
                  %954 = vst [vmem:[%s738 + $0x358] sm:$0xff] %v953
                  %v955 = vld [vmem:[%s737 + $0x660] sm:$0xff]
                  %956 = vst [vmem:[%s738 + $0x360] sm:$0xff] %v955
                  %v957 = vld [vmem:[%s737 + $0x668] sm:$0xff]
                  %958 = vst [vmem:[%s738 + $0x368] sm:$0xff] %v957
                  %v959 = vld [vmem:[%s737 + $0x670] sm:$0xff]
                  %960 = vst [vmem:[%s738 + $0x370] sm:$0xff] %v959
                  %v961 = vld [vmem:[%s737 + $0x678] sm:$0xff]
                  %962 = vst [vmem:[%s738 + $0x378] sm:$0xff] %v961
                  %v963 = vld [vmem:[%s737 + $0x680] sm:$0xff]
                  %964 = vst [vmem:[%s738 + $0x380] sm:$0xff] %v963
                  %v965 = vld [vmem:[%s737 + $0x688] sm:$0xff]
                  %966 = vst [vmem:[%s738 + $0x388] sm:$0xff] %v965
                  %v967 = vld [vmem:[%s737 + $0x690] sm:$0xff]
                  %968 = vst [vmem:[%s738 + $0x390] sm:$0xff] %v967
                  %v969 = vld [vmem:[%s737 + $0x698] sm:$0xff]
                  %970 = vst [vmem:[%s738 + $0x398] sm:$0xff] %v969
                  %v971 = vld [vmem:[%s737 + $0x6a0] sm:$0xff]
                  %972 = vst [vmem:[%s738 + $0x3a0] sm:$0xff] %v971
                  %v973 = vld [vmem:[%s737 + $0x6a8] sm:$0xff]
                  %974 = vst [vmem:[%s738 + $0x3a8] sm:$0xff] %v973
                  %v975 = vld [vmem:[%s737 + $0x6b0] sm:$0xff]
                  %976 = vst [vmem:[%s738 + $0x3b0] sm:$0xff] %v975
                  %v977 = vld [vmem:[%s737 + $0x6b8] sm:$0xff]
                  %978 = vst [vmem:[%s738 + $0x3b8] sm:$0xff] %v977
                  %v979 = vld [vmem:[%s737 + $0x6c0] sm:$0xff]
                  %980 = vst [vmem:[%s738 + $0x3c0] sm:$0xff] %v979
                  %v981 = vld [vmem:[%s737 + $0x6c8] sm:$0xff]
                  %982 = vst [vmem:[%s738 + $0x3c8] sm:$0xff] %v981
                  %v983 = vld [vmem:[%s737 + $0x6d0] sm:$0xff]
                  %984 = vst [vmem:[%s738 + $0x3d0] sm:$0xff] %v983
                  %v985 = vld [vmem:[%s737 + $0x6d8] sm:$0xff]
                  %986 = vst [vmem:[%s738 + $0x3d8] sm:$0xff] %v985
                  %v987 = vld [vmem:[%s737 + $0x6e0] sm:$0xff]
                  %988 = vst [vmem:[%s738 + $0x3e0] sm:$0xff] %v987
                  %v989 = vld [vmem:[%s737 + $0x6e8] sm:$0xff]
                  %990 = vst [vmem:[%s738 + $0x3e8] sm:$0xff] %v989
                  %v991 = vld [vmem:[%s737 + $0x6f0] sm:$0xff]
                  %992 = vst [vmem:[%s738 + $0x3f0] sm:$0xff] %v991
                  %v993 = vld [vmem:[%s737 + $0x6f8] sm:$0xff]
                  %994 = vst [vmem:[%s738 + $0x3f8] sm:$0xff] %v993
                  %v995 = vld [vmem:[%s737 + $0x800] sm:$0xff]
                  %996 = vst [vmem:[%s738 + $0x400] sm:$0xff] %v995
                  %v997 = vld [vmem:[%s737 + $0x808] sm:$0xff]
                  %998 = vst [vmem:[%s738 + $0x408] sm:$0xff] %v997
                  %v999 = vld [vmem:[%s737 + $0x810] sm:$0xff]
                  %1000 = vst [vmem:[%s738 + $0x410] sm:$0xff] %v999
                  %v1001 = vld [vmem:[%s737 + $0x818] sm:$0xff]
                  %1002 = vst [vmem:[%s738 + $0x418] sm:$0xff] %v1001
                  %v1003 = vld [vmem:[%s737 + $0x820] sm:$0xff]
                  %1004 = vst [vmem:[%s738 + $0x420] sm:$0xff] %v1003
                  %v1005 = vld [vmem:[%s737 + $0x828] sm:$0xff]
                  %1006 = vst [vmem:[%s738 + $0x428] sm:$0xff] %v1005
                  %v1007 = vld [vmem:[%s737 + $0x830] sm:$0xff]
                  %1008 = vst [vmem:[%s738 + $0x430] sm:$0xff] %v1007
                  %v1009 = vld [vmem:[%s737 + $0x838] sm:$0xff]
                  %1010 = vst [vmem:[%s738 + $0x438] sm:$0xff] %v1009
                  %v1011 = vld [vmem:[%s737 + $0x840] sm:$0xff]
                  %1012 = vst [vmem:[%s738 + $0x440] sm:$0xff] %v1011
                  %v1013 = vld [vmem:[%s737 + $0x848] sm:$0xff]
                  %1014 = vst [vmem:[%s738 + $0x448] sm:$0xff] %v1013
                  %v1015 = vld [vmem:[%s737 + $0x850] sm:$0xff]
                  %1016 = vst [vmem:[%s738 + $0x450] sm:$0xff] %v1015
                  %v1017 = vld [vmem:[%s737 + $0x858] sm:$0xff]
                  %1018 = vst [vmem:[%s738 + $0x458] sm:$0xff] %v1017
                  %v1019 = vld [vmem:[%s737 + $0x860] sm:$0xff]
                  %1020 = vst [vmem:[%s738 + $0x460] sm:$0xff] %v1019
                  %v1021 = vld [vmem:[%s737 + $0x868] sm:$0xff]
                  %1022 = vst [vmem:[%s738 + $0x468] sm:$0xff] %v1021
                  %v1023 = vld [vmem:[%s737 + $0x870] sm:$0xff]
                  %1024 = vst [vmem:[%s738 + $0x470] sm:$0xff] %v1023
                  %v1025 = vld [vmem:[%s737 + $0x878] sm:$0xff]
                  %1026 = vst [vmem:[%s738 + $0x478] sm:$0xff] %v1025
                  %v1027 = vld [vmem:[%s737 + $0x880] sm:$0xff]
                  %1028 = vst [vmem:[%s738 + $0x480] sm:$0xff] %v1027
                  %v1029 = vld [vmem:[%s737 + $0x888] sm:$0xff]
                  %1030 = vst [vmem:[%s738 + $0x488] sm:$0xff] %v1029
                  %v1031 = vld [vmem:[%s737 + $0x890] sm:$0xff]
                  %1032 = vst [vmem:[%s738 + $0x490] sm:$0xff] %v1031
                  %v1033 = vld [vmem:[%s737 + $0x898] sm:$0xff]
                  %1034 = vst [vmem:[%s738 + $0x498] sm:$0xff] %v1033
                  %v1035 = vld [vmem:[%s737 + $0x8a0] sm:$0xff]
                  %1036 = vst [vmem:[%s738 + $0x4a0] sm:$0xff] %v1035
                  %v1037 = vld [vmem:[%s737 + $0x8a8] sm:$0xff]
                  %1038 = vst [vmem:[%s738 + $0x4a8] sm:$0xff] %v1037
                  %v1039 = vld [vmem:[%s737 + $0x8b0] sm:$0xff]
                  %1040 = vst [vmem:[%s738 + $0x4b0] sm:$0xff] %v1039
                  %v1041 = vld [vmem:[%s737 + $0x8b8] sm:$0xff]
                  %1042 = vst [vmem:[%s738 + $0x4b8] sm:$0xff] %v1041
                  %v1043 = vld [vmem:[%s737 + $0x8c0] sm:$0xff]
                  %1044 = vst [vmem:[%s738 + $0x4c0] sm:$0xff] %v1043
                  %v1045 = vld [vmem:[%s737 + $0x8c8] sm:$0xff]
                  %1046 = vst [vmem:[%s738 + $0x4c8] sm:$0xff] %v1045
                  %v1047 = vld [vmem:[%s737 + $0x8d0] sm:$0xff]
                  %1048 = vst [vmem:[%s738 + $0x4d0] sm:$0xff] %v1047
                  %v1049 = vld [vmem:[%s737 + $0x8d8] sm:$0xff]
                  %1050 = vst [vmem:[%s738 + $0x4d8] sm:$0xff] %v1049
                  %v1051 = vld [vmem:[%s737 + $0x8e0] sm:$0xff]
                  %1052 = vst [vmem:[%s738 + $0x4e0] sm:$0xff] %v1051
                  %v1053 = vld [vmem:[%s737 + $0x8e8] sm:$0xff]
                  %1054 = vst [vmem:[%s738 + $0x4e8] sm:$0xff] %v1053
                  %v1055 = vld [vmem:[%s737 + $0x8f0] sm:$0xff]
                  %1056 = vst [vmem:[%s738 + $0x4f0] sm:$0xff] %v1055
                  %v1057 = vld [vmem:[%s737 + $0x8f8] sm:$0xff]
                  %1058 = vst [vmem:[%s738 + $0x4f8] sm:$0xff] %v1057
                  %v1059 = vld [vmem:[%s737 + $0xa00] sm:$0xff]
                  %1060 = vst [vmem:[%s738 + $0x500] sm:$0xff] %v1059
                  %v1061 = vld [vmem:[%s737 + $0xa08] sm:$0xff]
                  %1062 = vst [vmem:[%s738 + $0x508] sm:$0xff] %v1061
                  %v1063 = vld [vmem:[%s737 + $0xa10] sm:$0xff]
                  %1064 = vst [vmem:[%s738 + $0x510] sm:$0xff] %v1063
                  %v1065 = vld [vmem:[%s737 + $0xa18] sm:$0xff]
                  %1066 = vst [vmem:[%s738 + $0x518] sm:$0xff] %v1065
                  %v1067 = vld [vmem:[%s737 + $0xa20] sm:$0xff]
                  %1068 = vst [vmem:[%s738 + $0x520] sm:$0xff] %v1067
                  %v1069 = vld [vmem:[%s737 + $0xa28] sm:$0xff]
                  %1070 = vst [vmem:[%s738 + $0x528] sm:$0xff] %v1069
                  %v1071 = vld [vmem:[%s737 + $0xa30] sm:$0xff]
                  %1072 = vst [vmem:[%s738 + $0x530] sm:$0xff] %v1071
                  %v1073 = vld [vmem:[%s737 + $0xa38] sm:$0xff]
                  %1074 = vst [vmem:[%s738 + $0x538] sm:$0xff] %v1073
                  %v1075 = vld [vmem:[%s737 + $0xa40] sm:$0xff]
                  %1076 = vst [vmem:[%s738 + $0x540] sm:$0xff] %v1075
                  %v1077 = vld [vmem:[%s737 + $0xa48] sm:$0xff]
                  %1078 = vst [vmem:[%s738 + $0x548] sm:$0xff] %v1077
                  %v1079 = vld [vmem:[%s737 + $0xa50] sm:$0xff]
                  %1080 = vst [vmem:[%s738 + $0x550] sm:$0xff] %v1079
                  %v1081 = vld [vmem:[%s737 + $0xa58] sm:$0xff]
                  %1082 = vst [vmem:[%s738 + $0x558] sm:$0xff] %v1081
                  %v1083 = vld [vmem:[%s737 + $0xa60] sm:$0xff]
                  %1084 = vst [vmem:[%s738 + $0x560] sm:$0xff] %v1083
                  %v1085 = vld [vmem:[%s737 + $0xa68] sm:$0xff]
                  %1086 = vst [vmem:[%s738 + $0x568] sm:$0xff] %v1085
                  %v1087 = vld [vmem:[%s737 + $0xa70] sm:$0xff]
                  %1088 = vst [vmem:[%s738 + $0x570] sm:$0xff] %v1087
                  %v1089 = vld [vmem:[%s737 + $0xa78] sm:$0xff]
                  %1090 = vst [vmem:[%s738 + $0x578] sm:$0xff] %v1089
                  %v1091 = vld [vmem:[%s737 + $0xa80] sm:$0xff]
                  %1092 = vst [vmem:[%s738 + $0x580] sm:$0xff] %v1091
                  %v1093 = vld [vmem:[%s737 + $0xa88] sm:$0xff]
                  %1094 = vst [vmem:[%s738 + $0x588] sm:$0xff] %v1093
                  %v1095 = vld [vmem:[%s737 + $0xa90] sm:$0xff]
                  %1096 = vst [vmem:[%s738 + $0x590] sm:$0xff] %v1095
                  %v1097 = vld [vmem:[%s737 + $0xa98] sm:$0xff]
                  %1098 = vst [vmem:[%s738 + $0x598] sm:$0xff] %v1097
                  %v1099 = vld [vmem:[%s737 + $0xaa0] sm:$0xff]
                  %1100 = vst [vmem:[%s738 + $0x5a0] sm:$0xff] %v1099
                  %v1101 = vld [vmem:[%s737 + $0xaa8] sm:$0xff]
                  %1102 = vst [vmem:[%s738 + $0x5a8] sm:$0xff] %v1101
                  %v1103 = vld [vmem:[%s737 + $0xab0] sm:$0xff]
                  %1104 = vst [vmem:[%s738 + $0x5b0] sm:$0xff] %v1103
                  %v1105 = vld [vmem:[%s737 + $0xab8] sm:$0xff]
                  %1106 = vst [vmem:[%s738 + $0x5b8] sm:$0xff] %v1105
                  %v1107 = vld [vmem:[%s737 + $0xac0] sm:$0xff]
                  %1108 = vst [vmem:[%s738 + $0x5c0] sm:$0xff] %v1107
                  %v1109 = vld [vmem:[%s737 + $0xac8] sm:$0xff]
                  %1110 = vst [vmem:[%s738 + $0x5c8] sm:$0xff] %v1109
                  %v1111 = vld [vmem:[%s737 + $0xad0] sm:$0xff]
                  %1112 = vst [vmem:[%s738 + $0x5d0] sm:$0xff] %v1111
                  %v1113 = vld [vmem:[%s737 + $0xad8] sm:$0xff]
                  %1114 = vst [vmem:[%s738 + $0x5d8] sm:$0xff] %v1113
                  %v1115 = vld [vmem:[%s737 + $0xae0] sm:$0xff]
                  %1116 = vst [vmem:[%s738 + $0x5e0] sm:$0xff] %v1115
                  %v1117 = vld [vmem:[%s737 + $0xae8] sm:$0xff]
                  %1118 = vst [vmem:[%s738 + $0x5e8] sm:$0xff] %v1117
                  %v1119 = vld [vmem:[%s737 + $0xaf0] sm:$0xff]
                  %1120 = vst [vmem:[%s738 + $0x5f0] sm:$0xff] %v1119
                  %v1121 = vld [vmem:[%s737 + $0xaf8] sm:$0xff]
                  %1122 = vst [vmem:[%s738 + $0x5f8] sm:$0xff] %v1121
                  %v1123 = vld [vmem:[%s737 + $0xc00] sm:$0xff]
                  %1124 = vst [vmem:[%s738 + $0x600] sm:$0xff] %v1123
                  %v1125 = vld [vmem:[%s737 + $0xc08] sm:$0xff]
                  %1126 = vst [vmem:[%s738 + $0x608] sm:$0xff] %v1125
                  %v1127 = vld [vmem:[%s737 + $0xc10] sm:$0xff]
                  %1128 = vst [vmem:[%s738 + $0x610] sm:$0xff] %v1127
                  %v1129 = vld [vmem:[%s737 + $0xc18] sm:$0xff]
                  %1130 = vst [vmem:[%s738 + $0x618] sm:$0xff] %v1129
                  %v1131 = vld [vmem:[%s737 + $0xc20] sm:$0xff]
                  %1132 = vst [vmem:[%s738 + $0x620] sm:$0xff] %v1131
                  %v1133 = vld [vmem:[%s737 + $0xc28] sm:$0xff]
                  %1134 = vst [vmem:[%s738 + $0x628] sm:$0xff] %v1133
                  %v1135 = vld [vmem:[%s737 + $0xc30] sm:$0xff]
                  %1136 = vst [vmem:[%s738 + $0x630] sm:$0xff] %v1135
                  %v1137 = vld [vmem:[%s737 + $0xc38] sm:$0xff]
                  %1138 = vst [vmem:[%s738 + $0x638] sm:$0xff] %v1137
                  %v1139 = vld [vmem:[%s737 + $0xc40] sm:$0xff]
                  %1140 = vst [vmem:[%s738 + $0x640] sm:$0xff] %v1139
                  %v1141 = vld [vmem:[%s737 + $0xc48] sm:$0xff]
                  %1142 = vst [vmem:[%s738 + $0x648] sm:$0xff] %v1141
                  %v1143 = vld [vmem:[%s737 + $0xc50] sm:$0xff]
                  %1144 = vst [vmem:[%s738 + $0x650] sm:$0xff] %v1143
                  %v1145 = vld [vmem:[%s737 + $0xc58] sm:$0xff]
                  %1146 = vst [vmem:[%s738 + $0x658] sm:$0xff] %v1145
                  %v1147 = vld [vmem:[%s737 + $0xc60] sm:$0xff]
                  %1148 = vst [vmem:[%s738 + $0x660] sm:$0xff] %v1147
                  %v1149 = vld [vmem:[%s737 + $0xc68] sm:$0xff]
                  %1150 = vst [vmem:[%s738 + $0x668] sm:$0xff] %v1149
                  %v1151 = vld [vmem:[%s737 + $0xc70] sm:$0xff]
                  %1152 = vst [vmem:[%s738 + $0x670] sm:$0xff] %v1151
                  %v1153 = vld [vmem:[%s737 + $0xc78] sm:$0xff]
                  %1154 = vst [vmem:[%s738 + $0x678] sm:$0xff] %v1153
                  %v1155 = vld [vmem:[%s737 + $0xc80] sm:$0xff]
                  %1156 = vst [vmem:[%s738 + $0x680] sm:$0xff] %v1155
                  %v1157 = vld [vmem:[%s737 + $0xc88] sm:$0xff]
                  %1158 = vst [vmem:[%s738 + $0x688] sm:$0xff] %v1157
                  %v1159 = vld [vmem:[%s737 + $0xc90] sm:$0xff]
                  %1160 = vst [vmem:[%s738 + $0x690] sm:$0xff] %v1159
                  %v1161 = vld [vmem:[%s737 + $0xc98] sm:$0xff]
                  %1162 = vst [vmem:[%s738 + $0x698] sm:$0xff] %v1161
                  %v1163 = vld [vmem:[%s737 + $0xca0] sm:$0xff]
                  %1164 = vst [vmem:[%s738 + $0x6a0] sm:$0xff] %v1163
                  %v1165 = vld [vmem:[%s737 + $0xca8] sm:$0xff]
                  %1166 = vst [vmem:[%s738 + $0x6a8] sm:$0xff] %v1165
                  %v1167 = vld [vmem:[%s737 + $0xcb0] sm:$0xff]
                  %1168 = vst [vmem:[%s738 + $0x6b0] sm:$0xff] %v1167
                  %v1169 = vld [vmem:[%s737 + $0xcb8] sm:$0xff]
                  %1170 = vst [vmem:[%s738 + $0x6b8] sm:$0xff] %v1169
                  %v1171 = vld [vmem:[%s737 + $0xcc0] sm:$0xff]
                  %1172 = vst [vmem:[%s738 + $0x6c0] sm:$0xff] %v1171
                  %v1173 = vld [vmem:[%s737 + $0xcc8] sm:$0xff]
                  %1174 = vst [vmem:[%s738 + $0x6c8] sm:$0xff] %v1173
                  %v1175 = vld [vmem:[%s737 + $0xcd0] sm:$0xff]
                  %1176 = vst [vmem:[%s738 + $0x6d0] sm:$0xff] %v1175
                  %v1177 = vld [vmem:[%s737 + $0xcd8] sm:$0xff]
                  %1178 = vst [vmem:[%s738 + $0x6d8] sm:$0xff] %v1177
                  %v1179 = vld [vmem:[%s737 + $0xce0] sm:$0xff]
                  %1180 = vst [vmem:[%s738 + $0x6e0] sm:$0xff] %v1179
                  %v1181 = vld [vmem:[%s737 + $0xce8] sm:$0xff]
                  %1182 = vst [vmem:[%s738 + $0x6e8] sm:$0xff] %v1181
                  %v1183 = vld [vmem:[%s737 + $0xcf0] sm:$0xff]
                  %1184 = vst [vmem:[%s738 + $0x6f0] sm:$0xff] %v1183
                  %v1185 = vld [vmem:[%s737 + $0xcf8] sm:$0xff]
                  %1186 = vst [vmem:[%s738 + $0x6f8] sm:$0xff] %v1185
                  %v1187 = vld [vmem:[%s737 + $0xe00] sm:$0xff]
                  %1188 = vst [vmem:[%s738 + $0x700] sm:$0xff] %v1187
                  %v1189 = vld [vmem:[%s737 + $0xe08] sm:$0xff]
                  %1190 = vst [vmem:[%s738 + $0x708] sm:$0xff] %v1189
                  %v1191 = vld [vmem:[%s737 + $0xe10] sm:$0xff]
                  %1192 = vst [vmem:[%s738 + $0x710] sm:$0xff] %v1191
                  %v1193 = vld [vmem:[%s737 + $0xe18] sm:$0xff]
                  %1194 = vst [vmem:[%s738 + $0x718] sm:$0xff] %v1193
                  %v1195 = vld [vmem:[%s737 + $0xe20] sm:$0xff]
                  %1196 = vst [vmem:[%s738 + $0x720] sm:$0xff] %v1195
                  %v1197 = vld [vmem:[%s737 + $0xe28] sm:$0xff]
                  %1198 = vst [vmem:[%s738 + $0x728] sm:$0xff] %v1197
                  %v1199 = vld [vmem:[%s737 + $0xe30] sm:$0xff]
                  %1200 = vst [vmem:[%s738 + $0x730] sm:$0xff] %v1199
                  %v1201 = vld [vmem:[%s737 + $0xe38] sm:$0xff]
                  %1202 = vst [vmem:[%s738 + $0x738] sm:$0xff] %v1201
                  %v1203 = vld [vmem:[%s737 + $0xe40] sm:$0xff]
                  %1204 = vst [vmem:[%s738 + $0x740] sm:$0xff] %v1203
                  %v1205 = vld [vmem:[%s737 + $0xe48] sm:$0xff]
                  %1206 = vst [vmem:[%s738 + $0x748] sm:$0xff] %v1205
                  %v1207 = vld [vmem:[%s737 + $0xe50] sm:$0xff]
                  %1208 = vst [vmem:[%s738 + $0x750] sm:$0xff] %v1207
                  %v1209 = vld [vmem:[%s737 + $0xe58] sm:$0xff]
                  %1210 = vst [vmem:[%s738 + $0x758] sm:$0xff] %v1209
                  %v1211 = vld [vmem:[%s737 + $0xe60] sm:$0xff]
                  %1212 = vst [vmem:[%s738 + $0x760] sm:$0xff] %v1211
                  %v1213 = vld [vmem:[%s737 + $0xe68] sm:$0xff]
                  %1214 = vst [vmem:[%s738 + $0x768] sm:$0xff] %v1213
                  %v1215 = vld [vmem:[%s737 + $0xe70] sm:$0xff]
                  %1216 = vst [vmem:[%s738 + $0x770] sm:$0xff] %v1215
                  %v1217 = vld [vmem:[%s737 + $0xe78] sm:$0xff]
                  %1218 = vst [vmem:[%s738 + $0x778] sm:$0xff] %v1217
                  %v1219 = vld [vmem:[%s737 + $0xe80] sm:$0xff]
                  %1220 = vst [vmem:[%s738 + $0x780] sm:$0xff] %v1219
                  %v1221 = vld [vmem:[%s737 + $0xe88] sm:$0xff]
                  %1222 = vst [vmem:[%s738 + $0x788] sm:$0xff] %v1221
                  %v1223 = vld [vmem:[%s737 + $0xe90] sm:$0xff]
                  %1224 = vst [vmem:[%s738 + $0x790] sm:$0xff] %v1223
                  %v1225 = vld [vmem:[%s737 + $0xe98] sm:$0xff]
                  %1226 = vst [vmem:[%s738 + $0x798] sm:$0xff] %v1225
                  %v1227 = vld [vmem:[%s737 + $0xea0] sm:$0xff]
                  %1228 = vst [vmem:[%s738 + $0x7a0] sm:$0xff] %v1227
                  %v1229 = vld [vmem:[%s737 + $0xea8] sm:$0xff]
                  %1230 = vst [vmem:[%s738 + $0x7a8] sm:$0xff] %v1229
                  %v1231 = vld [vmem:[%s737 + $0xeb0] sm:$0xff]
                  %1232 = vst [vmem:[%s738 + $0x7b0] sm:$0xff] %v1231
                  %v1233 = vld [vmem:[%s737 + $0xeb8] sm:$0xff]
                  %1234 = vst [vmem:[%s738 + $0x7b8] sm:$0xff] %v1233
                  %v1235 = vld [vmem:[%s737 + $0xec0] sm:$0xff]
                  %1236 = vst [vmem:[%s738 + $0x7c0] sm:$0xff] %v1235
                  %v1237 = vld [vmem:[%s737 + $0xec8] sm:$0xff]
                  %1238 = vst [vmem:[%s738 + $0x7c8] sm:$0xff] %v1237
                  %v1239 = vld [vmem:[%s737 + $0xed0] sm:$0xff]
                  %1240 = vst [vmem:[%s738 + $0x7d0] sm:$0xff] %v1239
                  %v1241 = vld [vmem:[%s737 + $0xed8] sm:$0xff]
                  %1242 = vst [vmem:[%s738 + $0x7d8] sm:$0xff] %v1241
                  %v1243 = vld [vmem:[%s737 + $0xee0] sm:$0xff]
                  %1244 = vst [vmem:[%s738 + $0x7e0] sm:$0xff] %v1243
                  %v1245 = vld [vmem:[%s737 + $0xee8] sm:$0xff]
                  %1246 = vst [vmem:[%s738 + $0x7e8] sm:$0xff] %v1245
                  %v1247 = vld [vmem:[%s737 + $0xef0] sm:$0xff]
                  %1248 = vst [vmem:[%s738 + $0x7f0] sm:$0xff] %v1247
                  %v1249 = vld [vmem:[%s737 + $0xef8] sm:$0xff]
                  %1250 = vst [vmem:[%s738 + $0x7f8] sm:$0xff] %v1249
                  %v1251 = vld [vmem:[%s737 + $0x1000] sm:$0xff]
                  %1252 = vst [vmem:[%s738 + $0x800] sm:$0xff] %v1251
                  %v1253 = vld [vmem:[%s737 + $0x1008] sm:$0xff]
                  %1254 = vst [vmem:[%s738 + $0x808] sm:$0xff] %v1253
                  %v1255 = vld [vmem:[%s737 + $0x1010] sm:$0xff]
                  %1256 = vst [vmem:[%s738 + $0x810] sm:$0xff] %v1255
                  %v1257 = vld [vmem:[%s737 + $0x1018] sm:$0xff]
                  %1258 = vst [vmem:[%s738 + $0x818] sm:$0xff] %v1257
                  %v1259 = vld [vmem:[%s737 + $0x1020] sm:$0xff]
                  %1260 = vst [vmem:[%s738 + $0x820] sm:$0xff] %v1259
                  %v1261 = vld [vmem:[%s737 + $0x1028] sm:$0xff]
                  %1262 = vst [vmem:[%s738 + $0x828] sm:$0xff] %v1261
                  %v1263 = vld [vmem:[%s737 + $0x1030] sm:$0xff]
                  %1264 = vst [vmem:[%s738 + $0x830] sm:$0xff] %v1263
                  %v1265 = vld [vmem:[%s737 + $0x1038] sm:$0xff]
                  %1266 = vst [vmem:[%s738 + $0x838] sm:$0xff] %v1265
                  %v1267 = vld [vmem:[%s737 + $0x1040] sm:$0xff]
                  %1268 = vst [vmem:[%s738 + $0x840] sm:$0xff] %v1267
                  %v1269 = vld [vmem:[%s737 + $0x1048] sm:$0xff]
                  %1270 = vst [vmem:[%s738 + $0x848] sm:$0xff] %v1269
                  %v1271 = vld [vmem:[%s737 + $0x1050] sm:$0xff]
                  %1272 = vst [vmem:[%s738 + $0x850] sm:$0xff] %v1271
                  %v1273 = vld [vmem:[%s737 + $0x1058] sm:$0xff]
                  %1274 = vst [vmem:[%s738 + $0x858] sm:$0xff] %v1273
                  %v1275 = vld [vmem:[%s737 + $0x1060] sm:$0xff]
                  %1276 = vst [vmem:[%s738 + $0x860] sm:$0xff] %v1275
                  %v1277 = vld [vmem:[%s737 + $0x1068] sm:$0xff]
                  %1278 = vst [vmem:[%s738 + $0x868] sm:$0xff] %v1277
                  %v1279 = vld [vmem:[%s737 + $0x1070] sm:$0xff]
                  %1280 = vst [vmem:[%s738 + $0x870] sm:$0xff] %v1279
                  %v1281 = vld [vmem:[%s737 + $0x1078] sm:$0xff]
                  %1282 = vst [vmem:[%s738 + $0x878] sm:$0xff] %v1281
                  %v1283 = vld [vmem:[%s737 + $0x1080] sm:$0xff]
                  %1284 = vst [vmem:[%s738 + $0x880] sm:$0xff] %v1283
                  %v1285 = vld [vmem:[%s737 + $0x1088] sm:$0xff]
                  %1286 = vst [vmem:[%s738 + $0x888] sm:$0xff] %v1285
                  %v1287 = vld [vmem:[%s737 + $0x1090] sm:$0xff]
                  %1288 = vst [vmem:[%s738 + $0x890] sm:$0xff] %v1287
                  %v1289 = vld [vmem:[%s737 + $0x1098] sm:$0xff]
                  %1290 = vst [vmem:[%s738 + $0x898] sm:$0xff] %v1289
                  %v1291 = vld [vmem:[%s737 + $0x10a0] sm:$0xff]
                  %1292 = vst [vmem:[%s738 + $0x8a0] sm:$0xff] %v1291
                  %v1293 = vld [vmem:[%s737 + $0x10a8] sm:$0xff]
                  %1294 = vst [vmem:[%s738 + $0x8a8] sm:$0xff] %v1293
                  %v1295 = vld [vmem:[%s737 + $0x10b0] sm:$0xff]
                  %1296 = vst [vmem:[%s738 + $0x8b0] sm:$0xff] %v1295
                  %v1297 = vld [vmem:[%s737 + $0x10b8] sm:$0xff]
                  %1298 = vst [vmem:[%s738 + $0x8b8] sm:$0xff] %v1297
                  %v1299 = vld [vmem:[%s737 + $0x10c0] sm:$0xff]
                  %1300 = vst [vmem:[%s738 + $0x8c0] sm:$0xff] %v1299
                  %v1301 = vld [vmem:[%s737 + $0x10c8] sm:$0xff]
                  %1302 = vst [vmem:[%s738 + $0x8c8] sm:$0xff] %v1301
                  %v1303 = vld [vmem:[%s737 + $0x10d0] sm:$0xff]
                  %1304 = vst [vmem:[%s738 + $0x8d0] sm:$0xff] %v1303
                  %v1305 = vld [vmem:[%s737 + $0x10d8] sm:$0xff]
                  %1306 = vst [vmem:[%s738 + $0x8d8] sm:$0xff] %v1305
                  %v1307 = vld [vmem:[%s737 + $0x10e0] sm:$0xff]
                  %1308 = vst [vmem:[%s738 + $0x8e0] sm:$0xff] %v1307
                  %v1309 = vld [vmem:[%s737 + $0x10e8] sm:$0xff]
                  %1310 = vst [vmem:[%s738 + $0x8e8] sm:$0xff] %v1309
                  %v1311 = vld [vmem:[%s737 + $0x10f0] sm:$0xff]
                  %1312 = vst [vmem:[%s738 + $0x8f0] sm:$0xff] %v1311
                  %v1313 = vld [vmem:[%s737 + $0x10f8] sm:$0xff]
                  %1314 = vst [vmem:[%s738 + $0x8f8] sm:$0xff] %v1313
                $region56: #{_lambda_.22} parent=50 // loop_footer
                  %s736 = sadd.s32 1, %s732
                $region57: #{_lambda_.22} parent=50 // loop_footer_branch
                  %731 = sbr.rel target = $region53
                $region58: #{_lambda_.22} parent=50 // loop_exit
                  _
              $region51: #{_lambda_.22} parent=35 // pred_fallthru
                _
              // Predicated region
              $region59: #{_lambda_.22} parent=35 // pred_check
                _
              $region60: #{_lambda_.22} parent=35 // pred_check_branch
                %1316 = sbr.rel target = $region62
              $region61: #{_lambda_.22} parent=35 // pred_region
                _
              $region62: #{_lambda_.22} parent=35 // pred_fallthru
                _
            $region36: #{_lambda_.22} parent=31 // pred_fallthru
              _
            // Predicated region
            $region37: #{_lambda_.22} parent=31 // pred_check
              _
            $region38: #{_lambda_.22} parent=31 // pred_check_branch
              %143 = sbr.rel target = $region40
            $region39: #{_lambda_.22} parent=31 // pred_region
              loop: start=0, step=1, limit=1
              $region41: #{_lambda_.22} parent=39 // loop_pre_header
                _
              $region42: #{_lambda_.22} parent=39 // loop_header
                %s146 = sphi 0, %s150
                %p147 = scmp.ge.s32.totalorder %s146, 1
                %s151 = sphi %s137, %s137
                %s152 = sphi %s134, %s134
              $region43: #{_lambda_.22} parent=39 // loop_header_branch
                %149 = sbr.rel (%p147) target = $region47
              $region44: #{_lambda_.22} parent=39 // loop_body
                %v153 = vld [vmem:[%s151] sm:$0xff]
                %154 = vst [vmem:[%s152] sm:$0xff] %v153
                %v155 = vld [vmem:[%s151 + $0x8] sm:$0xff]
                %156 = vst [vmem:[%s152 + $0x8] sm:$0xff] %v155
                %v157 = vld [vmem:[%s151 + $0x10] sm:$0xff]
                %158 = vst [vmem:[%s152 + $0x10] sm:$0xff] %v157
                %v159 = vld [vmem:[%s151 + $0x18] sm:$0xff]
                %160 = vst [vmem:[%s152 + $0x18] sm:$0xff] %v159
                %v161 = vld [vmem:[%s151 + $0x20] sm:$0xff]
                %162 = vst [vmem:[%s152 + $0x20] sm:$0xff] %v161
                %v163 = vld [vmem:[%s151 + $0x28] sm:$0xff]
                %164 = vst [vmem:[%s152 + $0x28] sm:$0xff] %v163
                %v165 = vld [vmem:[%s151 + $0x30] sm:$0xff]
                %166 = vst [vmem:[%s152 + $0x30] sm:$0xff] %v165
                %v167 = vld [vmem:[%s151 + $0x38] sm:$0xff]
                %168 = vst [vmem:[%s152 + $0x38] sm:$0xff] %v167
                %v169 = vld [vmem:[%s151 + $0x40] sm:$0xff]
                %170 = vst [vmem:[%s152 + $0x40] sm:$0xff] %v169
                %v171 = vld [vmem:[%s151 + $0x48] sm:$0xff]
                %172 = vst [vmem:[%s152 + $0x48] sm:$0xff] %v171
                %v173 = vld [vmem:[%s151 + $0x50] sm:$0xff]
                %174 = vst [vmem:[%s152 + $0x50] sm:$0xff] %v173
                %v175 = vld [vmem:[%s151 + $0x58] sm:$0xff]
                %176 = vst [vmem:[%s152 + $0x58] sm:$0xff] %v175
                %v177 = vld [vmem:[%s151 + $0x60] sm:$0xff]
                %178 = vst [vmem:[%s152 + $0x60] sm:$0xff] %v177
                %v179 = vld [vmem:[%s151 + $0x68] sm:$0xff]
                %180 = vst [vmem:[%s152 + $0x68] sm:$0xff] %v179
                %v181 = vld [vmem:[%s151 + $0x70] sm:$0xff]
                %182 = vst [vmem:[%s152 + $0x70] sm:$0xff] %v181
                %v183 = vld [vmem:[%s151 + $0x78] sm:$0xff]
                %184 = vst [vmem:[%s152 + $0x78] sm:$0xff] %v183
                %v185 = vld [vmem:[%s151 + $0x80] sm:$0xff]
                %186 = vst [vmem:[%s152 + $0x80] sm:$0xff] %v185
                %v187 = vld [vmem:[%s151 + $0x88] sm:$0xff]
                %188 = vst [vmem:[%s152 + $0x88] sm:$0xff] %v187
                %v189 = vld [vmem:[%s151 + $0x90] sm:$0xff]
                %190 = vst [vmem:[%s152 + $0x90] sm:$0xff] %v189
                %v191 = vld [vmem:[%s151 + $0x98] sm:$0xff]
                %192 = vst [vmem:[%s152 + $0x98] sm:$0xff] %v191
                %v193 = vld [vmem:[%s151 + $0xa0] sm:$0xff]
                %194 = vst [vmem:[%s152 + $0xa0] sm:$0xff] %v193
                %v195 = vld [vmem:[%s151 + $0xa8] sm:$0xff]
                %196 = vst [vmem:[%s152 + $0xa8] sm:$0xff] %v195
                %v197 = vld [vmem:[%s151 + $0xb0] sm:$0xff]
                %198 = vst [vmem:[%s152 + $0xb0] sm:$0xff] %v197
                %v199 = vld [vmem:[%s151 + $0xb8] sm:$0xff]
                %200 = vst [vmem:[%s152 + $0xb8] sm:$0xff] %v199
                %v201 = vld [vmem:[%s151 + $0xc0] sm:$0xff]
                %202 = vst [vmem:[%s152 + $0xc0] sm:$0xff] %v201
                %v203 = vld [vmem:[%s151 + $0xc8] sm:$0xff]
                %204 = vst [vmem:[%s152 + $0xc8] sm:$0xff] %v203
                %v205 = vld [vmem:[%s151 + $0xd0] sm:$0xff]
                %206 = vst [vmem:[%s152 + $0xd0] sm:$0xff] %v205
                %v207 = vld [vmem:[%s151 + $0xd8] sm:$0xff]
                %208 = vst [vmem:[%s152 + $0xd8] sm:$0xff] %v207
                %v209 = vld [vmem:[%s151 + $0xe0] sm:$0xff]
                %210 = vst [vmem:[%s152 + $0xe0] sm:$0xff] %v209
                %v211 = vld [vmem:[%s151 + $0xe8] sm:$0xff]
                %212 = vst [vmem:[%s152 + $0xe8] sm:$0xff] %v211
                %v213 = vld [vmem:[%s151 + $0xf0] sm:$0xff]
                %214 = vst [vmem:[%s152 + $0xf0] sm:$0xff] %v213
                %v215 = vld [vmem:[%s151 + $0xf8] sm:$0xff]
                %216 = vst [vmem:[%s152 + $0xf8] sm:$0xff] %v215
                %v217 = vld [vmem:[%s151 + $0x200] sm:$0xff]
                %218 = vst [vmem:[%s152 + $0x100] sm:$0xff] %v217
                %v219 = vld [vmem:[%s151 + $0x208] sm:$0xff]
                %220 = vst [vmem:[%s152 + $0x108] sm:$0xff] %v219
                %v221 = vld [vmem:[%s151 + $0x210] sm:$0xff]
                %222 = vst [vmem:[%s152 + $0x110] sm:$0xff] %v221
                %v223 = vld [vmem:[%s151 + $0x218] sm:$0xff]
                %224 = vst [vmem:[%s152 + $0x118] sm:$0xff] %v223
                %v225 = vld [vmem:[%s151 + $0x220] sm:$0xff]
                %226 = vst [vmem:[%s152 + $0x120] sm:$0xff] %v225
                %v227 = vld [vmem:[%s151 + $0x228] sm:$0xff]
                %228 = vst [vmem:[%s152 + $0x128] sm:$0xff] %v227
                %v229 = vld [vmem:[%s151 + $0x230] sm:$0xff]
                %230 = vst [vmem:[%s152 + $0x130] sm:$0xff] %v229
                %v231 = vld [vmem:[%s151 + $0x238] sm:$0xff]
                %232 = vst [vmem:[%s152 + $0x138] sm:$0xff] %v231
                %v233 = vld [vmem:[%s151 + $0x240] sm:$0xff]
                %234 = vst [vmem:[%s152 + $0x140] sm:$0xff] %v233
                %v235 = vld [vmem:[%s151 + $0x248] sm:$0xff]
                %236 = vst [vmem:[%s152 + $0x148] sm:$0xff] %v235
                %v237 = vld [vmem:[%s151 + $0x250] sm:$0xff]
                %238 = vst [vmem:[%s152 + $0x150] sm:$0xff] %v237
                %v239 = vld [vmem:[%s151 + $0x258] sm:$0xff]
                %240 = vst [vmem:[%s152 + $0x158] sm:$0xff] %v239
                %v241 = vld [vmem:[%s151 + $0x260] sm:$0xff]
                %242 = vst [vmem:[%s152 + $0x160] sm:$0xff] %v241
                %v243 = vld [vmem:[%s151 + $0x268] sm:$0xff]
                %244 = vst [vmem:[%s152 + $0x168] sm:$0xff] %v243
                %v245 = vld [vmem:[%s151 + $0x270] sm:$0xff]
                %246 = vst [vmem:[%s152 + $0x170] sm:$0xff] %v245
                %v247 = vld [vmem:[%s151 + $0x278] sm:$0xff]
                %248 = vst [vmem:[%s152 + $0x178] sm:$0xff] %v247
                %v249 = vld [vmem:[%s151 + $0x280] sm:$0xff]
                %250 = vst [vmem:[%s152 + $0x180] sm:$0xff] %v249
                %v251 = vld [vmem:[%s151 + $0x288] sm:$0xff]
                %252 = vst [vmem:[%s152 + $0x188] sm:$0xff] %v251
                %v253 = vld [vmem:[%s151 + $0x290] sm:$0xff]
                %254 = vst [vmem:[%s152 + $0x190] sm:$0xff] %v253
                %v255 = vld [vmem:[%s151 + $0x298] sm:$0xff]
                %256 = vst [vmem:[%s152 + $0x198] sm:$0xff] %v255
                %v257 = vld [vmem:[%s151 + $0x2a0] sm:$0xff]
                %258 = vst [vmem:[%s152 + $0x1a0] sm:$0xff] %v257
                %v259 = vld [vmem:[%s151 + $0x2a8] sm:$0xff]
                %260 = vst [vmem:[%s152 + $0x1a8] sm:$0xff] %v259
                %v261 = vld [vmem:[%s151 + $0x2b0] sm:$0xff]
                %262 = vst [vmem:[%s152 + $0x1b0] sm:$0xff] %v261
                %v263 = vld [vmem:[%s151 + $0x2b8] sm:$0xff]
                %264 = vst [vmem:[%s152 + $0x1b8] sm:$0xff] %v263
                %v265 = vld [vmem:[%s151 + $0x2c0] sm:$0xff]
                %266 = vst [vmem:[%s152 + $0x1c0] sm:$0xff] %v265
                %v267 = vld [vmem:[%s151 + $0x2c8] sm:$0xff]
                %268 = vst [vmem:[%s152 + $0x1c8] sm:$0xff] %v267
                %v269 = vld [vmem:[%s151 + $0x2d0] sm:$0xff]
                %270 = vst [vmem:[%s152 + $0x1d0] sm:$0xff] %v269
                %v271 = vld [vmem:[%s151 + $0x2d8] sm:$0xff]
                %272 = vst [vmem:[%s152 + $0x1d8] sm:$0xff] %v271
                %v273 = vld [vmem:[%s151 + $0x2e0] sm:$0xff]
                %274 = vst [vmem:[%s152 + $0x1e0] sm:$0xff] %v273
                %v275 = vld [vmem:[%s151 + $0x2e8] sm:$0xff]
                %276 = vst [vmem:[%s152 + $0x1e8] sm:$0xff] %v275
                %v277 = vld [vmem:[%s151 + $0x2f0] sm:$0xff]
                %278 = vst [vmem:[%s152 + $0x1f0] sm:$0xff] %v277
                %v279 = vld [vmem:[%s151 + $0x2f8] sm:$0xff]
                %280 = vst [vmem:[%s152 + $0x1f8] sm:$0xff] %v279
                %v281 = vld [vmem:[%s151 + $0x400] sm:$0xff]
                %282 = vst [vmem:[%s152 + $0x200] sm:$0xff] %v281
                %v283 = vld [vmem:[%s151 + $0x408] sm:$0xff]
                %284 = vst [vmem:[%s152 + $0x208] sm:$0xff] %v283
                %v285 = vld [vmem:[%s151 + $0x410] sm:$0xff]
                %286 = vst [vmem:[%s152 + $0x210] sm:$0xff] %v285
                %v287 = vld [vmem:[%s151 + $0x418] sm:$0xff]
                %288 = vst [vmem:[%s152 + $0x218] sm:$0xff] %v287
                %v289 = vld [vmem:[%s151 + $0x420] sm:$0xff]
                %290 = vst [vmem:[%s152 + $0x220] sm:$0xff] %v289
                %v291 = vld [vmem:[%s151 + $0x428] sm:$0xff]
                %292 = vst [vmem:[%s152 + $0x228] sm:$0xff] %v291
                %v293 = vld [vmem:[%s151 + $0x430] sm:$0xff]
                %294 = vst [vmem:[%s152 + $0x230] sm:$0xff] %v293
                %v295 = vld [vmem:[%s151 + $0x438] sm:$0xff]
                %296 = vst [vmem:[%s152 + $0x238] sm:$0xff] %v295
                %v297 = vld [vmem:[%s151 + $0x440] sm:$0xff]
                %298 = vst [vmem:[%s152 + $0x240] sm:$0xff] %v297
                %v299 = vld [vmem:[%s151 + $0x448] sm:$0xff]
                %300 = vst [vmem:[%s152 + $0x248] sm:$0xff] %v299
                %v301 = vld [vmem:[%s151 + $0x450] sm:$0xff]
                %302 = vst [vmem:[%s152 + $0x250] sm:$0xff] %v301
                %v303 = vld [vmem:[%s151 + $0x458] sm:$0xff]
                %304 = vst [vmem:[%s152 + $0x258] sm:$0xff] %v303
                %v305 = vld [vmem:[%s151 + $0x460] sm:$0xff]
                %306 = vst [vmem:[%s152 + $0x260] sm:$0xff] %v305
                %v307 = vld [vmem:[%s151 + $0x468] sm:$0xff]
                %308 = vst [vmem:[%s152 + $0x268] sm:$0xff] %v307
                %v309 = vld [vmem:[%s151 + $0x470] sm:$0xff]
                %310 = vst [vmem:[%s152 + $0x270] sm:$0xff] %v309
                %v311 = vld [vmem:[%s151 + $0x478] sm:$0xff]
                %312 = vst [vmem:[%s152 + $0x278] sm:$0xff] %v311
                %v313 = vld [vmem:[%s151 + $0x480] sm:$0xff]
                %314 = vst [vmem:[%s152 + $0x280] sm:$0xff] %v313
                %v315 = vld [vmem:[%s151 + $0x488] sm:$0xff]
                %316 = vst [vmem:[%s152 + $0x288] sm:$0xff] %v315
                %v317 = vld [vmem:[%s151 + $0x490] sm:$0xff]
                %318 = vst [vmem:[%s152 + $0x290] sm:$0xff] %v317
                %v319 = vld [vmem:[%s151 + $0x498] sm:$0xff]
                %320 = vst [vmem:[%s152 + $0x298] sm:$0xff] %v319
                %v321 = vld [vmem:[%s151 + $0x4a0] sm:$0xff]
                %322 = vst [vmem:[%s152 + $0x2a0] sm:$0xff] %v321
                %v323 = vld [vmem:[%s151 + $0x4a8] sm:$0xff]
                %324 = vst [vmem:[%s152 + $0x2a8] sm:$0xff] %v323
                %v325 = vld [vmem:[%s151 + $0x4b0] sm:$0xff]
                %326 = vst [vmem:[%s152 + $0x2b0] sm:$0xff] %v325
                %v327 = vld [vmem:[%s151 + $0x4b8] sm:$0xff]
                %328 = vst [vmem:[%s152 + $0x2b8] sm:$0xff] %v327
                %v329 = vld [vmem:[%s151 + $0x4c0] sm:$0xff]
                %330 = vst [vmem:[%s152 + $0x2c0] sm:$0xff] %v329
                %v331 = vld [vmem:[%s151 + $0x4c8] sm:$0xff]
                %332 = vst [vmem:[%s152 + $0x2c8] sm:$0xff] %v331
                %v333 = vld [vmem:[%s151 + $0x4d0] sm:$0xff]
                %334 = vst [vmem:[%s152 + $0x2d0] sm:$0xff] %v333
                %v335 = vld [vmem:[%s151 + $0x4d8] sm:$0xff]
                %336 = vst [vmem:[%s152 + $0x2d8] sm:$0xff] %v335
                %v337 = vld [vmem:[%s151 + $0x4e0] sm:$0xff]
                %338 = vst [vmem:[%s152 + $0x2e0] sm:$0xff] %v337
                %v339 = vld [vmem:[%s151 + $0x4e8] sm:$0xff]
                %340 = vst [vmem:[%s152 + $0x2e8] sm:$0xff] %v339
                %v341 = vld [vmem:[%s151 + $0x4f0] sm:$0xff]
                %342 = vst [vmem:[%s152 + $0x2f0] sm:$0xff] %v341
                %v343 = vld [vmem:[%s151 + $0x4f8] sm:$0xff]
                %344 = vst [vmem:[%s152 + $0x2f8] sm:$0xff] %v343
                %v345 = vld [vmem:[%s151 + $0x600] sm:$0xff]
                %346 = vst [vmem:[%s152 + $0x300] sm:$0xff] %v345
                %v347 = vld [vmem:[%s151 + $0x608] sm:$0xff]
                %348 = vst [vmem:[%s152 + $0x308] sm:$0xff] %v347
                %v349 = vld [vmem:[%s151 + $0x610] sm:$0xff]
                %350 = vst [vmem:[%s152 + $0x310] sm:$0xff] %v349
                %v351 = vld [vmem:[%s151 + $0x618] sm:$0xff]
                %352 = vst [vmem:[%s152 + $0x318] sm:$0xff] %v351
                %v353 = vld [vmem:[%s151 + $0x620] sm:$0xff]
                %354 = vst [vmem:[%s152 + $0x320] sm:$0xff] %v353
                %v355 = vld [vmem:[%s151 + $0x628] sm:$0xff]
                %356 = vst [vmem:[%s152 + $0x328] sm:$0xff] %v355
                %v357 = vld [vmem:[%s151 + $0x630] sm:$0xff]
                %358 = vst [vmem:[%s152 + $0x330] sm:$0xff] %v357
                %v359 = vld [vmem:[%s151 + $0x638] sm:$0xff]
                %360 = vst [vmem:[%s152 + $0x338] sm:$0xff] %v359
                %v361 = vld [vmem:[%s151 + $0x640] sm:$0xff]
                %362 = vst [vmem:[%s152 + $0x340] sm:$0xff] %v361
                %v363 = vld [vmem:[%s151 + $0x648] sm:$0xff]
                %364 = vst [vmem:[%s152 + $0x348] sm:$0xff] %v363
                %v365 = vld [vmem:[%s151 + $0x650] sm:$0xff]
                %366 = vst [vmem:[%s152 + $0x350] sm:$0xff] %v365
                %v367 = vld [vmem:[%s151 + $0x658] sm:$0xff]
                %368 = vst [vmem:[%s152 + $0x358] sm:$0xff] %v367
                %v369 = vld [vmem:[%s151 + $0x660] sm:$0xff]
                %370 = vst [vmem:[%s152 + $0x360] sm:$0xff] %v369
                %v371 = vld [vmem:[%s151 + $0x668] sm:$0xff]
                %372 = vst [vmem:[%s152 + $0x368] sm:$0xff] %v371
                %v373 = vld [vmem:[%s151 + $0x670] sm:$0xff]
                %374 = vst [vmem:[%s152 + $0x370] sm:$0xff] %v373
                %v375 = vld [vmem:[%s151 + $0x678] sm:$0xff]
                %376 = vst [vmem:[%s152 + $0x378] sm:$0xff] %v375
                %v377 = vld [vmem:[%s151 + $0x680] sm:$0xff]
                %378 = vst [vmem:[%s152 + $0x380] sm:$0xff] %v377
                %v379 = vld [vmem:[%s151 + $0x688] sm:$0xff]
                %380 = vst [vmem:[%s152 + $0x388] sm:$0xff] %v379
                %v381 = vld [vmem:[%s151 + $0x690] sm:$0xff]
                %382 = vst [vmem:[%s152 + $0x390] sm:$0xff] %v381
                %v383 = vld [vmem:[%s151 + $0x698] sm:$0xff]
                %384 = vst [vmem:[%s152 + $0x398] sm:$0xff] %v383
                %v385 = vld [vmem:[%s151 + $0x6a0] sm:$0xff]
                %386 = vst [vmem:[%s152 + $0x3a0] sm:$0xff] %v385
                %v387 = vld [vmem:[%s151 + $0x6a8] sm:$0xff]
                %388 = vst [vmem:[%s152 + $0x3a8] sm:$0xff] %v387
                %v389 = vld [vmem:[%s151 + $0x6b0] sm:$0xff]
                %390 = vst [vmem:[%s152 + $0x3b0] sm:$0xff] %v389
                %v391 = vld [vmem:[%s151 + $0x6b8] sm:$0xff]
                %392 = vst [vmem:[%s152 + $0x3b8] sm:$0xff] %v391
                %v393 = vld [vmem:[%s151 + $0x6c0] sm:$0xff]
                %394 = vst [vmem:[%s152 + $0x3c0] sm:$0xff] %v393
                %v395 = vld [vmem:[%s151 + $0x6c8] sm:$0xff]
                %396 = vst [vmem:[%s152 + $0x3c8] sm:$0xff] %v395
                %v397 = vld [vmem:[%s151 + $0x6d0] sm:$0xff]
                %398 = vst [vmem:[%s152 + $0x3d0] sm:$0xff] %v397
                %v399 = vld [vmem:[%s151 + $0x6d8] sm:$0xff]
                %400 = vst [vmem:[%s152 + $0x3d8] sm:$0xff] %v399
                %v401 = vld [vmem:[%s151 + $0x6e0] sm:$0xff]
                %402 = vst [vmem:[%s152 + $0x3e0] sm:$0xff] %v401
                %v403 = vld [vmem:[%s151 + $0x6e8] sm:$0xff]
                %404 = vst [vmem:[%s152 + $0x3e8] sm:$0xff] %v403
                %v405 = vld [vmem:[%s151 + $0x6f0] sm:$0xff]
                %406 = vst [vmem:[%s152 + $0x3f0] sm:$0xff] %v405
                %v407 = vld [vmem:[%s151 + $0x6f8] sm:$0xff]
                %408 = vst [vmem:[%s152 + $0x3f8] sm:$0xff] %v407
                %v409 = vld [vmem:[%s151 + $0x800] sm:$0xff]
                %410 = vst [vmem:[%s152 + $0x400] sm:$0xff] %v409
                %v411 = vld [vmem:[%s151 + $0x808] sm:$0xff]
                %412 = vst [vmem:[%s152 + $0x408] sm:$0xff] %v411
                %v413 = vld [vmem:[%s151 + $0x810] sm:$0xff]
                %414 = vst [vmem:[%s152 + $0x410] sm:$0xff] %v413
                %v415 = vld [vmem:[%s151 + $0x818] sm:$0xff]
                %416 = vst [vmem:[%s152 + $0x418] sm:$0xff] %v415
                %v417 = vld [vmem:[%s151 + $0x820] sm:$0xff]
                %418 = vst [vmem:[%s152 + $0x420] sm:$0xff] %v417
                %v419 = vld [vmem:[%s151 + $0x828] sm:$0xff]
                %420 = vst [vmem:[%s152 + $0x428] sm:$0xff] %v419
                %v421 = vld [vmem:[%s151 + $0x830] sm:$0xff]
                %422 = vst [vmem:[%s152 + $0x430] sm:$0xff] %v421
                %v423 = vld [vmem:[%s151 + $0x838] sm:$0xff]
                %424 = vst [vmem:[%s152 + $0x438] sm:$0xff] %v423
                %v425 = vld [vmem:[%s151 + $0x840] sm:$0xff]
                %426 = vst [vmem:[%s152 + $0x440] sm:$0xff] %v425
                %v427 = vld [vmem:[%s151 + $0x848] sm:$0xff]
                %428 = vst [vmem:[%s152 + $0x448] sm:$0xff] %v427
                %v429 = vld [vmem:[%s151 + $0x850] sm:$0xff]
                %430 = vst [vmem:[%s152 + $0x450] sm:$0xff] %v429
                %v431 = vld [vmem:[%s151 + $0x858] sm:$0xff]
                %432 = vst [vmem:[%s152 + $0x458] sm:$0xff] %v431
                %v433 = vld [vmem:[%s151 + $0x860] sm:$0xff]
                %434 = vst [vmem:[%s152 + $0x460] sm:$0xff] %v433
                %v435 = vld [vmem:[%s151 + $0x868] sm:$0xff]
                %436 = vst [vmem:[%s152 + $0x468] sm:$0xff] %v435
                %v437 = vld [vmem:[%s151 + $0x870] sm:$0xff]
                %438 = vst [vmem:[%s152 + $0x470] sm:$0xff] %v437
                %v439 = vld [vmem:[%s151 + $0x878] sm:$0xff]
                %440 = vst [vmem:[%s152 + $0x478] sm:$0xff] %v439
                %v441 = vld [vmem:[%s151 + $0x880] sm:$0xff]
                %442 = vst [vmem:[%s152 + $0x480] sm:$0xff] %v441
                %v443 = vld [vmem:[%s151 + $0x888] sm:$0xff]
                %444 = vst [vmem:[%s152 + $0x488] sm:$0xff] %v443
                %v445 = vld [vmem:[%s151 + $0x890] sm:$0xff]
                %446 = vst [vmem:[%s152 + $0x490] sm:$0xff] %v445
                %v447 = vld [vmem:[%s151 + $0x898] sm:$0xff]
                %448 = vst [vmem:[%s152 + $0x498] sm:$0xff] %v447
                %v449 = vld [vmem:[%s151 + $0x8a0] sm:$0xff]
                %450 = vst [vmem:[%s152 + $0x4a0] sm:$0xff] %v449
                %v451 = vld [vmem:[%s151 + $0x8a8] sm:$0xff]
                %452 = vst [vmem:[%s152 + $0x4a8] sm:$0xff] %v451
                %v453 = vld [vmem:[%s151 + $0x8b0] sm:$0xff]
                %454 = vst [vmem:[%s152 + $0x4b0] sm:$0xff] %v453
                %v455 = vld [vmem:[%s151 + $0x8b8] sm:$0xff]
                %456 = vst [vmem:[%s152 + $0x4b8] sm:$0xff] %v455
                %v457 = vld [vmem:[%s151 + $0x8c0] sm:$0xff]
                %458 = vst [vmem:[%s152 + $0x4c0] sm:$0xff] %v457
                %v459 = vld [vmem:[%s151 + $0x8c8] sm:$0xff]
                %460 = vst [vmem:[%s152 + $0x4c8] sm:$0xff] %v459
                %v461 = vld [vmem:[%s151 + $0x8d0] sm:$0xff]
                %462 = vst [vmem:[%s152 + $0x4d0] sm:$0xff] %v461
                %v463 = vld [vmem:[%s151 + $0x8d8] sm:$0xff]
                %464 = vst [vmem:[%s152 + $0x4d8] sm:$0xff] %v463
                %v465 = vld [vmem:[%s151 + $0x8e0] sm:$0xff]
                %466 = vst [vmem:[%s152 + $0x4e0] sm:$0xff] %v465
                %v467 = vld [vmem:[%s151 + $0x8e8] sm:$0xff]
                %468 = vst [vmem:[%s152 + $0x4e8] sm:$0xff] %v467
                %v469 = vld [vmem:[%s151 + $0x8f0] sm:$0xff]
                %470 = vst [vmem:[%s152 + $0x4f0] sm:$0xff] %v469
                %v471 = vld [vmem:[%s151 + $0x8f8] sm:$0xff]
                %472 = vst [vmem:[%s152 + $0x4f8] sm:$0xff] %v471
                %v473 = vld [vmem:[%s151 + $0xa00] sm:$0xff]
                %474 = vst [vmem:[%s152 + $0x500] sm:$0xff] %v473
                %v475 = vld [vmem:[%s151 + $0xa08] sm:$0xff]
                %476 = vst [vmem:[%s152 + $0x508] sm:$0xff] %v475
                %v477 = vld [vmem:[%s151 + $0xa10] sm:$0xff]
                %478 = vst [vmem:[%s152 + $0x510] sm:$0xff] %v477
                %v479 = vld [vmem:[%s151 + $0xa18] sm:$0xff]
                %480 = vst [vmem:[%s152 + $0x518] sm:$0xff] %v479
                %v481 = vld [vmem:[%s151 + $0xa20] sm:$0xff]
                %482 = vst [vmem:[%s152 + $0x520] sm:$0xff] %v481
                %v483 = vld [vmem:[%s151 + $0xa28] sm:$0xff]
                %484 = vst [vmem:[%s152 + $0x528] sm:$0xff] %v483
                %v485 = vld [vmem:[%s151 + $0xa30] sm:$0xff]
                %486 = vst [vmem:[%s152 + $0x530] sm:$0xff] %v485
                %v487 = vld [vmem:[%s151 + $0xa38] sm:$0xff]
                %488 = vst [vmem:[%s152 + $0x538] sm:$0xff] %v487
                %v489 = vld [vmem:[%s151 + $0xa40] sm:$0xff]
                %490 = vst [vmem:[%s152 + $0x540] sm:$0xff] %v489
                %v491 = vld [vmem:[%s151 + $0xa48] sm:$0xff]
                %492 = vst [vmem:[%s152 + $0x548] sm:$0xff] %v491
                %v493 = vld [vmem:[%s151 + $0xa50] sm:$0xff]
                %494 = vst [vmem:[%s152 + $0x550] sm:$0xff] %v493
                %v495 = vld [vmem:[%s151 + $0xa58] sm:$0xff]
                %496 = vst [vmem:[%s152 + $0x558] sm:$0xff] %v495
                %v497 = vld [vmem:[%s151 + $0xa60] sm:$0xff]
                %498 = vst [vmem:[%s152 + $0x560] sm:$0xff] %v497
                %v499 = vld [vmem:[%s151 + $0xa68] sm:$0xff]
                %500 = vst [vmem:[%s152 + $0x568] sm:$0xff] %v499
                %v501 = vld [vmem:[%s151 + $0xa70] sm:$0xff]
                %502 = vst [vmem:[%s152 + $0x570] sm:$0xff] %v501
                %v503 = vld [vmem:[%s151 + $0xa78] sm:$0xff]
                %504 = vst [vmem:[%s152 + $0x578] sm:$0xff] %v503
                %v505 = vld [vmem:[%s151 + $0xa80] sm:$0xff]
                %506 = vst [vmem:[%s152 + $0x580] sm:$0xff] %v505
                %v507 = vld [vmem:[%s151 + $0xa88] sm:$0xff]
                %508 = vst [vmem:[%s152 + $0x588] sm:$0xff] %v507
                %v509 = vld [vmem:[%s151 + $0xa90] sm:$0xff]
                %510 = vst [vmem:[%s152 + $0x590] sm:$0xff] %v509
                %v511 = vld [vmem:[%s151 + $0xa98] sm:$0xff]
                %512 = vst [vmem:[%s152 + $0x598] sm:$0xff] %v511
                %v513 = vld [vmem:[%s151 + $0xaa0] sm:$0xff]
                %514 = vst [vmem:[%s152 + $0x5a0] sm:$0xff] %v513
                %v515 = vld [vmem:[%s151 + $0xaa8] sm:$0xff]
                %516 = vst [vmem:[%s152 + $0x5a8] sm:$0xff] %v515
                %v517 = vld [vmem:[%s151 + $0xab0] sm:$0xff]
                %518 = vst [vmem:[%s152 + $0x5b0] sm:$0xff] %v517
                %v519 = vld [vmem:[%s151 + $0xab8] sm:$0xff]
                %520 = vst [vmem:[%s152 + $0x5b8] sm:$0xff] %v519
                %v521 = vld [vmem:[%s151 + $0xac0] sm:$0xff]
                %522 = vst [vmem:[%s152 + $0x5c0] sm:$0xff] %v521
                %v523 = vld [vmem:[%s151 + $0xac8] sm:$0xff]
                %524 = vst [vmem:[%s152 + $0x5c8] sm:$0xff] %v523
                %v525 = vld [vmem:[%s151 + $0xad0] sm:$0xff]
                %526 = vst [vmem:[%s152 + $0x5d0] sm:$0xff] %v525
                %v527 = vld [vmem:[%s151 + $0xad8] sm:$0xff]
                %528 = vst [vmem:[%s152 + $0x5d8] sm:$0xff] %v527
                %v529 = vld [vmem:[%s151 + $0xae0] sm:$0xff]
                %530 = vst [vmem:[%s152 + $0x5e0] sm:$0xff] %v529
                %v531 = vld [vmem:[%s151 + $0xae8] sm:$0xff]
                %532 = vst [vmem:[%s152 + $0x5e8] sm:$0xff] %v531
                %v533 = vld [vmem:[%s151 + $0xaf0] sm:$0xff]
                %534 = vst [vmem:[%s152 + $0x5f0] sm:$0xff] %v533
                %v535 = vld [vmem:[%s151 + $0xaf8] sm:$0xff]
                %536 = vst [vmem:[%s152 + $0x5f8] sm:$0xff] %v535
                %v537 = vld [vmem:[%s151 + $0xc00] sm:$0xff]
                %538 = vst [vmem:[%s152 + $0x600] sm:$0xff] %v537
                %v539 = vld [vmem:[%s151 + $0xc08] sm:$0xff]
                %540 = vst [vmem:[%s152 + $0x608] sm:$0xff] %v539
                %v541 = vld [vmem:[%s151 + $0xc10] sm:$0xff]
                %542 = vst [vmem:[%s152 + $0x610] sm:$0xff] %v541
                %v543 = vld [vmem:[%s151 + $0xc18] sm:$0xff]
                %544 = vst [vmem:[%s152 + $0x618] sm:$0xff] %v543
                %v545 = vld [vmem:[%s151 + $0xc20] sm:$0xff]
                %546 = vst [vmem:[%s152 + $0x620] sm:$0xff] %v545
                %v547 = vld [vmem:[%s151 + $0xc28] sm:$0xff]
                %548 = vst [vmem:[%s152 + $0x628] sm:$0xff] %v547
                %v549 = vld [vmem:[%s151 + $0xc30] sm:$0xff]
                %550 = vst [vmem:[%s152 + $0x630] sm:$0xff] %v549
                %v551 = vld [vmem:[%s151 + $0xc38] sm:$0xff]
                %552 = vst [vmem:[%s152 + $0x638] sm:$0xff] %v551
                %v553 = vld [vmem:[%s151 + $0xc40] sm:$0xff]
                %554 = vst [vmem:[%s152 + $0x640] sm:$0xff] %v553
                %v555 = vld [vmem:[%s151 + $0xc48] sm:$0xff]
                %556 = vst [vmem:[%s152 + $0x648] sm:$0xff] %v555
                %v557 = vld [vmem:[%s151 + $0xc50] sm:$0xff]
                %558 = vst [vmem:[%s152 + $0x650] sm:$0xff] %v557
                %v559 = vld [vmem:[%s151 + $0xc58] sm:$0xff]
                %560 = vst [vmem:[%s152 + $0x658] sm:$0xff] %v559
                %v561 = vld [vmem:[%s151 + $0xc60] sm:$0xff]
                %562 = vst [vmem:[%s152 + $0x660] sm:$0xff] %v561
                %v563 = vld [vmem:[%s151 + $0xc68] sm:$0xff]
                %564 = vst [vmem:[%s152 + $0x668] sm:$0xff] %v563
                %v565 = vld [vmem:[%s151 + $0xc70] sm:$0xff]
                %566 = vst [vmem:[%s152 + $0x670] sm:$0xff] %v565
                %v567 = vld [vmem:[%s151 + $0xc78] sm:$0xff]
                %568 = vst [vmem:[%s152 + $0x678] sm:$0xff] %v567
                %v569 = vld [vmem:[%s151 + $0xc80] sm:$0xff]
                %570 = vst [vmem:[%s152 + $0x680] sm:$0xff] %v569
                %v571 = vld [vmem:[%s151 + $0xc88] sm:$0xff]
                %572 = vst [vmem:[%s152 + $0x688] sm:$0xff] %v571
                %v573 = vld [vmem:[%s151 + $0xc90] sm:$0xff]
                %574 = vst [vmem:[%s152 + $0x690] sm:$0xff] %v573
                %v575 = vld [vmem:[%s151 + $0xc98] sm:$0xff]
                %576 = vst [vmem:[%s152 + $0x698] sm:$0xff] %v575
                %v577 = vld [vmem:[%s151 + $0xca0] sm:$0xff]
                %578 = vst [vmem:[%s152 + $0x6a0] sm:$0xff] %v577
                %v579 = vld [vmem:[%s151 + $0xca8] sm:$0xff]
                %580 = vst [vmem:[%s152 + $0x6a8] sm:$0xff] %v579
                %v581 = vld [vmem:[%s151 + $0xcb0] sm:$0xff]
                %582 = vst [vmem:[%s152 + $0x6b0] sm:$0xff] %v581
                %v583 = vld [vmem:[%s151 + $0xcb8] sm:$0xff]
                %584 = vst [vmem:[%s152 + $0x6b8] sm:$0xff] %v583
                %v585 = vld [vmem:[%s151 + $0xcc0] sm:$0xff]
                %586 = vst [vmem:[%s152 + $0x6c0] sm:$0xff] %v585
                %v587 = vld [vmem:[%s151 + $0xcc8] sm:$0xff]
                %588 = vst [vmem:[%s152 + $0x6c8] sm:$0xff] %v587
                %v589 = vld [vmem:[%s151 + $0xcd0] sm:$0xff]
                %590 = vst [vmem:[%s152 + $0x6d0] sm:$0xff] %v589
                %v591 = vld [vmem:[%s151 + $0xcd8] sm:$0xff]
                %592 = vst [vmem:[%s152 + $0x6d8] sm:$0xff] %v591
                %v593 = vld [vmem:[%s151 + $0xce0] sm:$0xff]
                %594 = vst [vmem:[%s152 + $0x6e0] sm:$0xff] %v593
                %v595 = vld [vmem:[%s151 + $0xce8] sm:$0xff]
                %596 = vst [vmem:[%s152 + $0x6e8] sm:$0xff] %v595
                %v597 = vld [vmem:[%s151 + $0xcf0] sm:$0xff]
                %598 = vst [vmem:[%s152 + $0x6f0] sm:$0xff] %v597
                %v599 = vld [vmem:[%s151 + $0xcf8] sm:$0xff]
                %600 = vst [vmem:[%s152 + $0x6f8] sm:$0xff] %v599
                %v601 = vld [vmem:[%s151 + $0xe00] sm:$0xff]
                %602 = vst [vmem:[%s152 + $0x700] sm:$0xff] %v601
                %v603 = vld [vmem:[%s151 + $0xe08] sm:$0xff]
                %604 = vst [vmem:[%s152 + $0x708] sm:$0xff] %v603
                %v605 = vld [vmem:[%s151 + $0xe10] sm:$0xff]
                %606 = vst [vmem:[%s152 + $0x710] sm:$0xff] %v605
                %v607 = vld [vmem:[%s151 + $0xe18] sm:$0xff]
                %608 = vst [vmem:[%s152 + $0x718] sm:$0xff] %v607
                %v609 = vld [vmem:[%s151 + $0xe20] sm:$0xff]
                %610 = vst [vmem:[%s152 + $0x720] sm:$0xff] %v609
                %v611 = vld [vmem:[%s151 + $0xe28] sm:$0xff]
                %612 = vst [vmem:[%s152 + $0x728] sm:$0xff] %v611
                %v613 = vld [vmem:[%s151 + $0xe30] sm:$0xff]
                %614 = vst [vmem:[%s152 + $0x730] sm:$0xff] %v613
                %v615 = vld [vmem:[%s151 + $0xe38] sm:$0xff]
                %616 = vst [vmem:[%s152 + $0x738] sm:$0xff] %v615
                %v617 = vld [vmem:[%s151 + $0xe40] sm:$0xff]
                %618 = vst [vmem:[%s152 + $0x740] sm:$0xff] %v617
                %v619 = vld [vmem:[%s151 + $0xe48] sm:$0xff]
                %620 = vst [vmem:[%s152 + $0x748] sm:$0xff] %v619
                %v621 = vld [vmem:[%s151 + $0xe50] sm:$0xff]
                %622 = vst [vmem:[%s152 + $0x750] sm:$0xff] %v621
                %v623 = vld [vmem:[%s151 + $0xe58] sm:$0xff]
                %624 = vst [vmem:[%s152 + $0x758] sm:$0xff] %v623
                %v625 = vld [vmem:[%s151 + $0xe60] sm:$0xff]
                %626 = vst [vmem:[%s152 + $0x760] sm:$0xff] %v625
                %v627 = vld [vmem:[%s151 + $0xe68] sm:$0xff]
                %628 = vst [vmem:[%s152 + $0x768] sm:$0xff] %v627
                %v629 = vld [vmem:[%s151 + $0xe70] sm:$0xff]
                %630 = vst [vmem:[%s152 + $0x770] sm:$0xff] %v629
                %v631 = vld [vmem:[%s151 + $0xe78] sm:$0xff]
                %632 = vst [vmem:[%s152 + $0x778] sm:$0xff] %v631
                %v633 = vld [vmem:[%s151 + $0xe80] sm:$0xff]
                %634 = vst [vmem:[%s152 + $0x780] sm:$0xff] %v633
                %v635 = vld [vmem:[%s151 + $0xe88] sm:$0xff]
                %636 = vst [vmem:[%s152 + $0x788] sm:$0xff] %v635
                %v637 = vld [vmem:[%s151 + $0xe90] sm:$0xff]
                %638 = vst [vmem:[%s152 + $0x790] sm:$0xff] %v637
                %v639 = vld [vmem:[%s151 + $0xe98] sm:$0xff]
                %640 = vst [vmem:[%s152 + $0x798] sm:$0xff] %v639
                %v641 = vld [vmem:[%s151 + $0xea0] sm:$0xff]
                %642 = vst [vmem:[%s152 + $0x7a0] sm:$0xff] %v641
                %v643 = vld [vmem:[%s151 + $0xea8] sm:$0xff]
                %644 = vst [vmem:[%s152 + $0x7a8] sm:$0xff] %v643
                %v645 = vld [vmem:[%s151 + $0xeb0] sm:$0xff]
                %646 = vst [vmem:[%s152 + $0x7b0] sm:$0xff] %v645
                %v647 = vld [vmem:[%s151 + $0xeb8] sm:$0xff]
                %648 = vst [vmem:[%s152 + $0x7b8] sm:$0xff] %v647
                %v649 = vld [vmem:[%s151 + $0xec0] sm:$0xff]
                %650 = vst [vmem:[%s152 + $0x7c0] sm:$0xff] %v649
                %v651 = vld [vmem:[%s151 + $0xec8] sm:$0xff]
                %652 = vst [vmem:[%s152 + $0x7c8] sm:$0xff] %v651
                %v653 = vld [vmem:[%s151 + $0xed0] sm:$0xff]
                %654 = vst [vmem:[%s152 + $0x7d0] sm:$0xff] %v653
                %v655 = vld [vmem:[%s151 + $0xed8] sm:$0xff]
                %656 = vst [vmem:[%s152 + $0x7d8] sm:$0xff] %v655
                %v657 = vld [vmem:[%s151 + $0xee0] sm:$0xff]
                %658 = vst [vmem:[%s152 + $0x7e0] sm:$0xff] %v657
                %v659 = vld [vmem:[%s151 + $0xee8] sm:$0xff]
                %660 = vst [vmem:[%s152 + $0x7e8] sm:$0xff] %v659
                %v661 = vld [vmem:[%s151 + $0xef0] sm:$0xff]
                %662 = vst [vmem:[%s152 + $0x7f0] sm:$0xff] %v661
                %v663 = vld [vmem:[%s151 + $0xef8] sm:$0xff]
                %664 = vst [vmem:[%s152 + $0x7f8] sm:$0xff] %v663
                %v665 = vld [vmem:[%s151 + $0x1000] sm:$0xff]
                %666 = vst [vmem:[%s152 + $0x800] sm:$0xff] %v665
                %v667 = vld [vmem:[%s151 + $0x1008] sm:$0xff]
                %668 = vst [vmem:[%s152 + $0x808] sm:$0xff] %v667
                %v669 = vld [vmem:[%s151 + $0x1010] sm:$0xff]
                %670 = vst [vmem:[%s152 + $0x810] sm:$0xff] %v669
                %v671 = vld [vmem:[%s151 + $0x1018] sm:$0xff]
                %672 = vst [vmem:[%s152 + $0x818] sm:$0xff] %v671
                %v673 = vld [vmem:[%s151 + $0x1020] sm:$0xff]
                %674 = vst [vmem:[%s152 + $0x820] sm:$0xff] %v673
                %v675 = vld [vmem:[%s151 + $0x1028] sm:$0xff]
                %676 = vst [vmem:[%s152 + $0x828] sm:$0xff] %v675
                %v677 = vld [vmem:[%s151 + $0x1030] sm:$0xff]
                %678 = vst [vmem:[%s152 + $0x830] sm:$0xff] %v677
                %v679 = vld [vmem:[%s151 + $0x1038] sm:$0xff]
                %680 = vst [vmem:[%s152 + $0x838] sm:$0xff] %v679
                %v681 = vld [vmem:[%s151 + $0x1040] sm:$0xff]
                %682 = vst [vmem:[%s152 + $0x840] sm:$0xff] %v681
                %v683 = vld [vmem:[%s151 + $0x1048] sm:$0xff]
                %684 = vst [vmem:[%s152 + $0x848] sm:$0xff] %v683
                %v685 = vld [vmem:[%s151 + $0x1050] sm:$0xff]
                %686 = vst [vmem:[%s152 + $0x850] sm:$0xff] %v685
                %v687 = vld [vmem:[%s151 + $0x1058] sm:$0xff]
                %688 = vst [vmem:[%s152 + $0x858] sm:$0xff] %v687
                %v689 = vld [vmem:[%s151 + $0x1060] sm:$0xff]
                %690 = vst [vmem:[%s152 + $0x860] sm:$0xff] %v689
                %v691 = vld [vmem:[%s151 + $0x1068] sm:$0xff]
                %692 = vst [vmem:[%s152 + $0x868] sm:$0xff] %v691
                %v693 = vld [vmem:[%s151 + $0x1070] sm:$0xff]
                %694 = vst [vmem:[%s152 + $0x870] sm:$0xff] %v693
                %v695 = vld [vmem:[%s151 + $0x1078] sm:$0xff]
                %696 = vst [vmem:[%s152 + $0x878] sm:$0xff] %v695
                %v697 = vld [vmem:[%s151 + $0x1080] sm:$0xff]
                %698 = vst [vmem:[%s152 + $0x880] sm:$0xff] %v697
                %v699 = vld [vmem:[%s151 + $0x1088] sm:$0xff]
                %700 = vst [vmem:[%s152 + $0x888] sm:$0xff] %v699
                %v701 = vld [vmem:[%s151 + $0x1090] sm:$0xff]
                %702 = vst [vmem:[%s152 + $0x890] sm:$0xff] %v701
                %v703 = vld [vmem:[%s151 + $0x1098] sm:$0xff]
                %704 = vst [vmem:[%s152 + $0x898] sm:$0xff] %v703
                %v705 = vld [vmem:[%s151 + $0x10a0] sm:$0xff]
                %706 = vst [vmem:[%s152 + $0x8a0] sm:$0xff] %v705
                %v707 = vld [vmem:[%s151 + $0x10a8] sm:$0xff]
                %708 = vst [vmem:[%s152 + $0x8a8] sm:$0xff] %v707
                %v709 = vld [vmem:[%s151 + $0x10b0] sm:$0xff]
                %710 = vst [vmem:[%s152 + $0x8b0] sm:$0xff] %v709
                %v711 = vld [vmem:[%s151 + $0x10b8] sm:$0xff]
                %712 = vst [vmem:[%s152 + $0x8b8] sm:$0xff] %v711
                %v713 = vld [vmem:[%s151 + $0x10c0] sm:$0xff]
                %714 = vst [vmem:[%s152 + $0x8c0] sm:$0xff] %v713
                %v715 = vld [vmem:[%s151 + $0x10c8] sm:$0xff]
                %716 = vst [vmem:[%s152 + $0x8c8] sm:$0xff] %v715
                %v717 = vld [vmem:[%s151 + $0x10d0] sm:$0xff]
                %718 = vst [vmem:[%s152 + $0x8d0] sm:$0xff] %v717
                %v719 = vld [vmem:[%s151 + $0x10d8] sm:$0xff]
                %720 = vst [vmem:[%s152 + $0x8d8] sm:$0xff] %v719
                %v721 = vld [vmem:[%s151 + $0x10e0] sm:$0xff]
                %722 = vst [vmem:[%s152 + $0x8e0] sm:$0xff] %v721
                %v723 = vld [vmem:[%s151 + $0x10e8] sm:$0xff]
                %724 = vst [vmem:[%s152 + $0x8e8] sm:$0xff] %v723
                %v725 = vld [vmem:[%s151 + $0x10f0] sm:$0xff]
                %726 = vst [vmem:[%s152 + $0x8f0] sm:$0xff] %v725
                %v727 = vld [vmem:[%s151 + $0x10f8] sm:$0xff]
                %728 = vst [vmem:[%s152 + $0x8f8] sm:$0xff] %v727
              $region45: #{_lambda_.22} parent=39 // loop_footer
                %s150 = sadd.s32 1, %s146
              $region46: #{_lambda_.22} parent=39 // loop_footer_branch
                %145 = sbr.rel target = $region42
              $region47: #{_lambda_.22} parent=39 // loop_exit
                _
            $region40: #{_lambda_.22} parent=31 // pred_fallthru
              _
          $region32: #{_lambda_.22} parent=27 // pred_fallthru
            _
          %1317 = vnop
        $region28: #{_lambda_.22} parent=23 // pred_fallthru
          _
      $region24: #{_lambda_.22} parent=5 // pred_fallthru
        _
      %p1318 = scmp.le.s32.totalorder 1, %s9
      %p1319 = scmp.lt.s32.totalorder %s9, 3
      %p1320 = pnand %p1318, %p1319
      %p1321 = pneg %p1320
      // Predicated region
      $region63: #{_lambda_.22} parent=5 // pred_check
        _
      $region64: #{_lambda_.22} parent=5 // pred_check_branch
        %1323 = sbr.rel (%p1320) target = $region66
      $region65: #{_lambda_.22} parent=5 // pred_region
        %s1324 = ssub.s32 %s9, 1
        %s1325 = sand.u32 %s22, 1
        %s1326 = sand.u32 %s22, 1
        %s1327 = smul.addr %s1326, 2304
        %s1328 = scalar_lea.vmem [#allocation2], %s1327
        // Predicated region
        $region67: #{_lambda_.22} parent=65 // pred_check
          %p1329 = pneg %p35
        $region68: #{_lambda_.22} parent=65 // pred_check_branch
          %1331 = sbr.rel (%p1329) target = $region70
        $region69: #{_lambda_.22} parent=65 // pred_region
          _
        $region70: #{_lambda_.22} parent=65 // pred_fallthru
          _
        %s1332 = sand.u32 %s22, 1
        %s1333 = sand.u32 %s22, 1
        %s1334 = smul.addr %s1333, 2304
        %s1335 = scalar_lea.vmem [#allocation2], %s1334
        %p1336 = pneg %p35
        %p1337 = pneg %p32
        %p1338 = pneg %p56
        %p1339 = pneg %p53
        %p1340 = pneg %p77
        %p1341 = pneg %p74
        %p1342 = pneg %p103
        %p1343 = pneg %p100
        %s1344 = smul.u32 32, %s14
        %p1345 = scmp.lt.s32.totalorder %s1344, 63
        %s1346 = scalar_select %p1345, %s1344, 63
        %s1347 = smul.addr %s1346, 8
        %s1348 = scalar_lea.vmem %s3, %s1347
        %s1349 = smul.u32 32, %s14
        %s1350 = smul.u32 32, %s14
        %p1351 = scmp.lt.s32.totalorder %s1350, 63
        %s1352 = scalar_select %p1351, %s1350, 63
        %s1353 = smul.addr %s1352, 8
        %s1354 = scalar_lea.vmem %s3, %s1353
        %s1355 = smul.u32 32, %s14
        %v1356 = vld [vmem:[%s1] sm:$0x1]
        %v1357 = vld [vmem:[%s1 + $0x1] sm:$0x1]
        %v1358 = vld [vmem:[%s1 + $0x2] sm:$0x1]
        %v1359 = vld [vmem:[%s1 + $0x3] sm:$0x1]
        %v1360 = vld [vmem:[%s1 + $0x4] sm:$0x1]
        %v1361 = vld [vmem:[%s1 + $0x5] sm:$0x1]
        %v1362 = vld [vmem:[%s1 + $0x6] sm:$0x1]
        %v1363 = vld [vmem:[%s1 + $0x7] sm:$0x1]
        %v1364 = vld [vmem:[%s1 + $0x8] sm:$0x1]
        %v1365 = vld [vmem:[%s2] sm:$0x1]
        %v1366 = vld [vmem:[%s1328] sm:$0xff]
        %v1367 = vld [vmem:[%s1328 + $0x8] sm:$0xff]
        %v1368 = vld [vmem:[%s1328 + $0x10] sm:$0xff]
        %v1369 = vld [vmem:[%s1328 + $0x18] sm:$0xff]
        %v1370 = vld [vmem:[%s1328 + $0x20] sm:$0xff]
        %v1371 = vld [vmem:[%s1328 + $0x28] sm:$0xff]
        %v1372 = vld [vmem:[%s1328 + $0x30] sm:$0xff]
        %v1373 = vld [vmem:[%s1328 + $0x38] sm:$0xff]
        %v1374 = vld [vmem:[%s1328 + $0x40] sm:$0xff]
        %v1375 = vld [vmem:[%s1328 + $0x48] sm:$0xff]
        %v1376 = vld [vmem:[%s1328 + $0x50] sm:$0xff]
        %v1377 = vld [vmem:[%s1328 + $0x58] sm:$0xff]
        %v1378 = vld [vmem:[%s1328 + $0x60] sm:$0xff]
        %v1379 = vld [vmem:[%s1328 + $0x68] sm:$0xff]
        %v1380 = vld [vmem:[%s1328 + $0x70] sm:$0xff]
        %v1381 = vld [vmem:[%s1328 + $0x78] sm:$0xff]
        %v1382 = vld [vmem:[%s1328 + $0x80] sm:$0xff]
        %v1383 = vld [vmem:[%s1328 + $0x88] sm:$0xff]
        %v1384 = vld [vmem:[%s1328 + $0x90] sm:$0xff]
        %v1385 = vld [vmem:[%s1328 + $0x98] sm:$0xff]
        %v1386 = vld [vmem:[%s1328 + $0xa0] sm:$0xff]
        %v1387 = vld [vmem:[%s1328 + $0xa8] sm:$0xff]
        %v1388 = vld [vmem:[%s1328 + $0xb0] sm:$0xff]
        %v1389 = vld [vmem:[%s1328 + $0xb8] sm:$0xff]
        %v1390 = vld [vmem:[%s1328 + $0xc0] sm:$0xff]
        %v1391 = vld [vmem:[%s1328 + $0xc8] sm:$0xff]
        %v1392 = vld [vmem:[%s1328 + $0xd0] sm:$0xff]
        %v1393 = vld [vmem:[%s1328 + $0xd8] sm:$0xff]
        %v1394 = vld [vmem:[%s1328 + $0xe0] sm:$0xff]
        %v1395 = vld [vmem:[%s1328 + $0xe8] sm:$0xff]
        %v1396 = vld [vmem:[%s1328 + $0xf0] sm:$0xff]
        %v1397 = vld [vmem:[%s1328 + $0xf8] sm:$0xff]
        %v1399 = vlaneseq
        %v1400 = vshrl.u32 %v1399, 7
        %v1401 = vsub.s32 0, %v1400
        %v1402 = vrot.slane %v1356, %v1401
        %v1404 = vmul.f32 %v1366, %v1402
        %v1405 = vmul.f32 %v1367, %v1402
        %v1406 = vmul.f32 %v1368, %v1402
        %v1407 = vmul.f32 %v1369, %v1402
        %v1408 = vmul.f32 %v1370, %v1402
        %v1409 = vmul.f32 %v1371, %v1402
        %v1410 = vmul.f32 %v1372, %v1402
        %v1411 = vmul.f32 %v1373, %v1402
        %v1412 = vmul.f32 %v1374, %v1402
        %v1413 = vmul.f32 %v1375, %v1402
        %v1414 = vmul.f32 %v1376, %v1402
        %v1415 = vmul.f32 %v1377, %v1402
        %v1416 = vmul.f32 %v1378, %v1402
        %v1417 = vmul.f32 %v1379, %v1402
        %v1418 = vmul.f32 %v1380, %v1402
        %v1419 = vmul.f32 %v1381, %v1402
        %v1420 = vmul.f32 %v1382, %v1402
        %v1421 = vmul.f32 %v1383, %v1402
        %v1422 = vmul.f32 %v1384, %v1402
        %v1423 = vmul.f32 %v1385, %v1402
        %v1424 = vmul.f32 %v1386, %v1402
        %v1425 = vmul.f32 %v1387, %v1402
        %v1426 = vmul.f32 %v1388, %v1402
        %v1427 = vmul.f32 %v1389, %v1402
        %v1428 = vmul.f32 %v1390, %v1402
        %v1429 = vmul.f32 %v1391, %v1402
        %v1430 = vmul.f32 %v1392, %v1402
        %v1431 = vmul.f32 %v1393, %v1402
        %v1432 = vmul.f32 %v1394, %v1402
        %v1433 = vmul.f32 %v1395, %v1402
        %v1434 = vmul.f32 %v1396, %v1402
        %v1435 = vmul.f32 %v1397, %v1402
        %v1437 = vlaneseq
        %v1438 = vshrl.u32 %v1437, 7
        %v1439 = vsub.s32 0, %v1438
        %v1440 = vrot.slane %v1365, %v1439
        %v1442 = vadd.f32 %v1404, %v1440
        %v1443 = vadd.f32 %v1405, %v1440
        %v1444 = vadd.f32 %v1406, %v1440
        %v1445 = vadd.f32 %v1407, %v1440
        %v1446 = vadd.f32 %v1408, %v1440
        %v1447 = vadd.f32 %v1409, %v1440
        %v1448 = vadd.f32 %v1410, %v1440
        %v1449 = vadd.f32 %v1411, %v1440
        %v1450 = vadd.f32 %v1412, %v1440
        %v1451 = vadd.f32 %v1413, %v1440
        %v1452 = vadd.f32 %v1414, %v1440
        %v1453 = vadd.f32 %v1415, %v1440
        %v1454 = vadd.f32 %v1416, %v1440
        %v1455 = vadd.f32 %v1417, %v1440
        %v1456 = vadd.f32 %v1418, %v1440
        %v1457 = vadd.f32 %v1419, %v1440
        %v1458 = vadd.f32 %v1420, %v1440
        %v1459 = vadd.f32 %v1421, %v1440
        %v1460 = vadd.f32 %v1422, %v1440
        %v1461 = vadd.f32 %v1423, %v1440
        %v1462 = vadd.f32 %v1424, %v1440
        %v1463 = vadd.f32 %v1425, %v1440
        %v1464 = vadd.f32 %v1426, %v1440
        %v1465 = vadd.f32 %v1427, %v1440
        %v1466 = vadd.f32 %v1428, %v1440
        %v1467 = vadd.f32 %v1429, %v1440
        %v1468 = vadd.f32 %v1430, %v1440
        %v1469 = vadd.f32 %v1431, %v1440
        %v1470 = vadd.f32 %v1432, %v1440
        %v1471 = vadd.f32 %v1433, %v1440
        %v1472 = vadd.f32 %v1434, %v1440
        %v1473 = vadd.f32 %v1435, %v1440
        %s1474 = scalar_lea.vmem %s1328, 256 [#allocation2]
        %v1475 = vld [vmem:[%s1474] sm:$0xff]
        %v1476 = vld [vmem:[%s1474 + $0x8] sm:$0xff]
        %v1477 = vld [vmem:[%s1474 + $0x10] sm:$0xff]
        %v1478 = vld [vmem:[%s1474 + $0x18] sm:$0xff]
        %v1479 = vld [vmem:[%s1474 + $0x20] sm:$0xff]
        %v1480 = vld [vmem:[%s1474 + $0x28] sm:$0xff]
        %v1481 = vld [vmem:[%s1474 + $0x30] sm:$0xff]
        %v1482 = vld [vmem:[%s1474 + $0x38] sm:$0xff]
        %v1483 = vld [vmem:[%s1474 + $0x40] sm:$0xff]
        %v1484 = vld [vmem:[%s1474 + $0x48] sm:$0xff]
        %v1485 = vld [vmem:[%s1474 + $0x50] sm:$0xff]
        %v1486 = vld [vmem:[%s1474 + $0x58] sm:$0xff]
        %v1487 = vld [vmem:[%s1474 + $0x60] sm:$0xff]
        %v1488 = vld [vmem:[%s1474 + $0x68] sm:$0xff]
        %v1489 = vld [vmem:[%s1474 + $0x70] sm:$0xff]
        %v1490 = vld [vmem:[%s1474 + $0x78] sm:$0xff]
        %v1491 = vld [vmem:[%s1474 + $0x80] sm:$0xff]
        %v1492 = vld [vmem:[%s1474 + $0x88] sm:$0xff]
        %v1493 = vld [vmem:[%s1474 + $0x90] sm:$0xff]
        %v1494 = vld [vmem:[%s1474 + $0x98] sm:$0xff]
        %v1495 = vld [vmem:[%s1474 + $0xa0] sm:$0xff]
        %v1496 = vld [vmem:[%s1474 + $0xa8] sm:$0xff]
        %v1497 = vld [vmem:[%s1474 + $0xb0] sm:$0xff]
        %v1498 = vld [vmem:[%s1474 + $0xb8] sm:$0xff]
        %v1499 = vld [vmem:[%s1474 + $0xc0] sm:$0xff]
        %v1500 = vld [vmem:[%s1474 + $0xc8] sm:$0xff]
        %v1501 = vld [vmem:[%s1474 + $0xd0] sm:$0xff]
        %v1502 = vld [vmem:[%s1474 + $0xd8] sm:$0xff]
        %v1503 = vld [vmem:[%s1474 + $0xe0] sm:$0xff]
        %v1504 = vld [vmem:[%s1474 + $0xe8] sm:$0xff]
        %v1505 = vld [vmem:[%s1474 + $0xf0] sm:$0xff]
        %v1506 = vld [vmem:[%s1474 + $0xf8] sm:$0xff]
        %v1508 = vlaneseq
        %v1509 = vshrl.u32 %v1508, 7
        %v1510 = vsub.s32 0, %v1509
        %v1511 = vrot.slane %v1357, %v1510
        %v1513 = vmul.f32 %v1475, %v1511
        %v1514 = vmul.f32 %v1476, %v1511
        %v1515 = vmul.f32 %v1477, %v1511
        %v1516 = vmul.f32 %v1478, %v1511
        %v1517 = vmul.f32 %v1479, %v1511
        %v1518 = vmul.f32 %v1480, %v1511
        %v1519 = vmul.f32 %v1481, %v1511
        %v1520 = vmul.f32 %v1482, %v1511
        %v1521 = vmul.f32 %v1483, %v1511
        %v1522 = vmul.f32 %v1484, %v1511
        %v1523 = vmul.f32 %v1485, %v1511
        %v1524 = vmul.f32 %v1486, %v1511
        %v1525 = vmul.f32 %v1487, %v1511
        %v1526 = vmul.f32 %v1488, %v1511
        %v1527 = vmul.f32 %v1489, %v1511
        %v1528 = vmul.f32 %v1490, %v1511
        %v1529 = vmul.f32 %v1491, %v1511
        %v1530 = vmul.f32 %v1492, %v1511
        %v1531 = vmul.f32 %v1493, %v1511
        %v1532 = vmul.f32 %v1494, %v1511
        %v1533 = vmul.f32 %v1495, %v1511
        %v1534 = vmul.f32 %v1496, %v1511
        %v1535 = vmul.f32 %v1497, %v1511
        %v1536 = vmul.f32 %v1498, %v1511
        %v1537 = vmul.f32 %v1499, %v1511
        %v1538 = vmul.f32 %v1500, %v1511
        %v1539 = vmul.f32 %v1501, %v1511
        %v1540 = vmul.f32 %v1502, %v1511
        %v1541 = vmul.f32 %v1503, %v1511
        %v1542 = vmul.f32 %v1504, %v1511
        %v1543 = vmul.f32 %v1505, %v1511
        %v1544 = vmul.f32 %v1506, %v1511
        %v1545 = vadd.f32 %v1442, %v1513
        %v1546 = vadd.f32 %v1443, %v1514
        %v1547 = vadd.f32 %v1444, %v1515
        %v1548 = vadd.f32 %v1445, %v1516
        %v1549 = vadd.f32 %v1446, %v1517
        %v1550 = vadd.f32 %v1447, %v1518
        %v1551 = vadd.f32 %v1448, %v1519
        %v1552 = vadd.f32 %v1449, %v1520
        %v1553 = vadd.f32 %v1450, %v1521
        %v1554 = vadd.f32 %v1451, %v1522
        %v1555 = vadd.f32 %v1452, %v1523
        %v1556 = vadd.f32 %v1453, %v1524
        %v1557 = vadd.f32 %v1454, %v1525
        %v1558 = vadd.f32 %v1455, %v1526
        %v1559 = vadd.f32 %v1456, %v1527
        %v1560 = vadd.f32 %v1457, %v1528
        %v1561 = vadd.f32 %v1458, %v1529
        %v1562 = vadd.f32 %v1459, %v1530
        %v1563 = vadd.f32 %v1460, %v1531
        %v1564 = vadd.f32 %v1461, %v1532
        %v1565 = vadd.f32 %v1462, %v1533
        %v1566 = vadd.f32 %v1463, %v1534
        %v1567 = vadd.f32 %v1464, %v1535
        %v1568 = vadd.f32 %v1465, %v1536
        %v1569 = vadd.f32 %v1466, %v1537
        %v1570 = vadd.f32 %v1467, %v1538
        %v1571 = vadd.f32 %v1468, %v1539
        %v1572 = vadd.f32 %v1469, %v1540
        %v1573 = vadd.f32 %v1470, %v1541
        %v1574 = vadd.f32 %v1471, %v1542
        %v1575 = vadd.f32 %v1472, %v1543
        %v1576 = vadd.f32 %v1473, %v1544
        %s1577 = scalar_lea.vmem %s1328, 512 [#allocation2]
        %v1578 = vld [vmem:[%s1577] sm:$0xff]
        %v1579 = vld [vmem:[%s1577 + $0x8] sm:$0xff]
        %v1580 = vld [vmem:[%s1577 + $0x10] sm:$0xff]
        %v1581 = vld [vmem:[%s1577 + $0x18] sm:$0xff]
        %v1582 = vld [vmem:[%s1577 + $0x20] sm:$0xff]
        %v1583 = vld [vmem:[%s1577 + $0x28] sm:$0xff]
        %v1584 = vld [vmem:[%s1577 + $0x30] sm:$0xff]
        %v1585 = vld [vmem:[%s1577 + $0x38] sm:$0xff]
        %v1586 = vld [vmem:[%s1577 + $0x40] sm:$0xff]
        %v1587 = vld [vmem:[%s1577 + $0x48] sm:$0xff]
        %v1588 = vld [vmem:[%s1577 + $0x50] sm:$0xff]
        %v1589 = vld [vmem:[%s1577 + $0x58] sm:$0xff]
        %v1590 = vld [vmem:[%s1577 + $0x60] sm:$0xff]
        %v1591 = vld [vmem:[%s1577 + $0x68] sm:$0xff]
        %v1592 = vld [vmem:[%s1577 + $0x70] sm:$0xff]
        %v1593 = vld [vmem:[%s1577 + $0x78] sm:$0xff]
        %v1594 = vld [vmem:[%s1577 + $0x80] sm:$0xff]
        %v1595 = vld [vmem:[%s1577 + $0x88] sm:$0xff]
        %v1596 = vld [vmem:[%s1577 + $0x90] sm:$0xff]
        %v1597 = vld [vmem:[%s1577 + $0x98] sm:$0xff]
        %v1598 = vld [vmem:[%s1577 + $0xa0] sm:$0xff]
        %v1599 = vld [vmem:[%s1577 + $0xa8] sm:$0xff]
        %v1600 = vld [vmem:[%s1577 + $0xb0] sm:$0xff]
        %v1601 = vld [vmem:[%s1577 + $0xb8] sm:$0xff]
        %v1602 = vld [vmem:[%s1577 + $0xc0] sm:$0xff]
        %v1603 = vld [vmem:[%s1577 + $0xc8] sm:$0xff]
        %v1604 = vld [vmem:[%s1577 + $0xd0] sm:$0xff]
        %v1605 = vld [vmem:[%s1577 + $0xd8] sm:$0xff]
        %v1606 = vld [vmem:[%s1577 + $0xe0] sm:$0xff]
        %v1607 = vld [vmem:[%s1577 + $0xe8] sm:$0xff]
        %v1608 = vld [vmem:[%s1577 + $0xf0] sm:$0xff]
        %v1609 = vld [vmem:[%s1577 + $0xf8] sm:$0xff]
        %v1611 = vlaneseq
        %v1612 = vshrl.u32 %v1611, 7
        %v1613 = vsub.s32 0, %v1612
        %v1614 = vrot.slane %v1358, %v1613
        %v1616 = vmul.f32 %v1578, %v1614
        %v1617 = vmul.f32 %v1579, %v1614
        %v1618 = vmul.f32 %v1580, %v1614
        %v1619 = vmul.f32 %v1581, %v1614
        %v1620 = vmul.f32 %v1582, %v1614
        %v1621 = vmul.f32 %v1583, %v1614
        %v1622 = vmul.f32 %v1584, %v1614
        %v1623 = vmul.f32 %v1585, %v1614
        %v1624 = vmul.f32 %v1586, %v1614
        %v1625 = vmul.f32 %v1587, %v1614
        %v1626 = vmul.f32 %v1588, %v1614
        %v1627 = vmul.f32 %v1589, %v1614
        %v1628 = vmul.f32 %v1590, %v1614
        %v1629 = vmul.f32 %v1591, %v1614
        %v1630 = vmul.f32 %v1592, %v1614
        %v1631 = vmul.f32 %v1593, %v1614
        %v1632 = vmul.f32 %v1594, %v1614
        %v1633 = vmul.f32 %v1595, %v1614
        %v1634 = vmul.f32 %v1596, %v1614
        %v1635 = vmul.f32 %v1597, %v1614
        %v1636 = vmul.f32 %v1598, %v1614
        %v1637 = vmul.f32 %v1599, %v1614
        %v1638 = vmul.f32 %v1600, %v1614
        %v1639 = vmul.f32 %v1601, %v1614
        %v1640 = vmul.f32 %v1602, %v1614
        %v1641 = vmul.f32 %v1603, %v1614
        %v1642 = vmul.f32 %v1604, %v1614
        %v1643 = vmul.f32 %v1605, %v1614
        %v1644 = vmul.f32 %v1606, %v1614
        %v1645 = vmul.f32 %v1607, %v1614
        %v1646 = vmul.f32 %v1608, %v1614
        %v1647 = vmul.f32 %v1609, %v1614
        %v1648 = vadd.f32 %v1545, %v1616
        %v1649 = vadd.f32 %v1546, %v1617
        %v1650 = vadd.f32 %v1547, %v1618
        %v1651 = vadd.f32 %v1548, %v1619
        %v1652 = vadd.f32 %v1549, %v1620
        %v1653 = vadd.f32 %v1550, %v1621
        %v1654 = vadd.f32 %v1551, %v1622
        %v1655 = vadd.f32 %v1552, %v1623
        %v1656 = vadd.f32 %v1553, %v1624
        %v1657 = vadd.f32 %v1554, %v1625
        %v1658 = vadd.f32 %v1555, %v1626
        %v1659 = vadd.f32 %v1556, %v1627
        %v1660 = vadd.f32 %v1557, %v1628
        %v1661 = vadd.f32 %v1558, %v1629
        %v1662 = vadd.f32 %v1559, %v1630
        %v1663 = vadd.f32 %v1560, %v1631
        %v1664 = vadd.f32 %v1561, %v1632
        %v1665 = vadd.f32 %v1562, %v1633
        %v1666 = vadd.f32 %v1563, %v1634
        %v1667 = vadd.f32 %v1564, %v1635
        %v1668 = vadd.f32 %v1565, %v1636
        %v1669 = vadd.f32 %v1566, %v1637
        %v1670 = vadd.f32 %v1567, %v1638
        %v1671 = vadd.f32 %v1568, %v1639
        %v1672 = vadd.f32 %v1569, %v1640
        %v1673 = vadd.f32 %v1570, %v1641
        %v1674 = vadd.f32 %v1571, %v1642
        %v1675 = vadd.f32 %v1572, %v1643
        %v1676 = vadd.f32 %v1573, %v1644
        %v1677 = vadd.f32 %v1574, %v1645
        %v1678 = vadd.f32 %v1575, %v1646
        %v1679 = vadd.f32 %v1576, %v1647
        %s1680 = scalar_lea.vmem %s1328, 768 [#allocation2]
        %v1681 = vld [vmem:[%s1680] sm:$0xff]
        %v1682 = vld [vmem:[%s1680 + $0x8] sm:$0xff]
        %v1683 = vld [vmem:[%s1680 + $0x10] sm:$0xff]
        %v1684 = vld [vmem:[%s1680 + $0x18] sm:$0xff]
        %v1685 = vld [vmem:[%s1680 + $0x20] sm:$0xff]
        %v1686 = vld [vmem:[%s1680 + $0x28] sm:$0xff]
        %v1687 = vld [vmem:[%s1680 + $0x30] sm:$0xff]
        %v1688 = vld [vmem:[%s1680 + $0x38] sm:$0xff]
        %v1689 = vld [vmem:[%s1680 + $0x40] sm:$0xff]
        %v1690 = vld [vmem:[%s1680 + $0x48] sm:$0xff]
        %v1691 = vld [vmem:[%s1680 + $0x50] sm:$0xff]
        %v1692 = vld [vmem:[%s1680 + $0x58] sm:$0xff]
        %v1693 = vld [vmem:[%s1680 + $0x60] sm:$0xff]
        %v1694 = vld [vmem:[%s1680 + $0x68] sm:$0xff]
        %v1695 = vld [vmem:[%s1680 + $0x70] sm:$0xff]
        %v1696 = vld [vmem:[%s1680 + $0x78] sm:$0xff]
        %v1697 = vld [vmem:[%s1680 + $0x80] sm:$0xff]
        %v1698 = vld [vmem:[%s1680 + $0x88] sm:$0xff]
        %v1699 = vld [vmem:[%s1680 + $0x90] sm:$0xff]
        %v1700 = vld [vmem:[%s1680 + $0x98] sm:$0xff]
        %v1701 = vld [vmem:[%s1680 + $0xa0] sm:$0xff]
        %v1702 = vld [vmem:[%s1680 + $0xa8] sm:$0xff]
        %v1703 = vld [vmem:[%s1680 + $0xb0] sm:$0xff]
        %v1704 = vld [vmem:[%s1680 + $0xb8] sm:$0xff]
        %v1705 = vld [vmem:[%s1680 + $0xc0] sm:$0xff]
        %v1706 = vld [vmem:[%s1680 + $0xc8] sm:$0xff]
        %v1707 = vld [vmem:[%s1680 + $0xd0] sm:$0xff]
        %v1708 = vld [vmem:[%s1680 + $0xd8] sm:$0xff]
        %v1709 = vld [vmem:[%s1680 + $0xe0] sm:$0xff]
        %v1710 = vld [vmem:[%s1680 + $0xe8] sm:$0xff]
        %v1711 = vld [vmem:[%s1680 + $0xf0] sm:$0xff]
        %v1712 = vld [vmem:[%s1680 + $0xf8] sm:$0xff]
        %v1714 = vlaneseq
        %v1715 = vshrl.u32 %v1714, 7
        %v1716 = vsub.s32 0, %v1715
        %v1717 = vrot.slane %v1359, %v1716
        %v1719 = vmul.f32 %v1681, %v1717
        %v1720 = vmul.f32 %v1682, %v1717
        %v1721 = vmul.f32 %v1683, %v1717
        %v1722 = vmul.f32 %v1684, %v1717
        %v1723 = vmul.f32 %v1685, %v1717
        %v1724 = vmul.f32 %v1686, %v1717
        %v1725 = vmul.f32 %v1687, %v1717
        %v1726 = vmul.f32 %v1688, %v1717
        %v1727 = vmul.f32 %v1689, %v1717
        %v1728 = vmul.f32 %v1690, %v1717
        %v1729 = vmul.f32 %v1691, %v1717
        %v1730 = vmul.f32 %v1692, %v1717
        %v1731 = vmul.f32 %v1693, %v1717
        %v1732 = vmul.f32 %v1694, %v1717
        %v1733 = vmul.f32 %v1695, %v1717
        %v1734 = vmul.f32 %v1696, %v1717
        %v1735 = vmul.f32 %v1697, %v1717
        %v1736 = vmul.f32 %v1698, %v1717
        %v1737 = vmul.f32 %v1699, %v1717
        %v1738 = vmul.f32 %v1700, %v1717
        %v1739 = vmul.f32 %v1701, %v1717
        %v1740 = vmul.f32 %v1702, %v1717
        %v1741 = vmul.f32 %v1703, %v1717
        %v1742 = vmul.f32 %v1704, %v1717
        %v1743 = vmul.f32 %v1705, %v1717
        %v1744 = vmul.f32 %v1706, %v1717
        %v1745 = vmul.f32 %v1707, %v1717
        %v1746 = vmul.f32 %v1708, %v1717
        %v1747 = vmul.f32 %v1709, %v1717
        %v1748 = vmul.f32 %v1710, %v1717
        %v1749 = vmul.f32 %v1711, %v1717
        %v1750 = vmul.f32 %v1712, %v1717
        %v1751 = vadd.f32 %v1648, %v1719
        %v1752 = vadd.f32 %v1649, %v1720
        %v1753 = vadd.f32 %v1650, %v1721
        %v1754 = vadd.f32 %v1651, %v1722
        %v1755 = vadd.f32 %v1652, %v1723
        %v1756 = vadd.f32 %v1653, %v1724
        %v1757 = vadd.f32 %v1654, %v1725
        %v1758 = vadd.f32 %v1655, %v1726
        %v1759 = vadd.f32 %v1656, %v1727
        %v1760 = vadd.f32 %v1657, %v1728
        %v1761 = vadd.f32 %v1658, %v1729
        %v1762 = vadd.f32 %v1659, %v1730
        %v1763 = vadd.f32 %v1660, %v1731
        %v1764 = vadd.f32 %v1661, %v1732
        %v1765 = vadd.f32 %v1662, %v1733
        %v1766 = vadd.f32 %v1663, %v1734
        %v1767 = vadd.f32 %v1664, %v1735
        %v1768 = vadd.f32 %v1665, %v1736
        %v1769 = vadd.f32 %v1666, %v1737
        %v1770 = vadd.f32 %v1667, %v1738
        %v1771 = vadd.f32 %v1668, %v1739
        %v1772 = vadd.f32 %v1669, %v1740
        %v1773 = vadd.f32 %v1670, %v1741
        %v1774 = vadd.f32 %v1671, %v1742
        %v1775 = vadd.f32 %v1672, %v1743
        %v1776 = vadd.f32 %v1673, %v1744
        %v1777 = vadd.f32 %v1674, %v1745
        %v1778 = vadd.f32 %v1675, %v1746
        %v1779 = vadd.f32 %v1676, %v1747
        %v1780 = vadd.f32 %v1677, %v1748
        %v1781 = vadd.f32 %v1678, %v1749
        %v1782 = vadd.f32 %v1679, %v1750
        %s1783 = scalar_lea.vmem %s1328, 1024 [#allocation2]
        %v1784 = vld [vmem:[%s1783] sm:$0xff]
        %v1785 = vld [vmem:[%s1783 + $0x8] sm:$0xff]
        %v1786 = vld [vmem:[%s1783 + $0x10] sm:$0xff]
        %v1787 = vld [vmem:[%s1783 + $0x18] sm:$0xff]
        %v1788 = vld [vmem:[%s1783 + $0x20] sm:$0xff]
        %v1789 = vld [vmem:[%s1783 + $0x28] sm:$0xff]
        %v1790 = vld [vmem:[%s1783 + $0x30] sm:$0xff]
        %v1791 = vld [vmem:[%s1783 + $0x38] sm:$0xff]
        %v1792 = vld [vmem:[%s1783 + $0x40] sm:$0xff]
        %v1793 = vld [vmem:[%s1783 + $0x48] sm:$0xff]
        %v1794 = vld [vmem:[%s1783 + $0x50] sm:$0xff]
        %v1795 = vld [vmem:[%s1783 + $0x58] sm:$0xff]
        %v1796 = vld [vmem:[%s1783 + $0x60] sm:$0xff]
        %v1797 = vld [vmem:[%s1783 + $0x68] sm:$0xff]
        %v1798 = vld [vmem:[%s1783 + $0x70] sm:$0xff]
        %v1799 = vld [vmem:[%s1783 + $0x78] sm:$0xff]
        %v1800 = vld [vmem:[%s1783 + $0x80] sm:$0xff]
        %v1801 = vld [vmem:[%s1783 + $0x88] sm:$0xff]
        %v1802 = vld [vmem:[%s1783 + $0x90] sm:$0xff]
        %v1803 = vld [vmem:[%s1783 + $0x98] sm:$0xff]
        %v1804 = vld [vmem:[%s1783 + $0xa0] sm:$0xff]
        %v1805 = vld [vmem:[%s1783 + $0xa8] sm:$0xff]
        %v1806 = vld [vmem:[%s1783 + $0xb0] sm:$0xff]
        %v1807 = vld [vmem:[%s1783 + $0xb8] sm:$0xff]
        %v1808 = vld [vmem:[%s1783 + $0xc0] sm:$0xff]
        %v1809 = vld [vmem:[%s1783 + $0xc8] sm:$0xff]
        %v1810 = vld [vmem:[%s1783 + $0xd0] sm:$0xff]
        %v1811 = vld [vmem:[%s1783 + $0xd8] sm:$0xff]
        %v1812 = vld [vmem:[%s1783 + $0xe0] sm:$0xff]
        %v1813 = vld [vmem:[%s1783 + $0xe8] sm:$0xff]
        %v1814 = vld [vmem:[%s1783 + $0xf0] sm:$0xff]
        %v1815 = vld [vmem:[%s1783 + $0xf8] sm:$0xff]
        %v1817 = vlaneseq
        %v1818 = vshrl.u32 %v1817, 7
        %v1819 = vsub.s32 0, %v1818
        %v1820 = vrot.slane %v1360, %v1819
        %v1822 = vmul.f32 %v1784, %v1820
        %v1823 = vmul.f32 %v1785, %v1820
        %v1824 = vmul.f32 %v1786, %v1820
        %v1825 = vmul.f32 %v1787, %v1820
        %v1826 = vmul.f32 %v1788, %v1820
        %v1827 = vmul.f32 %v1789, %v1820
        %v1828 = vmul.f32 %v1790, %v1820
        %v1829 = vmul.f32 %v1791, %v1820
        %v1830 = vmul.f32 %v1792, %v1820
        %v1831 = vmul.f32 %v1793, %v1820
        %v1832 = vmul.f32 %v1794, %v1820
        %v1833 = vmul.f32 %v1795, %v1820
        %v1834 = vmul.f32 %v1796, %v1820
        %v1835 = vmul.f32 %v1797, %v1820
        %v1836 = vmul.f32 %v1798, %v1820
        %v1837 = vmul.f32 %v1799, %v1820
        %v1838 = vmul.f32 %v1800, %v1820
        %v1839 = vmul.f32 %v1801, %v1820
        %v1840 = vmul.f32 %v1802, %v1820
        %v1841 = vmul.f32 %v1803, %v1820
        %v1842 = vmul.f32 %v1804, %v1820
        %v1843 = vmul.f32 %v1805, %v1820
        %v1844 = vmul.f32 %v1806, %v1820
        %v1845 = vmul.f32 %v1807, %v1820
        %v1846 = vmul.f32 %v1808, %v1820
        %v1847 = vmul.f32 %v1809, %v1820
        %v1848 = vmul.f32 %v1810, %v1820
        %v1849 = vmul.f32 %v1811, %v1820
        %v1850 = vmul.f32 %v1812, %v1820
        %v1851 = vmul.f32 %v1813, %v1820
        %v1852 = vmul.f32 %v1814, %v1820
        %v1853 = vmul.f32 %v1815, %v1820
        %v1854 = vadd.f32 %v1751, %v1822
        %v1855 = vadd.f32 %v1752, %v1823
        %v1856 = vadd.f32 %v1753, %v1824
        %v1857 = vadd.f32 %v1754, %v1825
        %v1858 = vadd.f32 %v1755, %v1826
        %v1859 = vadd.f32 %v1756, %v1827
        %v1860 = vadd.f32 %v1757, %v1828
        %v1861 = vadd.f32 %v1758, %v1829
        %v1862 = vadd.f32 %v1759, %v1830
        %v1863 = vadd.f32 %v1760, %v1831
        %v1864 = vadd.f32 %v1761, %v1832
        %v1865 = vadd.f32 %v1762, %v1833
        %v1866 = vadd.f32 %v1763, %v1834
        %v1867 = vadd.f32 %v1764, %v1835
        %v1868 = vadd.f32 %v1765, %v1836
        %v1869 = vadd.f32 %v1766, %v1837
        %v1870 = vadd.f32 %v1767, %v1838
        %v1871 = vadd.f32 %v1768, %v1839
        %v1872 = vadd.f32 %v1769, %v1840
        %v1873 = vadd.f32 %v1770, %v1841
        %v1874 = vadd.f32 %v1771, %v1842
        %v1875 = vadd.f32 %v1772, %v1843
        %v1876 = vadd.f32 %v1773, %v1844
        %v1877 = vadd.f32 %v1774, %v1845
        %v1878 = vadd.f32 %v1775, %v1846
        %v1879 = vadd.f32 %v1776, %v1847
        %v1880 = vadd.f32 %v1777, %v1848
        %v1881 = vadd.f32 %v1778, %v1849
        %v1882 = vadd.f32 %v1779, %v1850
        %v1883 = vadd.f32 %v1780, %v1851
        %v1884 = vadd.f32 %v1781, %v1852
        %v1885 = vadd.f32 %v1782, %v1853
        %s1886 = scalar_lea.vmem %s1328, 1280 [#allocation2]
        %v1887 = vld [vmem:[%s1886] sm:$0xff]
        %v1888 = vld [vmem:[%s1886 + $0x8] sm:$0xff]
        %v1889 = vld [vmem:[%s1886 + $0x10] sm:$0xff]
        %v1890 = vld [vmem:[%s1886 + $0x18] sm:$0xff]
        %v1891 = vld [vmem:[%s1886 + $0x20] sm:$0xff]
        %v1892 = vld [vmem:[%s1886 + $0x28] sm:$0xff]
        %v1893 = vld [vmem:[%s1886 + $0x30] sm:$0xff]
        %v1894 = vld [vmem:[%s1886 + $0x38] sm:$0xff]
        %v1895 = vld [vmem:[%s1886 + $0x40] sm:$0xff]
        %v1896 = vld [vmem:[%s1886 + $0x48] sm:$0xff]
        %v1897 = vld [vmem:[%s1886 + $0x50] sm:$0xff]
        %v1898 = vld [vmem:[%s1886 + $0x58] sm:$0xff]
        %v1899 = vld [vmem:[%s1886 + $0x60] sm:$0xff]
        %v1900 = vld [vmem:[%s1886 + $0x68] sm:$0xff]
        %v1901 = vld [vmem:[%s1886 + $0x70] sm:$0xff]
        %v1902 = vld [vmem:[%s1886 + $0x78] sm:$0xff]
        %v1903 = vld [vmem:[%s1886 + $0x80] sm:$0xff]
        %v1904 = vld [vmem:[%s1886 + $0x88] sm:$0xff]
        %v1905 = vld [vmem:[%s1886 + $0x90] sm:$0xff]
        %v1906 = vld [vmem:[%s1886 + $0x98] sm:$0xff]
        %v1907 = vld [vmem:[%s1886 + $0xa0] sm:$0xff]
        %v1908 = vld [vmem:[%s1886 + $0xa8] sm:$0xff]
        %v1909 = vld [vmem:[%s1886 + $0xb0] sm:$0xff]
        %v1910 = vld [vmem:[%s1886 + $0xb8] sm:$0xff]
        %v1911 = vld [vmem:[%s1886 + $0xc0] sm:$0xff]
        %v1912 = vld [vmem:[%s1886 + $0xc8] sm:$0xff]
        %v1913 = vld [vmem:[%s1886 + $0xd0] sm:$0xff]
        %v1914 = vld [vmem:[%s1886 + $0xd8] sm:$0xff]
        %v1915 = vld [vmem:[%s1886 + $0xe0] sm:$0xff]
        %v1916 = vld [vmem:[%s1886 + $0xe8] sm:$0xff]
        %v1917 = vld [vmem:[%s1886 + $0xf0] sm:$0xff]
        %v1918 = vld [vmem:[%s1886 + $0xf8] sm:$0xff]
        %v1920 = vlaneseq
        %v1921 = vshrl.u32 %v1920, 7
        %v1922 = vsub.s32 0, %v1921
        %v1923 = vrot.slane %v1361, %v1922
        %v1925 = vmul.f32 %v1887, %v1923
        %v1926 = vmul.f32 %v1888, %v1923
        %v1927 = vmul.f32 %v1889, %v1923
        %v1928 = vmul.f32 %v1890, %v1923
        %v1929 = vmul.f32 %v1891, %v1923
        %v1930 = vmul.f32 %v1892, %v1923
        %v1931 = vmul.f32 %v1893, %v1923
        %v1932 = vmul.f32 %v1894, %v1923
        %v1933 = vmul.f32 %v1895, %v1923
        %v1934 = vmul.f32 %v1896, %v1923
        %v1935 = vmul.f32 %v1897, %v1923
        %v1936 = vmul.f32 %v1898, %v1923
        %v1937 = vmul.f32 %v1899, %v1923
        %v1938 = vmul.f32 %v1900, %v1923
        %v1939 = vmul.f32 %v1901, %v1923
        %v1940 = vmul.f32 %v1902, %v1923
        %v1941 = vmul.f32 %v1903, %v1923
        %v1942 = vmul.f32 %v1904, %v1923
        %v1943 = vmul.f32 %v1905, %v1923
        %v1944 = vmul.f32 %v1906, %v1923
        %v1945 = vmul.f32 %v1907, %v1923
        %v1946 = vmul.f32 %v1908, %v1923
        %v1947 = vmul.f32 %v1909, %v1923
        %v1948 = vmul.f32 %v1910, %v1923
        %v1949 = vmul.f32 %v1911, %v1923
        %v1950 = vmul.f32 %v1912, %v1923
        %v1951 = vmul.f32 %v1913, %v1923
        %v1952 = vmul.f32 %v1914, %v1923
        %v1953 = vmul.f32 %v1915, %v1923
        %v1954 = vmul.f32 %v1916, %v1923
        %v1955 = vmul.f32 %v1917, %v1923
        %v1956 = vmul.f32 %v1918, %v1923
        %v1957 = vadd.f32 %v1854, %v1925
        %v1958 = vadd.f32 %v1855, %v1926
        %v1959 = vadd.f32 %v1856, %v1927
        %v1960 = vadd.f32 %v1857, %v1928
        %v1961 = vadd.f32 %v1858, %v1929
        %v1962 = vadd.f32 %v1859, %v1930
        %v1963 = vadd.f32 %v1860, %v1931
        %v1964 = vadd.f32 %v1861, %v1932
        %v1965 = vadd.f32 %v1862, %v1933
        %v1966 = vadd.f32 %v1863, %v1934
        %v1967 = vadd.f32 %v1864, %v1935
        %v1968 = vadd.f32 %v1865, %v1936
        %v1969 = vadd.f32 %v1866, %v1937
        %v1970 = vadd.f32 %v1867, %v1938
        %v1971 = vadd.f32 %v1868, %v1939
        %v1972 = vadd.f32 %v1869, %v1940
        %v1973 = vadd.f32 %v1870, %v1941
        %v1974 = vadd.f32 %v1871, %v1942
        %v1975 = vadd.f32 %v1872, %v1943
        %v1976 = vadd.f32 %v1873, %v1944
        %v1977 = vadd.f32 %v1874, %v1945
        %v1978 = vadd.f32 %v1875, %v1946
        %v1979 = vadd.f32 %v1876, %v1947
        %v1980 = vadd.f32 %v1877, %v1948
        %v1981 = vadd.f32 %v1878, %v1949
        %v1982 = vadd.f32 %v1879, %v1950
        %v1983 = vadd.f32 %v1880, %v1951
        %v1984 = vadd.f32 %v1881, %v1952
        %v1985 = vadd.f32 %v1882, %v1953
        %v1986 = vadd.f32 %v1883, %v1954
        %v1987 = vadd.f32 %v1884, %v1955
        %v1988 = vadd.f32 %v1885, %v1956
        %s1989 = scalar_lea.vmem %s1328, 1536 [#allocation2]
        %v1990 = vld [vmem:[%s1989] sm:$0xff]
        %v1991 = vld [vmem:[%s1989 + $0x8] sm:$0xff]
        %v1992 = vld [vmem:[%s1989 + $0x10] sm:$0xff]
        %v1993 = vld [vmem:[%s1989 + $0x18] sm:$0xff]
        %v1994 = vld [vmem:[%s1989 + $0x20] sm:$0xff]
        %v1995 = vld [vmem:[%s1989 + $0x28] sm:$0xff]
        %v1996 = vld [vmem:[%s1989 + $0x30] sm:$0xff]
        %v1997 = vld [vmem:[%s1989 + $0x38] sm:$0xff]
        %v1998 = vld [vmem:[%s1989 + $0x40] sm:$0xff]
        %v1999 = vld [vmem:[%s1989 + $0x48] sm:$0xff]
        %v2000 = vld [vmem:[%s1989 + $0x50] sm:$0xff]
        %v2001 = vld [vmem:[%s1989 + $0x58] sm:$0xff]
        %v2002 = vld [vmem:[%s1989 + $0x60] sm:$0xff]
        %v2003 = vld [vmem:[%s1989 + $0x68] sm:$0xff]
        %v2004 = vld [vmem:[%s1989 + $0x70] sm:$0xff]
        %v2005 = vld [vmem:[%s1989 + $0x78] sm:$0xff]
        %v2006 = vld [vmem:[%s1989 + $0x80] sm:$0xff]
        %v2007 = vld [vmem:[%s1989 + $0x88] sm:$0xff]
        %v2008 = vld [vmem:[%s1989 + $0x90] sm:$0xff]
        %v2009 = vld [vmem:[%s1989 + $0x98] sm:$0xff]
        %v2010 = vld [vmem:[%s1989 + $0xa0] sm:$0xff]
        %v2011 = vld [vmem:[%s1989 + $0xa8] sm:$0xff]
        %v2012 = vld [vmem:[%s1989 + $0xb0] sm:$0xff]
        %v2013 = vld [vmem:[%s1989 + $0xb8] sm:$0xff]
        %v2014 = vld [vmem:[%s1989 + $0xc0] sm:$0xff]
        %v2015 = vld [vmem:[%s1989 + $0xc8] sm:$0xff]
        %v2016 = vld [vmem:[%s1989 + $0xd0] sm:$0xff]
        %v2017 = vld [vmem:[%s1989 + $0xd8] sm:$0xff]
        %v2018 = vld [vmem:[%s1989 + $0xe0] sm:$0xff]
        %v2019 = vld [vmem:[%s1989 + $0xe8] sm:$0xff]
        %v2020 = vld [vmem:[%s1989 + $0xf0] sm:$0xff]
        %v2021 = vld [vmem:[%s1989 + $0xf8] sm:$0xff]
        %v2023 = vlaneseq
        %v2024 = vshrl.u32 %v2023, 7
        %v2025 = vsub.s32 0, %v2024
        %v2026 = vrot.slane %v1362, %v2025
        %v2028 = vmul.f32 %v1990, %v2026
        %v2029 = vmul.f32 %v1991, %v2026
        %v2030 = vmul.f32 %v1992, %v2026
        %v2031 = vmul.f32 %v1993, %v2026
        %v2032 = vmul.f32 %v1994, %v2026
        %v2033 = vmul.f32 %v1995, %v2026
        %v2034 = vmul.f32 %v1996, %v2026
        %v2035 = vmul.f32 %v1997, %v2026
        %v2036 = vmul.f32 %v1998, %v2026
        %v2037 = vmul.f32 %v1999, %v2026
        %v2038 = vmul.f32 %v2000, %v2026
        %v2039 = vmul.f32 %v2001, %v2026
        %v2040 = vmul.f32 %v2002, %v2026
        %v2041 = vmul.f32 %v2003, %v2026
        %v2042 = vmul.f32 %v2004, %v2026
        %v2043 = vmul.f32 %v2005, %v2026
        %v2044 = vmul.f32 %v2006, %v2026
        %v2045 = vmul.f32 %v2007, %v2026
        %v2046 = vmul.f32 %v2008, %v2026
        %v2047 = vmul.f32 %v2009, %v2026
        %v2048 = vmul.f32 %v2010, %v2026
        %v2049 = vmul.f32 %v2011, %v2026
        %v2050 = vmul.f32 %v2012, %v2026
        %v2051 = vmul.f32 %v2013, %v2026
        %v2052 = vmul.f32 %v2014, %v2026
        %v2053 = vmul.f32 %v2015, %v2026
        %v2054 = vmul.f32 %v2016, %v2026
        %v2055 = vmul.f32 %v2017, %v2026
        %v2056 = vmul.f32 %v2018, %v2026
        %v2057 = vmul.f32 %v2019, %v2026
        %v2058 = vmul.f32 %v2020, %v2026
        %v2059 = vmul.f32 %v2021, %v2026
        %v2060 = vadd.f32 %v1957, %v2028
        %v2061 = vadd.f32 %v1958, %v2029
        %v2062 = vadd.f32 %v1959, %v2030
        %v2063 = vadd.f32 %v1960, %v2031
        %v2064 = vadd.f32 %v1961, %v2032
        %v2065 = vadd.f32 %v1962, %v2033
        %v2066 = vadd.f32 %v1963, %v2034
        %v2067 = vadd.f32 %v1964, %v2035
        %v2068 = vadd.f32 %v1965, %v2036
        %v2069 = vadd.f32 %v1966, %v2037
        %v2070 = vadd.f32 %v1967, %v2038
        %v2071 = vadd.f32 %v1968, %v2039
        %v2072 = vadd.f32 %v1969, %v2040
        %v2073 = vadd.f32 %v1970, %v2041
        %v2074 = vadd.f32 %v1971, %v2042
        %v2075 = vadd.f32 %v1972, %v2043
        %v2076 = vadd.f32 %v1973, %v2044
        %v2077 = vadd.f32 %v1974, %v2045
        %v2078 = vadd.f32 %v1975, %v2046
        %v2079 = vadd.f32 %v1976, %v2047
        %v2080 = vadd.f32 %v1977, %v2048
        %v2081 = vadd.f32 %v1978, %v2049
        %v2082 = vadd.f32 %v1979, %v2050
        %v2083 = vadd.f32 %v1980, %v2051
        %v2084 = vadd.f32 %v1981, %v2052
        %v2085 = vadd.f32 %v1982, %v2053
        %v2086 = vadd.f32 %v1983, %v2054
        %v2087 = vadd.f32 %v1984, %v2055
        %v2088 = vadd.f32 %v1985, %v2056
        %v2089 = vadd.f32 %v1986, %v2057
        %v2090 = vadd.f32 %v1987, %v2058
        %v2091 = vadd.f32 %v1988, %v2059
        %s2092 = scalar_lea.vmem %s1328, 1792 [#allocation2]
        %v2093 = vld [vmem:[%s2092] sm:$0xff]
        %v2094 = vld [vmem:[%s2092 + $0x8] sm:$0xff]
        %v2095 = vld [vmem:[%s2092 + $0x10] sm:$0xff]
        %v2096 = vld [vmem:[%s2092 + $0x18] sm:$0xff]
        %v2097 = vld [vmem:[%s2092 + $0x20] sm:$0xff]
        %v2098 = vld [vmem:[%s2092 + $0x28] sm:$0xff]
        %v2099 = vld [vmem:[%s2092 + $0x30] sm:$0xff]
        %v2100 = vld [vmem:[%s2092 + $0x38] sm:$0xff]
        %v2101 = vld [vmem:[%s2092 + $0x40] sm:$0xff]
        %v2102 = vld [vmem:[%s2092 + $0x48] sm:$0xff]
        %v2103 = vld [vmem:[%s2092 + $0x50] sm:$0xff]
        %v2104 = vld [vmem:[%s2092 + $0x58] sm:$0xff]
        %v2105 = vld [vmem:[%s2092 + $0x60] sm:$0xff]
        %v2106 = vld [vmem:[%s2092 + $0x68] sm:$0xff]
        %v2107 = vld [vmem:[%s2092 + $0x70] sm:$0xff]
        %v2108 = vld [vmem:[%s2092 + $0x78] sm:$0xff]
        %v2109 = vld [vmem:[%s2092 + $0x80] sm:$0xff]
        %v2110 = vld [vmem:[%s2092 + $0x88] sm:$0xff]
        %v2111 = vld [vmem:[%s2092 + $0x90] sm:$0xff]
        %v2112 = vld [vmem:[%s2092 + $0x98] sm:$0xff]
        %v2113 = vld [vmem:[%s2092 + $0xa0] sm:$0xff]
        %v2114 = vld [vmem:[%s2092 + $0xa8] sm:$0xff]
        %v2115 = vld [vmem:[%s2092 + $0xb0] sm:$0xff]
        %v2116 = vld [vmem:[%s2092 + $0xb8] sm:$0xff]
        %v2117 = vld [vmem:[%s2092 + $0xc0] sm:$0xff]
        %v2118 = vld [vmem:[%s2092 + $0xc8] sm:$0xff]
        %v2119 = vld [vmem:[%s2092 + $0xd0] sm:$0xff]
        %v2120 = vld [vmem:[%s2092 + $0xd8] sm:$0xff]
        %v2121 = vld [vmem:[%s2092 + $0xe0] sm:$0xff]
        %v2122 = vld [vmem:[%s2092 + $0xe8] sm:$0xff]
        %v2123 = vld [vmem:[%s2092 + $0xf0] sm:$0xff]
        %v2124 = vld [vmem:[%s2092 + $0xf8] sm:$0xff]
        %v2126 = vlaneseq
        %v2127 = vshrl.u32 %v2126, 7
        %v2128 = vsub.s32 0, %v2127
        %v2129 = vrot.slane %v1363, %v2128
        %v2131 = vmul.f32 %v2093, %v2129
        %v2132 = vmul.f32 %v2094, %v2129
        %v2133 = vmul.f32 %v2095, %v2129
        %v2134 = vmul.f32 %v2096, %v2129
        %v2135 = vmul.f32 %v2097, %v2129
        %v2136 = vmul.f32 %v2098, %v2129
        %v2137 = vmul.f32 %v2099, %v2129
        %v2138 = vmul.f32 %v2100, %v2129
        %v2139 = vmul.f32 %v2101, %v2129
        %v2140 = vmul.f32 %v2102, %v2129
        %v2141 = vmul.f32 %v2103, %v2129
        %v2142 = vmul.f32 %v2104, %v2129
        %v2143 = vmul.f32 %v2105, %v2129
        %v2144 = vmul.f32 %v2106, %v2129
        %v2145 = vmul.f32 %v2107, %v2129
        %v2146 = vmul.f32 %v2108, %v2129
        %v2147 = vmul.f32 %v2109, %v2129
        %v2148 = vmul.f32 %v2110, %v2129
        %v2149 = vmul.f32 %v2111, %v2129
        %v2150 = vmul.f32 %v2112, %v2129
        %v2151 = vmul.f32 %v2113, %v2129
        %v2152 = vmul.f32 %v2114, %v2129
        %v2153 = vmul.f32 %v2115, %v2129
        %v2154 = vmul.f32 %v2116, %v2129
        %v2155 = vmul.f32 %v2117, %v2129
        %v2156 = vmul.f32 %v2118, %v2129
        %v2157 = vmul.f32 %v2119, %v2129
        %v2158 = vmul.f32 %v2120, %v2129
        %v2159 = vmul.f32 %v2121, %v2129
        %v2160 = vmul.f32 %v2122, %v2129
        %v2161 = vmul.f32 %v2123, %v2129
        %v2162 = vmul.f32 %v2124, %v2129
        %v2163 = vadd.f32 %v2060, %v2131
        %v2164 = vadd.f32 %v2061, %v2132
        %v2165 = vadd.f32 %v2062, %v2133
        %v2166 = vadd.f32 %v2063, %v2134
        %v2167 = vadd.f32 %v2064, %v2135
        %v2168 = vadd.f32 %v2065, %v2136
        %v2169 = vadd.f32 %v2066, %v2137
        %v2170 = vadd.f32 %v2067, %v2138
        %v2171 = vadd.f32 %v2068, %v2139
        %v2172 = vadd.f32 %v2069, %v2140
        %v2173 = vadd.f32 %v2070, %v2141
        %v2174 = vadd.f32 %v2071, %v2142
        %v2175 = vadd.f32 %v2072, %v2143
        %v2176 = vadd.f32 %v2073, %v2144
        %v2177 = vadd.f32 %v2074, %v2145
        %v2178 = vadd.f32 %v2075, %v2146
        %v2179 = vadd.f32 %v2076, %v2147
        %v2180 = vadd.f32 %v2077, %v2148
        %v2181 = vadd.f32 %v2078, %v2149
        %v2182 = vadd.f32 %v2079, %v2150
        %v2183 = vadd.f32 %v2080, %v2151
        %v2184 = vadd.f32 %v2081, %v2152
        %v2185 = vadd.f32 %v2082, %v2153
        %v2186 = vadd.f32 %v2083, %v2154
        %v2187 = vadd.f32 %v2084, %v2155
        %v2188 = vadd.f32 %v2085, %v2156
        %v2189 = vadd.f32 %v2086, %v2157
        %v2190 = vadd.f32 %v2087, %v2158
        %v2191 = vadd.f32 %v2088, %v2159
        %v2192 = vadd.f32 %v2089, %v2160
        %v2193 = vadd.f32 %v2090, %v2161
        %v2194 = vadd.f32 %v2091, %v2162
        %s2195 = scalar_lea.vmem %s1328, 2048 [#allocation2]
        %v2196 = vld [vmem:[%s2195] sm:$0xff]
        %v2197 = vld [vmem:[%s2195 + $0x8] sm:$0xff]
        %v2198 = vld [vmem:[%s2195 + $0x10] sm:$0xff]
        %v2199 = vld [vmem:[%s2195 + $0x18] sm:$0xff]
        %v2200 = vld [vmem:[%s2195 + $0x20] sm:$0xff]
        %v2201 = vld [vmem:[%s2195 + $0x28] sm:$0xff]
        %v2202 = vld [vmem:[%s2195 + $0x30] sm:$0xff]
        %v2203 = vld [vmem:[%s2195 + $0x38] sm:$0xff]
        %v2204 = vld [vmem:[%s2195 + $0x40] sm:$0xff]
        %v2205 = vld [vmem:[%s2195 + $0x48] sm:$0xff]
        %v2206 = vld [vmem:[%s2195 + $0x50] sm:$0xff]
        %v2207 = vld [vmem:[%s2195 + $0x58] sm:$0xff]
        %v2208 = vld [vmem:[%s2195 + $0x60] sm:$0xff]
        %v2209 = vld [vmem:[%s2195 + $0x68] sm:$0xff]
        %v2210 = vld [vmem:[%s2195 + $0x70] sm:$0xff]
        %v2211 = vld [vmem:[%s2195 + $0x78] sm:$0xff]
        %v2212 = vld [vmem:[%s2195 + $0x80] sm:$0xff]
        %v2213 = vld [vmem:[%s2195 + $0x88] sm:$0xff]
        %v2214 = vld [vmem:[%s2195 + $0x90] sm:$0xff]
        %v2215 = vld [vmem:[%s2195 + $0x98] sm:$0xff]
        %v2216 = vld [vmem:[%s2195 + $0xa0] sm:$0xff]
        %v2217 = vld [vmem:[%s2195 + $0xa8] sm:$0xff]
        %v2218 = vld [vmem:[%s2195 + $0xb0] sm:$0xff]
        %v2219 = vld [vmem:[%s2195 + $0xb8] sm:$0xff]
        %v2220 = vld [vmem:[%s2195 + $0xc0] sm:$0xff]
        %v2221 = vld [vmem:[%s2195 + $0xc8] sm:$0xff]
        %v2222 = vld [vmem:[%s2195 + $0xd0] sm:$0xff]
        %v2223 = vld [vmem:[%s2195 + $0xd8] sm:$0xff]
        %v2224 = vld [vmem:[%s2195 + $0xe0] sm:$0xff]
        %v2225 = vld [vmem:[%s2195 + $0xe8] sm:$0xff]
        %v2226 = vld [vmem:[%s2195 + $0xf0] sm:$0xff]
        %v2227 = vld [vmem:[%s2195 + $0xf8] sm:$0xff]
        %v2229 = vlaneseq
        %v2230 = vshrl.u32 %v2229, 7
        %v2231 = vsub.s32 0, %v2230
        %v2232 = vrot.slane %v1364, %v2231
        %v2234 = vmul.f32 %v2196, %v2232
        %v2235 = vmul.f32 %v2197, %v2232
        %v2236 = vmul.f32 %v2198, %v2232
        %v2237 = vmul.f32 %v2199, %v2232
        %v2238 = vmul.f32 %v2200, %v2232
        %v2239 = vmul.f32 %v2201, %v2232
        %v2240 = vmul.f32 %v2202, %v2232
        %v2241 = vmul.f32 %v2203, %v2232
        %v2242 = vmul.f32 %v2204, %v2232
        %v2243 = vmul.f32 %v2205, %v2232
        %v2244 = vmul.f32 %v2206, %v2232
        %v2245 = vmul.f32 %v2207, %v2232
        %v2246 = vmul.f32 %v2208, %v2232
        %v2247 = vmul.f32 %v2209, %v2232
        %v2248 = vmul.f32 %v2210, %v2232
        %v2249 = vmul.f32 %v2211, %v2232
        %v2250 = vmul.f32 %v2212, %v2232
        %v2251 = vmul.f32 %v2213, %v2232
        %v2252 = vmul.f32 %v2214, %v2232
        %v2253 = vmul.f32 %v2215, %v2232
        %v2254 = vmul.f32 %v2216, %v2232
        %v2255 = vmul.f32 %v2217, %v2232
        %v2256 = vmul.f32 %v2218, %v2232
        %v2257 = vmul.f32 %v2219, %v2232
        %v2258 = vmul.f32 %v2220, %v2232
        %v2259 = vmul.f32 %v2221, %v2232
        %v2260 = vmul.f32 %v2222, %v2232
        %v2261 = vmul.f32 %v2223, %v2232
        %v2262 = vmul.f32 %v2224, %v2232
        %v2263 = vmul.f32 %v2225, %v2232
        %v2264 = vmul.f32 %v2226, %v2232
        %v2265 = vmul.f32 %v2227, %v2232
        %v2266 = vadd.f32 %v2163, %v2234
        %v2267 = vadd.f32 %v2164, %v2235
        %v2268 = vadd.f32 %v2165, %v2236
        %v2269 = vadd.f32 %v2166, %v2237
        %v2270 = vadd.f32 %v2167, %v2238
        %v2271 = vadd.f32 %v2168, %v2239
        %v2272 = vadd.f32 %v2169, %v2240
        %v2273 = vadd.f32 %v2170, %v2241
        %v2274 = vadd.f32 %v2171, %v2242
        %v2275 = vadd.f32 %v2172, %v2243
        %v2276 = vadd.f32 %v2173, %v2244
        %v2277 = vadd.f32 %v2174, %v2245
        %v2278 = vadd.f32 %v2175, %v2246
        %v2279 = vadd.f32 %v2176, %v2247
        %v2280 = vadd.f32 %v2177, %v2248
        %v2281 = vadd.f32 %v2178, %v2249
        %v2282 = vadd.f32 %v2179, %v2250
        %v2283 = vadd.f32 %v2180, %v2251
        %v2284 = vadd.f32 %v2181, %v2252
        %v2285 = vadd.f32 %v2182, %v2253
        %v2286 = vadd.f32 %v2183, %v2254
        %v2287 = vadd.f32 %v2184, %v2255
        %v2288 = vadd.f32 %v2185, %v2256
        %v2289 = vadd.f32 %v2186, %v2257
        %v2290 = vadd.f32 %v2187, %v2258
        %v2291 = vadd.f32 %v2188, %v2259
        %v2292 = vadd.f32 %v2189, %v2260
        %v2293 = vadd.f32 %v2190, %v2261
        %v2294 = vadd.f32 %v2191, %v2262
        %v2295 = vadd.f32 %v2192, %v2263
        %v2296 = vadd.f32 %v2193, %v2264
        %v2297 = vadd.f32 %v2194, %v2265
        %vm2298 = vcmask 195584
        %2299 = vst.msk [vmem:[%s1354] sm:$0xff] %vm2298, %v2266
        %2300 = vst.msk [vmem:[%s1354 + $0x8] sm:$0xff] %vm2298, %v2267
        %2301 = vst.msk [vmem:[%s1354 + $0x10] sm:$0xff] %vm2298, %v2268
        %2302 = vst.msk [vmem:[%s1354 + $0x18] sm:$0xff] %vm2298, %v2269
        %2303 = vst.msk [vmem:[%s1354 + $0x20] sm:$0xff] %vm2298, %v2270
        %2304 = vst.msk [vmem:[%s1354 + $0x28] sm:$0xff] %vm2298, %v2271
        %2305 = vst.msk [vmem:[%s1354 + $0x30] sm:$0xff] %vm2298, %v2272
        %2306 = vst.msk [vmem:[%s1354 + $0x38] sm:$0xff] %vm2298, %v2273
        %2307 = vst.msk [vmem:[%s1354 + $0x40] sm:$0xff] %vm2298, %v2274
        %2308 = vst.msk [vmem:[%s1354 + $0x48] sm:$0xff] %vm2298, %v2275
        %2309 = vst.msk [vmem:[%s1354 + $0x50] sm:$0xff] %vm2298, %v2276
        %2310 = vst.msk [vmem:[%s1354 + $0x58] sm:$0xff] %vm2298, %v2277
        %2311 = vst.msk [vmem:[%s1354 + $0x60] sm:$0xff] %vm2298, %v2278
        %2312 = vst.msk [vmem:[%s1354 + $0x68] sm:$0xff] %vm2298, %v2279
        %2313 = vst.msk [vmem:[%s1354 + $0x70] sm:$0xff] %vm2298, %v2280
        %2314 = vst.msk [vmem:[%s1354 + $0x78] sm:$0xff] %vm2298, %v2281
        %2315 = vst.msk [vmem:[%s1354 + $0x80] sm:$0xff] %vm2298, %v2282
        %2316 = vst.msk [vmem:[%s1354 + $0x88] sm:$0xff] %vm2298, %v2283
        %2317 = vst.msk [vmem:[%s1354 + $0x90] sm:$0xff] %vm2298, %v2284
        %2318 = vst.msk [vmem:[%s1354 + $0x98] sm:$0xff] %vm2298, %v2285
        %2319 = vst.msk [vmem:[%s1354 + $0xa0] sm:$0xff] %vm2298, %v2286
        %2320 = vst.msk [vmem:[%s1354 + $0xa8] sm:$0xff] %vm2298, %v2287
        %2321 = vst.msk [vmem:[%s1354 + $0xb0] sm:$0xff] %vm2298, %v2288
        %2322 = vst.msk [vmem:[%s1354 + $0xb8] sm:$0xff] %vm2298, %v2289
        %2323 = vst.msk [vmem:[%s1354 + $0xc0] sm:$0xff] %vm2298, %v2290
        %2324 = vst.msk [vmem:[%s1354 + $0xc8] sm:$0xff] %vm2298, %v2291
        %2325 = vst.msk [vmem:[%s1354 + $0xd0] sm:$0xff] %vm2298, %v2292
        %2326 = vst.msk [vmem:[%s1354 + $0xd8] sm:$0xff] %vm2298, %v2293
        %2327 = vst.msk [vmem:[%s1354 + $0xe0] sm:$0xff] %vm2298, %v2294
        %2328 = vst.msk [vmem:[%s1354 + $0xe8] sm:$0xff] %vm2298, %v2295
        %2329 = vst.msk [vmem:[%s1354 + $0xf0] sm:$0xff] %vm2298, %v2296
        %2330 = vst.msk [vmem:[%s1354 + $0xf8] sm:$0xff] %vm2298, %v2297
        %s2331 = smul.u32 32, %s14
        %p2332 = scmp.lt.s32.totalorder %s2331, 63
        %s2333 = scalar_select %p2332, %s2331, 63
        %s2334 = smul.addr %s2333, 8
        %s2335 = scalar_lea.vmem %s3, %s2334
        // Predicated region
        $region71: #{_lambda_.22} parent=65 // pred_check
          %p2336 = pneg %p100
        $region72: #{_lambda_.22} parent=65 // pred_check_branch
          %2338 = sbr.rel (%p2336) target = $region74
        $region73: #{_lambda_.22} parent=65 // pred_region
          %s2339 = smul.u32 32, %s14
        $region74: #{_lambda_.22} parent=65 // pred_fallthru
          _
      $region66: #{_lambda_.22} parent=5 // pred_fallthru
        _
      %p2340 = scmp.le.s32.totalorder 2, %s9
      // Predicated region
      $region75: #{_lambda_.22} parent=5 // pred_check
        %p2341 = pneg %p2340
      $region76: #{_lambda_.22} parent=5 // pred_check_branch
        %2343 = sbr.rel (%p2341) target = $region78
      $region77: #{_lambda_.22} parent=5 // pred_region
        %s2344 = ssub.s32 %s9, 2
        // Predicated region
        $region79: #{_lambda_.22} parent=77 // pred_check
          %p2345 = pneg %p106
        $region80: #{_lambda_.22} parent=77 // pred_check_branch
          %2347 = sbr.rel (%p2345) target = $region82
        $region81: #{_lambda_.22} parent=77 // pred_region
          %s2348 = smul.u32 32, %s15
          %p2349 = scmp.lt.s32.totalorder %s2348, 63
          %s2350 = scalar_select %p2349, %s2348, 63
          %s2351 = smul.addr %s2350, 8
          %s2352 = scalar_lea.vmem %s3, %s2351
        $region82: #{_lambda_.22} parent=77 // pred_fallthru
          _
      $region78: #{_lambda_.22} parent=5 // pred_fallthru
        _
    $region6: #{_lambda_.22} parent=1 // loop_footer
      %s13 = sadd.s32 1, %s9
    $region7: #{_lambda_.22} parent=1 // loop_footer_branch
      %8 = sbr.rel target = $region3
    $region8: #{_lambda_.22} parent=1 // loop_exit
      _

// kernel: _lambda_.25
$region0: #{_lambda_.25}
  #allocation0 [shape = 'u32[]', space=smem, size = 0x4, offset = 0x4, fixed_abs, tag = 'smem constant byte address 0x4 - core index']
  #allocation1 [shape = 'u32[144,128]{1,0:T(1,128)}', space=vmem, size = 0x12000, scoped, tag = 'internal scratch']
  %s0 = inlined_call_operand.vmem [shape: f32[128,48], index: 0, kind: input, shape index: {}]
  %s1 = inlined_call_operand.vmem [shape: f32[1,48], index: 1, kind: input, shape index: {}]
  %s2 = inlined_call_operand.vmem [shape: f32[1,48], index: 2, kind: input, shape index: {}]
  %s3 = inlined_call_operand.vmem [shape: f32[128,48], index: 3, kind: output, shape index: {}]
  %s4 = sld [smem:[#allocation0]]
  $region22: #{_lambda_.25} parent=0
    _
  %s6 = ssub.s32 1, %s4
  %s7 = scalar_select 0, %s6, %s4
  // Predicated region
  $region2: #{_lambda_.25} parent=0 // pred_check
    _
  $region3: #{_lambda_.25} parent=0 // pred_check_branch
    %9 = sbr.rel (0) target = $region5
  $region4: #{_lambda_.25} parent=0 // pred_region
    _
  $region5: #{_lambda_.25} parent=0 // pred_fallthru
    _
  // Predicated region
  $region6: #{_lambda_.25} parent=0 // pred_check
    _
  $region7: #{_lambda_.25} parent=0 // pred_check_branch
    %11 = sbr.rel (0) target = $region9
  $region8: #{_lambda_.25} parent=0 // pred_region
    _
  $region9: #{_lambda_.25} parent=0 // pred_fallthru
    _
  // Predicated region
  $region10: #{_lambda_.25} parent=0 // pred_check
    _
  $region11: #{_lambda_.25} parent=0 // pred_check_branch
    %13 = sbr.rel (0) target = $region13
  $region12: #{_lambda_.25} parent=0 // pred_region
    _
  $region13: #{_lambda_.25} parent=0 // pred_fallthru
    _
  %v14 = vld [vmem:[%s0] sm:$0xff]
  %v15 = vld [vmem:[%s0 + $0x8] sm:$0xff]
  %v16 = vld [vmem:[%s0 + $0x10] sm:$0xff]
  %v17 = vld [vmem:[%s0 + $0x18] sm:$0xff]
  %v18 = vld [vmem:[%s0 + $0x20] sm:$0xff]
  %v19 = vld [vmem:[%s0 + $0x28] sm:$0xff]
  %v20 = vld [vmem:[%s0 + $0x30] sm:$0xff]
  %v21 = vld [vmem:[%s0 + $0x38] sm:$0xff]
  %v22 = vld [vmem:[%s0 + $0x40] sm:$0xff]
  %v23 = vld [vmem:[%s0 + $0x48] sm:$0xff]
  %v24 = vld [vmem:[%s0 + $0x50] sm:$0xff]
  %v25 = vld [vmem:[%s0 + $0x58] sm:$0xff]
  %v26 = vld [vmem:[%s0 + $0x60] sm:$0xff]
  %v27 = vld [vmem:[%s0 + $0x68] sm:$0xff]
  %v28 = vld [vmem:[%s0 + $0x70] sm:$0xff]
  %v29 = vld [vmem:[%s0 + $0x78] sm:$0xff]
  %v30 = vld [vmem:[%s1] sm:$0x1]
  %v32 = vlaneseq
  %v33 = vshrl.u32 %v32, 7
  %v34 = vsub.s32 0, %v33
  %v35 = vrot.slane %v30, %v34
  %v37 = vmul.f32 %v14, %v35
  %v38 = vmul.f32 %v15, %v35
  %v39 = vmul.f32 %v16, %v35
  %v40 = vmul.f32 %v17, %v35
  %v41 = vmul.f32 %v18, %v35
  %v42 = vmul.f32 %v19, %v35
  %v43 = vmul.f32 %v20, %v35
  %v44 = vmul.f32 %v21, %v35
  %v45 = vmul.f32 %v22, %v35
  %v46 = vmul.f32 %v23, %v35
  %v47 = vmul.f32 %v24, %v35
  %v48 = vmul.f32 %v25, %v35
  %v49 = vmul.f32 %v26, %v35
  %v50 = vmul.f32 %v27, %v35
  %v51 = vmul.f32 %v28, %v35
  %v52 = vmul.f32 %v29, %v35
  %v53 = vld [vmem:[%s2] sm:$0x1]
  %v55 = vlaneseq
  %v56 = vshrl.u32 %v55, 7
  %v57 = vsub.s32 0, %v56
  %v58 = vrot.slane %v53, %v57
  %v60 = vadd.f32 %v37, %v58
  %v61 = vadd.f32 %v38, %v58
  %v62 = vadd.f32 %v39, %v58
  %v63 = vadd.f32 %v40, %v58
  %v64 = vadd.f32 %v41, %v58
  %v65 = vadd.f32 %v42, %v58
  %v66 = vadd.f32 %v43, %v58
  %v67 = vadd.f32 %v44, %v58
  %v68 = vadd.f32 %v45, %v58
  %v69 = vadd.f32 %v46, %v58
  %v70 = vadd.f32 %v47, %v58
  %v71 = vadd.f32 %v48, %v58
  %v72 = vadd.f32 %v49, %v58
  %v73 = vadd.f32 %v50, %v58
  %v74 = vadd.f32 %v51, %v58
  %v75 = vadd.f32 %v52, %v58
  %vm76 = vcmask 392192
  %77 = vst.msk [vmem:[%s3] sm:$0xff] %vm76, %v60
  %78 = vst.msk [vmem:[%s3 + $0x8] sm:$0xff] %vm76, %v61
  %79 = vst.msk [vmem:[%s3 + $0x10] sm:$0xff] %vm76, %v62
  %80 = vst.msk [vmem:[%s3 + $0x18] sm:$0xff] %vm76, %v63
  %81 = vst.msk [vmem:[%s3 + $0x20] sm:$0xff] %vm76, %v64
  %82 = vst.msk [vmem:[%s3 + $0x28] sm:$0xff] %vm76, %v65
  %83 = vst.msk [vmem:[%s3 + $0x30] sm:$0xff] %vm76, %v66
  %84 = vst.msk [vmem:[%s3 + $0x38] sm:$0xff] %vm76, %v67
  %85 = vst.msk [vmem:[%s3 + $0x40] sm:$0xff] %vm76, %v68
  %86 = vst.msk [vmem:[%s3 + $0x48] sm:$0xff] %vm76, %v69
  %87 = vst.msk [vmem:[%s3 + $0x50] sm:$0xff] %vm76, %v70
  %88 = vst.msk [vmem:[%s3 + $0x58] sm:$0xff] %vm76, %v71
  %89 = vst.msk [vmem:[%s3 + $0x60] sm:$0xff] %vm76, %v72
  %90 = vst.msk [vmem:[%s3 + $0x68] sm:$0xff] %vm76, %v73
  %91 = vst.msk [vmem:[%s3 + $0x70] sm:$0xff] %vm76, %v74
  %92 = vst.msk [vmem:[%s3 + $0x78] sm:$0xff] %vm76, %v75
  // Predicated region
  $region14: #{_lambda_.25} parent=0 // pred_check
    _
  $region15: #{_lambda_.25} parent=0 // pred_check_branch
    %94 = sbr.rel (0) target = $region17
  $region16: #{_lambda_.25} parent=0 // pred_region
    _
  $region17: #{_lambda_.25} parent=0 // pred_fallthru
    _
  // Predicated region
  $region18: #{_lambda_.25} parent=0 // pred_check
    _
  $region19: #{_lambda_.25} parent=0 // pred_check_branch
    %96 = sbr.rel (0) target = $region21
  $region20: #{_lambda_.25} parent=0 // pred_region
    _
  $region21: #{_lambda_.25} parent=0 // pred_fallthru
    _

// kernel: _lambda_.24
$region0: #{_lambda_.24}
  #allocation0 [shape = 'u32[]', space=smem, size = 0x4, offset = 0x4, fixed_abs, tag = 'smem constant byte address 0x4 - core index']
  #allocation1 [shape = 'u32[144,128]{1,0:T(1,128)}', space=vmem, size = 0x12000, scoped, tag = 'internal scratch']
  %s0 = inlined_call_operand.vmem [shape: f32[9,128,48], index: 0, kind: input, shape index: {}]
  %s1 = inlined_call_operand.vmem [shape: f32[9,1,48], index: 1, kind: input, shape index: {}]
  %s2 = inlined_call_operand.vmem [shape: f32[1,48], index: 2, kind: input, shape index: {}]
  %s3 = inlined_call_operand.vmem [shape: f32[128,48], index: 3, kind: output, shape index: {}]
  %s4 = sld [smem:[#allocation0]]
  $region22: #{_lambda_.24} parent=0
    _
  %s6 = ssub.s32 1, %s4
  %s7 = scalar_select 0, %s6, %s4
  // Predicated region
  $region2: #{_lambda_.24} parent=0 // pred_check
    _
  $region3: #{_lambda_.24} parent=0 // pred_check_branch
    %9 = sbr.rel (0) target = $region5
  $region4: #{_lambda_.24} parent=0 // pred_region
    _
  $region5: #{_lambda_.24} parent=0 // pred_fallthru
    _
  // Predicated region
  $region6: #{_lambda_.24} parent=0 // pred_check
    _
  $region7: #{_lambda_.24} parent=0 // pred_check_branch
    %11 = sbr.rel (0) target = $region9
  $region8: #{_lambda_.24} parent=0 // pred_region
    _
  $region9: #{_lambda_.24} parent=0 // pred_fallthru
    _
  // Predicated region
  $region10: #{_lambda_.24} parent=0 // pred_check
    _
  $region11: #{_lambda_.24} parent=0 // pred_check_branch
    %13 = sbr.rel (0) target = $region13
  $region12: #{_lambda_.24} parent=0 // pred_region
    _
  $region13: #{_lambda_.24} parent=0 // pred_fallthru
    _
  %v14 = vld [vmem:[%s1] sm:$0x1]
  %v15 = vld [vmem:[%s1 + $0x1] sm:$0x1]
  %v16 = vld [vmem:[%s1 + $0x2] sm:$0x1]
  %v17 = vld [vmem:[%s1 + $0x3] sm:$0x1]
  %v18 = vld [vmem:[%s1 + $0x4] sm:$0x1]
  %v19 = vld [vmem:[%s1 + $0x5] sm:$0x1]
  %v20 = vld [vmem:[%s1 + $0x6] sm:$0x1]
  %v21 = vld [vmem:[%s1 + $0x7] sm:$0x1]
  %v22 = vld [vmem:[%s1 + $0x8] sm:$0x1]
  %v23 = vld [vmem:[%s2] sm:$0x1]
  %v24 = vld [vmem:[%s0] sm:$0xff]
  %v25 = vld [vmem:[%s0 + $0x8] sm:$0xff]
  %v26 = vld [vmem:[%s0 + $0x10] sm:$0xff]
  %v27 = vld [vmem:[%s0 + $0x18] sm:$0xff]
  %v28 = vld [vmem:[%s0 + $0x20] sm:$0xff]
  %v29 = vld [vmem:[%s0 + $0x28] sm:$0xff]
  %v30 = vld [vmem:[%s0 + $0x30] sm:$0xff]
  %v31 = vld [vmem:[%s0 + $0x38] sm:$0xff]
  %v32 = vld [vmem:[%s0 + $0x40] sm:$0xff]
  %v33 = vld [vmem:[%s0 + $0x48] sm:$0xff]
  %v34 = vld [vmem:[%s0 + $0x50] sm:$0xff]
  %v35 = vld [vmem:[%s0 + $0x58] sm:$0xff]
  %v36 = vld [vmem:[%s0 + $0x60] sm:$0xff]
  %v37 = vld [vmem:[%s0 + $0x68] sm:$0xff]
  %v38 = vld [vmem:[%s0 + $0x70] sm:$0xff]
  %v39 = vld [vmem:[%s0 + $0x78] sm:$0xff]
  %v41 = vlaneseq
  %v42 = vshrl.u32 %v41, 7
  %v43 = vsub.s32 0, %v42
  %v44 = vrot.slane %v14, %v43
  %v46 = vmul.f32 %v24, %v44
  %v47 = vmul.f32 %v25, %v44
  %v48 = vmul.f32 %v26, %v44
  %v49 = vmul.f32 %v27, %v44
  %v50 = vmul.f32 %v28, %v44
  %v51 = vmul.f32 %v29, %v44
  %v52 = vmul.f32 %v30, %v44
  %v53 = vmul.f32 %v31, %v44
  %v54 = vmul.f32 %v32, %v44
  %v55 = vmul.f32 %v33, %v44
  %v56 = vmul.f32 %v34, %v44
  %v57 = vmul.f32 %v35, %v44
  %v58 = vmul.f32 %v36, %v44
  %v59 = vmul.f32 %v37, %v44
  %v60 = vmul.f32 %v38, %v44
  %v61 = vmul.f32 %v39, %v44
  %v63 = vlaneseq
  %v64 = vshrl.u32 %v63, 7
  %v65 = vsub.s32 0, %v64
  %v66 = vrot.slane %v23, %v65
  %v68 = vadd.f32 %v46, %v66
  %v69 = vadd.f32 %v47, %v66
  %v70 = vadd.f32 %v48, %v66
  %v71 = vadd.f32 %v49, %v66
  %v72 = vadd.f32 %v50, %v66
  %v73 = vadd.f32 %v51, %v66
  %v74 = vadd.f32 %v52, %v66
  %v75 = vadd.f32 %v53, %v66
  %v76 = vadd.f32 %v54, %v66
  %v77 = vadd.f32 %v55, %v66
  %v78 = vadd.f32 %v56, %v66
  %v79 = vadd.f32 %v57, %v66
  %v80 = vadd.f32 %v58, %v66
  %v81 = vadd.f32 %v59, %v66
  %v82 = vadd.f32 %v60, %v66
  %v83 = vadd.f32 %v61, %v66
  %s84 = scalar_lea.vmem %s0, 128
  %v85 = vld [vmem:[%s84] sm:$0xff]
  %v86 = vld [vmem:[%s84 + $0x8] sm:$0xff]
  %v87 = vld [vmem:[%s84 + $0x10] sm:$0xff]
  %v88 = vld [vmem:[%s84 + $0x18] sm:$0xff]
  %v89 = vld [vmem:[%s84 + $0x20] sm:$0xff]
  %v90 = vld [vmem:[%s84 + $0x28] sm:$0xff]
  %v91 = vld [vmem:[%s84 + $0x30] sm:$0xff]
  %v92 = vld [vmem:[%s84 + $0x38] sm:$0xff]
  %v93 = vld [vmem:[%s84 + $0x40] sm:$0xff]
  %v94 = vld [vmem:[%s84 + $0x48] sm:$0xff]
  %v95 = vld [vmem:[%s84 + $0x50] sm:$0xff]
  %v96 = vld [vmem:[%s84 + $0x58] sm:$0xff]
  %v97 = vld [vmem:[%s84 + $0x60] sm:$0xff]
  %v98 = vld [vmem:[%s84 + $0x68] sm:$0xff]
  %v99 = vld [vmem:[%s84 + $0x70] sm:$0xff]
  %v100 = vld [vmem:[%s84 + $0x78] sm:$0xff]
  %v102 = vlaneseq
  %v103 = vshrl.u32 %v102, 7
  %v104 = vsub.s32 0, %v103
  %v105 = vrot.slane %v15, %v104
  %v107 = vmul.f32 %v85, %v105
  %v108 = vmul.f32 %v86, %v105
  %v109 = vmul.f32 %v87, %v105
  %v110 = vmul.f32 %v88, %v105
  %v111 = vmul.f32 %v89, %v105
  %v112 = vmul.f32 %v90, %v105
  %v113 = vmul.f32 %v91, %v105
  %v114 = vmul.f32 %v92, %v105
  %v115 = vmul.f32 %v93, %v105
  %v116 = vmul.f32 %v94, %v105
  %v117 = vmul.f32 %v95, %v105
  %v118 = vmul.f32 %v96, %v105
  %v119 = vmul.f32 %v97, %v105
  %v120 = vmul.f32 %v98, %v105
  %v121 = vmul.f32 %v99, %v105
  %v122 = vmul.f32 %v100, %v105
  %v123 = vadd.f32 %v68, %v107
  %v124 = vadd.f32 %v69, %v108
  %v125 = vadd.f32 %v70, %v109
  %v126 = vadd.f32 %v71, %v110
  %v127 = vadd.f32 %v72, %v111
  %v128 = vadd.f32 %v73, %v112
  %v129 = vadd.f32 %v74, %v113
  %v130 = vadd.f32 %v75, %v114
  %v131 = vadd.f32 %v76, %v115
  %v132 = vadd.f32 %v77, %v116
  %v133 = vadd.f32 %v78, %v117
  %v134 = vadd.f32 %v79, %v118
  %v135 = vadd.f32 %v80, %v119
  %v136 = vadd.f32 %v81, %v120
  %v137 = vadd.f32 %v82, %v121
  %v138 = vadd.f32 %v83, %v122
  %s139 = scalar_lea.vmem %s0, 256
  %v140 = vld [vmem:[%s139] sm:$0xff]
  %v141 = vld [vmem:[%s139 + $0x8] sm:$0xff]
  %v142 = vld [vmem:[%s139 + $0x10] sm:$0xff]
  %v143 = vld [vmem:[%s139 + $0x18] sm:$0xff]
  %v144 = vld [vmem:[%s139 + $0x20] sm:$0xff]
  %v145 = vld [vmem:[%s139 + $0x28] sm:$0xff]
  %v146 = vld [vmem:[%s139 + $0x30] sm:$0xff]
  %v147 = vld [vmem:[%s139 + $0x38] sm:$0xff]
  %v148 = vld [vmem:[%s139 + $0x40] sm:$0xff]
  %v149 = vld [vmem:[%s139 + $0x48] sm:$0xff]
  %v150 = vld [vmem:[%s139 + $0x50] sm:$0xff]
  %v151 = vld [vmem:[%s139 + $0x58] sm:$0xff]
  %v152 = vld [vmem:[%s139 + $0x60] sm:$0xff]
  %v153 = vld [vmem:[%s139 + $0x68] sm:$0xff]
  %v154 = vld [vmem:[%s139 + $0x70] sm:$0xff]
  %v155 = vld [vmem:[%s139 + $0x78] sm:$0xff]
  %v157 = vlaneseq
  %v158 = vshrl.u32 %v157, 7
  %v159 = vsub.s32 0, %v158
  %v160 = vrot.slane %v16, %v159
  %v162 = vmul.f32 %v140, %v160
  %v163 = vmul.f32 %v141, %v160
  %v164 = vmul.f32 %v142, %v160
  %v165 = vmul.f32 %v143, %v160
  %v166 = vmul.f32 %v144, %v160
  %v167 = vmul.f32 %v145, %v160
  %v168 = vmul.f32 %v146, %v160
  %v169 = vmul.f32 %v147, %v160
  %v170 = vmul.f32 %v148, %v160
  %v171 = vmul.f32 %v149, %v160
  %v172 = vmul.f32 %v150, %v160
  %v173 = vmul.f32 %v151, %v160
  %v174 = vmul.f32 %v152, %v160
  %v175 = vmul.f32 %v153, %v160
  %v176 = vmul.f32 %v154, %v160
  %v177 = vmul.f32 %v155, %v160
  %v178 = vadd.f32 %v123, %v162
  %v179 = vadd.f32 %v124, %v163
  %v180 = vadd.f32 %v125, %v164
  %v181 = vadd.f32 %v126, %v165
  %v182 = vadd.f32 %v127, %v166
  %v183 = vadd.f32 %v128, %v167
  %v184 = vadd.f32 %v129, %v168
  %v185 = vadd.f32 %v130, %v169
  %v186 = vadd.f32 %v131, %v170
  %v187 = vadd.f32 %v132, %v171
  %v188 = vadd.f32 %v133, %v172
  %v189 = vadd.f32 %v134, %v173
  %v190 = vadd.f32 %v135, %v174
  %v191 = vadd.f32 %v136, %v175
  %v192 = vadd.f32 %v137, %v176
  %v193 = vadd.f32 %v138, %v177
  %s194 = scalar_lea.vmem %s0, 384
  %v195 = vld [vmem:[%s194] sm:$0xff]
  %v196 = vld [vmem:[%s194 + $0x8] sm:$0xff]
  %v197 = vld [vmem:[%s194 + $0x10] sm:$0xff]
  %v198 = vld [vmem:[%s194 + $0x18] sm:$0xff]
  %v199 = vld [vmem:[%s194 + $0x20] sm:$0xff]
  %v200 = vld [vmem:[%s194 + $0x28] sm:$0xff]
  %v201 = vld [vmem:[%s194 + $0x30] sm:$0xff]
  %v202 = vld [vmem:[%s194 + $0x38] sm:$0xff]
  %v203 = vld [vmem:[%s194 + $0x40] sm:$0xff]
  %v204 = vld [vmem:[%s194 + $0x48] sm:$0xff]
  %v205 = vld [vmem:[%s194 + $0x50] sm:$0xff]
  %v206 = vld [vmem:[%s194 + $0x58] sm:$0xff]
  %v207 = vld [vmem:[%s194 + $0x60] sm:$0xff]
  %v208 = vld [vmem:[%s194 + $0x68] sm:$0xff]
  %v209 = vld [vmem:[%s194 + $0x70] sm:$0xff]
  %v210 = vld [vmem:[%s194 + $0x78] sm:$0xff]
  %v212 = vlaneseq
  %v213 = vshrl.u32 %v212, 7
  %v214 = vsub.s32 0, %v213
  %v215 = vrot.slane %v17, %v214
  %v217 = vmul.f32 %v195, %v215
  %v218 = vmul.f32 %v196, %v215
  %v219 = vmul.f32 %v197, %v215
  %v220 = vmul.f32 %v198, %v215
  %v221 = vmul.f32 %v199, %v215
  %v222 = vmul.f32 %v200, %v215
  %v223 = vmul.f32 %v201, %v215
  %v224 = vmul.f32 %v202, %v215
  %v225 = vmul.f32 %v203, %v215
  %v226 = vmul.f32 %v204, %v215
  %v227 = vmul.f32 %v205, %v215
  %v228 = vmul.f32 %v206, %v215
  %v229 = vmul.f32 %v207, %v215
  %v230 = vmul.f32 %v208, %v215
  %v231 = vmul.f32 %v209, %v215
  %v232 = vmul.f32 %v210, %v215
  %v233 = vadd.f32 %v178, %v217
  %v234 = vadd.f32 %v179, %v218
  %v235 = vadd.f32 %v180, %v219
  %v236 = vadd.f32 %v181, %v220
  %v237 = vadd.f32 %v182, %v221
  %v238 = vadd.f32 %v183, %v222
  %v239 = vadd.f32 %v184, %v223
  %v240 = vadd.f32 %v185, %v224
  %v241 = vadd.f32 %v186, %v225
  %v242 = vadd.f32 %v187, %v226
  %v243 = vadd.f32 %v188, %v227
  %v244 = vadd.f32 %v189, %v228
  %v245 = vadd.f32 %v190, %v229
  %v246 = vadd.f32 %v191, %v230
  %v247 = vadd.f32 %v192, %v231
  %v248 = vadd.f32 %v193, %v232
  %s249 = scalar_lea.vmem %s0, 512
  %v250 = vld [vmem:[%s249] sm:$0xff]
  %v251 = vld [vmem:[%s249 + $0x8] sm:$0xff]
  %v252 = vld [vmem:[%s249 + $0x10] sm:$0xff]
  %v253 = vld [vmem:[%s249 + $0x18] sm:$0xff]
  %v254 = vld [vmem:[%s249 + $0x20] sm:$0xff]
  %v255 = vld [vmem:[%s249 + $0x28] sm:$0xff]
  %v256 = vld [vmem:[%s249 + $0x30] sm:$0xff]
  %v257 = vld [vmem:[%s249 + $0x38] sm:$0xff]
  %v258 = vld [vmem:[%s249 + $0x40] sm:$0xff]
  %v259 = vld [vmem:[%s249 + $0x48] sm:$0xff]
  %v260 = vld [vmem:[%s249 + $0x50] sm:$0xff]
  %v261 = vld [vmem:[%s249 + $0x58] sm:$0xff]
  %v262 = vld [vmem:[%s249 + $0x60] sm:$0xff]
  %v263 = vld [vmem:[%s249 + $0x68] sm:$0xff]
  %v264 = vld [vmem:[%s249 + $0x70] sm:$0xff]
  %v265 = vld [vmem:[%s249 + $0x78] sm:$0xff]
  %v267 = vlaneseq
  %v268 = vshrl.u32 %v267, 7
  %v269 = vsub.s32 0, %v268
  %v270 = vrot.slane %v18, %v269
  %v272 = vmul.f32 %v250, %v270
  %v273 = vmul.f32 %v251, %v270
  %v274 = vmul.f32 %v252, %v270
  %v275 = vmul.f32 %v253, %v270
  %v276 = vmul.f32 %v254, %v270
  %v277 = vmul.f32 %v255, %v270
  %v278 = vmul.f32 %v256, %v270
  %v279 = vmul.f32 %v257, %v270
  %v280 = vmul.f32 %v258, %v270
  %v281 = vmul.f32 %v259, %v270
  %v282 = vmul.f32 %v260, %v270
  %v283 = vmul.f32 %v261, %v270
  %v284 = vmul.f32 %v262, %v270
  %v285 = vmul.f32 %v263, %v270
  %v286 = vmul.f32 %v264, %v270
  %v287 = vmul.f32 %v265, %v270
  %v288 = vadd.f32 %v233, %v272
  %v289 = vadd.f32 %v234, %v273
  %v290 = vadd.f32 %v235, %v274
  %v291 = vadd.f32 %v236, %v275
  %v292 = vadd.f32 %v237, %v276
  %v293 = vadd.f32 %v238, %v277
  %v294 = vadd.f32 %v239, %v278
  %v295 = vadd.f32 %v240, %v279
  %v296 = vadd.f32 %v241, %v280
  %v297 = vadd.f32 %v242, %v281
  %v298 = vadd.f32 %v243, %v282
  %v299 = vadd.f32 %v244, %v283
  %v300 = vadd.f32 %v245, %v284
  %v301 = vadd.f32 %v246, %v285
  %v302 = vadd.f32 %v247, %v286
  %v303 = vadd.f32 %v248, %v287
  %s304 = scalar_lea.vmem %s0, 640
  %v305 = vld [vmem:[%s304] sm:$0xff]
  %v306 = vld [vmem:[%s304 + $0x8] sm:$0xff]
  %v307 = vld [vmem:[%s304 + $0x10] sm:$0xff]
  %v308 = vld [vmem:[%s304 + $0x18] sm:$0xff]
  %v309 = vld [vmem:[%s304 + $0x20] sm:$0xff]
  %v310 = vld [vmem:[%s304 + $0x28] sm:$0xff]
  %v311 = vld [vmem:[%s304 + $0x30] sm:$0xff]
  %v312 = vld [vmem:[%s304 + $0x38] sm:$0xff]
  %v313 = vld [vmem:[%s304 + $0x40] sm:$0xff]
  %v314 = vld [vmem:[%s304 + $0x48] sm:$0xff]
  %v315 = vld [vmem:[%s304 + $0x50] sm:$0xff]
  %v316 = vld [vmem:[%s304 + $0x58] sm:$0xff]
  %v317 = vld [vmem:[%s304 + $0x60] sm:$0xff]
  %v318 = vld [vmem:[%s304 + $0x68] sm:$0xff]
  %v319 = vld [vmem:[%s304 + $0x70] sm:$0xff]
  %v320 = vld [vmem:[%s304 + $0x78] sm:$0xff]
  %v322 = vlaneseq
  %v323 = vshrl.u32 %v322, 7
  %v324 = vsub.s32 0, %v323
  %v325 = vrot.slane %v19, %v324
  %v327 = vmul.f32 %v305, %v325
  %v328 = vmul.f32 %v306, %v325
  %v329 = vmul.f32 %v307, %v325
  %v330 = vmul.f32 %v308, %v325
  %v331 = vmul.f32 %v309, %v325
  %v332 = vmul.f32 %v310, %v325
  %v333 = vmul.f32 %v311, %v325
  %v334 = vmul.f32 %v312, %v325
  %v335 = vmul.f32 %v313, %v325
  %v336 = vmul.f32 %v314, %v325
  %v337 = vmul.f32 %v315, %v325
  %v338 = vmul.f32 %v316, %v325
  %v339 = vmul.f32 %v317, %v325
  %v340 = vmul.f32 %v318, %v325
  %v341 = vmul.f32 %v319, %v325
  %v342 = vmul.f32 %v320, %v325
  %v343 = vadd.f32 %v288, %v327
  %v344 = vadd.f32 %v289, %v328
  %v345 = vadd.f32 %v290, %v329
  %v346 = vadd.f32 %v291, %v330
  %v347 = vadd.f32 %v292, %v331
  %v348 = vadd.f32 %v293, %v332
  %v349 = vadd.f32 %v294, %v333
  %v350 = vadd.f32 %v295, %v334
  %v351 = vadd.f32 %v296, %v335
  %v352 = vadd.f32 %v297, %v336
  %v353 = vadd.f32 %v298, %v337
  %v354 = vadd.f32 %v299, %v338
  %v355 = vadd.f32 %v300, %v339
  %v356 = vadd.f32 %v301, %v340
  %v357 = vadd.f32 %v302, %v341
  %v358 = vadd.f32 %v303, %v342
  %s359 = scalar_lea.vmem %s0, 768
  %v360 = vld [vmem:[%s359] sm:$0xff]
  %v361 = vld [vmem:[%s359 + $0x8] sm:$0xff]
  %v362 = vld [vmem:[%s359 + $0x10] sm:$0xff]
  %v363 = vld [vmem:[%s359 + $0x18] sm:$0xff]
  %v364 = vld [vmem:[%s359 + $0x20] sm:$0xff]
  %v365 = vld [vmem:[%s359 + $0x28] sm:$0xff]
  %v366 = vld [vmem:[%s359 + $0x30] sm:$0xff]
  %v367 = vld [vmem:[%s359 + $0x38] sm:$0xff]
  %v368 = vld [vmem:[%s359 + $0x40] sm:$0xff]
  %v369 = vld [vmem:[%s359 + $0x48] sm:$0xff]
  %v370 = vld [vmem:[%s359 + $0x50] sm:$0xff]
  %v371 = vld [vmem:[%s359 + $0x58] sm:$0xff]
  %v372 = vld [vmem:[%s359 + $0x60] sm:$0xff]
  %v373 = vld [vmem:[%s359 + $0x68] sm:$0xff]
  %v374 = vld [vmem:[%s359 + $0x70] sm:$0xff]
  %v375 = vld [vmem:[%s359 + $0x78] sm:$0xff]
  %v377 = vlaneseq
  %v378 = vshrl.u32 %v377, 7
  %v379 = vsub.s32 0, %v378
  %v380 = vrot.slane %v20, %v379
  %v382 = vmul.f32 %v360, %v380
  %v383 = vmul.f32 %v361, %v380
  %v384 = vmul.f32 %v362, %v380
  %v385 = vmul.f32 %v363, %v380
  %v386 = vmul.f32 %v364, %v380
  %v387 = vmul.f32 %v365, %v380
  %v388 = vmul.f32 %v366, %v380
  %v389 = vmul.f32 %v367, %v380
  %v390 = vmul.f32 %v368, %v380
  %v391 = vmul.f32 %v369, %v380
  %v392 = vmul.f32 %v370, %v380
  %v393 = vmul.f32 %v371, %v380
  %v394 = vmul.f32 %v372, %v380
  %v395 = vmul.f32 %v373, %v380
  %v396 = vmul.f32 %v374, %v380
  %v397 = vmul.f32 %v375, %v380
  %v398 = vadd.f32 %v343, %v382
  %v399 = vadd.f32 %v344, %v383
  %v400 = vadd.f32 %v345, %v384
  %v401 = vadd.f32 %v346, %v385
  %v402 = vadd.f32 %v347, %v386
  %v403 = vadd.f32 %v348, %v387
  %v404 = vadd.f32 %v349, %v388
  %v405 = vadd.f32 %v350, %v389
  %v406 = vadd.f32 %v351, %v390
  %v407 = vadd.f32 %v352, %v391
  %v408 = vadd.f32 %v353, %v392
  %v409 = vadd.f32 %v354, %v393
  %v410 = vadd.f32 %v355, %v394
  %v411 = vadd.f32 %v356, %v395
  %v412 = vadd.f32 %v357, %v396
  %v413 = vadd.f32 %v358, %v397
  %s414 = scalar_lea.vmem %s0, 896
  %v415 = vld [vmem:[%s414] sm:$0xff]
  %v416 = vld [vmem:[%s414 + $0x8] sm:$0xff]
  %v417 = vld [vmem:[%s414 + $0x10] sm:$0xff]
  %v418 = vld [vmem:[%s414 + $0x18] sm:$0xff]
  %v419 = vld [vmem:[%s414 + $0x20] sm:$0xff]
  %v420 = vld [vmem:[%s414 + $0x28] sm:$0xff]
  %v421 = vld [vmem:[%s414 + $0x30] sm:$0xff]
  %v422 = vld [vmem:[%s414 + $0x38] sm:$0xff]
  %v423 = vld [vmem:[%s414 + $0x40] sm:$0xff]
  %v424 = vld [vmem:[%s414 + $0x48] sm:$0xff]
  %v425 = vld [vmem:[%s414 + $0x50] sm:$0xff]
  %v426 = vld [vmem:[%s414 + $0x58] sm:$0xff]
  %v427 = vld [vmem:[%s414 + $0x60] sm:$0xff]
  %v428 = vld [vmem:[%s414 + $0x68] sm:$0xff]
  %v429 = vld [vmem:[%s414 + $0x70] sm:$0xff]
  %v430 = vld [vmem:[%s414 + $0x78] sm:$0xff]
  %v432 = vlaneseq
  %v433 = vshrl.u32 %v432, 7
  %v434 = vsub.s32 0, %v433
  %v435 = vrot.slane %v21, %v434
  %v437 = vmul.f32 %v415, %v435
  %v438 = vmul.f32 %v416, %v435
  %v439 = vmul.f32 %v417, %v435
  %v440 = vmul.f32 %v418, %v435
  %v441 = vmul.f32 %v419, %v435
  %v442 = vmul.f32 %v420, %v435
  %v443 = vmul.f32 %v421, %v435
  %v444 = vmul.f32 %v422, %v435
  %v445 = vmul.f32 %v423, %v435
  %v446 = vmul.f32 %v424, %v435
  %v447 = vmul.f32 %v425, %v435
  %v448 = vmul.f32 %v426, %v435
  %v449 = vmul.f32 %v427, %v435
  %v450 = vmul.f32 %v428, %v435
  %v451 = vmul.f32 %v429, %v435
  %v452 = vmul.f32 %v430, %v435
  %v453 = vadd.f32 %v398, %v437
  %v454 = vadd.f32 %v399, %v438
  %v455 = vadd.f32 %v400, %v439
  %v456 = vadd.f32 %v401, %v440
  %v457 = vadd.f32 %v402, %v441
  %v458 = vadd.f32 %v403, %v442
  %v459 = vadd.f32 %v404, %v443
  %v460 = vadd.f32 %v405, %v444
  %v461 = vadd.f32 %v406, %v445
  %v462 = vadd.f32 %v407, %v446
  %v463 = vadd.f32 %v408, %v447
  %v464 = vadd.f32 %v409, %v448
  %v465 = vadd.f32 %v410, %v449
  %v466 = vadd.f32 %v411, %v450
  %v467 = vadd.f32 %v412, %v451
  %v468 = vadd.f32 %v413, %v452
  %s469 = scalar_lea.vmem %s0, 1024
  %v470 = vld [vmem:[%s469] sm:$0xff]
  %v471 = vld [vmem:[%s469 + $0x8] sm:$0xff]
  %v472 = vld [vmem:[%s469 + $0x10] sm:$0xff]
  %v473 = vld [vmem:[%s469 + $0x18] sm:$0xff]
  %v474 = vld [vmem:[%s469 + $0x20] sm:$0xff]
  %v475 = vld [vmem:[%s469 + $0x28] sm:$0xff]
  %v476 = vld [vmem:[%s469 + $0x30] sm:$0xff]
  %v477 = vld [vmem:[%s469 + $0x38] sm:$0xff]
  %v478 = vld [vmem:[%s469 + $0x40] sm:$0xff]
  %v479 = vld [vmem:[%s469 + $0x48] sm:$0xff]
  %v480 = vld [vmem:[%s469 + $0x50] sm:$0xff]
  %v481 = vld [vmem:[%s469 + $0x58] sm:$0xff]
  %v482 = vld [vmem:[%s469 + $0x60] sm:$0xff]
  %v483 = vld [vmem:[%s469 + $0x68] sm:$0xff]
  %v484 = vld [vmem:[%s469 + $0x70] sm:$0xff]
  %v485 = vld [vmem:[%s469 + $0x78] sm:$0xff]
  %v487 = vlaneseq
  %v488 = vshrl.u32 %v487, 7
  %v489 = vsub.s32 0, %v488
  %v490 = vrot.slane %v22, %v489
  %v492 = vmul.f32 %v470, %v490
  %v493 = vmul.f32 %v471, %v490
  %v494 = vmul.f32 %v472, %v490
  %v495 = vmul.f32 %v473, %v490
  %v496 = vmul.f32 %v474, %v490
  %v497 = vmul.f32 %v475, %v490
  %v498 = vmul.f32 %v476, %v490
  %v499 = vmul.f32 %v477, %v490
  %v500 = vmul.f32 %v478, %v490
  %v501 = vmul.f32 %v479, %v490
  %v502 = vmul.f32 %v480, %v490
  %v503 = vmul.f32 %v481, %v490
  %v504 = vmul.f32 %v482, %v490
  %v505 = vmul.f32 %v483, %v490
  %v506 = vmul.f32 %v484, %v490
  %v507 = vmul.f32 %v485, %v490
  %v508 = vadd.f32 %v453, %v492
  %v509 = vadd.f32 %v454, %v493
  %v510 = vadd.f32 %v455, %v494
  %v511 = vadd.f32 %v456, %v495
  %v512 = vadd.f32 %v457, %v496
  %v513 = vadd.f32 %v458, %v497
  %v514 = vadd.f32 %v459, %v498
  %v515 = vadd.f32 %v460, %v499
  %v516 = vadd.f32 %v461, %v500
  %v517 = vadd.f32 %v462, %v501
  %v518 = vadd.f32 %v463, %v502
  %v519 = vadd.f32 %v464, %v503
  %v520 = vadd.f32 %v465, %v504
  %v521 = vadd.f32 %v466, %v505
  %v522 = vadd.f32 %v467, %v506
  %v523 = vadd.f32 %v468, %v507
  %vm524 = vcmask 392192
  %525 = vst.msk [vmem:[%s3] sm:$0xff] %vm524, %v508
  %526 = vst.msk [vmem:[%s3 + $0x8] sm:$0xff] %vm524, %v509
  %527 = vst.msk [vmem:[%s3 + $0x10] sm:$0xff] %vm524, %v510
  %528 = vst.msk [vmem:[%s3 + $0x18] sm:$0xff] %vm524, %v511
  %529 = vst.msk [vmem:[%s3 + $0x20] sm:$0xff] %vm524, %v512
  %530 = vst.msk [vmem:[%s3 + $0x28] sm:$0xff] %vm524, %v513
  %531 = vst.msk [vmem:[%s3 + $0x30] sm:$0xff] %vm524, %v514
  %532 = vst.msk [vmem:[%s3 + $0x38] sm:$0xff] %vm524, %v515
  %533 = vst.msk [vmem:[%s3 + $0x40] sm:$0xff] %vm524, %v516
  %534 = vst.msk [vmem:[%s3 + $0x48] sm:$0xff] %vm524, %v517
  %535 = vst.msk [vmem:[%s3 + $0x50] sm:$0xff] %vm524, %v518
  %536 = vst.msk [vmem:[%s3 + $0x58] sm:$0xff] %vm524, %v519
  %537 = vst.msk [vmem:[%s3 + $0x60] sm:$0xff] %vm524, %v520
  %538 = vst.msk [vmem:[%s3 + $0x68] sm:$0xff] %vm524, %v521
  %539 = vst.msk [vmem:[%s3 + $0x70] sm:$0xff] %vm524, %v522
  %540 = vst.msk [vmem:[%s3 + $0x78] sm:$0xff] %vm524, %v523
  // Predicated region
  $region14: #{_lambda_.24} parent=0 // pred_check
    _
  $region15: #{_lambda_.24} parent=0 // pred_check_branch
    %542 = sbr.rel (0) target = $region17
  $region16: #{_lambda_.24} parent=0 // pred_region
    _
  $region17: #{_lambda_.24} parent=0 // pred_fallthru
    _
  // Predicated region
  $region18: #{_lambda_.24} parent=0 // pred_check
    _
  $region19: #{_lambda_.24} parent=0 // pred_check_branch
    %544 = sbr.rel (0) target = $region21
  $region20: #{_lambda_.24} parent=0 // pred_region
    _
  $region21: #{_lambda_.24} parent=0 // pred_fallthru
    _

// kernel: _lambda_.26
$region0: #{_lambda_.26}
  #allocation0 [shape = 'u32[]', space=smem, size = 0x4, offset = 0x4, fixed_abs, tag = 'smem constant byte address 0x4 - core index']
  #allocation1 [shape = 'u32[144,128]{1,0:T(1,128)}', space=vmem, size = 0x12000, scoped, tag = 'internal scratch']
  %s0 = inlined_call_operand.vmem [shape: f32[2,64,48], index: 0, kind: input, shape index: {}]
  %s1 = inlined_call_operand.vmem [shape: f32[2,1,48], index: 1, kind: output, shape index: {}]
  %s2 = sld [smem:[#allocation0]]
  $region45: #{_lambda_.26} parent=0
    _
  %s4 = ssub.s32 1, %s2
  %s5 = scalar_select 0, %s4, %s2
  loop: start=0, step=1, limit=4
  $region2: #{_lambda_.26} parent=0 // loop_pre_header
    _
  $region3: #{_lambda_.26} parent=0 // loop_header
    %s7 = sphi 0, %s11
    %p8 = scmp.ge.s32.totalorder %s7, 4
    %s14 = sphi 0, %s26
    %s15 = sphi 0, %s22
    %s16 = sphi 0, %s14
    %s17 = sphi 0, %s15
    %s18 = sphi 0, %s16
    %s19 = sphi 0, %s17
    %s31 = sphi 0, %s33
    %s34 = sphi 0, %s31
    %s35 = sphi 0, %s34
    %s51 = sphi 0, %s35
    %s57 = sphi 0, %s59
    %s60 = sphi 0, %s57
    %s61 = sphi 0, %s60
    %s77 = sphi 0, %s61
  $region4: #{_lambda_.26} parent=0 // loop_header_branch
    %10 = sbr.rel (%p8) target = $region8
  $region5: #{_lambda_.26} parent=0 // loop_body
    %s12 = ssub.s32 %s7, 1
    %s13 = ssub.s32 %s7, 2
    %s20 = sadd.s32 1, %s15
    %p21 = scmp.ge.s32.totalorder %s20, 1
    %s22 = scalar_select %p21, 0, %s20
    %s23 = sadd.s32 1, %s14
    %s24 = scalar_select %p21, %s23, %s14
    %p25 = scmp.ge.s32.totalorder %s24, 2
    %s26 = scalar_select %p25, 0, %s24
    %s27 = ssub.s32 %s14, %s26
    %s28 = ssub.s32 %s15, %s22
    %s29 = sor.u32 %s27, %s28
    %p30 = scmp.eq.s32.totalorder %s29, 0
    %s32 = sadd.s32 %s31, 1
    %s33 = scalar_select %p30, %s31, %s32
    %p36 = pneg %p30
    %p37 = scmp.eq.s32.totalorder %s7, 1
    %p38 = por %p36, %p37
    %p39 = scmp.ne.s32.totalorder %s31, %s34
    %p40 = scmp.eq.s32.totalorder %s7, 0
    %p41 = por %p39, %p40
    %p42 = scmp.ne.s32.totalorder %s31, %s34
    %p43 = scmp.eq.s32.totalorder %s12, 1
    %p44 = por %p42, %p43
    %p45 = scmp.ne.s32.totalorder %s34, %s35
    %p46 = scmp.eq.s32.totalorder %s12, 0
    %p47 = por %p45, %p46
    %p48 = scmp.ne.s32.totalorder %s34, %s35
    %p49 = scmp.eq.s32.totalorder %s13, 1
    %p50 = por %p48, %p49
    %p52 = scmp.ne.s32.totalorder %s35, %s51
    %p53 = scmp.eq.s32.totalorder %s13, 0
    %p54 = por %p52, %p53
    %s55 = ssub.s32 %s14, %s26
    %p56 = scmp.eq.s32.totalorder %s55, 0
    %s58 = sadd.s32 %s57, 1
    %s59 = scalar_select %p56, %s57, %s58
    %p62 = pneg %p56
    %p63 = scmp.eq.s32.totalorder %s7, 1
    %p64 = por %p62, %p63
    %p65 = scmp.ne.s32.totalorder %s57, %s60
    %p66 = scmp.eq.s32.totalorder %s7, 0
    %p67 = por %p65, %p66
    %p68 = scmp.ne.s32.totalorder %s57, %s60
    %p69 = scmp.eq.s32.totalorder %s12, 1
    %p70 = por %p68, %p69
    %p71 = scmp.ne.s32.totalorder %s60, %s61
    %p72 = scmp.eq.s32.totalorder %s12, 0
    %p73 = por %p71, %p72
    %p74 = scmp.ne.s32.totalorder %s60, %s61
    %p75 = scmp.eq.s32.totalorder %s13, 1
    %p76 = por %p74, %p75
    %p78 = scmp.ne.s32.totalorder %s61, %s77
    %p79 = scmp.eq.s32.totalorder %s13, 0
    %p80 = por %p78, %p79
    %p81 = scmp.le.s32.totalorder 1, %s7
    %p82 = scmp.lt.s32.totalorder %s7, 3
    %p83 = pnand %p81, %p82
    %p84 = pneg %p83
    // Predicated region
    $region9: #{_lambda_.26} parent=5 // pred_check
      _
    $region10: #{_lambda_.26} parent=5 // pred_check_branch
      %86 = sbr.rel (%p83) target = $region12
    $region11: #{_lambda_.26} parent=5 // pred_region
      %s87 = ssub.s32 %s7, 1
    $region12: #{_lambda_.26} parent=5 // pred_fallthru
      _
    %p88 = scmp.lt.s32.totalorder %s7, 2
    // Predicated region
    $region13: #{_lambda_.26} parent=5 // pred_check
      %p89 = pneg %p88
    $region14: #{_lambda_.26} parent=5 // pred_check_branch
      %91 = sbr.rel (%p89) target = $region16
    $region15: #{_lambda_.26} parent=5 // pred_region
      // Predicated region
      $region17: #{_lambda_.26} parent=15 // pred_check
        %p92 = pneg %p41
      $region18: #{_lambda_.26} parent=15 // pred_check_branch
        %94 = sbr.rel (%p92) target = $region20
      $region19: #{_lambda_.26} parent=15 // pred_region
        %s95 = smul.u32 8, %s15
        %p96 = scmp.lt.s32.totalorder %s14, 1
        %s97 = scalar_select %p96, %s14, 1
        %p98 = scmp.lt.s32.totalorder %s95, 7
        %s99 = scalar_select %p98, %s95, 7
        %s100 = smul.addr %s97, 8
        %s101 = sadd.s32 %s99, %s100
        %s102 = smul.addr %s101, 8
        %s103 = scalar_lea.vmem %s0, %s102
        %s104 = smul.u32 8, %s15
      $region20: #{_lambda_.26} parent=15 // pred_fallthru
        _
    $region16: #{_lambda_.26} parent=5 // pred_fallthru
      _
    %p105 = scmp.le.s32.totalorder 1, %s7
    %p106 = scmp.lt.s32.totalorder %s7, 3
    %p107 = pnand %p105, %p106
    %p108 = pneg %p107
    // Predicated region
    $region21: #{_lambda_.26} parent=5 // pred_check
      _
    $region22: #{_lambda_.26} parent=5 // pred_check_branch
      %110 = sbr.rel (%p107) target = $region24
    $region23: #{_lambda_.26} parent=5 // pred_region
      %s111 = ssub.s32 %s7, 1
      %s112 = smul.u32 8, %s17
      %p113 = scmp.lt.s32.totalorder %s16, 1
      %s114 = scalar_select %p113, %s16, 1
      %p115 = scmp.lt.s32.totalorder %s112, 7
      %s116 = scalar_select %p115, %s112, 7
      %s117 = smul.addr %s114, 8
      %s118 = sadd.s32 %s116, %s117
      %s119 = smul.addr %s118, 8
      %s120 = scalar_lea.vmem %s0, %s119
      %p121 = pneg %p47
      %p122 = pneg %p44
      %p123 = pneg %p73
      %p124 = pneg %p70
      %p125 = scmp.lt.s32.totalorder %s16, 1
      %s126 = scalar_select %p125, %s16, 1
      %s127 = scalar_lea.vmem %s1, %s126
      %s128 = smul.u32 8, %s17
      %p129 = scmp.lt.s32.totalorder %s16, 1
      %s130 = scalar_select %p129, %s16, 1
      %p131 = scmp.lt.s32.totalorder %s128, 7
      %s132 = scalar_select %p131, %s128, 7
      %s133 = smul.addr %s130, 8
      %s134 = sadd.s32 %s132, %s133
      %s135 = smul.addr %s134, 8
      %s136 = scalar_lea.vmem %s0, %s135
      %s137 = smul.u32 8, %s17
      %p138 = scmp.lt.s32.totalorder %s16, 1
      %s139 = scalar_select %p138, %s16, 1
      %s140 = scalar_lea.vmem %s1, %s139
      %p141 = scmp.eq.s32.totalorder %s17, 0
      // Predicated region
      $region25: #{_lambda_.26} parent=23 // pred_check
        %p142 = pneg %p141
      $region26: #{_lambda_.26} parent=23 // pred_check_branch
        %144 = sbr.rel (%p142) target = $region28
      $region27: #{_lambda_.26} parent=23 // pred_region
        %vm145 = vcmask 385024
        %146 = vst.msk [vmem:[%s140] sm:$0x1] %vm145, 0.0
      $region28: #{_lambda_.26} parent=23 // pred_fallthru
        _
      %v147 = vld [vmem:[%s140] sm:$0x1]
      %v148 = vld [vmem:[%s136] sm:$0xff]
      %v149 = vld [vmem:[%s136 + $0x8] sm:$0xff]
      %v150 = vld [vmem:[%s136 + $0x10] sm:$0xff]
      %v151 = vld [vmem:[%s136 + $0x18] sm:$0xff]
      %v152 = vld [vmem:[%s136 + $0x20] sm:$0xff]
      %v153 = vld [vmem:[%s136 + $0x28] sm:$0xff]
      %v154 = vld [vmem:[%s136 + $0x30] sm:$0xff]
      %v155 = vld [vmem:[%s136 + $0x38] sm:$0xff]
      %vm156 = vcmask 392192
      %v157 = vsel %vm156, %v148, 0.0
      %v158 = vsel %vm156, %v149, 0.0
      %v159 = vadd.f32 %v157, %v158
      %v160 = vsel %vm156, %v150, 0.0
      %v161 = vadd.f32 %v159, %v160
      %v162 = vsel %vm156, %v151, 0.0
      %v163 = vadd.f32 %v161, %v162
      %v164 = vsel %vm156, %v152, 0.0
      %v165 = vadd.f32 %v163, %v164
      %v166 = vsel %vm156, %v153, 0.0
      %v167 = vadd.f32 %v165, %v166
      %v168 = vsel %vm156, %v154, 0.0
      %v169 = vadd.f32 %v167, %v168
      %v170 = vsel %vm156, %v155, 0.0
      %v171 = vadd.f32 %v169, %v170
      %v172 = vrot.slane %v171, 4
      %v173 = vadd.f32 %v171, %v172
      %v174 = vrot.slane %v173, 2
      %v175 = vadd.f32 %v173, %v174
      %v176 = vrot.slane %v175, 1
      %v177 = vadd.f32 %v175, %v176
      %v178 = vadd.f32 %v147, %v177
      %vm179 = vcmask 385024
      %180 = vst.msk [vmem:[%s140] sm:$0x1] %vm179, %v178
      // Predicated region
      $region29: #{_lambda_.26} parent=23 // pred_check
        %p181 = pneg %p141
      $region30: #{_lambda_.26} parent=23 // pred_check_branch
        %183 = sbr.rel (%p181) target = $region32
      $region31: #{_lambda_.26} parent=23 // pred_region
        %v184 = vld [vmem:[%s140] sm:$0x1]
        %v185 = vmul.f32 %v184, 0.015625
        %186 = vst.msk [vmem:[%s140] sm:$0x1] %vm179, %v185
      $region32: #{_lambda_.26} parent=23 // pred_fallthru
        _
      %p187 = scmp.lt.s32.totalorder %s16, 1
      %s188 = scalar_select %p187, %s16, 1
      %s189 = scalar_lea.vmem %s1, %s188
      // Predicated region
      $region33: #{_lambda_.26} parent=23 // pred_check
        %p190 = pneg %p70
      $region34: #{_lambda_.26} parent=23 // pred_check_branch
        %192 = sbr.rel (%p190) target = $region36
      $region35: #{_lambda_.26} parent=23 // pred_region
        _
      $region36: #{_lambda_.26} parent=23 // pred_fallthru
        _
    $region24: #{_lambda_.26} parent=5 // pred_fallthru
      _
    %p193 = scmp.le.s32.totalorder 2, %s7
    // Predicated region
    $region37: #{_lambda_.26} parent=5 // pred_check
      %p194 = pneg %p193
    $region38: #{_lambda_.26} parent=5 // pred_check_branch
      %196 = sbr.rel (%p194) target = $region40
    $region39: #{_lambda_.26} parent=5 // pred_region
      %s197 = ssub.s32 %s7, 2
      // Predicated region
      $region41: #{_lambda_.26} parent=39 // pred_check
        %p198 = pneg %p76
      $region42: #{_lambda_.26} parent=39 // pred_check_branch
        %200 = sbr.rel (%p198) target = $region44
      $region43: #{_lambda_.26} parent=39 // pred_region
        %p201 = scmp.lt.s32.totalorder %s18, 1
        %s202 = scalar_select %p201, %s18, 1
        %s203 = scalar_lea.vmem %s1, %s202
      $region44: #{_lambda_.26} parent=39 // pred_fallthru
        _
    $region40: #{_lambda_.26} parent=5 // pred_fallthru
      _
  $region6: #{_lambda_.26} parent=0 // loop_footer
    %s11 = sadd.s32 1, %s7
  $region7: #{_lambda_.26} parent=0 // loop_footer_branch
    %6 = sbr.rel target = $region3
  $region8: #{_lambda_.26} parent=0 // loop_exit
    _

// kernel: _lambda_.27
$region0: #{_lambda_.27}
  #allocation0 [shape = 'u32[]', space=smem, size = 0x4, offset = 0x4, fixed_abs, tag = 'smem constant byte address 0x4 - core index']
  #allocation1 [shape = 'u32[144,128]{1,0:T(1,128)}', space=vmem, size = 0x12000, scoped, tag = 'internal scratch']
  %s0 = inlined_call_operand.vmem [shape: f32[2,64,48], index: 0, kind: input, shape index: {}]
  %s1 = inlined_call_operand.vmem [shape: f32[2,1,48], index: 1, kind: input, shape index: {}]
  %s2 = inlined_call_operand.vmem [shape: f32[48,12], index: 2, kind: input, shape index: {}]
  %s3 = inlined_call_operand.vmem [shape: f32[1,12], index: 3, kind: input, shape index: {}]
  %s4 = inlined_call_operand.vmem [shape: f32[12,48], index: 4, kind: input, shape index: {}]
  %s5 = inlined_call_operand.vmem [shape: f32[1,48], index: 5, kind: input, shape index: {}]
  %s6 = inlined_call_operand.vmem [shape: f32[2,64,48], index: 6, kind: output, shape index: {}]
  %s7 = sld [smem:[#allocation0]]
  $region57: #{_lambda_.27} parent=0
    _
  %s9 = ssub.s32 1, %s7
  %s10 = scalar_select 0, %s9, %s7
  loop: start=0, step=1, limit=4
  $region2: #{_lambda_.27} parent=0 // loop_pre_header
    _
  $region3: #{_lambda_.27} parent=0 // loop_header
    %s12 = sphi 0, %s16
    %p13 = scmp.ge.s32.totalorder %s12, 4
    %s19 = sphi 0, %s31
    %s20 = sphi 0, %s27
    %s21 = sphi 0, %s19
    %s22 = sphi 0, %s20
    %s23 = sphi 0, %s21
    %s24 = sphi 0, %s22
    %s36 = sphi 0, %s38
    %s39 = sphi 0, %s36
    %s40 = sphi 0, %s39
    %s56 = sphi 0, %s40
    %s62 = sphi 0, %s64
    %s65 = sphi 0, %s62
    %s66 = sphi 0, %s65
    %s82 = sphi 0, %s66
    %s86 = sphi 0, %s86
    %s88 = sphi 0, %s86
    %s89 = sphi 0, %s88
    %s103 = sphi 0, %s89
    %s107 = sphi 0, %s107
    %s109 = sphi 0, %s107
    %s110 = sphi 0, %s109
    %s124 = sphi 0, %s110
    %s128 = sphi 0, %s128
    %s130 = sphi 0, %s128
    %s131 = sphi 0, %s130
    %s145 = sphi 0, %s131
    %s149 = sphi 0, %s149
    %s151 = sphi 0, %s149
    %s152 = sphi 0, %s151
    %s166 = sphi 0, %s152
    %s174 = sphi 0, %s176
    %s177 = sphi 0, %s174
    %s178 = sphi 0, %s177
    %s194 = sphi 0, %s178
  $region4: #{_lambda_.27} parent=0 // loop_header_branch
    %15 = sbr.rel (%p13) target = $region8
  $region5: #{_lambda_.27} parent=0 // loop_body
    %s17 = ssub.s32 %s12, 1
    %s18 = ssub.s32 %s12, 2
    %s25 = sadd.s32 1, %s20
    %p26 = scmp.ge.s32.totalorder %s25, 1
    %s27 = scalar_select %p26, 0, %s25
    %s28 = sadd.s32 1, %s19
    %s29 = scalar_select %p26, %s28, %s19
    %p30 = scmp.ge.s32.totalorder %s29, 2
    %s31 = scalar_select %p30, 0, %s29
    %s32 = ssub.s32 %s19, %s31
    %s33 = ssub.s32 %s20, %s27
    %s34 = sor.u32 %s32, %s33
    %p35 = scmp.eq.s32.totalorder %s34, 0
    %s37 = sadd.s32 %s36, 1
    %s38 = scalar_select %p35, %s36, %s37
    %p41 = pneg %p35
    %p42 = scmp.eq.s32.totalorder %s12, 1
    %p43 = por %p41, %p42
    %p44 = scmp.ne.s32.totalorder %s36, %s39
    %p45 = scmp.eq.s32.totalorder %s12, 0
    %p46 = por %p44, %p45
    %p47 = scmp.ne.s32.totalorder %s36, %s39
    %p48 = scmp.eq.s32.totalorder %s17, 1
    %p49 = por %p47, %p48
    %p50 = scmp.ne.s32.totalorder %s39, %s40
    %p51 = scmp.eq.s32.totalorder %s17, 0
    %p52 = por %p50, %p51
    %p53 = scmp.ne.s32.totalorder %s39, %s40
    %p54 = scmp.eq.s32.totalorder %s18, 1
    %p55 = por %p53, %p54
    %p57 = scmp.ne.s32.totalorder %s40, %s56
    %p58 = scmp.eq.s32.totalorder %s18, 0
    %p59 = por %p57, %p58
    %s60 = ssub.s32 %s19, %s31
    %p61 = scmp.eq.s32.totalorder %s60, 0
    %s63 = sadd.s32 %s62, 1
    %s64 = scalar_select %p61, %s62, %s63
    %p67 = pneg %p61
    %p68 = scmp.eq.s32.totalorder %s12, 1
    %p69 = por %p67, %p68
    %p70 = scmp.ne.s32.totalorder %s62, %s65
    %p71 = scmp.eq.s32.totalorder %s12, 0
    %p72 = por %p70, %p71
    %p73 = scmp.ne.s32.totalorder %s62, %s65
    %p74 = scmp.eq.s32.totalorder %s17, 1
    %p75 = por %p73, %p74
    %p76 = scmp.ne.s32.totalorder %s65, %s66
    %p77 = scmp.eq.s32.totalorder %s17, 0
    %p78 = por %p76, %p77
    %p79 = scmp.ne.s32.totalorder %s65, %s66
    %p80 = scmp.eq.s32.totalorder %s18, 1
    %p81 = por %p79, %p80
    %p83 = scmp.ne.s32.totalorder %s66, %s82
    %p84 = scmp.eq.s32.totalorder %s18, 0
    %p85 = por %p83, %p84
    %s87 = sadd.s32 %s86, 1
    %p90 = scmp.eq.s32.totalorder %s12, 1
    %p91 = scmp.ne.s32.totalorder %s86, %s88
    %p92 = scmp.eq.s32.totalorder %s12, 0
    %p93 = por %p91, %p92
    %p94 = scmp.ne.s32.totalorder %s86, %s88
    %p95 = scmp.eq.s32.totalorder %s17, 1
    %p96 = por %p94, %p95
    %p97 = scmp.ne.s32.totalorder %s88, %s89
    %p98 = scmp.eq.s32.totalorder %s17, 0
    %p99 = por %p97, %p98
    %p100 = scmp.ne.s32.totalorder %s88, %s89
    %p101 = scmp.eq.s32.totalorder %s18, 1
    %p102 = por %p100, %p101
    %p104 = scmp.ne.s32.totalorder %s89, %s103
    %p105 = scmp.eq.s32.totalorder %s18, 0
    %p106 = por %p104, %p105
    %s108 = sadd.s32 %s107, 1
    %p111 = scmp.eq.s32.totalorder %s12, 1
    %p112 = scmp.ne.s32.totalorder %s107, %s109
    %p113 = scmp.eq.s32.totalorder %s12, 0
    %p114 = por %p112, %p113
    %p115 = scmp.ne.s32.totalorder %s107, %s109
    %p116 = scmp.eq.s32.totalorder %s17, 1
    %p117 = por %p115, %p116
    %p118 = scmp.ne.s32.totalorder %s109, %s110
    %p119 = scmp.eq.s32.totalorder %s17, 0
    %p120 = por %p118, %p119
    %p121 = scmp.ne.s32.totalorder %s109, %s110
    %p122 = scmp.eq.s32.totalorder %s18, 1
    %p123 = por %p121, %p122
    %p125 = scmp.ne.s32.totalorder %s110, %s124
    %p126 = scmp.eq.s32.totalorder %s18, 0
    %p127 = por %p125, %p126
    %s129 = sadd.s32 %s128, 1
    %p132 = scmp.eq.s32.totalorder %s12, 1
    %p133 = scmp.ne.s32.totalorder %s128, %s130
    %p134 = scmp.eq.s32.totalorder %s12, 0
    %p135 = por %p133, %p134
    %p136 = scmp.ne.s32.totalorder %s128, %s130
    %p137 = scmp.eq.s32.totalorder %s17, 1
    %p138 = por %p136, %p137
    %p139 = scmp.ne.s32.totalorder %s130, %s131
    %p140 = scmp.eq.s32.totalorder %s17, 0
    %p141 = por %p139, %p140
    %p142 = scmp.ne.s32.totalorder %s130, %s131
    %p143 = scmp.eq.s32.totalorder %s18, 1
    %p144 = por %p142, %p143
    %p146 = scmp.ne.s32.totalorder %s131, %s145
    %p147 = scmp.eq.s32.totalorder %s18, 0
    %p148 = por %p146, %p147
    %s150 = sadd.s32 %s149, 1
    %p153 = scmp.eq.s32.totalorder %s12, 1
    %p154 = scmp.ne.s32.totalorder %s149, %s151
    %p155 = scmp.eq.s32.totalorder %s12, 0
    %p156 = por %p154, %p155
    %p157 = scmp.ne.s32.totalorder %s149, %s151
    %p158 = scmp.eq.s32.totalorder %s17, 1
    %p159 = por %p157, %p158
    %p160 = scmp.ne.s32.totalorder %s151, %s152
    %p161 = scmp.eq.s32.totalorder %s17, 0
    %p162 = por %p160, %p161
    %p163 = scmp.ne.s32.totalorder %s151, %s152
    %p164 = scmp.eq.s32.totalorder %s18, 1
    %p165 = por %p163, %p164
    %p167 = scmp.ne.s32.totalorder %s152, %s166
    %p168 = scmp.eq.s32.totalorder %s18, 0
    %p169 = por %p167, %p168
    %s170 = ssub.s32 %s19, %s31
    %s171 = ssub.s32 %s20, %s27
    %s172 = sor.u32 %s170, %s171
    %p173 = scmp.eq.s32.totalorder %s172, 0
    %s175 = sadd.s32 %s174, 1
    %s176 = scalar_select %p173, %s174, %s175
    %p179 = pneg %p173
    %p180 = scmp.eq.s32.totalorder %s12, 1
    %p181 = por %p179, %p180
    %p182 = scmp.ne.s32.totalorder %s174, %s177
    %p183 = scmp.eq.s32.totalorder %s12, 0
    %p184 = por %p182, %p183
    %p185 = scmp.ne.s32.totalorder %s174, %s177
    %p186 = scmp.eq.s32.totalorder %s17, 1
    %p187 = por %p185, %p186
    %p188 = scmp.ne.s32.totalorder %s177, %s178
    %p189 = scmp.eq.s32.totalorder %s17, 0
    %p190 = por %p188, %p189
    %p191 = scmp.ne.s32.totalorder %s177, %s178
    %p192 = scmp.eq.s32.totalorder %s18, 1
    %p193 = por %p191, %p192
    %p195 = scmp.ne.s32.totalorder %s178, %s194
    %p196 = scmp.eq.s32.totalorder %s18, 0
    %p197 = por %p195, %p196
    %p198 = scmp.le.s32.totalorder 1, %s12
    %p199 = scmp.lt.s32.totalorder %s12, 3
    %p200 = pnand %p198, %p199
    %p201 = pneg %p200
    // Predicated region
    $region9: #{_lambda_.27} parent=5 // pred_check
      _
    $region10: #{_lambda_.27} parent=5 // pred_check_branch
      %203 = sbr.rel (%p200) target = $region12
    $region11: #{_lambda_.27} parent=5 // pred_region
      %s204 = ssub.s32 %s12, 1
      // Predicated region
      $region13: #{_lambda_.27} parent=11 // pred_check
        %p205 = pneg %p99
      $region14: #{_lambda_.27} parent=11 // pred_check_branch
        %207 = sbr.rel (%p205) target = $region16
      $region15: #{_lambda_.27} parent=11 // pred_region
        _
      $region16: #{_lambda_.27} parent=11 // pred_fallthru
        _
      // Predicated region
      $region17: #{_lambda_.27} parent=11 // pred_check
        %p208 = pneg %p120
      $region18: #{_lambda_.27} parent=11 // pred_check_branch
        %210 = sbr.rel (%p208) target = $region20
      $region19: #{_lambda_.27} parent=11 // pred_region
        _
      $region20: #{_lambda_.27} parent=11 // pred_fallthru
        _
      // Predicated region
      $region21: #{_lambda_.27} parent=11 // pred_check
        %p211 = pneg %p141
      $region22: #{_lambda_.27} parent=11 // pred_check_branch
        %213 = sbr.rel (%p211) target = $region24
      $region23: #{_lambda_.27} parent=11 // pred_region
        _
      $region24: #{_lambda_.27} parent=11 // pred_fallthru
        _
      // Predicated region
      $region25: #{_lambda_.27} parent=11 // pred_check
        %p214 = pneg %p162
      $region26: #{_lambda_.27} parent=11 // pred_check_branch
        %216 = sbr.rel (%p214) target = $region28
      $region27: #{_lambda_.27} parent=11 // pred_region
        _
      $region28: #{_lambda_.27} parent=11 // pred_fallthru
        _
    $region12: #{_lambda_.27} parent=5 // pred_fallthru
      _
    %p217 = scmp.lt.s32.totalorder %s12, 2
    // Predicated region
    $region29: #{_lambda_.27} parent=5 // pred_check
      %p218 = pneg %p217
    $region30: #{_lambda_.27} parent=5 // pred_check_branch
      %220 = sbr.rel (%p218) target = $region32
    $region31: #{_lambda_.27} parent=5 // pred_region
      // Predicated region
      $region33: #{_lambda_.27} parent=31 // pred_check
        %p221 = pneg %p46
      $region34: #{_lambda_.27} parent=31 // pred_check_branch
        %223 = sbr.rel (%p221) target = $region36
      $region35: #{_lambda_.27} parent=31 // pred_region
        %s224 = smul.u32 8, %s20
        %p225 = scmp.lt.s32.totalorder %s19, 1
        %s226 = scalar_select %p225, %s19, 1
        %p227 = scmp.lt.s32.totalorder %s224, 7
        %s228 = scalar_select %p227, %s224, 7
        %s229 = smul.addr %s226, 8
        %s230 = sadd.s32 %s228, %s229
        %s231 = smul.addr %s230, 8
        %s232 = scalar_lea.vmem %s0, %s231
        %s233 = smul.u32 8, %s20
      $region36: #{_lambda_.27} parent=31 // pred_fallthru
        _
      // Predicated region
      $region37: #{_lambda_.27} parent=31 // pred_check
        %p234 = pneg %p72
      $region38: #{_lambda_.27} parent=31 // pred_check_branch
        %236 = sbr.rel (%p234) target = $region40
      $region39: #{_lambda_.27} parent=31 // pred_region
        %p237 = scmp.lt.s32.totalorder %s19, 1
        %s238 = scalar_select %p237, %s19, 1
        %s239 = scalar_lea.vmem %s1, %s238
      $region40: #{_lambda_.27} parent=31 // pred_fallthru
        _
    $region32: #{_lambda_.27} parent=5 // pred_fallthru
      _
    %p240 = scmp.le.s32.totalorder 1, %s12
    %p241 = scmp.lt.s32.totalorder %s12, 3
    %p242 = pnand %p240, %p241
    %p243 = pneg %p242
    // Predicated region
    $region41: #{_lambda_.27} parent=5 // pred_check
      _
    $region42: #{_lambda_.27} parent=5 // pred_check_branch
      %245 = sbr.rel (%p242) target = $region44
    $region43: #{_lambda_.27} parent=5 // pred_region
      %s246 = ssub.s32 %s12, 1
      %s247 = smul.u32 8, %s22
      %p248 = scmp.lt.s32.totalorder %s21, 1
      %s249 = scalar_select %p248, %s21, 1
      %p250 = scmp.lt.s32.totalorder %s247, 7
      %s251 = scalar_select %p250, %s247, 7
      %s252 = smul.addr %s249, 8
      %s253 = sadd.s32 %s251, %s252
      %s254 = smul.addr %s253, 8
      %s255 = scalar_lea.vmem %s0, %s254
      %p256 = pneg %p52
      %p257 = pneg %p49
      %p258 = scmp.lt.s32.totalorder %s21, 1
      %s259 = scalar_select %p258, %s21, 1
      %s260 = scalar_lea.vmem %s1, %s259
      %p261 = pneg %p78
      %p262 = pneg %p75
      %p263 = pneg %p99
      %p264 = pneg %p96
      %p265 = pneg %p120
      %p266 = pneg %p117
      %p267 = pneg %p141
      %p268 = pneg %p138
      %p269 = pneg %p162
      %p270 = pneg %p159
      %p271 = pneg %p190
      %p272 = pneg %p187
      %s273 = smul.u32 8, %s22
      %p274 = scmp.lt.s32.totalorder %s21, 1
      %s275 = scalar_select %p274, %s21, 1
      %p276 = scmp.lt.s32.totalorder %s273, 7
      %s277 = scalar_select %p276, %s273, 7
      %s278 = smul.addr %s275, 8
      %s279 = sadd.s32 %s277, %s278
      %s280 = smul.addr %s279, 8
      %s281 = scalar_lea.vmem %s6, %s280
      %s282 = smul.u32 8, %s22
      %p283 = scmp.lt.s32.totalorder %s21, 1
      %s284 = scalar_select %p283, %s21, 1
      %p285 = scmp.lt.s32.totalorder %s282, 7
      %s286 = scalar_select %p285, %s282, 7
      %s287 = smul.addr %s284, 8
      %s288 = sadd.s32 %s286, %s287
      %s289 = smul.addr %s288, 8
      %s290 = scalar_lea.vmem %s0, %s289
      %s291 = smul.u32 8, %s22
      %p292 = scmp.lt.s32.totalorder %s21, 1
      %s293 = scalar_select %p292, %s21, 1
      %s294 = scalar_lea.vmem %s1, %s293
      %s295 = smul.u32 8, %s22
      %p296 = scmp.lt.s32.totalorder %s21, 1
      %s297 = scalar_select %p296, %s21, 1
      %p298 = scmp.lt.s32.totalorder %s295, 7
      %s299 = scalar_select %p298, %s295, 7
      %s300 = smul.addr %s297, 8
      %s301 = sadd.s32 %s299, %s300
      %s302 = smul.addr %s301, 8
      %s303 = scalar_lea.vmem %s6, %s302
      %s304 = smul.u32 8, %s22
      %v305 = vld [vmem:[%s294] sm:$0x1]
      %v306 = vld [vmem:[%s2] sm:$0xff]
      %v307 = vld [vmem:[%s2 + $0x8] sm:$0xff]
      %v308 = vld [vmem:[%s2 + $0x10] sm:$0xff]
      %v309 = vld [vmem:[%s2 + $0x18] sm:$0xff]
      %v310 = vld [vmem:[%s2 + $0x20] sm:$0xff]
      %v311 = vld [vmem:[%s2 + $0x28] sm:$0xff]
      %v312 = vld [vmem:[%s3] sm:$0x1]
      %vm313 = vcmask 392192
      %v315 = vsel %vm313, %v305, 0
      %317 = vmatprep.subr.mxu0 0.0
      %318 = vmatpush1.msra.mxu0 %v306
      %319 = vmatprep.subr.mxu0 0.0
      %320 = vmatpush1.msra.mxu0 %v307
      %321 = vmatprep.subr.mxu0 0.0
      %322 = vmatpush1.msra.mxu0 %v308
      %323 = vmatprep.subr.mxu0 0.0
      %324 = vmatpush1.msra.mxu0 %v309
      %325 = vmatprep.subr.mxu0 0.0
      %326 = vmatpush1.msra.mxu0 %v310
      %327 = vmatprep.subr.mxu0 0.0
      %328 = vmatpush1.msra.mxu0 %v311
      %329 = vmatprep.subr.mxu0 0.0
      %330 = vmatpush1.msra.mxu0 0.0
      %331 = vmatprep.subr.mxu0 0.0
      %332 = vmatpush1.msra.mxu0 0.0
      %333 = vmatprep.subr.mxu0 0.0
      %334 = vmatpush1.msra.mxu0 0.0
      %335 = vmatprep.subr.mxu0 0.0
      %336 = vmatpush1.msra.mxu0 0.0
      %337 = vmatprep.subr.mxu0 0.0
      %338 = vmatpush1.msra.mxu0 0.0
      %339 = vmatprep.subr.mxu0 0.0
      %340 = vmatpush1.msra.mxu0 0.0
      %341 = vmatprep.subr.mxu0 0.0
      %342 = vmatpush1.msra.mxu0 0.0
      %343 = vmatprep.subr.mxu0 0.0
      %344 = vmatpush1.msra.mxu0 0.0
      %345 = vmatprep.subr.mxu0 0.0
      %346 = vmatpush1.msra.mxu0 0.0
      %347 = vmatprep.subr.mxu0 0.0
      %348 = vmatpush1.msra.mxu0 0.0
      %349 = vmatprep.subr.mxu0 0.0
      %350 = vmatpush1.msra.mxu0 0.0
      %351 = vmatprep.subr.mxu0 0.0
      %352 = vmatpush1.msra.mxu0 0.0
      %353 = vmatprep.subr.mxu0 0.0
      %354 = vmatpush1.msra.mxu0 0.0
      %355 = vmatprep.subr.mxu0 0.0
      %356 = vmatpush1.msra.mxu0 0.0
      %357 = vmatprep.subr.mxu0 0.0
      %358 = vmatpush1.msra.mxu0 0.0
      %359 = vmatprep.subr.mxu0 0.0
      %360 = vmatpush1.msra.mxu0 0.0
      %361 = vmatprep.subr.mxu0 0.0
      %362 = vmatpush1.msra.mxu0 0.0
      %363 = vmatprep.subr.mxu0 0.0
      %364 = vmatpush1.msra.mxu0 0.0
      %365 = vmatprep.subr.mxu0 0.0
      %366 = vmatpush1.msra.mxu0 0.0
      %367 = vmatprep.subr.mxu0 0.0
      %368 = vmatpush1.msra.mxu0 0.0
      %369 = vmatprep.subr.mxu0 0.0
      %370 = vmatpush1.msra.mxu0 0.0
      %371 = vmatprep.subr.mxu0 0.0
      %372 = vmatpush1.msra.mxu0 0.0
      %373 = vmatprep.subr.mxu0 0.0
      %374 = vmatpush1.msra.mxu0 0.0
      %375 = vmatprep.subr.mxu0 0.0
      %376 = vmatpush1.msra.mxu0 0.0
      %377 = vmatprep.subr.mxu0 0.0
      %378 = vmatpush1.msra.mxu0 0.0
      %379 = vmatprep.subr.mxu0 0.0
      %380 = vmatpush1.msra.mxu0 0.0
      %381 = vmatprep.mubr.f32.mxu0 0.0
      %382 = vmatmul.mubr.f32.gmra.mrb[0].mxu0 %v315
      %v383 = vpop.f32.mrb[0].mxu0
      %v384 = vadd.f32 %v312, %v383
      %v385 = vpop.f32.mrb[0].mxu0
      %386 = vdwg.mxu0
      %v387 = vmax.f32 %v384, 0.0
      %v388 = vld [vmem:[%s4] sm:$0xff]
      %v389 = vld [vmem:[%s4 + $0x8] sm:$0xf]
      %v390 = vld [vmem:[%s5] sm:$0x1]
      %vm391 = vcmask 97280
      %v393 = vsel %vm391, %v387, 0
      %vm395 = vcmask 1043456
      %v397 = vsel %vm395, %v389, 0
      %399 = vmatprep.subr.mxu0 0.0
      %400 = vmatpush1.msra.mxu0 %v388
      %401 = vmatprep.subr.mxu0 0.0
      %402 = vmatpush1.msra.mxu0 %v397
      %403 = vmatprep.subr.mxu0 0.0
      %404 = vmatpush1.msra.mxu0 0.0
      %405 = vmatprep.subr.mxu0 0.0
      %406 = vmatpush1.msra.mxu0 0.0
      %407 = vmatprep.subr.mxu0 0.0
      %408 = vmatpush1.msra.mxu0 0.0
      %409 = vmatprep.subr.mxu0 0.0
      %410 = vmatpush1.msra.mxu0 0.0
      %411 = vmatprep.subr.mxu0 0.0
      %412 = vmatpush1.msra.mxu0 0.0
      %413 = vmatprep.subr.mxu0 0.0
      %414 = vmatpush1.msra.mxu0 0.0
      %415 = vmatprep.subr.mxu0 0.0
      %416 = vmatpush1.msra.mxu0 0.0
      %417 = vmatprep.subr.mxu0 0.0
      %418 = vmatpush1.msra.mxu0 0.0
      %419 = vmatprep.subr.mxu0 0.0
      %420 = vmatpush1.msra.mxu0 0.0
      %421 = vmatprep.subr.mxu0 0.0
      %422 = vmatpush1.msra.mxu0 0.0
      %423 = vmatprep.subr.mxu0 0.0
      %424 = vmatpush1.msra.mxu0 0.0
      %425 = vmatprep.subr.mxu0 0.0
      %426 = vmatpush1.msra.mxu0 0.0
      %427 = vmatprep.subr.mxu0 0.0
      %428 = vmatpush1.msra.mxu0 0.0
      %429 = vmatprep.subr.mxu0 0.0
      %430 = vmatpush1.msra.mxu0 0.0
      %431 = vmatprep.subr.mxu0 0.0
      %432 = vmatpush1.msra.mxu0 0.0
      %433 = vmatprep.subr.mxu0 0.0
      %434 = vmatpush1.msra.mxu0 0.0
      %435 = vmatprep.subr.mxu0 0.0
      %436 = vmatpush1.msra.mxu0 0.0
      %437 = vmatprep.subr.mxu0 0.0
      %438 = vmatpush1.msra.mxu0 0.0
      %439 = vmatprep.subr.mxu0 0.0
      %440 = vmatpush1.msra.mxu0 0.0
      %441 = vmatprep.subr.mxu0 0.0
      %442 = vmatpush1.msra.mxu0 0.0
      %443 = vmatprep.subr.mxu0 0.0
      %444 = vmatpush1.msra.mxu0 0.0
      %445 = vmatprep.subr.mxu0 0.0
      %446 = vmatpush1.msra.mxu0 0.0
      %447 = vmatprep.subr.mxu0 0.0
      %448 = vmatpush1.msra.mxu0 0.0
      %449 = vmatprep.subr.mxu0 0.0
      %450 = vmatpush1.msra.mxu0 0.0
      %451 = vmatprep.subr.mxu0 0.0
      %452 = vmatpush1.msra.mxu0 0.0
      %453 = vmatprep.subr.mxu0 0.0
      %454 = vmatpush1.msra.mxu0 0.0
      %455 = vmatprep.subr.mxu0 0.0
      %456 = vmatpush1.msra.mxu0 0.0
      %457 = vmatprep.subr.mxu0 0.0
      %458 = vmatpush1.msra.mxu0 0.0
      %459 = vmatprep.subr.mxu0 0.0
      %460 = vmatpush1.msra.mxu0 0.0
      %461 = vmatprep.subr.mxu0 0.0
      %462 = vmatpush1.msra.mxu0 0.0
      %463 = vmatprep.mubr.f32.mxu0 0.0
      %464 = vmatmul.mubr.f32.gmra.mrb[0].mxu0 %v393
      %v465 = vpop.f32.mrb[0].mxu0
      %v466 = vadd.f32 %v390, %v465
      %v467 = vpop.f32.mrb[0].mxu0
      %468 = vdwg.mxu0
      %v469 = vxor.u32 %v466, 2147483648
      %v470 = vmul.f32 %v469, 1.442695
      %v471 = vpow.pop %v470
      %v472 = vadd.f32 %v471, 1.0
      %v473 = vrcp.pop %v472
      %v474 = vmul.f32 1.0, %v473
      %v475 = vld [vmem:[%s290] sm:$0xff]
      %v476 = vld [vmem:[%s290 + $0x8] sm:$0xff]
      %v477 = vld [vmem:[%s290 + $0x10] sm:$0xff]
      %v478 = vld [vmem:[%s290 + $0x18] sm:$0xff]
      %v479 = vld [vmem:[%s290 + $0x20] sm:$0xff]
      %v480 = vld [vmem:[%s290 + $0x28] sm:$0xff]
      %v481 = vld [vmem:[%s290 + $0x30] sm:$0xff]
      %v482 = vld [vmem:[%s290 + $0x38] sm:$0xff]
      %v483 = vlaneseq
      %v484 = vshrl.u32 %v483, 7
      %v485 = vsub.s32 0, %v484
      %v486 = vrot.slane %v474, %v485
      %v487 = vmul.f32 %v475, %v486
      %v488 = vmul.f32 %v476, %v486
      %v489 = vmul.f32 %v477, %v486
      %v490 = vmul.f32 %v478, %v486
      %v491 = vmul.f32 %v479, %v486
      %v492 = vmul.f32 %v480, %v486
      %v493 = vmul.f32 %v481, %v486
      %v494 = vmul.f32 %v482, %v486
      %495 = vst.msk [vmem:[%s303] sm:$0xff] %vm313, %v487
      %496 = vst.msk [vmem:[%s303 + $0x8] sm:$0xff] %vm313, %v488
      %497 = vst.msk [vmem:[%s303 + $0x10] sm:$0xff] %vm313, %v489
      %498 = vst.msk [vmem:[%s303 + $0x18] sm:$0xff] %vm313, %v490
      %499 = vst.msk [vmem:[%s303 + $0x20] sm:$0xff] %vm313, %v491
      %500 = vst.msk [vmem:[%s303 + $0x28] sm:$0xff] %vm313, %v492
      %501 = vst.msk [vmem:[%s303 + $0x30] sm:$0xff] %vm313, %v493
      %502 = vst.msk [vmem:[%s303 + $0x38] sm:$0xff] %vm313, %v494
      %s503 = smul.u32 8, %s22
      %p504 = scmp.lt.s32.totalorder %s21, 1
      %s505 = scalar_select %p504, %s21, 1
      %p506 = scmp.lt.s32.totalorder %s503, 7
      %s507 = scalar_select %p506, %s503, 7
      %s508 = smul.addr %s505, 8
      %s509 = sadd.s32 %s507, %s508
      %s510 = smul.addr %s509, 8
      %s511 = scalar_lea.vmem %s6, %s510
      // Predicated region
      $region45: #{_lambda_.27} parent=43 // pred_check
        %p512 = pneg %p187
      $region46: #{_lambda_.27} parent=43 // pred_check_branch
        %514 = sbr.rel (%p512) target = $region48
      $region47: #{_lambda_.27} parent=43 // pred_region
        %s515 = smul.u32 8, %s22
      $region48: #{_lambda_.27} parent=43 // pred_fallthru
        _
    $region44: #{_lambda_.27} parent=5 // pred_fallthru
      _
    %p516 = scmp.le.s32.totalorder 2, %s12
    // Predicated region
    $region49: #{_lambda_.27} parent=5 // pred_check
      %p517 = pneg %p516
    $region50: #{_lambda_.27} parent=5 // pred_check_branch
      %519 = sbr.rel (%p517) target = $region52
    $region51: #{_lambda_.27} parent=5 // pred_region
      %s520 = ssub.s32 %s12, 2
      // Predicated region
      $region53: #{_lambda_.27} parent=51 // pred_check
        %p521 = pneg %p193
      $region54: #{_lambda_.27} parent=51 // pred_check_branch
        %523 = sbr.rel (%p521) target = $region56
      $region55: #{_lambda_.27} parent=51 // pred_region
        %s524 = smul.u32 8, %s24
        %p525 = scmp.lt.s32.totalorder %s23, 1
        %s526 = scalar_select %p525, %s23, 1
        %p527 = scmp.lt.s32.totalorder %s524, 7
        %s528 = scalar_select %p527, %s524, 7
        %s529 = smul.addr %s526, 8
        %s530 = sadd.s32 %s528, %s529
        %s531 = smul.addr %s530, 8
        %s532 = scalar_lea.vmem %s6, %s531
      $region56: #{_lambda_.27} parent=51 // pred_fallthru
        _
    $region52: #{_lambda_.27} parent=5 // pred_fallthru
      _
  $region6: #{_lambda_.27} parent=0 // loop_footer
    %s16 = sadd.s32 1, %s12
  $region7: #{_lambda_.27} parent=0 // loop_footer_branch
    %11 = sbr.rel target = $region3
  $region8: #{_lambda_.27} parent=0 // loop_exit
    _

// kernel: _lambda_.28
$region0: #{_lambda_.28}
  #allocation0 [shape = 'u32[]', space=smem, size = 0x4, offset = 0x4, fixed_abs, tag = 'smem constant byte address 0x4 - core index']
  #allocation1 [shape = 'u32[144,128]{1,0:T(1,128)}', space=vmem, size = 0x12000, scoped, tag = 'internal scratch']
  %s0 = inlined_call_operand.vmem [shape: f32[128,432], index: 0, kind: input, shape index: {}]
  %s1 = inlined_call_operand.vmem [shape: f32[432,128], index: 1, kind: input, shape index: {}]
  %s2 = inlined_call_operand.vmem [shape: f32[1,128], index: 2, kind: input, shape index: {}]
  %s3 = inlined_call_operand.vmem [shape: f32[128,128], index: 3, kind: output, shape index: {}]
  %s4 = sld [smem:[#allocation0]]
  $region22: #{_lambda_.28} parent=0
    _
  %s6 = ssub.s32 1, %s4
  %s7 = scalar_select 0, %s6, %s4
  // Predicated region
  $region2: #{_lambda_.28} parent=0 // pred_check
    _
  $region3: #{_lambda_.28} parent=0 // pred_check_branch
    %9 = sbr.rel (0) target = $region5
  $region4: #{_lambda_.28} parent=0 // pred_region
    _
  $region5: #{_lambda_.28} parent=0 // pred_fallthru
    _
  // Predicated region
  $region6: #{_lambda_.28} parent=0 // pred_check
    _
  $region7: #{_lambda_.28} parent=0 // pred_check_branch
    %11 = sbr.rel (0) target = $region9
  $region8: #{_lambda_.28} parent=0 // pred_region
    _
  $region9: #{_lambda_.28} parent=0 // pred_fallthru
    _
  // Predicated region
  $region10: #{_lambda_.28} parent=0 // pred_check
    _
  $region11: #{_lambda_.28} parent=0 // pred_check_branch
    %13 = sbr.rel (0) target = $region13
  $region12: #{_lambda_.28} parent=0 // pred_region
    _
  $region13: #{_lambda_.28} parent=0 // pred_fallthru
    _
  %v15 = vld [vmem:[%s0] sm:$0xff]
  %v16 = vld [vmem:[%s0 + $0x8] sm:$0xff]
  %v17 = vld [vmem:[%s0 + $0x10] sm:$0xff]
  %v18 = vld [vmem:[%s0 + $0x18] sm:$0xff]
  %v19 = vld [vmem:[%s0 + $0x20] sm:$0xff]
  %v20 = vld [vmem:[%s0 + $0x28] sm:$0xff]
  %v21 = vld [vmem:[%s0 + $0x30] sm:$0xff]
  %v22 = vld [vmem:[%s0 + $0x38] sm:$0xff]
  %v23 = vld [vmem:[%s0 + $0x40] sm:$0xff]
  %v24 = vld [vmem:[%s0 + $0x48] sm:$0xff]
  %v25 = vld [vmem:[%s0 + $0x50] sm:$0xff]
  %v26 = vld [vmem:[%s0 + $0x58] sm:$0xff]
  %v27 = vld [vmem:[%s0 + $0x60] sm:$0xff]
  %v28 = vld [vmem:[%s0 + $0x68] sm:$0xff]
  %v29 = vld [vmem:[%s0 + $0x70] sm:$0xff]
  %v30 = vld [vmem:[%s0 + $0x78] sm:$0xff]
  %v31 = vld [vmem:[%s0 + $0x80] sm:$0xff]
  %v32 = vld [vmem:[%s0 + $0x88] sm:$0xff]
  %v33 = vld [vmem:[%s0 + $0x90] sm:$0xff]
  %v34 = vld [vmem:[%s0 + $0x98] sm:$0xff]
  %v35 = vld [vmem:[%s0 + $0xa0] sm:$0xff]
  %v36 = vld [vmem:[%s0 + $0xa8] sm:$0xff]
  %v37 = vld [vmem:[%s0 + $0xb0] sm:$0xff]
  %v38 = vld [vmem:[%s0 + $0xb8] sm:$0xff]
  %v39 = vld [vmem:[%s0 + $0xc0] sm:$0xff]
  %v40 = vld [vmem:[%s0 + $0xc8] sm:$0xff]
  %v41 = vld [vmem:[%s0 + $0xd0] sm:$0xff]
  %v42 = vld [vmem:[%s0 + $0xd8] sm:$0xff]
  %v43 = vld [vmem:[%s0 + $0xe0] sm:$0xff]
  %v44 = vld [vmem:[%s0 + $0xe8] sm:$0xff]
  %v45 = vld [vmem:[%s0 + $0xf0] sm:$0xff]
  %v46 = vld [vmem:[%s0 + $0xf8] sm:$0xff]
  %v47 = vld [vmem:[%s0 + $0x100] sm:$0xff]
  %v48 = vld [vmem:[%s0 + $0x108] sm:$0xff]
  %v49 = vld [vmem:[%s0 + $0x110] sm:$0xff]
  %v50 = vld [vmem:[%s0 + $0x118] sm:$0xff]
  %v51 = vld [vmem:[%s0 + $0x120] sm:$0xff]
  %v52 = vld [vmem:[%s0 + $0x128] sm:$0xff]
  %v53 = vld [vmem:[%s0 + $0x130] sm:$0xff]
  %v54 = vld [vmem:[%s0 + $0x138] sm:$0xff]
  %v55 = vld [vmem:[%s0 + $0x140] sm:$0xff]
  %v56 = vld [vmem:[%s0 + $0x148] sm:$0xff]
  %v57 = vld [vmem:[%s0 + $0x150] sm:$0xff]
  %v58 = vld [vmem:[%s0 + $0x158] sm:$0xff]
  %v59 = vld [vmem:[%s0 + $0x160] sm:$0xff]
  %v60 = vld [vmem:[%s0 + $0x168] sm:$0xff]
  %v61 = vld [vmem:[%s0 + $0x170] sm:$0xff]
  %v62 = vld [vmem:[%s0 + $0x178] sm:$0xff]
  %v63 = vld [vmem:[%s0 + $0x180] sm:$0xff]
  %v64 = vld [vmem:[%s0 + $0x188] sm:$0xff]
  %v65 = vld [vmem:[%s0 + $0x190] sm:$0xff]
  %v66 = vld [vmem:[%s0 + $0x198] sm:$0xff]
  %v67 = vld [vmem:[%s0 + $0x1a0] sm:$0xff]
  %v68 = vld [vmem:[%s0 + $0x1a8] sm:$0xff]
  %v69 = vld [vmem:[%s0 + $0x1b0] sm:$0xff]
  %v70 = vld [vmem:[%s0 + $0x1b8] sm:$0xff]
  %v71 = vld [vmem:[%s0 + $0x1c0] sm:$0xff]
  %v72 = vld [vmem:[%s0 + $0x1c8] sm:$0xff]
  %v73 = vld [vmem:[%s0 + $0x1d0] sm:$0xff]
  %v74 = vld [vmem:[%s0 + $0x1d8] sm:$0xff]
  %v75 = vld [vmem:[%s0 + $0x1e0] sm:$0xff]
  %v76 = vld [vmem:[%s0 + $0x1e8] sm:$0xff]
  %v77 = vld [vmem:[%s0 + $0x1f0] sm:$0xff]
  %v78 = vld [vmem:[%s0 + $0x1f8] sm:$0xff]
  %v79 = vpack.c.bf16 %v19, %v15
  %v80 = vpack.c.bf16 %v20, %v16
  %v81 = vpack.c.bf16 %v21, %v17
  %v82 = vpack.c.bf16 %v22, %v18
  %v83 = vpack.c.bf16 %v27, %v23
  %v84 = vpack.c.bf16 %v28, %v24
  %v85 = vpack.c.bf16 %v29, %v25
  %v86 = vpack.c.bf16 %v30, %v26
  %v87 = vpack.c.bf16 %v35, %v31
  %v88 = vpack.c.bf16 %v36, %v32
  %v89 = vpack.c.bf16 %v37, %v33
  %v90 = vpack.c.bf16 %v38, %v34
  %v91 = vpack.c.bf16 %v43, %v39
  %v92 = vpack.c.bf16 %v44, %v40
  %v93 = vpack.c.bf16 %v45, %v41
  %v94 = vpack.c.bf16 %v46, %v42
  %v95 = vpack.c.bf16 %v51, %v47
  %v96 = vpack.c.bf16 %v52, %v48
  %v97 = vpack.c.bf16 %v53, %v49
  %v98 = vpack.c.bf16 %v54, %v50
  %v99 = vpack.c.bf16 %v59, %v55
  %v100 = vpack.c.bf16 %v60, %v56
  %v101 = vpack.c.bf16 %v61, %v57
  %v102 = vpack.c.bf16 %v62, %v58
  %v103 = vpack.c.bf16 %v67, %v63
  %v104 = vpack.c.bf16 %v68, %v64
  %v105 = vpack.c.bf16 %v69, %v65
  %v106 = vpack.c.bf16 %v70, %v66
  %v107 = vpack.c.bf16 %v75, %v71
  %v108 = vpack.c.bf16 %v76, %v72
  %v109 = vpack.c.bf16 %v77, %v73
  %v110 = vpack.c.bf16 %v78, %v74
  %v111 = vld [vmem:[%s1] sm:$0xff]
  %v112 = vld [vmem:[%s1 + $0x8] sm:$0xff]
  %v113 = vld [vmem:[%s1 + $0x10] sm:$0xff]
  %v114 = vld [vmem:[%s1 + $0x18] sm:$0xff]
  %v115 = vld [vmem:[%s1 + $0x20] sm:$0xff]
  %v116 = vld [vmem:[%s1 + $0x28] sm:$0xff]
  %v117 = vld [vmem:[%s1 + $0x30] sm:$0xff]
  %v118 = vld [vmem:[%s1 + $0x38] sm:$0xff]
  %v119 = vld [vmem:[%s1 + $0x40] sm:$0xff]
  %v120 = vld [vmem:[%s1 + $0x48] sm:$0xff]
  %v121 = vld [vmem:[%s1 + $0x50] sm:$0xff]
  %v122 = vld [vmem:[%s1 + $0x58] sm:$0xff]
  %v123 = vld [vmem:[%s1 + $0x60] sm:$0xff]
  %v124 = vld [vmem:[%s1 + $0x68] sm:$0xff]
  %v125 = vld [vmem:[%s1 + $0x70] sm:$0xff]
  %v126 = vld [vmem:[%s1 + $0x78] sm:$0xff]
  %v127 = vld [vmem:[%s1 + $0x80] sm:$0xff]
  %v128 = vld [vmem:[%s1 + $0x88] sm:$0xff]
  %v129 = vld [vmem:[%s1 + $0x90] sm:$0xff]
  %v130 = vld [vmem:[%s1 + $0x98] sm:$0xff]
  %v131 = vld [vmem:[%s1 + $0xa0] sm:$0xff]
  %v132 = vld [vmem:[%s1 + $0xa8] sm:$0xff]
  %v133 = vld [vmem:[%s1 + $0xb0] sm:$0xff]
  %v134 = vld [vmem:[%s1 + $0xb8] sm:$0xff]
  %v135 = vld [vmem:[%s1 + $0xc0] sm:$0xff]
  %v136 = vld [vmem:[%s1 + $0xc8] sm:$0xff]
  %v137 = vld [vmem:[%s1 + $0xd0] sm:$0xff]
  %v138 = vld [vmem:[%s1 + $0xd8] sm:$0xff]
  %v139 = vld [vmem:[%s1 + $0xe0] sm:$0xff]
  %v140 = vld [vmem:[%s1 + $0xe8] sm:$0xff]
  %v141 = vld [vmem:[%s1 + $0xf0] sm:$0xff]
  %v142 = vld [vmem:[%s1 + $0xf8] sm:$0xff]
  %v143 = vld [vmem:[%s1 + $0x100] sm:$0xff]
  %v144 = vld [vmem:[%s1 + $0x108] sm:$0xff]
  %v145 = vld [vmem:[%s1 + $0x110] sm:$0xff]
  %v146 = vld [vmem:[%s1 + $0x118] sm:$0xff]
  %v147 = vld [vmem:[%s1 + $0x120] sm:$0xff]
  %v148 = vld [vmem:[%s1 + $0x128] sm:$0xff]
  %v149 = vld [vmem:[%s1 + $0x130] sm:$0xff]
  %v150 = vld [vmem:[%s1 + $0x138] sm:$0xff]
  %v151 = vld [vmem:[%s1 + $0x140] sm:$0xff]
  %v152 = vld [vmem:[%s1 + $0x148] sm:$0xff]
  %v153 = vld [vmem:[%s1 + $0x150] sm:$0xff]
  %v154 = vld [vmem:[%s1 + $0x158] sm:$0xff]
  %v155 = vld [vmem:[%s1 + $0x160] sm:$0xff]
  %v156 = vld [vmem:[%s1 + $0x168] sm:$0xff]
  %v157 = vld [vmem:[%s1 + $0x170] sm:$0xff]
  %v158 = vld [vmem:[%s1 + $0x178] sm:$0xff]
  %v159 = vld [vmem:[%s1 + $0x180] sm:$0xff]
  %v160 = vld [vmem:[%s1 + $0x188] sm:$0xff]
  %v161 = vld [vmem:[%s1 + $0x190] sm:$0xff]
  %v162 = vld [vmem:[%s1 + $0x198] sm:$0xff]
  %v163 = vld [vmem:[%s1 + $0x1a0] sm:$0xff]
  %v164 = vld [vmem:[%s1 + $0x1a8] sm:$0xff]
  %v165 = vpack.c.bf16 %v112, %v111
  %v166 = vpack.c.bf16 %v114, %v113
  %v167 = vpack.c.bf16 %v116, %v115
  %v168 = vpack.c.bf16 %v118, %v117
  %v169 = vpack.c.bf16 %v120, %v119
  %v170 = vpack.c.bf16 %v122, %v121
  %v171 = vpack.c.bf16 %v124, %v123
  %v172 = vpack.c.bf16 %v126, %v125
  %v173 = vpack.c.bf16 %v128, %v127
  %v174 = vpack.c.bf16 %v130, %v129
  %v175 = vpack.c.bf16 %v132, %v131
  %v176 = vpack.c.bf16 %v134, %v133
  %v177 = vpack.c.bf16 %v136, %v135
  %v178 = vpack.c.bf16 %v138, %v137
  %v179 = vpack.c.bf16 %v140, %v139
  %v180 = vpack.c.bf16 %v142, %v141
  %v181 = vpack.c.bf16 %v144, %v143
  %v182 = vpack.c.bf16 %v146, %v145
  %v183 = vpack.c.bf16 %v148, %v147
  %v184 = vpack.c.bf16 %v150, %v149
  %v185 = vpack.c.bf16 %v152, %v151
  %v186 = vpack.c.bf16 %v154, %v153
  %v187 = vpack.c.bf16 %v156, %v155
  %v188 = vpack.c.bf16 %v158, %v157
  %v189 = vpack.c.bf16 %v160, %v159
  %v190 = vpack.c.bf16 %v162, %v161
  %v191 = vpack.c.bf16 %v164, %v163
  %v192 = vld [vmem:[%s2] sm:$0x1]
  %v194 = vlaneseq
  %v195 = vshrl.u32 %v194, 7
  %v196 = vsub.s32 0, %v195
  %v197 = vrot.slane %v192, %v196
  %vm199 = vcmask 392192
  %v201 = vsel %vm199, %v82, 0
  %v204 = vsel %vm199, %v86, 0
  %v207 = vsel %vm199, %v90, 0
  %v210 = vsel %vm199, %v94, 0
  %v213 = vsel %vm199, %v98, 0
  %v216 = vsel %vm199, %v102, 0
  %v219 = vsel %vm199, %v106, 0
  %v222 = vsel %vm199, %v110, 0
  %224 = vmatprep.subr.bf16.mxu0 0
  %225 = vmatpush1.bf16.msra.mxu0 %v165
  %226 = vmatprep.subr.bf16.mxu0 0
  %227 = vmatpush1.bf16.msra.mxu0 %v166
  %228 = vmatprep.subr.bf16.mxu0 0
  %229 = vmatpush1.bf16.msra.mxu0 %v167
  %230 = vmatprep.subr.bf16.mxu0 0
  %231 = vmatpush1.bf16.msra.mxu0 %v168
  %232 = vmatprep.subr.bf16.mxu0 0
  %233 = vmatpush1.bf16.msra.mxu0 %v169
  %234 = vmatprep.subr.bf16.mxu0 0
  %235 = vmatpush1.bf16.msra.mxu0 %v170
  %236 = vmatprep.subr.bf16.mxu0 0
  %237 = vmatpush1.bf16.msra.mxu0 %v171
  %238 = vmatprep.subr.bf16.mxu0 0
  %239 = vmatpush1.bf16.msra.mxu0 %v172
  %240 = vmatprep.subr.bf16.mxu0 0
  %241 = vmatpush1.bf16.msra.mxu0 %v173
  %242 = vmatprep.subr.bf16.mxu0 0
  %243 = vmatpush1.bf16.msra.mxu0 %v174
  %244 = vmatprep.subr.bf16.mxu0 0
  %245 = vmatpush1.bf16.msra.mxu0 %v175
  %246 = vmatprep.subr.bf16.mxu0 0
  %247 = vmatpush1.bf16.msra.mxu0 %v176
  %248 = vmatprep.subr.bf16.mxu0 0
  %249 = vmatpush1.bf16.msra.mxu0 %v177
  %250 = vmatprep.subr.bf16.mxu0 0
  %251 = vmatpush1.bf16.msra.mxu0 %v178
  %252 = vmatprep.subr.bf16.mxu0 0
  %253 = vmatpush1.bf16.msra.mxu0 %v179
  %254 = vmatprep.subr.bf16.mxu0 0
  %255 = vmatpush1.bf16.msra.mxu0 %v180
  %256 = vmatprep.mubr.bf16.mxu0 %v80
  %257 = vmatmul.mubr.bf16.gmra.mrb[0].mxu0 %v79
  %v258 = vpop.f32.mrb[0].mxu0
  %v259 = vadd.f32 %v197, %v258
  %v260 = vpop.f32.mrb[0].mxu0
  %v261 = vpop.f32.mrb[0].mxu0
  %v262 = vadd.f32 %v197, %v261
  %v263 = vpop.f32.mrb[0].mxu0
  %264 = vmatprep.mubr.bf16.mxu0 %v84
  %265 = vmatmul.mubr.bf16.gmra.mrb[0].mxu0 %v83
  %v266 = vpop.f32.mrb[0].mxu0
  %v267 = vadd.f32 %v197, %v266
  %v268 = vpop.f32.mrb[0].mxu0
  %v269 = vpop.f32.mrb[0].mxu0
  %v270 = vadd.f32 %v197, %v269
  %v271 = vpop.f32.mrb[0].mxu0
  %272 = vmatprep.mubr.bf16.mxu0 %v88
  %273 = vmatmul.mubr.bf16.gmra.mrb[0].mxu0 %v87
  %v274 = vpop.f32.mrb[0].mxu0
  %v275 = vadd.f32 %v197, %v274
  %v276 = vpop.f32.mrb[0].mxu0
  %v277 = vpop.f32.mrb[0].mxu0
  %v278 = vadd.f32 %v197, %v277
  %v279 = vpop.f32.mrb[0].mxu0
  %280 = vmatprep.mubr.bf16.mxu0 %v92
  %281 = vmatmul.mubr.bf16.gmra.mrb[0].mxu0 %v91
  %v282 = vpop.f32.mrb[0].mxu0
  %v283 = vadd.f32 %v197, %v282
  %v284 = vpop.f32.mrb[0].mxu0
  %v285 = vpop.f32.mrb[0].mxu0
  %v286 = vadd.f32 %v197, %v285
  %v287 = vpop.f32.mrb[0].mxu0
  %288 = vmatprep.mubr.bf16.mxu0 %v96
  %289 = vmatmul.mubr.bf16.gmra.mrb[0].mxu0 %v95
  %v290 = vpop.f32.mrb[0].mxu0
  %v291 = vadd.f32 %v197, %v290
  %v292 = vpop.f32.mrb[0].mxu0
  %v293 = vpop.f32.mrb[0].mxu0
  %v294 = vadd.f32 %v197, %v293
  %v295 = vpop.f32.mrb[0].mxu0
  %296 = vmatprep.mubr.bf16.mxu0 %v100
  %297 = vmatmul.mubr.bf16.gmra.mrb[0].mxu0 %v99
  %v298 = vpop.f32.mrb[0].mxu0
  %v299 = vadd.f32 %v197, %v298
  %v300 = vpop.f32.mrb[0].mxu0
  %v301 = vpop.f32.mrb[0].mxu0
  %v302 = vadd.f32 %v197, %v301
  %v303 = vpop.f32.mrb[0].mxu0
  %304 = vmatprep.mubr.bf16.mxu0 %v104
  %305 = vmatmul.mubr.bf16.gmra.mrb[0].mxu0 %v103
  %v306 = vpop.f32.mrb[0].mxu0
  %v307 = vadd.f32 %v197, %v306
  %v308 = vpop.f32.mrb[0].mxu0
  %v309 = vpop.f32.mrb[0].mxu0
  %v310 = vadd.f32 %v197, %v309
  %v311 = vpop.f32.mrb[0].mxu0
  %312 = vmatprep.mubr.bf16.mxu0 %v108
  %313 = vmatmul.mubr.bf16.gmra.mrb[0].mxu0 %v107
  %v314 = vpop.f32.mrb[0].mxu0
  %v315 = vadd.f32 %v197, %v314
  %v316 = vpop.f32.mrb[0].mxu0
  %v317 = vpop.f32.mrb[0].mxu0
  %v318 = vadd.f32 %v197, %v317
  %v319 = vpop.f32.mrb[0].mxu0
  %320 = vdwg.mxu0
  %321 = vmatprep.subr.bf16.mxu0 0
  %322 = vmatpush1.bf16.msra.mxu0 %v181
  %323 = vmatprep.subr.bf16.mxu0 0
  %324 = vmatpush1.bf16.msra.mxu0 %v182
  %325 = vmatprep.subr.bf16.mxu0 0
  %326 = vmatpush1.bf16.msra.mxu0 %v183
  %327 = vmatprep.subr.bf16.mxu0 0
  %328 = vmatpush1.bf16.msra.mxu0 %v184
  %329 = vmatprep.subr.bf16.mxu0 0
  %330 = vmatpush1.bf16.msra.mxu0 %v185
  %331 = vmatprep.subr.bf16.mxu0 0
  %332 = vmatpush1.bf16.msra.mxu0 %v186
  %333 = vmatprep.subr.bf16.mxu0 0
  %334 = vmatpush1.bf16.msra.mxu0 %v187
  %335 = vmatprep.subr.bf16.mxu0 0
  %336 = vmatpush1.bf16.msra.mxu0 %v188
  %337 = vmatprep.subr.bf16.mxu0 0
  %338 = vmatpush1.bf16.msra.mxu0 %v189
  %339 = vmatprep.subr.bf16.mxu0 0
  %340 = vmatpush1.bf16.msra.mxu0 %v190
  %341 = vmatprep.subr.bf16.mxu0 0
  %342 = vmatpush1.bf16.msra.mxu0 %v191
  %343 = vmatprep.subr.bf16.mxu0 0
  %344 = vmatpush1.bf16.msra.mxu0 0
  %345 = vmatprep.subr.bf16.mxu0 0
  %346 = vmatpush1.bf16.msra.mxu0 0
  %347 = vmatprep.subr.bf16.mxu0 0
  %348 = vmatpush1.bf16.msra.mxu0 0
  %349 = vmatprep.subr.bf16.mxu0 0
  %350 = vmatpush1.bf16.msra.mxu0 0
  %351 = vmatprep.subr.bf16.mxu0 0
  %352 = vmatpush1.bf16.msra.mxu0 0
  %353 = vmatprep.mubr.bf16.mxu0 %v201
  %354 = vmatmul.mubr.bf16.gmra.mrb[0].mxu0 %v81
  %v355 = vpop.f32.mrb[0].mxu0
  %v356 = vadd.f32 %v259, %v355
  %v357 = vpop.f32.mrb[0].mxu0
  %v358 = vpop.f32.mrb[0].mxu0
  %v359 = vadd.f32 %v262, %v358
  %v360 = vpop.f32.mrb[0].mxu0
  %361 = vmatprep.mubr.bf16.mxu0 %v204
  %362 = vmatmul.mubr.bf16.gmra.mrb[0].mxu0 %v85
  %v363 = vpop.f32.mrb[0].mxu0
  %v364 = vadd.f32 %v267, %v363
  %v365 = vpop.f32.mrb[0].mxu0
  %v366 = vpop.f32.mrb[0].mxu0
  %v367 = vadd.f32 %v270, %v366
  %v368 = vpop.f32.mrb[0].mxu0
  %369 = vmatprep.mubr.bf16.mxu0 %v207
  %370 = vmatmul.mubr.bf16.gmra.mrb[0].mxu0 %v89
  %v371 = vpop.f32.mrb[0].mxu0
  %v372 = vadd.f32 %v275, %v371
  %v373 = vpop.f32.mrb[0].mxu0
  %v374 = vpop.f32.mrb[0].mxu0
  %v375 = vadd.f32 %v278, %v374
  %v376 = vpop.f32.mrb[0].mxu0
  %377 = vmatprep.mubr.bf16.mxu0 %v210
  %378 = vmatmul.mubr.bf16.gmra.mrb[0].mxu0 %v93
  %v379 = vpop.f32.mrb[0].mxu0
  %v380 = vadd.f32 %v283, %v379
  %v381 = vpop.f32.mrb[0].mxu0
  %v382 = vpop.f32.mrb[0].mxu0
  %v383 = vadd.f32 %v286, %v382
  %v384 = vpop.f32.mrb[0].mxu0
  %385 = vmatprep.mubr.bf16.mxu0 %v213
  %386 = vmatmul.mubr.bf16.gmra.mrb[0].mxu0 %v97
  %v387 = vpop.f32.mrb[0].mxu0
  %v388 = vadd.f32 %v291, %v387
  %v389 = vpop.f32.mrb[0].mxu0
  %v390 = vpop.f32.mrb[0].mxu0
  %v391 = vadd.f32 %v294, %v390
  %v392 = vpop.f32.mrb[0].mxu0
  %393 = vmatprep.mubr.bf16.mxu0 %v216
  %394 = vmatmul.mubr.bf16.gmra.mrb[0].mxu0 %v101
  %v395 = vpop.f32.mrb[0].mxu0
  %v396 = vadd.f32 %v299, %v395
  %v397 = vpop.f32.mrb[0].mxu0
  %v398 = vpop.f32.mrb[0].mxu0
  %v399 = vadd.f32 %v302, %v398
  %v400 = vpop.f32.mrb[0].mxu0
  %401 = vmatprep.mubr.bf16.mxu0 %v219
  %402 = vmatmul.mubr.bf16.gmra.mrb[0].mxu0 %v105
  %v403 = vpop.f32.mrb[0].mxu0
  %v404 = vadd.f32 %v307, %v403
  %v405 = vpop.f32.mrb[0].mxu0
  %v406 = vpop.f32.mrb[0].mxu0
  %v407 = vadd.f32 %v310, %v406
  %v408 = vpop.f32.mrb[0].mxu0
  %409 = vmatprep.mubr.bf16.mxu0 %v222
  %410 = vmatmul.mubr.bf16.gmra.mrb[0].mxu0 %v109
  %v411 = vpop.f32.mrb[0].mxu0
  %v412 = vadd.f32 %v315, %v411
  %v413 = vpop.f32.mrb[0].mxu0
  %v414 = vpop.f32.mrb[0].mxu0
  %v415 = vadd.f32 %v318, %v414
  %v416 = vpop.f32.mrb[0].mxu0
  %417 = vdwg.mxu0
  %418 = vst [vmem:[%s3] sm:$0xff] %v356
  %419 = vst [vmem:[%s3 + $0x8] sm:$0xff] %v359
  %420 = vst [vmem:[%s3 + $0x10] sm:$0xff] %v364
  %421 = vst [vmem:[%s3 + $0x18] sm:$0xff] %v367
  %422 = vst [vmem:[%s3 + $0x20] sm:$0xff] %v372
  %423 = vst [vmem:[%s3 + $0x28] sm:$0xff] %v375
  %424 = vst [vmem:[%s3 + $0x30] sm:$0xff] %v380
  %425 = vst [vmem:[%s3 + $0x38] sm:$0xff] %v383
  %426 = vst [vmem:[%s3 + $0x40] sm:$0xff] %v388
  %427 = vst [vmem:[%s3 + $0x48] sm:$0xff] %v391
  %428 = vst [vmem:[%s3 + $0x50] sm:$0xff] %v396
  %429 = vst [vmem:[%s3 + $0x58] sm:$0xff] %v399
  %430 = vst [vmem:[%s3 + $0x60] sm:$0xff] %v404
  %431 = vst [vmem:[%s3 + $0x68] sm:$0xff] %v407
  %432 = vst [vmem:[%s3 + $0x70] sm:$0xff] %v412
  %433 = vst [vmem:[%s3 + $0x78] sm:$0xff] %v415
  // Predicated region
  $region14: #{_lambda_.28} parent=0 // pred_check
    _
  $region15: #{_lambda_.28} parent=0 // pred_check_branch
    %435 = sbr.rel (0) target = $region17
  $region16: #{_lambda_.28} parent=0 // pred_region
    _
  $region17: #{_lambda_.28} parent=0 // pred_fallthru
    _
  // Predicated region
  $region18: #{_lambda_.28} parent=0 // pred_check
    _
  $region19: #{_lambda_.28} parent=0 // pred_check_branch
    %437 = sbr.rel (0) target = $region21
  $region20: #{_lambda_.28} parent=0 // pred_region
    _
  $region21: #{_lambda_.28} parent=0 // pred_fallthru
    _

// kernel: _lambda_.29
$region0: #{_lambda_.29}
  #allocation0 [shape = 'u32[]', space=smem, size = 0x4, offset = 0x4, fixed_abs, tag = 'smem constant byte address 0x4 - core index']
  #allocation1 [shape = 'u32[144,128]{1,0:T(1,128)}', space=vmem, size = 0x12000, scoped, tag = 'internal scratch']
  %s0 = inlined_call_operand.vmem [shape: f32[128,12], index: 0, kind: input, shape index: {}]
  %s1 = inlined_call_operand.vmem [shape: f32[1,12], index: 1, kind: input, shape index: {}]
  %s2 = inlined_call_operand.vmem [shape: f32[1,12], index: 2, kind: input, shape index: {}]
  %s3 = inlined_call_operand.vmem [shape: f32[128,12], index: 3, kind: output, shape index: {}]
  %s4 = sld [smem:[#allocation0]]
  $region22: #{_lambda_.29} parent=0
    _
  %s6 = ssub.s32 1, %s4
  %s7 = scalar_select 0, %s6, %s4
  // Predicated region
  $region2: #{_lambda_.29} parent=0 // pred_check
    _
  $region3: #{_lambda_.29} parent=0 // pred_check_branch
    %9 = sbr.rel (0) target = $region5
  $region4: #{_lambda_.29} parent=0 // pred_region
    _
  $region5: #{_lambda_.29} parent=0 // pred_fallthru
    _
  // Predicated region
  $region6: #{_lambda_.29} parent=0 // pred_check
    _
  $region7: #{_lambda_.29} parent=0 // pred_check_branch
    %11 = sbr.rel (0) target = $region9
  $region8: #{_lambda_.29} parent=0 // pred_region
    _
  $region9: #{_lambda_.29} parent=0 // pred_fallthru
    _
  // Predicated region
  $region10: #{_lambda_.29} parent=0 // pred_check
    _
  $region11: #{_lambda_.29} parent=0 // pred_check_branch
    %13 = sbr.rel (0) target = $region13
  $region12: #{_lambda_.29} parent=0 // pred_region
    _
  $region13: #{_lambda_.29} parent=0 // pred_fallthru
    _
  %v14 = vld [vmem:[%s0] sm:$0xff]
  %v15 = vld [vmem:[%s0 + $0x8] sm:$0xff]
  %v16 = vld [vmem:[%s0 + $0x10] sm:$0xff]
  %v17 = vld [vmem:[%s0 + $0x18] sm:$0xff]
  %v18 = vld [vmem:[%s0 + $0x20] sm:$0xff]
  %v19 = vld [vmem:[%s0 + $0x28] sm:$0xff]
  %v20 = vld [vmem:[%s0 + $0x30] sm:$0xff]
  %v21 = vld [vmem:[%s0 + $0x38] sm:$0xff]
  %v22 = vld [vmem:[%s0 + $0x40] sm:$0xff]
  %v23 = vld [vmem:[%s0 + $0x48] sm:$0xff]
  %v24 = vld [vmem:[%s0 + $0x50] sm:$0xff]
  %v25 = vld [vmem:[%s0 + $0x58] sm:$0xff]
  %v26 = vld [vmem:[%s0 + $0x60] sm:$0xff]
  %v27 = vld [vmem:[%s0 + $0x68] sm:$0xff]
  %v28 = vld [vmem:[%s0 + $0x70] sm:$0xff]
  %v29 = vld [vmem:[%s0 + $0x78] sm:$0xff]
  %v30 = vld [vmem:[%s1] sm:$0x1]
  %v32 = vlaneseq
  %v33 = vshrl.u32 %v32, 7
  %v34 = vsub.s32 0, %v33
  %v35 = vrot.slane %v30, %v34
  %v37 = vmul.f32 %v14, %v35
  %v38 = vmul.f32 %v15, %v35
  %v39 = vmul.f32 %v16, %v35
  %v40 = vmul.f32 %v17, %v35
  %v41 = vmul.f32 %v18, %v35
  %v42 = vmul.f32 %v19, %v35
  %v43 = vmul.f32 %v20, %v35
  %v44 = vmul.f32 %v21, %v35
  %v45 = vmul.f32 %v22, %v35
  %v46 = vmul.f32 %v23, %v35
  %v47 = vmul.f32 %v24, %v35
  %v48 = vmul.f32 %v25, %v35
  %v49 = vmul.f32 %v26, %v35
  %v50 = vmul.f32 %v27, %v35
  %v51 = vmul.f32 %v28, %v35
  %v52 = vmul.f32 %v29, %v35
  %v53 = vld [vmem:[%s2] sm:$0x1]
  %v55 = vlaneseq
  %v56 = vshrl.u32 %v55, 7
  %v57 = vsub.s32 0, %v56
  %v58 = vrot.slane %v53, %v57
  %v60 = vadd.f32 %v37, %v58
  %v61 = vadd.f32 %v38, %v58
  %v62 = vadd.f32 %v39, %v58
  %v63 = vadd.f32 %v40, %v58
  %v64 = vadd.f32 %v41, %v58
  %v65 = vadd.f32 %v42, %v58
  %v66 = vadd.f32 %v43, %v58
  %v67 = vadd.f32 %v44, %v58
  %v68 = vadd.f32 %v45, %v58
  %v69 = vadd.f32 %v46, %v58
  %v70 = vadd.f32 %v47, %v58
  %v71 = vadd.f32 %v48, %v58
  %v72 = vadd.f32 %v49, %v58
  %v73 = vadd.f32 %v50, %v58
  %v74 = vadd.f32 %v51, %v58
  %v75 = vadd.f32 %v52, %v58
  %vm76 = vcmask 97280
  %77 = vst.msk [vmem:[%s3] sm:$0xff] %vm76, %v60
  %78 = vst.msk [vmem:[%s3 + $0x8] sm:$0xff] %vm76, %v61
  %79 = vst.msk [vmem:[%s3 + $0x10] sm:$0xff] %vm76, %v62
  %80 = vst.msk [vmem:[%s3 + $0x18] sm:$0xff] %vm76, %v63
  %81 = vst.msk [vmem:[%s3 + $0x20] sm:$0xff] %vm76, %v64
  %82 = vst.msk [vmem:[%s3 + $0x28] sm:$0xff] %vm76, %v65
  %83 = vst.msk [vmem:[%s3 + $0x30] sm:$0xff] %vm76, %v66
  %84 = vst.msk [vmem:[%s3 + $0x38] sm:$0xff] %vm76, %v67
  %85 = vst.msk [vmem:[%s3 + $0x40] sm:$0xff] %vm76, %v68
  %86 = vst.msk [vmem:[%s3 + $0x48] sm:$0xff] %vm76, %v69
  %87 = vst.msk [vmem:[%s3 + $0x50] sm:$0xff] %vm76, %v70
  %88 = vst.msk [vmem:[%s3 + $0x58] sm:$0xff] %vm76, %v71
  %89 = vst.msk [vmem:[%s3 + $0x60] sm:$0xff] %vm76, %v72
  %90 = vst.msk [vmem:[%s3 + $0x68] sm:$0xff] %vm76, %v73
  %91 = vst.msk [vmem:[%s3 + $0x70] sm:$0xff] %vm76, %v74
  %92 = vst.msk [vmem:[%s3 + $0x78] sm:$0xff] %vm76, %v75
  // Predicated region
  $region14: #{_lambda_.29} parent=0 // pred_check
    _
  $region15: #{_lambda_.29} parent=0 // pred_check_branch
    %94 = sbr.rel (0) target = $region17
  $region16: #{_lambda_.29} parent=0 // pred_region
    _
  $region17: #{_lambda_.29} parent=0 // pred_fallthru
    _
  // Predicated region
  $region18: #{_lambda_.29} parent=0 // pred_check
    _
  $region19: #{_lambda_.29} parent=0 // pred_check_branch
    %96 = sbr.rel (0) target = $region21
  $region20: #{_lambda_.29} parent=0 // pred_region
    _
  $region21: #{_lambda_.29} parent=0 // pred_fallthru
    _

// kernel: _lambda_.30
$region0: #{_lambda_.30}
  #allocation0 [shape = 'u32[]', space=smem, size = 0x4, offset = 0x4, fixed_abs, tag = 'smem constant byte address 0x4 - core index']
  #allocation1 [shape = 'u32[144,128]{1,0:T(1,128)}', space=vmem, size = 0x12000, scoped, tag = 'internal scratch']
  %s0 = inlined_call_operand.vmem [shape: f32[9,128,12], index: 0, kind: input, shape index: {}]
  %s1 = inlined_call_operand.vmem [shape: f32[9,1,12], index: 1, kind: input, shape index: {}]
  %s2 = inlined_call_operand.vmem [shape: f32[1,12], index: 2, kind: input, shape index: {}]
  %s3 = inlined_call_operand.vmem [shape: f32[128,12], index: 3, kind: output, shape index: {}]
  %s4 = sld [smem:[#allocation0]]
  $region22: #{_lambda_.30} parent=0
    _
  %s6 = ssub.s32 1, %s4
  %s7 = scalar_select 0, %s6, %s4
  // Predicated region
  $region2: #{_lambda_.30} parent=0 // pred_check
    _
  $region3: #{_lambda_.30} parent=0 // pred_check_branch
    %9 = sbr.rel (0) target = $region5
  $region4: #{_lambda_.30} parent=0 // pred_region
    _
  $region5: #{_lambda_.30} parent=0 // pred_fallthru
    _
  // Predicated region
  $region6: #{_lambda_.30} parent=0 // pred_check
    _
  $region7: #{_lambda_.30} parent=0 // pred_check_branch
    %11 = sbr.rel (0) target = $region9
  $region8: #{_lambda_.30} parent=0 // pred_region
    _
  $region9: #{_lambda_.30} parent=0 // pred_fallthru
    _
  // Predicated region
  $region10: #{_lambda_.30} parent=0 // pred_check
    _
  $region11: #{_lambda_.30} parent=0 // pred_check_branch
    %13 = sbr.rel (0) target = $region13
  $region12: #{_lambda_.30} parent=0 // pred_region
    _
  $region13: #{_lambda_.30} parent=0 // pred_fallthru
    _
  %v14 = vld [vmem:[%s1] sm:$0x1]
  %v15 = vld [vmem:[%s1 + $0x1] sm:$0x1]
  %v16 = vld [vmem:[%s1 + $0x2] sm:$0x1]
  %v17 = vld [vmem:[%s1 + $0x3] sm:$0x1]
  %v18 = vld [vmem:[%s1 + $0x4] sm:$0x1]
  %v19 = vld [vmem:[%s1 + $0x5] sm:$0x1]
  %v20 = vld [vmem:[%s1 + $0x6] sm:$0x1]
  %v21 = vld [vmem:[%s1 + $0x7] sm:$0x1]
  %v22 = vld [vmem:[%s1 + $0x8] sm:$0x1]
  %v23 = vld [vmem:[%s2] sm:$0x1]
  %v24 = vld [vmem:[%s0] sm:$0xff]
  %v25 = vld [vmem:[%s0 + $0x8] sm:$0xff]
  %v26 = vld [vmem:[%s0 + $0x10] sm:$0xff]
  %v27 = vld [vmem:[%s0 + $0x18] sm:$0xff]
  %v28 = vld [vmem:[%s0 + $0x20] sm:$0xff]
  %v29 = vld [vmem:[%s0 + $0x28] sm:$0xff]
  %v30 = vld [vmem:[%s0 + $0x30] sm:$0xff]
  %v31 = vld [vmem:[%s0 + $0x38] sm:$0xff]
  %v32 = vld [vmem:[%s0 + $0x40] sm:$0xff]
  %v33 = vld [vmem:[%s0 + $0x48] sm:$0xff]
  %v34 = vld [vmem:[%s0 + $0x50] sm:$0xff]
  %v35 = vld [vmem:[%s0 + $0x58] sm:$0xff]
  %v36 = vld [vmem:[%s0 + $0x60] sm:$0xff]
  %v37 = vld [vmem:[%s0 + $0x68] sm:$0xff]
  %v38 = vld [vmem:[%s0 + $0x70] sm:$0xff]
  %v39 = vld [vmem:[%s0 + $0x78] sm:$0xff]
  %v41 = vlaneseq
  %v42 = vshrl.u32 %v41, 7
  %v43 = vsub.s32 0, %v42
  %v44 = vrot.slane %v14, %v43
  %v46 = vmul.f32 %v24, %v44
  %v47 = vmul.f32 %v25, %v44
  %v48 = vmul.f32 %v26, %v44
  %v49 = vmul.f32 %v27, %v44
  %v50 = vmul.f32 %v28, %v44
  %v51 = vmul.f32 %v29, %v44
  %v52 = vmul.f32 %v30, %v44
  %v53 = vmul.f32 %v31, %v44
  %v54 = vmul.f32 %v32, %v44
  %v55 = vmul.f32 %v33, %v44
  %v56 = vmul.f32 %v34, %v44
  %v57 = vmul.f32 %v35, %v44
  %v58 = vmul.f32 %v36, %v44
  %v59 = vmul.f32 %v37, %v44
  %v60 = vmul.f32 %v38, %v44
  %v61 = vmul.f32 %v39, %v44
  %v63 = vlaneseq
  %v64 = vshrl.u32 %v63, 7
  %v65 = vsub.s32 0, %v64
  %v66 = vrot.slane %v23, %v65
  %v68 = vadd.f32 %v46, %v66
  %v69 = vadd.f32 %v47, %v66
  %v70 = vadd.f32 %v48, %v66
  %v71 = vadd.f32 %v49, %v66
  %v72 = vadd.f32 %v50, %v66
  %v73 = vadd.f32 %v51, %v66
  %v74 = vadd.f32 %v52, %v66
  %v75 = vadd.f32 %v53, %v66
  %v76 = vadd.f32 %v54, %v66
  %v77 = vadd.f32 %v55, %v66
  %v78 = vadd.f32 %v56, %v66
  %v79 = vadd.f32 %v57, %v66
  %v80 = vadd.f32 %v58, %v66
  %v81 = vadd.f32 %v59, %v66
  %v82 = vadd.f32 %v60, %v66
  %v83 = vadd.f32 %v61, %v66
  %s84 = scalar_lea.vmem %s0, 128
  %v85 = vld [vmem:[%s84] sm:$0xff]
  %v86 = vld [vmem:[%s84 + $0x8] sm:$0xff]
  %v87 = vld [vmem:[%s84 + $0x10] sm:$0xff]
  %v88 = vld [vmem:[%s84 + $0x18] sm:$0xff]
  %v89 = vld [vmem:[%s84 + $0x20] sm:$0xff]
  %v90 = vld [vmem:[%s84 + $0x28] sm:$0xff]
  %v91 = vld [vmem:[%s84 + $0x30] sm:$0xff]
  %v92 = vld [vmem:[%s84 + $0x38] sm:$0xff]
  %v93 = vld [vmem:[%s84 + $0x40] sm:$0xff]
  %v94 = vld [vmem:[%s84 + $0x48] sm:$0xff]
  %v95 = vld [vmem:[%s84 + $0x50] sm:$0xff]
  %v96 = vld [vmem:[%s84 + $0x58] sm:$0xff]
  %v97 = vld [vmem:[%s84 + $0x60] sm:$0xff]
  %v98 = vld [vmem:[%s84 + $0x68] sm:$0xff]
  %v99 = vld [vmem:[%s84 + $0x70] sm:$0xff]
  %v100 = vld [vmem:[%s84 + $0x78] sm:$0xff]
  %v102 = vlaneseq
  %v103 = vshrl.u32 %v102, 7
  %v104 = vsub.s32 0, %v103
  %v105 = vrot.slane %v15, %v104
  %v107 = vmul.f32 %v85, %v105
  %v108 = vmul.f32 %v86, %v105
  %v109 = vmul.f32 %v87, %v105
  %v110 = vmul.f32 %v88, %v105
  %v111 = vmul.f32 %v89, %v105
  %v112 = vmul.f32 %v90, %v105
  %v113 = vmul.f32 %v91, %v105
  %v114 = vmul.f32 %v92, %v105
  %v115 = vmul.f32 %v93, %v105
  %v116 = vmul.f32 %v94, %v105
  %v117 = vmul.f32 %v95, %v105
  %v118 = vmul.f32 %v96, %v105
  %v119 = vmul.f32 %v97, %v105
  %v120 = vmul.f32 %v98, %v105
  %v121 = vmul.f32 %v99, %v105
  %v122 = vmul.f32 %v100, %v105
  %v123 = vadd.f32 %v68, %v107
  %v124 = vadd.f32 %v69, %v108
  %v125 = vadd.f32 %v70, %v109
  %v126 = vadd.f32 %v71, %v110
  %v127 = vadd.f32 %v72, %v111
  %v128 = vadd.f32 %v73, %v112
  %v129 = vadd.f32 %v74, %v113
  %v130 = vadd.f32 %v75, %v114
  %v131 = vadd.f32 %v76, %v115
  %v132 = vadd.f32 %v77, %v116
  %v133 = vadd.f32 %v78, %v117
  %v134 = vadd.f32 %v79, %v118
  %v135 = vadd.f32 %v80, %v119
  %v136 = vadd.f32 %v81, %v120
  %v137 = vadd.f32 %v82, %v121
  %v138 = vadd.f32 %v83, %v122
  %s139 = scalar_lea.vmem %s0, 256
  %v140 = vld [vmem:[%s139] sm:$0xff]
  %v141 = vld [vmem:[%s139 + $0x8] sm:$0xff]
  %v142 = vld [vmem:[%s139 + $0x10] sm:$0xff]
  %v143 = vld [vmem:[%s139 + $0x18] sm:$0xff]
  %v144 = vld [vmem:[%s139 + $0x20] sm:$0xff]
  %v145 = vld [vmem:[%s139 + $0x28] sm:$0xff]
  %v146 = vld [vmem:[%s139 + $0x30] sm:$0xff]
  %v147 = vld [vmem:[%s139 + $0x38] sm:$0xff]
  %v148 = vld [vmem:[%s139 + $0x40] sm:$0xff]
  %v149 = vld [vmem:[%s139 + $0x48] sm:$0xff]
  %v150 = vld [vmem:[%s139 + $0x50] sm:$0xff]
  %v151 = vld [vmem:[%s139 + $0x58] sm:$0xff]
  %v152 = vld [vmem:[%s139 + $0x60] sm:$0xff]
  %v153 = vld [vmem:[%s139 + $0x68] sm:$0xff]
  %v154 = vld [vmem:[%s139 + $0x70] sm:$0xff]
  %v155 = vld [vmem:[%s139 + $0x78] sm:$0xff]
  %v157 = vlaneseq
  %v158 = vshrl.u32 %v157, 7
  %v159 = vsub.s32 0, %v158
  %v160 = vrot.slane %v16, %v159
  %v162 = vmul.f32 %v140, %v160
  %v163 = vmul.f32 %v141, %v160
  %v164 = vmul.f32 %v142, %v160
  %v165 = vmul.f32 %v143, %v160
  %v166 = vmul.f32 %v144, %v160
  %v167 = vmul.f32 %v145, %v160
  %v168 = vmul.f32 %v146, %v160
  %v169 = vmul.f32 %v147, %v160
  %v170 = vmul.f32 %v148, %v160
  %v171 = vmul.f32 %v149, %v160
  %v172 = vmul.f32 %v150, %v160
  %v173 = vmul.f32 %v151, %v160
  %v174 = vmul.f32 %v152, %v160
  %v175 = vmul.f32 %v153, %v160
  %v176 = vmul.f32 %v154, %v160
  %v177 = vmul.f32 %v155, %v160
  %v178 = vadd.f32 %v123, %v162
  %v179 = vadd.f32 %v124, %v163
  %v180 = vadd.f32 %v125, %v164
  %v181 = vadd.f32 %v126, %v165
  %v182 = vadd.f32 %v127, %v166
  %v183 = vadd.f32 %v128, %v167
  %v184 = vadd.f32 %v129, %v168
  %v185 = vadd.f32 %v130, %v169
  %v186 = vadd.f32 %v131, %v170
  %v187 = vadd.f32 %v132, %v171
  %v188 = vadd.f32 %v133, %v172
  %v189 = vadd.f32 %v134, %v173
  %v190 = vadd.f32 %v135, %v174
  %v191 = vadd.f32 %v136, %v175
  %v192 = vadd.f32 %v137, %v176
  %v193 = vadd.f32 %v138, %v177
  %s194 = scalar_lea.vmem %s0, 384
  %v195 = vld [vmem:[%s194] sm:$0xff]
  %v196 = vld [vmem:[%s194 + $0x8] sm:$0xff]
  %v197 = vld [vmem:[%s194 + $0x10] sm:$0xff]
  %v198 = vld [vmem:[%s194 + $0x18] sm:$0xff]
  %v199 = vld [vmem:[%s194 + $0x20] sm:$0xff]
  %v200 = vld [vmem:[%s194 + $0x28] sm:$0xff]
  %v201 = vld [vmem:[%s194 + $0x30] sm:$0xff]
  %v202 = vld [vmem:[%s194 + $0x38] sm:$0xff]
  %v203 = vld [vmem:[%s194 + $0x40] sm:$0xff]
  %v204 = vld [vmem:[%s194 + $0x48] sm:$0xff]
  %v205 = vld [vmem:[%s194 + $0x50] sm:$0xff]
  %v206 = vld [vmem:[%s194 + $0x58] sm:$0xff]
  %v207 = vld [vmem:[%s194 + $0x60] sm:$0xff]
  %v208 = vld [vmem:[%s194 + $0x68] sm:$0xff]
  %v209 = vld [vmem:[%s194 + $0x70] sm:$0xff]
  %v210 = vld [vmem:[%s194 + $0x78] sm:$0xff]
  %v212 = vlaneseq
  %v213 = vshrl.u32 %v212, 7
  %v214 = vsub.s32 0, %v213
  %v215 = vrot.slane %v17, %v214
  %v217 = vmul.f32 %v195, %v215
  %v218 = vmul.f32 %v196, %v215
  %v219 = vmul.f32 %v197, %v215
  %v220 = vmul.f32 %v198, %v215
  %v221 = vmul.f32 %v199, %v215
  %v222 = vmul.f32 %v200, %v215
  %v223 = vmul.f32 %v201, %v215
  %v224 = vmul.f32 %v202, %v215
  %v225 = vmul.f32 %v203, %v215
  %v226 = vmul.f32 %v204, %v215
  %v227 = vmul.f32 %v205, %v215
  %v228 = vmul.f32 %v206, %v215
  %v229 = vmul.f32 %v207, %v215
  %v230 = vmul.f32 %v208, %v215
  %v231 = vmul.f32 %v209, %v215
  %v232 = vmul.f32 %v210, %v215
  %v233 = vadd.f32 %v178, %v217
  %v234 = vadd.f32 %v179, %v218
  %v235 = vadd.f32 %v180, %v219
  %v236 = vadd.f32 %v181, %v220
  %v237 = vadd.f32 %v182, %v221
  %v238 = vadd.f32 %v183, %v222
  %v239 = vadd.f32 %v184, %v223
  %v240 = vadd.f32 %v185, %v224
  %v241 = vadd.f32 %v186, %v225
  %v242 = vadd.f32 %v187, %v226
  %v243 = vadd.f32 %v188, %v227
  %v244 = vadd.f32 %v189, %v228
  %v245 = vadd.f32 %v190, %v229
  %v246 = vadd.f32 %v191, %v230
  %v247 = vadd.f32 %v192, %v231
  %v248 = vadd.f32 %v193, %v232
  %s249 = scalar_lea.vmem %s0, 512
  %v250 = vld [vmem:[%s249] sm:$0xff]
  %v251 = vld [vmem:[%s249 + $0x8] sm:$0xff]
  %v252 = vld [vmem:[%s249 + $0x10] sm:$0xff]
  %v253 = vld [vmem:[%s249 + $0x18] sm:$0xff]
  %v254 = vld [vmem:[%s249 + $0x20] sm:$0xff]
  %v255 = vld [vmem:[%s249 + $0x28] sm:$0xff]
  %v256 = vld [vmem:[%s249 + $0x30] sm:$0xff]
  %v257 = vld [vmem:[%s249 + $0x38] sm:$0xff]
  %v258 = vld [vmem:[%s249 + $0x40] sm:$0xff]
  %v259 = vld [vmem:[%s249 + $0x48] sm:$0xff]
  %v260 = vld [vmem:[%s249 + $0x50] sm:$0xff]
  %v261 = vld [vmem:[%s249 + $0x58] sm:$0xff]
  %v262 = vld [vmem:[%s249 + $0x60] sm:$0xff]
  %v263 = vld [vmem:[%s249 + $0x68] sm:$0xff]
  %v264 = vld [vmem:[%s249 + $0x70] sm:$0xff]
  %v265 = vld [vmem:[%s249 + $0x78] sm:$0xff]
  %v267 = vlaneseq
  %v268 = vshrl.u32 %v267, 7
  %v269 = vsub.s32 0, %v268
  %v270 = vrot.slane %v18, %v269
  %v272 = vmul.f32 %v250, %v270
  %v273 = vmul.f32 %v251, %v270
  %v274 = vmul.f32 %v252, %v270
  %v275 = vmul.f32 %v253, %v270
  %v276 = vmul.f32 %v254, %v270
  %v277 = vmul.f32 %v255, %v270
  %v278 = vmul.f32 %v256, %v270
  %v279 = vmul.f32 %v257, %v270
  %v280 = vmul.f32 %v258, %v270
  %v281 = vmul.f32 %v259, %v270
  %v282 = vmul.f32 %v260, %v270
  %v283 = vmul.f32 %v261, %v270
  %v284 = vmul.f32 %v262, %v270
  %v285 = vmul.f32 %v263, %v270
  %v286 = vmul.f32 %v264, %v270
  %v287 = vmul.f32 %v265, %v270
  %v288 = vadd.f32 %v233, %v272
  %v289 = vadd.f32 %v234, %v273
  %v290 = vadd.f32 %v235, %v274
  %v291 = vadd.f32 %v236, %v275
  %v292 = vadd.f32 %v237, %v276
  %v293 = vadd.f32 %v238, %v277
  %v294 = vadd.f32 %v239, %v278
  %v295 = vadd.f32 %v240, %v279
  %v296 = vadd.f32 %v241, %v280
  %v297 = vadd.f32 %v242, %v281
  %v298 = vadd.f32 %v243, %v282
  %v299 = vadd.f32 %v244, %v283
  %v300 = vadd.f32 %v245, %v284
  %v301 = vadd.f32 %v246, %v285
  %v302 = vadd.f32 %v247, %v286
  %v303 = vadd.f32 %v248, %v287
  %s304 = scalar_lea.vmem %s0, 640
  %v305 = vld [vmem:[%s304] sm:$0xff]
  %v306 = vld [vmem:[%s304 + $0x8] sm:$0xff]
  %v307 = vld [vmem:[%s304 + $0x10] sm:$0xff]
  %v308 = vld [vmem:[%s304 + $0x18] sm:$0xff]
  %v309 = vld [vmem:[%s304 + $0x20] sm:$0xff]
  %v310 = vld [vmem:[%s304 + $0x28] sm:$0xff]
  %v311 = vld [vmem:[%s304 + $0x30] sm:$0xff]
  %v312 = vld [vmem:[%s304 + $0x38] sm:$0xff]
  %v313 = vld [vmem:[%s304 + $0x40] sm:$0xff]
  %v314 = vld [vmem:[%s304 + $0x48] sm:$0xff]
  %v315 = vld [vmem:[%s304 + $0x50] sm:$0xff]
  %v316 = vld [vmem:[%s304 + $0x58] sm:$0xff]
  %v317 = vld [vmem:[%s304 + $0x60] sm:$0xff]
  %v318 = vld [vmem:[%s304 + $0x68] sm:$0xff]
  %v319 = vld [vmem:[%s304 + $0x70] sm:$0xff]
  %v320 = vld [vmem:[%s304 + $0x78] sm:$0xff]
  %v322 = vlaneseq
  %v323 = vshrl.u32 %v322, 7
  %v324 = vsub.s32 0, %v323
  %v325 = vrot.slane %v19, %v324
  %v327 = vmul.f32 %v305, %v325
  %v328 = vmul.f32 %v306, %v325
  %v329 = vmul.f32 %v307, %v325
  %v330 = vmul.f32 %v308, %v325
  %v331 = vmul.f32 %v309, %v325
  %v332 = vmul.f32 %v310, %v325
  %v333 = vmul.f32 %v311, %v325
  %v334 = vmul.f32 %v312, %v325
  %v335 = vmul.f32 %v313, %v325
  %v336 = vmul.f32 %v314, %v325
  %v337 = vmul.f32 %v315, %v325
  %v338 = vmul.f32 %v316, %v325
  %v339 = vmul.f32 %v317, %v325
  %v340 = vmul.f32 %v318, %v325
  %v341 = vmul.f32 %v319, %v325
  %v342 = vmul.f32 %v320, %v325
  %v343 = vadd.f32 %v288, %v327
  %v344 = vadd.f32 %v289, %v328
  %v345 = vadd.f32 %v290, %v329
  %v346 = vadd.f32 %v291, %v330
  %v347 = vadd.f32 %v292, %v331
  %v348 = vadd.f32 %v293, %v332
  %v349 = vadd.f32 %v294, %v333
  %v350 = vadd.f32 %v295, %v334
  %v351 = vadd.f32 %v296, %v335
  %v352 = vadd.f32 %v297, %v336
  %v353 = vadd.f32 %v298, %v337
  %v354 = vadd.f32 %v299, %v338
  %v355 = vadd.f32 %v300, %v339
  %v356 = vadd.f32 %v301, %v340
  %v357 = vadd.f32 %v302, %v341
  %v358 = vadd.f32 %v303, %v342
  %s359 = scalar_lea.vmem %s0, 768
  %v360 = vld [vmem:[%s359] sm:$0xff]
  %v361 = vld [vmem:[%s359 + $0x8] sm:$0xff]
  %v362 = vld [vmem:[%s359 + $0x10] sm:$0xff]
  %v363 = vld [vmem:[%s359 + $0x18] sm:$0xff]
  %v364 = vld [vmem:[%s359 + $0x20] sm:$0xff]
  %v365 = vld [vmem:[%s359 + $0x28] sm:$0xff]
  %v366 = vld [vmem:[%s359 + $0x30] sm:$0xff]
  %v367 = vld [vmem:[%s359 + $0x38] sm:$0xff]
  %v368 = vld [vmem:[%s359 + $0x40] sm:$0xff]
  %v369 = vld [vmem:[%s359 + $0x48] sm:$0xff]
  %v370 = vld [vmem:[%s359 + $0x50] sm:$0xff]
  %v371 = vld [vmem:[%s359 + $0x58] sm:$0xff]
  %v372 = vld [vmem:[%s359 + $0x60] sm:$0xff]
  %v373 = vld [vmem:[%s359 + $0x68] sm:$0xff]
  %v374 = vld [vmem:[%s359 + $0x70] sm:$0xff]
  %v375 = vld [vmem:[%s359 + $0x78] sm:$0xff]
  %v377 = vlaneseq
  %v378 = vshrl.u32 %v377, 7
  %v379 = vsub.s32 0, %v378
  %v380 = vrot.slane %v20, %v379
  %v382 = vmul.f32 %v360, %v380
  %v383 = vmul.f32 %v361, %v380
  %v384 = vmul.f32 %v362, %v380
  %v385 = vmul.f32 %v363, %v380
  %v386 = vmul.f32 %v364, %v380
  %v387 = vmul.f32 %v365, %v380
  %v388 = vmul.f32 %v366, %v380
  %v389 = vmul.f32 %v367, %v380
  %v390 = vmul.f32 %v368, %v380
  %v391 = vmul.f32 %v369, %v380
  %v392 = vmul.f32 %v370, %v380
  %v393 = vmul.f32 %v371, %v380
  %v394 = vmul.f32 %v372, %v380
  %v395 = vmul.f32 %v373, %v380
  %v396 = vmul.f32 %v374, %v380
  %v397 = vmul.f32 %v375, %v380
  %v398 = vadd.f32 %v343, %v382
  %v399 = vadd.f32 %v344, %v383
  %v400 = vadd.f32 %v345, %v384
  %v401 = vadd.f32 %v346, %v385
  %v402 = vadd.f32 %v347, %v386
  %v403 = vadd.f32 %v348, %v387
  %v404 = vadd.f32 %v349, %v388
  %v405 = vadd.f32 %v350, %v389
  %v406 = vadd.f32 %v351, %v390
  %v407 = vadd.f32 %v352, %v391
  %v408 = vadd.f32 %v353, %v392
  %v409 = vadd.f32 %v354, %v393
  %v410 = vadd.f32 %v355, %v394
  %v411 = vadd.f32 %v356, %v395
  %v412 = vadd.f32 %v357, %v396
  %v413 = vadd.f32 %v358, %v397
  %s414 = scalar_lea.vmem %s0, 896
  %v415 = vld [vmem:[%s414] sm:$0xff]
  %v416 = vld [vmem:[%s414 + $0x8] sm:$0xff]
  %v417 = vld [vmem:[%s414 + $0x10] sm:$0xff]
  %v418 = vld [vmem:[%s414 + $0x18] sm:$0xff]
  %v419 = vld [vmem:[%s414 + $0x20] sm:$0xff]
  %v420 = vld [vmem:[%s414 + $0x28] sm:$0xff]
  %v421 = vld [vmem:[%s414 + $0x30] sm:$0xff]
  %v422 = vld [vmem:[%s414 + $0x38] sm:$0xff]
  %v423 = vld [vmem:[%s414 + $0x40] sm:$0xff]
  %v424 = vld [vmem:[%s414 + $0x48] sm:$0xff]
  %v425 = vld [vmem:[%s414 + $0x50] sm:$0xff]
  %v426 = vld [vmem:[%s414 + $0x58] sm:$0xff]
  %v427 = vld [vmem:[%s414 + $0x60] sm:$0xff]
  %v428 = vld [vmem:[%s414 + $0x68] sm:$0xff]
  %v429 = vld [vmem:[%s414 + $0x70] sm:$0xff]
  %v430 = vld [vmem:[%s414 + $0x78] sm:$0xff]
  %v432 = vlaneseq
  %v433 = vshrl.u32 %v432, 7
  %v434 = vsub.s32 0, %v433
  %v435 = vrot.slane %v21, %v434
  %v437 = vmul.f32 %v415, %v435
  %v438 = vmul.f32 %v416, %v435
  %v439 = vmul.f32 %v417, %v435
  %v440 = vmul.f32 %v418, %v435
  %v441 = vmul.f32 %v419, %v435
  %v442 = vmul.f32 %v420, %v435
  %v443 = vmul.f32 %v421, %v435
  %v444 = vmul.f32 %v422, %v435
  %v445 = vmul.f32 %v423, %v435
  %v446 = vmul.f32 %v424, %v435
  %v447 = vmul.f32 %v425, %v435
  %v448 = vmul.f32 %v426, %v435
  %v449 = vmul.f32 %v427, %v435
  %v450 = vmul.f32 %v428, %v435
  %v451 = vmul.f32 %v429, %v435
  %v452 = vmul.f32 %v430, %v435
  %v453 = vadd.f32 %v398, %v437
  %v454 = vadd.f32 %v399, %v438
  %v455 = vadd.f32 %v400, %v439
  %v456 = vadd.f32 %v401, %v440
  %v457 = vadd.f32 %v402, %v441
  %v458 = vadd.f32 %v403, %v442
  %v459 = vadd.f32 %v404, %v443
  %v460 = vadd.f32 %v405, %v444
  %v461 = vadd.f32 %v406, %v445
  %v462 = vadd.f32 %v407, %v446
  %v463 = vadd.f32 %v408, %v447
  %v464 = vadd.f32 %v409, %v448
  %v465 = vadd.f32 %v410, %v449
  %v466 = vadd.f32 %v411, %v450
  %v467 = vadd.f32 %v412, %v451
  %v468 = vadd.f32 %v413, %v452
  %s469 = scalar_lea.vmem %s0, 1024
  %v470 = vld [vmem:[%s469] sm:$0xff]
  %v471 = vld [vmem:[%s469 + $0x8] sm:$0xff]
  %v472 = vld [vmem:[%s469 + $0x10] sm:$0xff]
  %v473 = vld [vmem:[%s469 + $0x18] sm:$0xff]
  %v474 = vld [vmem:[%s469 + $0x20] sm:$0xff]
  %v475 = vld [vmem:[%s469 + $0x28] sm:$0xff]
  %v476 = vld [vmem:[%s469 + $0x30] sm:$0xff]
  %v477 = vld [vmem:[%s469 + $0x38] sm:$0xff]
  %v478 = vld [vmem:[%s469 + $0x40] sm:$0xff]
  %v479 = vld [vmem:[%s469 + $0x48] sm:$0xff]
  %v480 = vld [vmem:[%s469 + $0x50] sm:$0xff]
  %v481 = vld [vmem:[%s469 + $0x58] sm:$0xff]
  %v482 = vld [vmem:[%s469 + $0x60] sm:$0xff]
  %v483 = vld [vmem:[%s469 + $0x68] sm:$0xff]
  %v484 = vld [vmem:[%s469 + $0x70] sm:$0xff]
  %v485 = vld [vmem:[%s469 + $0x78] sm:$0xff]
  %v487 = vlaneseq
  %v488 = vshrl.u32 %v487, 7
  %v489 = vsub.s32 0, %v488
  %v490 = vrot.slane %v22, %v489
  %v492 = vmul.f32 %v470, %v490
  %v493 = vmul.f32 %v471, %v490
  %v494 = vmul.f32 %v472, %v490
  %v495 = vmul.f32 %v473, %v490
  %v496 = vmul.f32 %v474, %v490
  %v497 = vmul.f32 %v475, %v490
  %v498 = vmul.f32 %v476, %v490
  %v499 = vmul.f32 %v477, %v490
  %v500 = vmul.f32 %v478, %v490
  %v501 = vmul.f32 %v479, %v490
  %v502 = vmul.f32 %v480, %v490
  %v503 = vmul.f32 %v481, %v490
  %v504 = vmul.f32 %v482, %v490
  %v505 = vmul.f32 %v483, %v490
  %v506 = vmul.f32 %v484, %v490
  %v507 = vmul.f32 %v485, %v490
  %v508 = vadd.f32 %v453, %v492
  %v509 = vadd.f32 %v454, %v493
  %v510 = vadd.f32 %v455, %v494
  %v511 = vadd.f32 %v456, %v495
  %v512 = vadd.f32 %v457, %v496
  %v513 = vadd.f32 %v458, %v497
  %v514 = vadd.f32 %v459, %v498
  %v515 = vadd.f32 %v460, %v499
  %v516 = vadd.f32 %v461, %v500
  %v517 = vadd.f32 %v462, %v501
  %v518 = vadd.f32 %v463, %v502
  %v519 = vadd.f32 %v464, %v503
  %v520 = vadd.f32 %v465, %v504
  %v521 = vadd.f32 %v466, %v505
  %v522 = vadd.f32 %v467, %v506
  %v523 = vadd.f32 %v468, %v507
  %vm524 = vcmask 97280
  %525 = vst.msk [vmem:[%s3] sm:$0xff] %vm524, %v508
  %526 = vst.msk [vmem:[%s3 + $0x8] sm:$0xff] %vm524, %v509
  %527 = vst.msk [vmem:[%s3 + $0x10] sm:$0xff] %vm524, %v510
  %528 = vst.msk [vmem:[%s3 + $0x18] sm:$0xff] %vm524, %v511
  %529 = vst.msk [vmem:[%s3 + $0x20] sm:$0xff] %vm524, %v512
  %530 = vst.msk [vmem:[%s3 + $0x28] sm:$0xff] %vm524, %v513
  %531 = vst.msk [vmem:[%s3 + $0x30] sm:$0xff] %vm524, %v514
  %532 = vst.msk [vmem:[%s3 + $0x38] sm:$0xff] %vm524, %v515
  %533 = vst.msk [vmem:[%s3 + $0x40] sm:$0xff] %vm524, %v516
  %534 = vst.msk [vmem:[%s3 + $0x48] sm:$0xff] %vm524, %v517
  %535 = vst.msk [vmem:[%s3 + $0x50] sm:$0xff] %vm524, %v518
  %536 = vst.msk [vmem:[%s3 + $0x58] sm:$0xff] %vm524, %v519
  %537 = vst.msk [vmem:[%s3 + $0x60] sm:$0xff] %vm524, %v520
  %538 = vst.msk [vmem:[%s3 + $0x68] sm:$0xff] %vm524, %v521
  %539 = vst.msk [vmem:[%s3 + $0x70] sm:$0xff] %vm524, %v522
  %540 = vst.msk [vmem:[%s3 + $0x78] sm:$0xff] %vm524, %v523
  // Predicated region
  $region14: #{_lambda_.30} parent=0 // pred_check
    _
  $region15: #{_lambda_.30} parent=0 // pred_check_branch
    %542 = sbr.rel (0) target = $region17
  $region16: #{_lambda_.30} parent=0 // pred_region
    _
  $region17: #{_lambda_.30} parent=0 // pred_fallthru
    _
  // Predicated region
  $region18: #{_lambda_.30} parent=0 // pred_check
    _
  $region19: #{_lambda_.30} parent=0 // pred_check_branch
    %544 = sbr.rel (0) target = $region21
  $region20: #{_lambda_.30} parent=0 // pred_region
    _
  $region21: #{_lambda_.30} parent=0 // pred_fallthru
    _

// kernel: _lambda_.18
$region0: #{_lambda_.18}
  #allocation0 [shape = 'u32[]', space=smem, size = 0x4, offset = 0x4, fixed_abs, tag = 'smem constant byte address 0x4 - core index']
  #allocation1 [shape = 'u32[144,128]{1,0:T(1,128)}', space=vmem, size = 0x12000, scoped, tag = 'internal scratch']
  %s0 = inlined_call_operand.vmem [shape: f32[128,16], index: 0, kind: input, shape index: {}]
  %s1 = inlined_call_operand.vmem [shape: f32[16,128], index: 1, kind: input, shape index: {}]
  %s2 = inlined_call_operand.vmem [shape: f32[1,128], index: 2, kind: input, shape index: {}]
  %s3 = inlined_call_operand.vmem [shape: f32[128,128], index: 3, kind: output, shape index: {}]
  %s4 = sld [smem:[#allocation0]]
  $region22: #{_lambda_.18} parent=0
    _
  %s6 = ssub.s32 1, %s4
  %s7 = scalar_select 0, %s6, %s4
  // Predicated region
  $region2: #{_lambda_.18} parent=0 // pred_check
    _
  $region3: #{_lambda_.18} parent=0 // pred_check_branch
    %9 = sbr.rel (0) target = $region5
  $region4: #{_lambda_.18} parent=0 // pred_region
    _
  $region5: #{_lambda_.18} parent=0 // pred_fallthru
    _
  // Predicated region
  $region6: #{_lambda_.18} parent=0 // pred_check
    _
  $region7: #{_lambda_.18} parent=0 // pred_check_branch
    %11 = sbr.rel (0) target = $region9
  $region8: #{_lambda_.18} parent=0 // pred_region
    _
  $region9: #{_lambda_.18} parent=0 // pred_fallthru
    _
  // Predicated region
  $region10: #{_lambda_.18} parent=0 // pred_check
    _
  $region11: #{_lambda_.18} parent=0 // pred_check_branch
    %13 = sbr.rel (0) target = $region13
  $region12: #{_lambda_.18} parent=0 // pred_region
    _
  $region13: #{_lambda_.18} parent=0 // pred_fallthru
    _
  %v15 = vld [vmem:[%s0] sm:$0xff]
  %v16 = vld [vmem:[%s0 + $0x8] sm:$0xff]
  %v17 = vld [vmem:[%s0 + $0x10] sm:$0xff]
  %v18 = vld [vmem:[%s0 + $0x18] sm:$0xff]
  %v19 = vld [vmem:[%s0 + $0x20] sm:$0xff]
  %v20 = vld [vmem:[%s0 + $0x28] sm:$0xff]
  %v21 = vld [vmem:[%s0 + $0x30] sm:$0xff]
  %v22 = vld [vmem:[%s0 + $0x38] sm:$0xff]
  %v23 = vld [vmem:[%s0 + $0x40] sm:$0xff]
  %v24 = vld [vmem:[%s0 + $0x48] sm:$0xff]
  %v25 = vld [vmem:[%s0 + $0x50] sm:$0xff]
  %v26 = vld [vmem:[%s0 + $0x58] sm:$0xff]
  %v27 = vld [vmem:[%s0 + $0x60] sm:$0xff]
  %v28 = vld [vmem:[%s0 + $0x68] sm:$0xff]
  %v29 = vld [vmem:[%s0 + $0x70] sm:$0xff]
  %v30 = vld [vmem:[%s0 + $0x78] sm:$0xff]
  %v31 = vpack.c.bf16 %v16, %v15
  %v32 = vpack.c.bf16 %v18, %v17
  %v33 = vpack.c.bf16 %v20, %v19
  %v34 = vpack.c.bf16 %v22, %v21
  %v35 = vpack.c.bf16 %v24, %v23
  %v36 = vpack.c.bf16 %v26, %v25
  %v37 = vpack.c.bf16 %v28, %v27
  %v38 = vpack.c.bf16 %v30, %v29
  %v39 = vld [vmem:[%s1] sm:$0xff]
  %v40 = vld [vmem:[%s1 + $0x8] sm:$0xff]
  %v41 = vpack.c.bf16 %v40, %v39
  %v42 = vld [vmem:[%s2] sm:$0x1]
  %v44 = vlaneseq
  %v45 = vshrl.u32 %v44, 7
  %v46 = vsub.s32 0, %v45
  %v47 = vrot.slane %v42, %v46
  %vm49 = vcmask 130048
  %v51 = vsel %vm49, %v31, 0
  %v54 = vsel %vm49, %v32, 0
  %v57 = vsel %vm49, %v33, 0
  %v60 = vsel %vm49, %v34, 0
  %v63 = vsel %vm49, %v35, 0
  %v66 = vsel %vm49, %v36, 0
  %v69 = vsel %vm49, %v37, 0
  %v72 = vsel %vm49, %v38, 0
  %74 = vmatprep.subr.bf16.mxu0 0
  %75 = vmatpush1.bf16.msra.mxu0 %v41
  %76 = vmatprep.subr.bf16.mxu0 0
  %77 = vmatpush1.bf16.msra.mxu0 0
  %78 = vmatprep.subr.bf16.mxu0 0
  %79 = vmatpush1.bf16.msra.mxu0 0
  %80 = vmatprep.subr.bf16.mxu0 0
  %81 = vmatpush1.bf16.msra.mxu0 0
  %82 = vmatprep.subr.bf16.mxu0 0
  %83 = vmatpush1.bf16.msra.mxu0 0
  %84 = vmatprep.subr.bf16.mxu0 0
  %85 = vmatpush1.bf16.msra.mxu0 0
  %86 = vmatprep.subr.bf16.mxu0 0
  %87 = vmatpush1.bf16.msra.mxu0 0
  %88 = vmatprep.subr.bf16.mxu0 0
  %89 = vmatpush1.bf16.msra.mxu0 0
  %90 = vmatprep.subr.bf16.mxu0 0
  %91 = vmatpush1.bf16.msra.mxu0 0
  %92 = vmatprep.subr.bf16.mxu0 0
  %93 = vmatpush1.bf16.msra.mxu0 0
  %94 = vmatprep.subr.bf16.mxu0 0
  %95 = vmatpush1.bf16.msra.mxu0 0
  %96 = vmatprep.subr.bf16.mxu0 0
  %97 = vmatpush1.bf16.msra.mxu0 0
  %98 = vmatprep.subr.bf16.mxu0 0
  %99 = vmatpush1.bf16.msra.mxu0 0
  %100 = vmatprep.subr.bf16.mxu0 0
  %101 = vmatpush1.bf16.msra.mxu0 0
  %102 = vmatprep.subr.bf16.mxu0 0
  %103 = vmatpush1.bf16.msra.mxu0 0
  %104 = vmatprep.subr.bf16.mxu0 0
  %105 = vmatpush1.bf16.msra.mxu0 0
  %106 = vmatprep.mubr.bf16.mxu0 0
  %107 = vmatmul.mubr.bf16.gmra.mrb[0].mxu0 %v51
  %v108 = vpop.f32.mrb[0].mxu0
  %v109 = vadd.f32 %v47, %v108
  %v110 = vpop.f32.mrb[0].mxu0
  %v111 = vpop.f32.mrb[0].mxu0
  %v112 = vadd.f32 %v47, %v111
  %v113 = vpop.f32.mrb[0].mxu0
  %114 = vmatprep.mubr.bf16.mxu0 0
  %115 = vmatmul.mubr.bf16.gmra.mrb[0].mxu0 %v54
  %v116 = vpop.f32.mrb[0].mxu0
  %v117 = vadd.f32 %v47, %v116
  %v118 = vpop.f32.mrb[0].mxu0
  %v119 = vpop.f32.mrb[0].mxu0
  %v120 = vadd.f32 %v47, %v119
  %v121 = vpop.f32.mrb[0].mxu0
  %122 = vmatprep.mubr.bf16.mxu0 0
  %123 = vmatmul.mubr.bf16.gmra.mrb[0].mxu0 %v57
  %v124 = vpop.f32.mrb[0].mxu0
  %v125 = vadd.f32 %v47, %v124
  %v126 = vpop.f32.mrb[0].mxu0
  %v127 = vpop.f32.mrb[0].mxu0
  %v128 = vadd.f32 %v47, %v127
  %v129 = vpop.f32.mrb[0].mxu0
  %130 = vmatprep.mubr.bf16.mxu0 0
  %131 = vmatmul.mubr.bf16.gmra.mrb[0].mxu0 %v60
  %v132 = vpop.f32.mrb[0].mxu0
  %v133 = vadd.f32 %v47, %v132
  %v134 = vpop.f32.mrb[0].mxu0
  %v135 = vpop.f32.mrb[0].mxu0
  %v136 = vadd.f32 %v47, %v135
  %v137 = vpop.f32.mrb[0].mxu0
  %138 = vmatprep.mubr.bf16.mxu0 0
  %139 = vmatmul.mubr.bf16.gmra.mrb[0].mxu0 %v63
  %v140 = vpop.f32.mrb[0].mxu0
  %v141 = vadd.f32 %v47, %v140
  %v142 = vpop.f32.mrb[0].mxu0
  %v143 = vpop.f32.mrb[0].mxu0
  %v144 = vadd.f32 %v47, %v143
  %v145 = vpop.f32.mrb[0].mxu0
  %146 = vmatprep.mubr.bf16.mxu0 0
  %147 = vmatmul.mubr.bf16.gmra.mrb[0].mxu0 %v66
  %v148 = vpop.f32.mrb[0].mxu0
  %v149 = vadd.f32 %v47, %v148
  %v150 = vpop.f32.mrb[0].mxu0
  %v151 = vpop.f32.mrb[0].mxu0
  %v152 = vadd.f32 %v47, %v151
  %v153 = vpop.f32.mrb[0].mxu0
  %154 = vmatprep.mubr.bf16.mxu0 0
  %155 = vmatmul.mubr.bf16.gmra.mrb[0].mxu0 %v69
  %v156 = vpop.f32.mrb[0].mxu0
  %v157 = vadd.f32 %v47, %v156
  %v158 = vpop.f32.mrb[0].mxu0
  %v159 = vpop.f32.mrb[0].mxu0
  %v160 = vadd.f32 %v47, %v159
  %v161 = vpop.f32.mrb[0].mxu0
  %162 = vmatprep.mubr.bf16.mxu0 0
  %163 = vmatmul.mubr.bf16.gmra.mrb[0].mxu0 %v72
  %v164 = vpop.f32.mrb[0].mxu0
  %v165 = vadd.f32 %v47, %v164
  %v166 = vpop.f32.mrb[0].mxu0
  %v167 = vpop.f32.mrb[0].mxu0
  %v168 = vadd.f32 %v47, %v167
  %v169 = vpop.f32.mrb[0].mxu0
  %170 = vdwg.mxu0
  %171 = vst [vmem:[%s3] sm:$0xff] %v109
  %172 = vst [vmem:[%s3 + $0x8] sm:$0xff] %v112
  %173 = vst [vmem:[%s3 + $0x10] sm:$0xff] %v117
  %174 = vst [vmem:[%s3 + $0x18] sm:$0xff] %v120
  %175 = vst [vmem:[%s3 + $0x20] sm:$0xff] %v125
  %176 = vst [vmem:[%s3 + $0x28] sm:$0xff] %v128
  %177 = vst [vmem:[%s3 + $0x30] sm:$0xff] %v133
  %178 = vst [vmem:[%s3 + $0x38] sm:$0xff] %v136
  %179 = vst [vmem:[%s3 + $0x40] sm:$0xff] %v141
  %180 = vst [vmem:[%s3 + $0x48] sm:$0xff] %v144
  %181 = vst [vmem:[%s3 + $0x50] sm:$0xff] %v149
  %182 = vst [vmem:[%s3 + $0x58] sm:$0xff] %v152
  %183 = vst [vmem:[%s3 + $0x60] sm:$0xff] %v157
  %184 = vst [vmem:[%s3 + $0x68] sm:$0xff] %v160
  %185 = vst [vmem:[%s3 + $0x70] sm:$0xff] %v165
  %186 = vst [vmem:[%s3 + $0x78] sm:$0xff] %v168
  // Predicated region
  $region14: #{_lambda_.18} parent=0 // pred_check
    _
  $region15: #{_lambda_.18} parent=0 // pred_check_branch
    %188 = sbr.rel (0) target = $region17
  $region16: #{_lambda_.18} parent=0 // pred_region
    _
  $region17: #{_lambda_.18} parent=0 // pred_fallthru
    _
  // Predicated region
  $region18: #{_lambda_.18} parent=0 // pred_check
    _
  $region19: #{_lambda_.18} parent=0 // pred_check_branch
    %190 = sbr.rel (0) target = $region21
  $region20: #{_lambda_.18} parent=0 // pred_region
    _
  $region21: #{_lambda_.18} parent=0 // pred_fallthru
    _

// kernel: _lambda_.17
$region0: #{_lambda_.17}
  #allocation0 [shape = 'u32[]', space=smem, size = 0x4, offset = 0x4, fixed_abs, tag = 'smem constant byte address 0x4 - core index']
  #allocation1 [shape = 'u32[144,128]{1,0:T(1,128)}', space=vmem, size = 0x12000, scoped, tag = 'internal scratch']
  %s0 = inlined_call_operand.vmem [shape: f32[128,16], index: 0, kind: input, shape index: {}]
  %s1 = inlined_call_operand.vmem [shape: f32[1,16], index: 1, kind: input, shape index: {}]
  %s2 = inlined_call_operand.vmem [shape: f32[1,16], index: 2, kind: input, shape index: {}]
  %s3 = inlined_call_operand.vmem [shape: f32[128,16], index: 3, kind: output, shape index: {}]
  %s4 = sld [smem:[#allocation0]]
  $region22: #{_lambda_.17} parent=0
    _
  %s6 = ssub.s32 1, %s4
  %s7 = scalar_select 0, %s6, %s4
  // Predicated region
  $region2: #{_lambda_.17} parent=0 // pred_check
    _
  $region3: #{_lambda_.17} parent=0 // pred_check_branch
    %9 = sbr.rel (0) target = $region5
  $region4: #{_lambda_.17} parent=0 // pred_region
    _
  $region5: #{_lambda_.17} parent=0 // pred_fallthru
    _
  // Predicated region
  $region6: #{_lambda_.17} parent=0 // pred_check
    _
  $region7: #{_lambda_.17} parent=0 // pred_check_branch
    %11 = sbr.rel (0) target = $region9
  $region8: #{_lambda_.17} parent=0 // pred_region
    _
  $region9: #{_lambda_.17} parent=0 // pred_fallthru
    _
  // Predicated region
  $region10: #{_lambda_.17} parent=0 // pred_check
    _
  $region11: #{_lambda_.17} parent=0 // pred_check_branch
    %13 = sbr.rel (0) target = $region13
  $region12: #{_lambda_.17} parent=0 // pred_region
    _
  $region13: #{_lambda_.17} parent=0 // pred_fallthru
    _
  %v14 = vld [vmem:[%s0] sm:$0xff]
  %v15 = vld [vmem:[%s0 + $0x8] sm:$0xff]
  %v16 = vld [vmem:[%s0 + $0x10] sm:$0xff]
  %v17 = vld [vmem:[%s0 + $0x18] sm:$0xff]
  %v18 = vld [vmem:[%s0 + $0x20] sm:$0xff]
  %v19 = vld [vmem:[%s0 + $0x28] sm:$0xff]
  %v20 = vld [vmem:[%s0 + $0x30] sm:$0xff]
  %v21 = vld [vmem:[%s0 + $0x38] sm:$0xff]
  %v22 = vld [vmem:[%s0 + $0x40] sm:$0xff]
  %v23 = vld [vmem:[%s0 + $0x48] sm:$0xff]
  %v24 = vld [vmem:[%s0 + $0x50] sm:$0xff]
  %v25 = vld [vmem:[%s0 + $0x58] sm:$0xff]
  %v26 = vld [vmem:[%s0 + $0x60] sm:$0xff]
  %v27 = vld [vmem:[%s0 + $0x68] sm:$0xff]
  %v28 = vld [vmem:[%s0 + $0x70] sm:$0xff]
  %v29 = vld [vmem:[%s0 + $0x78] sm:$0xff]
  %v30 = vld [vmem:[%s1] sm:$0x1]
  %v32 = vlaneseq
  %v33 = vshrl.u32 %v32, 7
  %v34 = vsub.s32 0, %v33
  %v35 = vrot.slane %v30, %v34
  %v37 = vmul.f32 %v14, %v35
  %v38 = vmul.f32 %v15, %v35
  %v39 = vmul.f32 %v16, %v35
  %v40 = vmul.f32 %v17, %v35
  %v41 = vmul.f32 %v18, %v35
  %v42 = vmul.f32 %v19, %v35
  %v43 = vmul.f32 %v20, %v35
  %v44 = vmul.f32 %v21, %v35
  %v45 = vmul.f32 %v22, %v35
  %v46 = vmul.f32 %v23, %v35
  %v47 = vmul.f32 %v24, %v35
  %v48 = vmul.f32 %v25, %v35
  %v49 = vmul.f32 %v26, %v35
  %v50 = vmul.f32 %v27, %v35
  %v51 = vmul.f32 %v28, %v35
  %v52 = vmul.f32 %v29, %v35
  %v53 = vld [vmem:[%s2] sm:$0x1]
  %v55 = vlaneseq
  %v56 = vshrl.u32 %v55, 7
  %v57 = vsub.s32 0, %v56
  %v58 = vrot.slane %v53, %v57
  %v60 = vadd.f32 %v37, %v58
  %v61 = vadd.f32 %v38, %v58
  %v62 = vadd.f32 %v39, %v58
  %v63 = vadd.f32 %v40, %v58
  %v64 = vadd.f32 %v41, %v58
  %v65 = vadd.f32 %v42, %v58
  %v66 = vadd.f32 %v43, %v58
  %v67 = vadd.f32 %v44, %v58
  %v68 = vadd.f32 %v45, %v58
  %v69 = vadd.f32 %v46, %v58
  %v70 = vadd.f32 %v47, %v58
  %v71 = vadd.f32 %v48, %v58
  %v72 = vadd.f32 %v49, %v58
  %v73 = vadd.f32 %v50, %v58
  %v74 = vadd.f32 %v51, %v58
  %v75 = vadd.f32 %v52, %v58
  %vm76 = vcmask 130048
  %77 = vst.msk [vmem:[%s3] sm:$0xff] %vm76, %v60
  %78 = vst.msk [vmem:[%s3 + $0x8] sm:$0xff] %vm76, %v61
  %79 = vst.msk [vmem:[%s3 + $0x10] sm:$0xff] %vm76, %v62
  %80 = vst.msk [vmem:[%s3 + $0x18] sm:$0xff] %vm76, %v63
  %81 = vst.msk [vmem:[%s3 + $0x20] sm:$0xff] %vm76, %v64
  %82 = vst.msk [vmem:[%s3 + $0x28] sm:$0xff] %vm76, %v65
  %83 = vst.msk [vmem:[%s3 + $0x30] sm:$0xff] %vm76, %v66
  %84 = vst.msk [vmem:[%s3 + $0x38] sm:$0xff] %vm76, %v67
  %85 = vst.msk [vmem:[%s3 + $0x40] sm:$0xff] %vm76, %v68
  %86 = vst.msk [vmem:[%s3 + $0x48] sm:$0xff] %vm76, %v69
  %87 = vst.msk [vmem:[%s3 + $0x50] sm:$0xff] %vm76, %v70
  %88 = vst.msk [vmem:[%s3 + $0x58] sm:$0xff] %vm76, %v71
  %89 = vst.msk [vmem:[%s3 + $0x60] sm:$0xff] %vm76, %v72
  %90 = vst.msk [vmem:[%s3 + $0x68] sm:$0xff] %vm76, %v73
  %91 = vst.msk [vmem:[%s3 + $0x70] sm:$0xff] %vm76, %v74
  %92 = vst.msk [vmem:[%s3 + $0x78] sm:$0xff] %vm76, %v75
  // Predicated region
  $region14: #{_lambda_.17} parent=0 // pred_check
    _
  $region15: #{_lambda_.17} parent=0 // pred_check_branch
    %94 = sbr.rel (0) target = $region17
  $region16: #{_lambda_.17} parent=0 // pred_region
    _
  $region17: #{_lambda_.17} parent=0 // pred_fallthru
    _
  // Predicated region
  $region18: #{_lambda_.17} parent=0 // pred_check
    _
  $region19: #{_lambda_.17} parent=0 // pred_check_branch
    %96 = sbr.rel (0) target = $region21
  $region20: #{_lambda_.17} parent=0 // pred_region
    _
  $region21: #{_lambda_.17} parent=0 // pred_fallthru
    _

// kernel: _lambda_.16
$region0: #{_lambda_.16}
  #allocation0 [shape = 'u32[]', space=smem, size = 0x4, offset = 0x4, fixed_abs, tag = 'smem constant byte address 0x4 - core index']
  #allocation1 [shape = 'u32[144,128]{1,0:T(1,128)}', space=vmem, size = 0x12000, scoped, tag = 'internal scratch']
  %s0 = inlined_call_operand.vmem [shape: f32[9,128,16], index: 0, kind: input, shape index: {}]
  %s1 = inlined_call_operand.vmem [shape: f32[9,1,16], index: 1, kind: input, shape index: {}]
  %s2 = inlined_call_operand.vmem [shape: f32[1,16], index: 2, kind: input, shape index: {}]
  %s3 = inlined_call_operand.vmem [shape: f32[128,16], index: 3, kind: output, shape index: {}]
  %s4 = sld [smem:[#allocation0]]
  $region22: #{_lambda_.16} parent=0
    _
  %s6 = ssub.s32 1, %s4
  %s7 = scalar_select 0, %s6, %s4
  // Predicated region
  $region2: #{_lambda_.16} parent=0 // pred_check
    _
  $region3: #{_lambda_.16} parent=0 // pred_check_branch
    %9 = sbr.rel (0) target = $region5
  $region4: #{_lambda_.16} parent=0 // pred_region
    _
  $region5: #{_lambda_.16} parent=0 // pred_fallthru
    _
  // Predicated region
  $region6: #{_lambda_.16} parent=0 // pred_check
    _
  $region7: #{_lambda_.16} parent=0 // pred_check_branch
    %11 = sbr.rel (0) target = $region9
  $region8: #{_lambda_.16} parent=0 // pred_region
    _
  $region9: #{_lambda_.16} parent=0 // pred_fallthru
    _
  // Predicated region
  $region10: #{_lambda_.16} parent=0 // pred_check
    _
  $region11: #{_lambda_.16} parent=0 // pred_check_branch
    %13 = sbr.rel (0) target = $region13
  $region12: #{_lambda_.16} parent=0 // pred_region
    _
  $region13: #{_lambda_.16} parent=0 // pred_fallthru
    _
  %v14 = vld [vmem:[%s1] sm:$0x1]
  %v15 = vld [vmem:[%s1 + $0x1] sm:$0x1]
  %v16 = vld [vmem:[%s1 + $0x2] sm:$0x1]
  %v17 = vld [vmem:[%s1 + $0x3] sm:$0x1]
  %v18 = vld [vmem:[%s1 + $0x4] sm:$0x1]
  %v19 = vld [vmem:[%s1 + $0x5] sm:$0x1]
  %v20 = vld [vmem:[%s1 + $0x6] sm:$0x1]
  %v21 = vld [vmem:[%s1 + $0x7] sm:$0x1]
  %v22 = vld [vmem:[%s1 + $0x8] sm:$0x1]
  %v23 = vld [vmem:[%s2] sm:$0x1]
  %v24 = vld [vmem:[%s0] sm:$0xff]
  %v25 = vld [vmem:[%s0 + $0x8] sm:$0xff]
  %v26 = vld [vmem:[%s0 + $0x10] sm:$0xff]
  %v27 = vld [vmem:[%s0 + $0x18] sm:$0xff]
  %v28 = vld [vmem:[%s0 + $0x20] sm:$0xff]
  %v29 = vld [vmem:[%s0 + $0x28] sm:$0xff]
  %v30 = vld [vmem:[%s0 + $0x30] sm:$0xff]
  %v31 = vld [vmem:[%s0 + $0x38] sm:$0xff]
  %v32 = vld [vmem:[%s0 + $0x40] sm:$0xff]
  %v33 = vld [vmem:[%s0 + $0x48] sm:$0xff]
  %v34 = vld [vmem:[%s0 + $0x50] sm:$0xff]
  %v35 = vld [vmem:[%s0 + $0x58] sm:$0xff]
  %v36 = vld [vmem:[%s0 + $0x60] sm:$0xff]
  %v37 = vld [vmem:[%s0 + $0x68] sm:$0xff]
  %v38 = vld [vmem:[%s0 + $0x70] sm:$0xff]
  %v39 = vld [vmem:[%s0 + $0x78] sm:$0xff]
  %v41 = vlaneseq
  %v42 = vshrl.u32 %v41, 7
  %v43 = vsub.s32 0, %v42
  %v44 = vrot.slane %v14, %v43
  %v46 = vmul.f32 %v24, %v44
  %v47 = vmul.f32 %v25, %v44
  %v48 = vmul.f32 %v26, %v44
  %v49 = vmul.f32 %v27, %v44
  %v50 = vmul.f32 %v28, %v44
  %v51 = vmul.f32 %v29, %v44
  %v52 = vmul.f32 %v30, %v44
  %v53 = vmul.f32 %v31, %v44
  %v54 = vmul.f32 %v32, %v44
  %v55 = vmul.f32 %v33, %v44
  %v56 = vmul.f32 %v34, %v44
  %v57 = vmul.f32 %v35, %v44
  %v58 = vmul.f32 %v36, %v44
  %v59 = vmul.f32 %v37, %v44
  %v60 = vmul.f32 %v38, %v44
  %v61 = vmul.f32 %v39, %v44
  %v63 = vlaneseq
  %v64 = vshrl.u32 %v63, 7
  %v65 = vsub.s32 0, %v64
  %v66 = vrot.slane %v23, %v65
  %v68 = vadd.f32 %v46, %v66
  %v69 = vadd.f32 %v47, %v66
  %v70 = vadd.f32 %v48, %v66
  %v71 = vadd.f32 %v49, %v66
  %v72 = vadd.f32 %v50, %v66
  %v73 = vadd.f32 %v51, %v66
  %v74 = vadd.f32 %v52, %v66
  %v75 = vadd.f32 %v53, %v66
  %v76 = vadd.f32 %v54, %v66
  %v77 = vadd.f32 %v55, %v66
  %v78 = vadd.f32 %v56, %v66
  %v79 = vadd.f32 %v57, %v66
  %v80 = vadd.f32 %v58, %v66
  %v81 = vadd.f32 %v59, %v66
  %v82 = vadd.f32 %v60, %v66
  %v83 = vadd.f32 %v61, %v66
  %s84 = scalar_lea.vmem %s0, 128
  %v85 = vld [vmem:[%s84] sm:$0xff]
  %v86 = vld [vmem:[%s84 + $0x8] sm:$0xff]
  %v87 = vld [vmem:[%s84 + $0x10] sm:$0xff]
  %v88 = vld [vmem:[%s84 + $0x18] sm:$0xff]
  %v89 = vld [vmem:[%s84 + $0x20] sm:$0xff]
  %v90 = vld [vmem:[%s84 + $0x28] sm:$0xff]
  %v91 = vld [vmem:[%s84 + $0x30] sm:$0xff]
  %v92 = vld [vmem:[%s84 + $0x38] sm:$0xff]
  %v93 = vld [vmem:[%s84 + $0x40] sm:$0xff]
  %v94 = vld [vmem:[%s84 + $0x48] sm:$0xff]
  %v95 = vld [vmem:[%s84 + $0x50] sm:$0xff]
  %v96 = vld [vmem:[%s84 + $0x58] sm:$0xff]
  %v97 = vld [vmem:[%s84 + $0x60] sm:$0xff]
  %v98 = vld [vmem:[%s84 + $0x68] sm:$0xff]
  %v99 = vld [vmem:[%s84 + $0x70] sm:$0xff]
  %v100 = vld [vmem:[%s84 + $0x78] sm:$0xff]
  %v102 = vlaneseq
  %v103 = vshrl.u32 %v102, 7
  %v104 = vsub.s32 0, %v103
  %v105 = vrot.slane %v15, %v104
  %v107 = vmul.f32 %v85, %v105
  %v108 = vmul.f32 %v86, %v105
  %v109 = vmul.f32 %v87, %v105
  %v110 = vmul.f32 %v88, %v105
  %v111 = vmul.f32 %v89, %v105
  %v112 = vmul.f32 %v90, %v105
  %v113 = vmul.f32 %v91, %v105
  %v114 = vmul.f32 %v92, %v105
  %v115 = vmul.f32 %v93, %v105
  %v116 = vmul.f32 %v94, %v105
  %v117 = vmul.f32 %v95, %v105
  %v118 = vmul.f32 %v96, %v105
  %v119 = vmul.f32 %v97, %v105
  %v120 = vmul.f32 %v98, %v105
  %v121 = vmul.f32 %v99, %v105
  %v122 = vmul.f32 %v100, %v105
  %v123 = vadd.f32 %v68, %v107
  %v124 = vadd.f32 %v69, %v108
  %v125 = vadd.f32 %v70, %v109
  %v126 = vadd.f32 %v71, %v110
  %v127 = vadd.f32 %v72, %v111
  %v128 = vadd.f32 %v73, %v112
  %v129 = vadd.f32 %v74, %v113
  %v130 = vadd.f32 %v75, %v114
  %v131 = vadd.f32 %v76, %v115
  %v132 = vadd.f32 %v77, %v116
  %v133 = vadd.f32 %v78, %v117
  %v134 = vadd.f32 %v79, %v118
  %v135 = vadd.f32 %v80, %v119
  %v136 = vadd.f32 %v81, %v120
  %v137 = vadd.f32 %v82, %v121
  %v138 = vadd.f32 %v83, %v122
  %s139 = scalar_lea.vmem %s0, 256
  %v140 = vld [vmem:[%s139] sm:$0xff]
  %v141 = vld [vmem:[%s139 + $0x8] sm:$0xff]
  %v142 = vld [vmem:[%s139 + $0x10] sm:$0xff]
  %v143 = vld [vmem:[%s139 + $0x18] sm:$0xff]
  %v144 = vld [vmem:[%s139 + $0x20] sm:$0xff]
  %v145 = vld [vmem:[%s139 + $0x28] sm:$0xff]
  %v146 = vld [vmem:[%s139 + $0x30] sm:$0xff]
  %v147 = vld [vmem:[%s139 + $0x38] sm:$0xff]
  %v148 = vld [vmem:[%s139 + $0x40] sm:$0xff]
  %v149 = vld [vmem:[%s139 + $0x48] sm:$0xff]
  %v150 = vld [vmem:[%s139 + $0x50] sm:$0xff]
  %v151 = vld [vmem:[%s139 + $0x58] sm:$0xff]
  %v152 = vld [vmem:[%s139 + $0x60] sm:$0xff]
  %v153 = vld [vmem:[%s139 + $0x68] sm:$0xff]
  %v154 = vld [vmem:[%s139 + $0x70] sm:$0xff]
  %v155 = vld [vmem:[%s139 + $0x78] sm:$0xff]
  %v157 = vlaneseq
  %v158 = vshrl.u32 %v157, 7
  %v159 = vsub.s32 0, %v158
  %v160 = vrot.slane %v16, %v159
  %v162 = vmul.f32 %v140, %v160
  %v163 = vmul.f32 %v141, %v160
  %v164 = vmul.f32 %v142, %v160
  %v165 = vmul.f32 %v143, %v160
  %v166 = vmul.f32 %v144, %v160
  %v167 = vmul.f32 %v145, %v160
  %v168 = vmul.f32 %v146, %v160
  %v169 = vmul.f32 %v147, %v160
  %v170 = vmul.f32 %v148, %v160
  %v171 = vmul.f32 %v149, %v160
  %v172 = vmul.f32 %v150, %v160
  %v173 = vmul.f32 %v151, %v160
  %v174 = vmul.f32 %v152, %v160
  %v175 = vmul.f32 %v153, %v160
  %v176 = vmul.f32 %v154, %v160
  %v177 = vmul.f32 %v155, %v160
  %v178 = vadd.f32 %v123, %v162
  %v179 = vadd.f32 %v124, %v163
  %v180 = vadd.f32 %v125, %v164
  %v181 = vadd.f32 %v126, %v165
  %v182 = vadd.f32 %v127, %v166
  %v183 = vadd.f32 %v128, %v167
  %v184 = vadd.f32 %v129, %v168
  %v185 = vadd.f32 %v130, %v169
  %v186 = vadd.f32 %v131, %v170
  %v187 = vadd.f32 %v132, %v171
  %v188 = vadd.f32 %v133, %v172
  %v189 = vadd.f32 %v134, %v173
  %v190 = vadd.f32 %v135, %v174
  %v191 = vadd.f32 %v136, %v175
  %v192 = vadd.f32 %v137, %v176
  %v193 = vadd.f32 %v138, %v177
  %s194 = scalar_lea.vmem %s0, 384
  %v195 = vld [vmem:[%s194] sm:$0xff]
  %v196 = vld [vmem:[%s194 + $0x8] sm:$0xff]
  %v197 = vld [vmem:[%s194 + $0x10] sm:$0xff]
  %v198 = vld [vmem:[%s194 + $0x18] sm:$0xff]
  %v199 = vld [vmem:[%s194 + $0x20] sm:$0xff]
  %v200 = vld [vmem:[%s194 + $0x28] sm:$0xff]
  %v201 = vld [vmem:[%s194 + $0x30] sm:$0xff]
  %v202 = vld [vmem:[%s194 + $0x38] sm:$0xff]
  %v203 = vld [vmem:[%s194 + $0x40] sm:$0xff]
  %v204 = vld [vmem:[%s194 + $0x48] sm:$0xff]
  %v205 = vld [vmem:[%s194 + $0x50] sm:$0xff]
  %v206 = vld [vmem:[%s194 + $0x58] sm:$0xff]
  %v207 = vld [vmem:[%s194 + $0x60] sm:$0xff]
  %v208 = vld [vmem:[%s194 + $0x68] sm:$0xff]
  %v209 = vld [vmem:[%s194 + $0x70] sm:$0xff]
  %v210 = vld [vmem:[%s194 + $0x78] sm:$0xff]
  %v212 = vlaneseq
  %v213 = vshrl.u32 %v212, 7
  %v214 = vsub.s32 0, %v213
  %v215 = vrot.slane %v17, %v214
  %v217 = vmul.f32 %v195, %v215
  %v218 = vmul.f32 %v196, %v215
  %v219 = vmul.f32 %v197, %v215
  %v220 = vmul.f32 %v198, %v215
  %v221 = vmul.f32 %v199, %v215
  %v222 = vmul.f32 %v200, %v215
  %v223 = vmul.f32 %v201, %v215
  %v224 = vmul.f32 %v202, %v215
  %v225 = vmul.f32 %v203, %v215
  %v226 = vmul.f32 %v204, %v215
  %v227 = vmul.f32 %v205, %v215
  %v228 = vmul.f32 %v206, %v215
  %v229 = vmul.f32 %v207, %v215
  %v230 = vmul.f32 %v208, %v215
  %v231 = vmul.f32 %v209, %v215
  %v232 = vmul.f32 %v210, %v215
  %v233 = vadd.f32 %v178, %v217
  %v234 = vadd.f32 %v179, %v218
  %v235 = vadd.f32 %v180, %v219
  %v236 = vadd.f32 %v181, %v220
  %v237 = vadd.f32 %v182, %v221
  %v238 = vadd.f32 %v183, %v222
  %v239 = vadd.f32 %v184, %v223
  %v240 = vadd.f32 %v185, %v224
  %v241 = vadd.f32 %v186, %v225
  %v242 = vadd.f32 %v187, %v226
  %v243 = vadd.f32 %v188, %v227
  %v244 = vadd.f32 %v189, %v228
  %v245 = vadd.f32 %v190, %v229
  %v246 = vadd.f32 %v191, %v230
  %v247 = vadd.f32 %v192, %v231
  %v248 = vadd.f32 %v193, %v232
  %s249 = scalar_lea.vmem %s0, 512
  %v250 = vld [vmem:[%s249] sm:$0xff]
  %v251 = vld [vmem:[%s249 + $0x8] sm:$0xff]
  %v252 = vld [vmem:[%s249 + $0x10] sm:$0xff]
  %v253 = vld [vmem:[%s249 + $0x18] sm:$0xff]
  %v254 = vld [vmem:[%s249 + $0x20] sm:$0xff]
  %v255 = vld [vmem:[%s249 + $0x28] sm:$0xff]
  %v256 = vld [vmem:[%s249 + $0x30] sm:$0xff]
  %v257 = vld [vmem:[%s249 + $0x38] sm:$0xff]
  %v258 = vld [vmem:[%s249 + $0x40] sm:$0xff]
  %v259 = vld [vmem:[%s249 + $0x48] sm:$0xff]
  %v260 = vld [vmem:[%s249 + $0x50] sm:$0xff]
  %v261 = vld [vmem:[%s249 + $0x58] sm:$0xff]
  %v262 = vld [vmem:[%s249 + $0x60] sm:$0xff]
  %v263 = vld [vmem:[%s249 + $0x68] sm:$0xff]
  %v264 = vld [vmem:[%s249 + $0x70] sm:$0xff]
  %v265 = vld [vmem:[%s249 + $0x78] sm:$0xff]
  %v267 = vlaneseq
  %v268 = vshrl.u32 %v267, 7
  %v269 = vsub.s32 0, %v268
  %v270 = vrot.slane %v18, %v269
  %v272 = vmul.f32 %v250, %v270
  %v273 = vmul.f32 %v251, %v270
  %v274 = vmul.f32 %v252, %v270
  %v275 = vmul.f32 %v253, %v270
  %v276 = vmul.f32 %v254, %v270
  %v277 = vmul.f32 %v255, %v270
  %v278 = vmul.f32 %v256, %v270
  %v279 = vmul.f32 %v257, %v270
  %v280 = vmul.f32 %v258, %v270
  %v281 = vmul.f32 %v259, %v270
  %v282 = vmul.f32 %v260, %v270
  %v283 = vmul.f32 %v261, %v270
  %v284 = vmul.f32 %v262, %v270
  %v285 = vmul.f32 %v263, %v270
  %v286 = vmul.f32 %v264, %v270
  %v287 = vmul.f32 %v265, %v270
  %v288 = vadd.f32 %v233, %v272
  %v289 = vadd.f32 %v234, %v273
  %v290 = vadd.f32 %v235, %v274
  %v291 = vadd.f32 %v236, %v275
  %v292 = vadd.f32 %v237, %v276
  %v293 = vadd.f32 %v238, %v277
  %v294 = vadd.f32 %v239, %v278
  %v295 = vadd.f32 %v240, %v279
  %v296 = vadd.f32 %v241, %v280
  %v297 = vadd.f32 %v242, %v281
  %v298 = vadd.f32 %v243, %v282
  %v299 = vadd.f32 %v244, %v283
  %v300 = vadd.f32 %v245, %v284
  %v301 = vadd.f32 %v246, %v285
  %v302 = vadd.f32 %v247, %v286
  %v303 = vadd.f32 %v248, %v287
  %s304 = scalar_lea.vmem %s0, 640
  %v305 = vld [vmem:[%s304] sm:$0xff]
  %v306 = vld [vmem:[%s304 + $0x8] sm:$0xff]
  %v307 = vld [vmem:[%s304 + $0x10] sm:$0xff]
  %v308 = vld [vmem:[%s304 + $0x18] sm:$0xff]
  %v309 = vld [vmem:[%s304 + $0x20] sm:$0xff]
  %v310 = vld [vmem:[%s304 + $0x28] sm:$0xff]
  %v311 = vld [vmem:[%s304 + $0x30] sm:$0xff]
  %v312 = vld [vmem:[%s304 + $0x38] sm:$0xff]
  %v313 = vld [vmem:[%s304 + $0x40] sm:$0xff]
  %v314 = vld [vmem:[%s304 + $0x48] sm:$0xff]
  %v315 = vld [vmem:[%s304 + $0x50] sm:$0xff]
  %v316 = vld [vmem:[%s304 + $0x58] sm:$0xff]
  %v317 = vld [vmem:[%s304 + $0x60] sm:$0xff]
  %v318 = vld [vmem:[%s304 + $0x68] sm:$0xff]
  %v319 = vld [vmem:[%s304 + $0x70] sm:$0xff]
  %v320 = vld [vmem:[%s304 + $0x78] sm:$0xff]
  %v322 = vlaneseq
  %v323 = vshrl.u32 %v322, 7
  %v324 = vsub.s32 0, %v323
  %v325 = vrot.slane %v19, %v324
  %v327 = vmul.f32 %v305, %v325
  %v328 = vmul.f32 %v306, %v325
  %v329 = vmul.f32 %v307, %v325
  %v330 = vmul.f32 %v308, %v325
  %v331 = vmul.f32 %v309, %v325
  %v332 = vmul.f32 %v310, %v325
  %v333 = vmul.f32 %v311, %v325
  %v334 = vmul.f32 %v312, %v325
  %v335 = vmul.f32 %v313, %v325
  %v336 = vmul.f32 %v314, %v325
  %v337 = vmul.f32 %v315, %v325
  %v338 = vmul.f32 %v316, %v325
  %v339 = vmul.f32 %v317, %v325
  %v340 = vmul.f32 %v318, %v325
  %v341 = vmul.f32 %v319, %v325
  %v342 = vmul.f32 %v320, %v325
  %v343 = vadd.f32 %v288, %v327
  %v344 = vadd.f32 %v289, %v328
  %v345 = vadd.f32 %v290, %v329
  %v346 = vadd.f32 %v291, %v330
  %v347 = vadd.f32 %v292, %v331
  %v348 = vadd.f32 %v293, %v332
  %v349 = vadd.f32 %v294, %v333
  %v350 = vadd.f32 %v295, %v334
  %v351 = vadd.f32 %v296, %v335
  %v352 = vadd.f32 %v297, %v336
  %v353 = vadd.f32 %v298, %v337
  %v354 = vadd.f32 %v299, %v338
  %v355 = vadd.f32 %v300, %v339
  %v356 = vadd.f32 %v301, %v340
  %v357 = vadd.f32 %v302, %v341
  %v358 = vadd.f32 %v303, %v342
  %s359 = scalar_lea.vmem %s0, 768
  %v360 = vld [vmem:[%s359] sm:$0xff]
  %v361 = vld [vmem:[%s359 + $0x8] sm:$0xff]
  %v362 = vld [vmem:[%s359 + $0x10] sm:$0xff]
  %v363 = vld [vmem:[%s359 + $0x18] sm:$0xff]
  %v364 = vld [vmem:[%s359 + $0x20] sm:$0xff]
  %v365 = vld [vmem:[%s359 + $0x28] sm:$0xff]
  %v366 = vld [vmem:[%s359 + $0x30] sm:$0xff]
  %v367 = vld [vmem:[%s359 + $0x38] sm:$0xff]
  %v368 = vld [vmem:[%s359 + $0x40] sm:$0xff]
  %v369 = vld [vmem:[%s359 + $0x48] sm:$0xff]
  %v370 = vld [vmem:[%s359 + $0x50] sm:$0xff]
  %v371 = vld [vmem:[%s359 + $0x58] sm:$0xff]
  %v372 = vld [vmem:[%s359 + $0x60] sm:$0xff]
  %v373 = vld [vmem:[%s359 + $0x68] sm:$0xff]
  %v374 = vld [vmem:[%s359 + $0x70] sm:$0xff]
  %v375 = vld [vmem:[%s359 + $0x78] sm:$0xff]
  %v377 = vlaneseq
  %v378 = vshrl.u32 %v377, 7
  %v379 = vsub.s32 0, %v378
  %v380 = vrot.slane %v20, %v379
  %v382 = vmul.f32 %v360, %v380
  %v383 = vmul.f32 %v361, %v380
  %v384 = vmul.f32 %v362, %v380
  %v385 = vmul.f32 %v363, %v380
  %v386 = vmul.f32 %v364, %v380
  %v387 = vmul.f32 %v365, %v380
  %v388 = vmul.f32 %v366, %v380
  %v389 = vmul.f32 %v367, %v380
  %v390 = vmul.f32 %v368, %v380
  %v391 = vmul.f32 %v369, %v380
  %v392 = vmul.f32 %v370, %v380
  %v393 = vmul.f32 %v371, %v380
  %v394 = vmul.f32 %v372, %v380
  %v395 = vmul.f32 %v373, %v380
  %v396 = vmul.f32 %v374, %v380
  %v397 = vmul.f32 %v375, %v380
  %v398 = vadd.f32 %v343, %v382
  %v399 = vadd.f32 %v344, %v383
  %v400 = vadd.f32 %v345, %v384
  %v401 = vadd.f32 %v346, %v385
  %v402 = vadd.f32 %v347, %v386
  %v403 = vadd.f32 %v348, %v387
  %v404 = vadd.f32 %v349, %v388
  %v405 = vadd.f32 %v350, %v389
  %v406 = vadd.f32 %v351, %v390
  %v407 = vadd.f32 %v352, %v391
  %v408 = vadd.f32 %v353, %v392
  %v409 = vadd.f32 %v354, %v393
  %v410 = vadd.f32 %v355, %v394
  %v411 = vadd.f32 %v356, %v395
  %v412 = vadd.f32 %v357, %v396
  %v413 = vadd.f32 %v358, %v397
  %s414 = scalar_lea.vmem %s0, 896
  %v415 = vld [vmem:[%s414] sm:$0xff]
  %v416 = vld [vmem:[%s414 + $0x8] sm:$0xff]
  %v417 = vld [vmem:[%s414 + $0x10] sm:$0xff]
  %v418 = vld [vmem:[%s414 + $0x18] sm:$0xff]
  %v419 = vld [vmem:[%s414 + $0x20] sm:$0xff]
  %v420 = vld [vmem:[%s414 + $0x28] sm:$0xff]
  %v421 = vld [vmem:[%s414 + $0x30] sm:$0xff]
  %v422 = vld [vmem:[%s414 + $0x38] sm:$0xff]
  %v423 = vld [vmem:[%s414 + $0x40] sm:$0xff]
  %v424 = vld [vmem:[%s414 + $0x48] sm:$0xff]
  %v425 = vld [vmem:[%s414 + $0x50] sm:$0xff]
  %v426 = vld [vmem:[%s414 + $0x58] sm:$0xff]
  %v427 = vld [vmem:[%s414 + $0x60] sm:$0xff]
  %v428 = vld [vmem:[%s414 + $0x68] sm:$0xff]
  %v429 = vld [vmem:[%s414 + $0x70] sm:$0xff]
  %v430 = vld [vmem:[%s414 + $0x78] sm:$0xff]
  %v432 = vlaneseq
  %v433 = vshrl.u32 %v432, 7
  %v434 = vsub.s32 0, %v433
  %v435 = vrot.slane %v21, %v434
  %v437 = vmul.f32 %v415, %v435
  %v438 = vmul.f32 %v416, %v435
  %v439 = vmul.f32 %v417, %v435
  %v440 = vmul.f32 %v418, %v435
  %v441 = vmul.f32 %v419, %v435
  %v442 = vmul.f32 %v420, %v435
  %v443 = vmul.f32 %v421, %v435
  %v444 = vmul.f32 %v422, %v435
  %v445 = vmul.f32 %v423, %v435
  %v446 = vmul.f32 %v424, %v435
  %v447 = vmul.f32 %v425, %v435
  %v448 = vmul.f32 %v426, %v435
  %v449 = vmul.f32 %v427, %v435
  %v450 = vmul.f32 %v428, %v435
  %v451 = vmul.f32 %v429, %v435
  %v452 = vmul.f32 %v430, %v435
  %v453 = vadd.f32 %v398, %v437
  %v454 = vadd.f32 %v399, %v438
  %v455 = vadd.f32 %v400, %v439
  %v456 = vadd.f32 %v401, %v440
  %v457 = vadd.f32 %v402, %v441
  %v458 = vadd.f32 %v403, %v442
  %v459 = vadd.f32 %v404, %v443
  %v460 = vadd.f32 %v405, %v444
  %v461 = vadd.f32 %v406, %v445
  %v462 = vadd.f32 %v407, %v446
  %v463 = vadd.f32 %v408, %v447
  %v464 = vadd.f32 %v409, %v448
  %v465 = vadd.f32 %v410, %v449
  %v466 = vadd.f32 %v411, %v450
  %v467 = vadd.f32 %v412, %v451
  %v468 = vadd.f32 %v413, %v452
  %s469 = scalar_lea.vmem %s0, 1024
  %v470 = vld [vmem:[%s469] sm:$0xff]
  %v471 = vld [vmem:[%s469 + $0x8] sm:$0xff]
  %v472 = vld [vmem:[%s469 + $0x10] sm:$0xff]
  %v473 = vld [vmem:[%s469 + $0x18] sm:$0xff]
  %v474 = vld [vmem:[%s469 + $0x20] sm:$0xff]
  %v475 = vld [vmem:[%s469 + $0x28] sm:$0xff]
  %v476 = vld [vmem:[%s469 + $0x30] sm:$0xff]
  %v477 = vld [vmem:[%s469 + $0x38] sm:$0xff]
  %v478 = vld [vmem:[%s469 + $0x40] sm:$0xff]
  %v479 = vld [vmem:[%s469 + $0x48] sm:$0xff]
  %v480 = vld [vmem:[%s469 + $0x50] sm:$0xff]
  %v481 = vld [vmem:[%s469 + $0x58] sm:$0xff]
  %v482 = vld [vmem:[%s469 + $0x60] sm:$0xff]
  %v483 = vld [vmem:[%s469 + $0x68] sm:$0xff]
  %v484 = vld [vmem:[%s469 + $0x70] sm:$0xff]
  %v485 = vld [vmem:[%s469 + $0x78] sm:$0xff]
  %v487 = vlaneseq
  %v488 = vshrl.u32 %v487, 7
  %v489 = vsub.s32 0, %v488
  %v490 = vrot.slane %v22, %v489
  %v492 = vmul.f32 %v470, %v490
  %v493 = vmul.f32 %v471, %v490
  %v494 = vmul.f32 %v472, %v490
  %v495 = vmul.f32 %v473, %v490
  %v496 = vmul.f32 %v474, %v490
  %v497 = vmul.f32 %v475, %v490
  %v498 = vmul.f32 %v476, %v490
  %v499 = vmul.f32 %v477, %v490
  %v500 = vmul.f32 %v478, %v490
  %v501 = vmul.f32 %v479, %v490
  %v502 = vmul.f32 %v480, %v490
  %v503 = vmul.f32 %v481, %v490
  %v504 = vmul.f32 %v482, %v490
  %v505 = vmul.f32 %v483, %v490
  %v506 = vmul.f32 %v484, %v490
  %v507 = vmul.f32 %v485, %v490
  %v508 = vadd.f32 %v453, %v492
  %v509 = vadd.f32 %v454, %v493
  %v510 = vadd.f32 %v455, %v494
  %v511 = vadd.f32 %v456, %v495
  %v512 = vadd.f32 %v457, %v496
  %v513 = vadd.f32 %v458, %v497
  %v514 = vadd.f32 %v459, %v498
  %v515 = vadd.f32 %v460, %v499
  %v516 = vadd.f32 %v461, %v500
  %v517 = vadd.f32 %v462, %v501
  %v518 = vadd.f32 %v463, %v502
  %v519 = vadd.f32 %v464, %v503
  %v520 = vadd.f32 %v465, %v504
  %v521 = vadd.f32 %v466, %v505
  %v522 = vadd.f32 %v467, %v506
  %v523 = vadd.f32 %v468, %v507
  %vm524 = vcmask 130048
  %525 = vst.msk [vmem:[%s3] sm:$0xff] %vm524, %v508
  %526 = vst.msk [vmem:[%s3 + $0x8] sm:$0xff] %vm524, %v509
  %527 = vst.msk [vmem:[%s3 + $0x10] sm:$0xff] %vm524, %v510
  %528 = vst.msk [vmem:[%s3 + $0x18] sm:$0xff] %vm524, %v511
  %529 = vst.msk [vmem:[%s3 + $0x20] sm:$0xff] %vm524, %v512
  %530 = vst.msk [vmem:[%s3 + $0x28] sm:$0xff] %vm524, %v513
  %531 = vst.msk [vmem:[%s3 + $0x30] sm:$0xff] %vm524, %v514
  %532 = vst.msk [vmem:[%s3 + $0x38] sm:$0xff] %vm524, %v515
  %533 = vst.msk [vmem:[%s3 + $0x40] sm:$0xff] %vm524, %v516
  %534 = vst.msk [vmem:[%s3 + $0x48] sm:$0xff] %vm524, %v517
  %535 = vst.msk [vmem:[%s3 + $0x50] sm:$0xff] %vm524, %v518
  %536 = vst.msk [vmem:[%s3 + $0x58] sm:$0xff] %vm524, %v519
  %537 = vst.msk [vmem:[%s3 + $0x60] sm:$0xff] %vm524, %v520
  %538 = vst.msk [vmem:[%s3 + $0x68] sm:$0xff] %vm524, %v521
  %539 = vst.msk [vmem:[%s3 + $0x70] sm:$0xff] %vm524, %v522
  %540 = vst.msk [vmem:[%s3 + $0x78] sm:$0xff] %vm524, %v523
  // Predicated region
  $region14: #{_lambda_.16} parent=0 // pred_check
    _
  $region15: #{_lambda_.16} parent=0 // pred_check_branch
    %542 = sbr.rel (0) target = $region17
  $region16: #{_lambda_.16} parent=0 // pred_region
    _
  $region17: #{_lambda_.16} parent=0 // pred_fallthru
    _
  // Predicated region
  $region18: #{_lambda_.16} parent=0 // pred_check
    _
  $region19: #{_lambda_.16} parent=0 // pred_check_branch
    %544 = sbr.rel (0) target = $region21
  $region20: #{_lambda_.16} parent=0 // pred_region
    _
  $region21: #{_lambda_.16} parent=0 // pred_fallthru
    _

// kernel: _lambda_.19
$region0: #{_lambda_.19}
  #allocation0 [shape = 'u32[]', space=smem, size = 0x4, offset = 0x4, fixed_abs, tag = 'smem constant byte address 0x4 - core index']
  #allocation1 [shape = 'u32[144,128]{1,0:T(1,128)}', space=vmem, size = 0x12000, scoped, tag = 'internal scratch']
  %s0 = inlined_call_operand.vmem [shape: f32[128,24], index: 0, kind: input, shape index: {}]
  %s1 = inlined_call_operand.vmem [shape: f32[1,24], index: 1, kind: input, shape index: {}]
  %s2 = inlined_call_operand.vmem [shape: f32[1,24], index: 2, kind: input, shape index: {}]
  %s3 = inlined_call_operand.vmem [shape: f32[128,24], index: 3, kind: output, shape index: {}]
  %s4 = sld [smem:[#allocation0]]
  $region22: #{_lambda_.19} parent=0
    _
  %s6 = ssub.s32 1, %s4
  %s7 = scalar_select 0, %s6, %s4
  // Predicated region
  $region2: #{_lambda_.19} parent=0 // pred_check
    _
  $region3: #{_lambda_.19} parent=0 // pred_check_branch
    %9 = sbr.rel (0) target = $region5
  $region4: #{_lambda_.19} parent=0 // pred_region
    _
  $region5: #{_lambda_.19} parent=0 // pred_fallthru
    _
  // Predicated region
  $region6: #{_lambda_.19} parent=0 // pred_check
    _
  $region7: #{_lambda_.19} parent=0 // pred_check_branch
    %11 = sbr.rel (0) target = $region9
  $region8: #{_lambda_.19} parent=0 // pred_region
    _
  $region9: #{_lambda_.19} parent=0 // pred_fallthru
    _
  // Predicated region
  $region10: #{_lambda_.19} parent=0 // pred_check
    _
  $region11: #{_lambda_.19} parent=0 // pred_check_branch
    %13 = sbr.rel (0) target = $region13
  $region12: #{_lambda_.19} parent=0 // pred_region
    _
  $region13: #{_lambda_.19} parent=0 // pred_fallthru
    _
  %v14 = vld [vmem:[%s0] sm:$0xff]
  %v15 = vld [vmem:[%s0 + $0x8] sm:$0xff]
  %v16 = vld [vmem:[%s0 + $0x10] sm:$0xff]
  %v17 = vld [vmem:[%s0 + $0x18] sm:$0xff]
  %v18 = vld [vmem:[%s0 + $0x20] sm:$0xff]
  %v19 = vld [vmem:[%s0 + $0x28] sm:$0xff]
  %v20 = vld [vmem:[%s0 + $0x30] sm:$0xff]
  %v21 = vld [vmem:[%s0 + $0x38] sm:$0xff]
  %v22 = vld [vmem:[%s0 + $0x40] sm:$0xff]
  %v23 = vld [vmem:[%s0 + $0x48] sm:$0xff]
  %v24 = vld [vmem:[%s0 + $0x50] sm:$0xff]
  %v25 = vld [vmem:[%s0 + $0x58] sm:$0xff]
  %v26 = vld [vmem:[%s0 + $0x60] sm:$0xff]
  %v27 = vld [vmem:[%s0 + $0x68] sm:$0xff]
  %v28 = vld [vmem:[%s0 + $0x70] sm:$0xff]
  %v29 = vld [vmem:[%s0 + $0x78] sm:$0xff]
  %v30 = vld [vmem:[%s1] sm:$0x1]
  %v32 = vlaneseq
  %v33 = vshrl.u32 %v32, 7
  %v34 = vsub.s32 0, %v33
  %v35 = vrot.slane %v30, %v34
  %v37 = vmul.f32 %v14, %v35
  %v38 = vmul.f32 %v15, %v35
  %v39 = vmul.f32 %v16, %v35
  %v40 = vmul.f32 %v17, %v35
  %v41 = vmul.f32 %v18, %v35
  %v42 = vmul.f32 %v19, %v35
  %v43 = vmul.f32 %v20, %v35
  %v44 = vmul.f32 %v21, %v35
  %v45 = vmul.f32 %v22, %v35
  %v46 = vmul.f32 %v23, %v35
  %v47 = vmul.f32 %v24, %v35
  %v48 = vmul.f32 %v25, %v35
  %v49 = vmul.f32 %v26, %v35
  %v50 = vmul.f32 %v27, %v35
  %v51 = vmul.f32 %v28, %v35
  %v52 = vmul.f32 %v29, %v35
  %v53 = vld [vmem:[%s2] sm:$0x1]
  %v55 = vlaneseq
  %v56 = vshrl.u32 %v55, 7
  %v57 = vsub.s32 0, %v56
  %v58 = vrot.slane %v53, %v57
  %v60 = vadd.f32 %v37, %v58
  %v61 = vadd.f32 %v38, %v58
  %v62 = vadd.f32 %v39, %v58
  %v63 = vadd.f32 %v40, %v58
  %v64 = vadd.f32 %v41, %v58
  %v65 = vadd.f32 %v42, %v58
  %v66 = vadd.f32 %v43, %v58
  %v67 = vadd.f32 %v44, %v58
  %v68 = vadd.f32 %v45, %v58
  %v69 = vadd.f32 %v46, %v58
  %v70 = vadd.f32 %v47, %v58
  %v71 = vadd.f32 %v48, %v58
  %v72 = vadd.f32 %v49, %v58
  %v73 = vadd.f32 %v50, %v58
  %v74 = vadd.f32 %v51, %v58
  %v75 = vadd.f32 %v52, %v58
  %vm76 = vcmask 195584
  %77 = vst.msk [vmem:[%s3] sm:$0xff] %vm76, %v60
  %78 = vst.msk [vmem:[%s3 + $0x8] sm:$0xff] %vm76, %v61
  %79 = vst.msk [vmem:[%s3 + $0x10] sm:$0xff] %vm76, %v62
  %80 = vst.msk [vmem:[%s3 + $0x18] sm:$0xff] %vm76, %v63
  %81 = vst.msk [vmem:[%s3 + $0x20] sm:$0xff] %vm76, %v64
  %82 = vst.msk [vmem:[%s3 + $0x28] sm:$0xff] %vm76, %v65
  %83 = vst.msk [vmem:[%s3 + $0x30] sm:$0xff] %vm76, %v66
  %84 = vst.msk [vmem:[%s3 + $0x38] sm:$0xff] %vm76, %v67
  %85 = vst.msk [vmem:[%s3 + $0x40] sm:$0xff] %vm76, %v68
  %86 = vst.msk [vmem:[%s3 + $0x48] sm:$0xff] %vm76, %v69
  %87 = vst.msk [vmem:[%s3 + $0x50] sm:$0xff] %vm76, %v70
  %88 = vst.msk [vmem:[%s3 + $0x58] sm:$0xff] %vm76, %v71
  %89 = vst.msk [vmem:[%s3 + $0x60] sm:$0xff] %vm76, %v72
  %90 = vst.msk [vmem:[%s3 + $0x68] sm:$0xff] %vm76, %v73
  %91 = vst.msk [vmem:[%s3 + $0x70] sm:$0xff] %vm76, %v74
  %92 = vst.msk [vmem:[%s3 + $0x78] sm:$0xff] %vm76, %v75
  // Predicated region
  $region14: #{_lambda_.19} parent=0 // pred_check
    _
  $region15: #{_lambda_.19} parent=0 // pred_check_branch
    %94 = sbr.rel (0) target = $region17
  $region16: #{_lambda_.19} parent=0 // pred_region
    _
  $region17: #{_lambda_.19} parent=0 // pred_fallthru
    _
  // Predicated region
  $region18: #{_lambda_.19} parent=0 // pred_check
    _
  $region19: #{_lambda_.19} parent=0 // pred_check_branch
    %96 = sbr.rel (0) target = $region21
  $region20: #{_lambda_.19} parent=0 // pred_region
    _
  $region21: #{_lambda_.19} parent=0 // pred_fallthru
    _

</llo_original>
